<compile_context>
chip_gen: v5e
topology: v5e:2x2
jax: 0.10.0
libtpu: 0.0.40
codegen_flags: <defaults>
</compile_context>

<pallas_src>
import jax
import jax.numpy as jnp
from jax.experimental import pallas as pl
from jax.experimental.pallas import tpu as pltpu


def _round_up(n, m):
    return ((n + m - 1) // m) * m


def vgg32_kernel(x_ref,
                 w1, b1, w2, b2, w3, b3, w4, b4, w5, b5,
                 weca,
                 wf1, bf1, wf2, bf2, wf3, bf3, wf4, bf4,
                 o_ref):
    f32 = jnp.float32
    bf16 = jnp.bfloat16

    def mm(h, w_ref):
        # MXU matmul: bf16 operands, f32 accumulation.
        return jnp.dot(h.astype(bf16), w_ref[...], preferred_element_type=f32)

    def conv_pool(h, w_ref, b_ref, act):
        # Conv2d(1x1, pad=1) -> act -> MaxPool(2,2) on a 1x1 map:
        #   max(act(Wh + b), act(b)) == act(b + relu(Wh))  for monotone act.
        return act(b_ref[...] + jnp.maximum(mm(h, w_ref), 0.0))

    relu = lambda v: jnp.maximum(v, 0.0)

    h = x_ref[...].astype(f32)
    h = conv_pool(h, w1, b1, jnp.tanh)   # (bt, 64)
    h = conv_pool(h, w2, b2, jnp.tanh)   # (bt, 128)
    h = conv_pool(h, w3, b3, jnp.tanh)   # (bt, 256)
    h = conv_pool(h, w4, b4, jnp.tanh)   # (bt, 512)
    h = conv_pool(h, w5, b5, relu)       # (bt, 1024)  block 5 uses ReLU

    # ECANet: identity avg-pool, center-tap (1024,1024) matmul, sigmoid gate.
    gate = jax.nn.sigmoid(mm(h, weca))
    h = h * gate                         # (bt, 1024)

    # classifier head (Dropout is identity in eval mode)
    h = jnp.maximum(mm(h, wf1) + bf1[...], 0.0)
    h = jnp.tanh(mm(h, wf2) + bf2[...])
    h = jnp.tanh(mm(h, wf3) + bf3[...])  # 125 padded to 128: extra cols tanh(0)=0
    out = mm(h, wf4) + bf4[...]          # zero-padded rows/cols contribute 0

    # x * (1 + log(epoch + 1)) with epoch = 0 is exactly 1.0 -- folded away.
    o_ref[...] = out


def vgg32_forward(x, params, *, batch_tile=128):
    B, cin = x.shape
    num_classes = params["wf4"].shape[1]
    nc_pad = _round_up(num_classes, 128)

    # batch tile: at least a full sublane (8), at most `batch_tile`
    bt = min(batch_tile, _round_up(B, 8))
    Bp = _round_up(B, bt)
    xp = jnp.pad(x.astype(jnp.float32), ((0, Bp - B), (0, 0)))

    bf16 = jnp.bfloat16
    wcast = lambda k: params[k].astype(bf16)

    # pad the 125-wide tail and the num_classes tail to lane-dense 128
    wf3 = jnp.pad(params["wf3"],
                  ((0, 0), (0, 128 - params["wf3"].shape[1]))).astype(bf16)
    bf3 = jnp.pad(params["bf3"], ((0, 0), (0, 128 - params["bf3"].shape[1])))
    wf4 = jnp.pad(params["wf4"],
                  ((0, 128 - params["wf4"].shape[0]),
                   (0, nc_pad - num_classes))).astype(bf16)
    bf4 = jnp.pad(params["bf4"], ((0, 0), (0, nc_pad - num_classes)))

    args = (xp,
            wcast("w1"), params["b1"], wcast("w2"), params["b2"],
            wcast("w3"), params["b3"], wcast("w4"), params["b4"],
            wcast("w5"), params["b5"],
            wcast("weca"),
            wcast("wf1"), params["bf1"], wcast("wf2"), params["bf2"],
            wf3, bf3, wf4, bf4)

    # weights/biases: full-array blocks with a constant index_map so they are
    # DMA'd once and stay VMEM-resident across all batch grid steps.
    def const_spec(a):
        return pl.BlockSpec(a.shape, lambda i: (0, 0))

    in_specs = ([pl.BlockSpec((bt, cin), lambda i: (i, 0))]
                + [const_spec(a) for a in args[1:]])
    out_spec = pl.BlockSpec((bt, nc_pad), lambda i: (i, 0))

    out = pl.pallas_call(
        vgg32_kernel,
        out_shape=jax.ShapeDtypeStruct((Bp, nc_pad), jnp.float32),
        grid=(Bp // bt,),
        in_specs=in_specs,
        out_specs=out_spec,
        compiler_params=pltpu.CompilerParams(
            dimension_semantics=("parallel",),
            vmem_limit_bytes=32 * 1024 * 1024),
    )(*args)
    return out[:B, :num_classes]


def init_params(key, input_dim, num_classes=32):
    """Deterministic synthetic parameters with the module's shapes (f32).

    Conv2d(in, out, 1x1) -> dense (in, out) weight + (1, out) bias.
    ECANet Conv1d(1024, 1024, k=5) -> only the center tap matters -> (1024, 1024).
    """
    feat_dims = [(input_dim, 64), (64, 128), (128, 256), (256, 512), (512, 1024)]
    fc_dims = [(1024, 512), (512, 256), (256, 125), (125, num_classes)]
    params = {}
    keys = jax.random.split(key, len(feat_dims) + 1 + len(fc_dims))

    for i, (cin, cout) in enumerate(feat_dims):
        kw, kb = jax.random.split(keys[i])
        scale = 1.0 / jnp.sqrt(jnp.float32(cin))
        params[f"w{i+1}"] = jax.random.normal(kw, (cin, cout), jnp.float32) * scale
        params[f"b{i+1}"] = jax.random.normal(kb, (1, cout), jnp.float32) * 0.1

    # ECA center-tap weight (in, out) so that out = y @ weca
    params["weca"] = (jax.random.normal(keys[len(feat_dims)], (1024, 1024),
                                        jnp.float32) / jnp.sqrt(1024.0))

    for j, (cin, cout) in enumerate(fc_dims):
        kw, kb = jax.random.split(keys[len(feat_dims) + 1 + j])
        scale = 1.0 / jnp.sqrt(jnp.float32(cin))
        params[f"wf{j+1}"] = jax.random.normal(kw, (cin, cout), jnp.float32) * scale
        params[f"bf{j+1}"] = jax.random.normal(kb, (1, cout), jnp.float32) * 0.1

    return params


if __name__ == "__main__":
    key = jax.random.PRNGKey(0)
    kx, kp = jax.random.split(key)

    B, input_dim, num_classes = 2, 4, 32
    x = jax.random.normal(kx, (B, input_dim), jnp.float32)
    params = init_params(kp, input_dim, num_classes)

    out = vgg32_forward(x, params)
    out = jax.block_until_ready(out)
    assert out.shape == (B, num_classes) and out.dtype == jnp.float32
    assert bool(jnp.all(jnp.isfinite(out)))
    # TODO(synk): Dropout layers are treated as eval-mode identity (no RNG mask);
    # epoch-dependent output scale is fixed at epoch=0 (scale == 1.0).
    print("KERNEL_OK")
</pallas_src>

<mosaic_0001>
module attributes {stable_mosaic.version = 11 : i64} {
  func.func @vgg32_kernel(%arg0: i32, %arg1: memref<8x4xf32, #tpu.memory_space<vmem>>, %arg2: memref<4x64xbf16, #tpu.memory_space<vmem>>, %arg3: memref<1x64xf32, #tpu.memory_space<vmem>>, %arg4: memref<64x128xbf16, #tpu.memory_space<vmem>>, %arg5: memref<1x128xf32, #tpu.memory_space<vmem>>, %arg6: memref<128x256xbf16, #tpu.memory_space<vmem>>, %arg7: memref<1x256xf32, #tpu.memory_space<vmem>>, %arg8: memref<256x512xbf16, #tpu.memory_space<vmem>>, %arg9: memref<1x512xf32, #tpu.memory_space<vmem>>, %arg10: memref<512x1024xbf16, #tpu.memory_space<vmem>>, %arg11: memref<1x1024xf32, #tpu.memory_space<vmem>>, %arg12: memref<1024x1024xbf16, #tpu.memory_space<vmem>>, %arg13: memref<1024x512xbf16, #tpu.memory_space<vmem>>, %arg14: memref<1x512xf32, #tpu.memory_space<vmem>>, %arg15: memref<512x256xbf16, #tpu.memory_space<vmem>>, %arg16: memref<1x256xf32, #tpu.memory_space<vmem>>, %arg17: memref<256x128xbf16, #tpu.memory_space<vmem>>, %arg18: memref<1x128xf32, #tpu.memory_space<vmem>>, %arg19: memref<128x128xbf16, #tpu.memory_space<vmem>>, %arg20: memref<1x128xf32, #tpu.memory_space<vmem>>, %arg21: memref<8x128xf32, #tpu.memory_space<vmem>>) attributes {dimension_semantics = [#tpu.dimension_semantics<parallel>], iteration_bounds = array<i64: 1>, scalar_prefetch = 0 : i64, scratch_operands = 0 : i64, tpu.core_type = #tpu.core_type<tc>, window_params = [{transform_indices = @transform_0, window_bounds = array<i64: 8, 4>}, {pipeline_mode = #tpu.pipeline_mode<synchronous>, transform_indices = @transform_1, window_bounds = array<i64: 4, 64>}, {pipeline_mode = #tpu.pipeline_mode<synchronous>, transform_indices = @transform_2, window_bounds = array<i64: 1, 64>}, {pipeline_mode = #tpu.pipeline_mode<synchronous>, transform_indices = @transform_3, window_bounds = array<i64: 64, 128>}, {pipeline_mode = #tpu.pipeline_mode<synchronous>, transform_indices = @transform_4, window_bounds = array<i64: 1, 128>}, {pipeline_mode = #tpu.pipeline_mode<synchronous>, transform_indices = @transform_5, window_bounds = array<i64: 128, 256>}, {pipeline_mode = #tpu.pipeline_mode<synchronous>, transform_indices = @transform_6, window_bounds = array<i64: 1, 256>}, {pipeline_mode = #tpu.pipeline_mode<synchronous>, transform_indices = @transform_7, window_bounds = array<i64: 256, 512>}, {pipeline_mode = #tpu.pipeline_mode<synchronous>, transform_indices = @transform_8, window_bounds = array<i64: 1, 512>}, {pipeline_mode = #tpu.pipeline_mode<synchronous>, transform_indices = @transform_9, window_bounds = array<i64: 512, 1024>}, {pipeline_mode = #tpu.pipeline_mode<synchronous>, transform_indices = @transform_10, window_bounds = array<i64: 1, 1024>}, {pipeline_mode = #tpu.pipeline_mode<synchronous>, transform_indices = @transform_11, window_bounds = array<i64: 1024, 1024>}, {pipeline_mode = #tpu.pipeline_mode<synchronous>, transform_indices = @transform_12, window_bounds = array<i64: 1024, 512>}, {pipeline_mode = #tpu.pipeline_mode<synchronous>, transform_indices = @transform_13, window_bounds = array<i64: 1, 512>}, {pipeline_mode = #tpu.pipeline_mode<synchronous>, transform_indices = @transform_14, window_bounds = array<i64: 512, 256>}, {pipeline_mode = #tpu.pipeline_mode<synchronous>, transform_indices = @transform_15, window_bounds = array<i64: 1, 256>}, {pipeline_mode = #tpu.pipeline_mode<synchronous>, transform_indices = @transform_16, window_bounds = array<i64: 256, 128>}, {pipeline_mode = #tpu.pipeline_mode<synchronous>, transform_indices = @transform_17, window_bounds = array<i64: 1, 128>}, {pipeline_mode = #tpu.pipeline_mode<synchronous>, transform_indices = @transform_18, window_bounds = array<i64: 128, 128>}, {pipeline_mode = #tpu.pipeline_mode<synchronous>, transform_indices = @transform_19, window_bounds = array<i64: 1, 128>}, {transform_indices = @transform_20, window_bounds = array<i64: 8, 128>}]} {
    %c0 = arith.constant 0 : index
    %c0_0 = arith.constant 0 : index
    %0 = vector.load %arg1[%c0, %c0_0] : memref<8x4xf32, #tpu.memory_space<vmem>>, vector<8x4xf32>
    %c0_1 = arith.constant 0 : index
    %c0_2 = arith.constant 0 : index
    %1 = vector.load %arg3[%c0_1, %c0_2] : memref<1x64xf32, #tpu.memory_space<vmem>>, vector<1x64xf32>
    %2 = arith.truncf %0 : vector<8x4xf32> to vector<8x4xbf16>
    %c0_3 = arith.constant 0 : index
    %c0_4 = arith.constant 0 : index
    %3 = vector.load %arg2[%c0_3, %c0_4] : memref<4x64xbf16, #tpu.memory_space<vmem>>, vector<4x64xbf16>
    %cst = arith.constant dense<0.000000e+00> : vector<8x64xf32>
    %4 = tpu.matmul %2, %3, %cst {dimension_numbers = #tpu.dot_dimension_numbers<[1], [0], [0], [1], [0, 0, 1, 1], [], []>} : vector<8x4xbf16>, vector<4x64xbf16>, vector<8x64xf32> -> vector<8x64xf32>
    %cst_5 = arith.constant 0.000000e+00 : f32
    %5 = vector.broadcast %cst_5 : f32 to vector<8x64xf32>
    %6 = arith.maximumf %4, %5 : vector<8x64xf32>
    %7 = vector.broadcast %1 : vector<1x64xf32> to vector<8x64xf32>
    %8 = arith.addf %7, %6 : vector<8x64xf32>
    %9 = math.tanh %8 : vector<8x64xf32>
    %c0_6 = arith.constant 0 : index
    %c0_7 = arith.constant 0 : index
    %10 = vector.load %arg5[%c0_6, %c0_7] : memref<1x128xf32, #tpu.memory_space<vmem>>, vector<1x128xf32>
    %11 = arith.truncf %9 : vector<8x64xf32> to vector<8x64xbf16>
    %c0_8 = arith.constant 0 : index
    %c0_9 = arith.constant 0 : index
    %12 = vector.load %arg4[%c0_8, %c0_9] : memref<64x128xbf16, #tpu.memory_space<vmem>>, vector<64x128xbf16>
    %cst_10 = arith.constant dense<0.000000e+00> : vector<8x128xf32>
    %13 = tpu.matmul %11, %12, %cst_10 {dimension_numbers = #tpu.dot_dimension_numbers<[1], [0], [0], [1], [0, 0, 1, 1], [], []>} : vector<8x64xbf16>, vector<64x128xbf16>, vector<8x128xf32> -> vector<8x128xf32>
    %cst_11 = arith.constant 0.000000e+00 : f32
    %14 = vector.broadcast %cst_11 : f32 to vector<8x128xf32>
    %15 = arith.maximumf %13, %14 : vector<8x128xf32>
    %16 = vector.broadcast %10 : vector<1x128xf32> to vector<8x128xf32>
    %17 = arith.addf %16, %15 : vector<8x128xf32>
    %18 = math.tanh %17 : vector<8x128xf32>
    %c0_12 = arith.constant 0 : index
    %c0_13 = arith.constant 0 : index
    %19 = vector.load %arg7[%c0_12, %c0_13] : memref<1x256xf32, #tpu.memory_space<vmem>>, vector<1x256xf32>
    %20 = arith.truncf %18 : vector<8x128xf32> to vector<8x128xbf16>
    %c0_14 = arith.constant 0 : index
    %c0_15 = arith.constant 0 : index
    %21 = vector.load %arg6[%c0_14, %c0_15] : memref<128x256xbf16, #tpu.memory_space<vmem>>, vector<128x256xbf16>
    %cst_16 = arith.constant dense<0.000000e+00> : vector<8x256xf32>
    %22 = tpu.matmul %20, %21, %cst_16 {dimension_numbers = #tpu.dot_dimension_numbers<[1], [0], [0], [1], [0, 0, 1, 1], [], []>} : vector<8x128xbf16>, vector<128x256xbf16>, vector<8x256xf32> -> vector<8x256xf32>
    %cst_17 = arith.constant 0.000000e+00 : f32
    %23 = vector.broadcast %cst_17 : f32 to vector<8x256xf32>
    %24 = arith.maximumf %22, %23 : vector<8x256xf32>
    %25 = vector.broadcast %19 : vector<1x256xf32> to vector<8x256xf32>
    %26 = arith.addf %25, %24 : vector<8x256xf32>
    %27 = math.tanh %26 : vector<8x256xf32>
    %c0_18 = arith.constant 0 : index
    %c0_19 = arith.constant 0 : index
    %28 = vector.load %arg9[%c0_18, %c0_19] : memref<1x512xf32, #tpu.memory_space<vmem>>, vector<1x512xf32>
    %29 = arith.truncf %27 : vector<8x256xf32> to vector<8x256xbf16>
    %c0_20 = arith.constant 0 : index
    %c0_21 = arith.constant 0 : index
    %30 = vector.load %arg8[%c0_20, %c0_21] : memref<256x512xbf16, #tpu.memory_space<vmem>>, vector<256x512xbf16>
    %cst_22 = arith.constant dense<0.000000e+00> : vector<8x512xf32>
    %31 = tpu.matmul %29, %30, %cst_22 {dimension_numbers = #tpu.dot_dimension_numbers<[1], [0], [0], [1], [0, 0, 1, 1], [], []>} : vector<8x256xbf16>, vector<256x512xbf16>, vector<8x512xf32> -> vector<8x512xf32>
    %cst_23 = arith.constant 0.000000e+00 : f32
    %32 = vector.broadcast %cst_23 : f32 to vector<8x512xf32>
    %33 = arith.maximumf %31, %32 : vector<8x512xf32>
    %34 = vector.broadcast %28 : vector<1x512xf32> to vector<8x512xf32>
    %35 = arith.addf %34, %33 : vector<8x512xf32>
    %36 = math.tanh %35 : vector<8x512xf32>
    %c0_24 = arith.constant 0 : index
    %c0_25 = arith.constant 0 : index
    %37 = vector.load %arg11[%c0_24, %c0_25] : memref<1x1024xf32, #tpu.memory_space<vmem>>, vector<1x1024xf32>
    %38 = arith.truncf %36 : vector<8x512xf32> to vector<8x512xbf16>
    %c0_26 = arith.constant 0 : index
    %c0_27 = arith.constant 0 : index
    %39 = vector.load %arg10[%c0_26, %c0_27] : memref<512x1024xbf16, #tpu.memory_space<vmem>>, vector<512x1024xbf16>
    %cst_28 = arith.constant dense<0.000000e+00> : vector<8x1024xf32>
    %40 = tpu.matmul %38, %39, %cst_28 {dimension_numbers = #tpu.dot_dimension_numbers<[1], [0], [0], [1], [0, 0, 1, 1], [], []>} : vector<8x512xbf16>, vector<512x1024xbf16>, vector<8x1024xf32> -> vector<8x1024xf32>
    %cst_29 = arith.constant 0.000000e+00 : f32
    %41 = vector.broadcast %cst_29 : f32 to vector<8x1024xf32>
    %42 = arith.maximumf %40, %41 : vector<8x1024xf32>
    %43 = vector.broadcast %37 : vector<1x1024xf32> to vector<8x1024xf32>
    %44 = arith.addf %43, %42 : vector<8x1024xf32>
    %cst_30 = arith.constant 0.000000e+00 : f32
    %45 = vector.broadcast %cst_30 : f32 to vector<8x1024xf32>
    %46 = arith.maximumf %44, %45 : vector<8x1024xf32>
    %47 = arith.truncf %46 : vector<8x1024xf32> to vector<8x1024xbf16>
    %c0_31 = arith.constant 0 : index
    %c0_32 = arith.constant 0 : index
    %48 = vector.load %arg12[%c0_31, %c0_32] : memref<1024x1024xbf16, #tpu.memory_space<vmem>>, vector<1024x1024xbf16>
    %cst_33 = arith.constant dense<0.000000e+00> : vector<8x1024xf32>
    %49 = tpu.matmul %47, %48, %cst_33 {dimension_numbers = #tpu.dot_dimension_numbers<[1], [0], [0], [1], [0, 0, 1, 1], [], []>} : vector<8x1024xbf16>, vector<1024x1024xbf16>, vector<8x1024xf32> -> vector<8x1024xf32>
    %50 = arith.negf %49 : vector<8x1024xf32>
    %51 = math.exp %50 : vector<8x1024xf32>
    %cst_34 = arith.constant 1.000000e+00 : f32
    %52 = vector.broadcast %cst_34 : f32 to vector<8x1024xf32>
    %53 = arith.addf %52, %51 : vector<8x1024xf32>
    %54 = arith.divf %52, %53 : vector<8x1024xf32>
    %55 = arith.mulf %46, %54 : vector<8x1024xf32>
    %56 = arith.truncf %55 : vector<8x1024xf32> to vector<8x1024xbf16>
    %c0_35 = arith.constant 0 : index
    %c0_36 = arith.constant 0 : index
    %57 = vector.load %arg13[%c0_35, %c0_36] : memref<1024x512xbf16, #tpu.memory_space<vmem>>, vector<1024x512xbf16>
    %cst_37 = arith.constant dense<0.000000e+00> : vector<8x512xf32>
    %58 = tpu.matmul %56, %57, %cst_37 {dimension_numbers = #tpu.dot_dimension_numbers<[1], [0], [0], [1], [0, 0, 1, 1], [], []>} : vector<8x1024xbf16>, vector<1024x512xbf16>, vector<8x512xf32> -> vector<8x512xf32>
    %c0_38 = arith.constant 0 : index
    %c0_39 = arith.constant 0 : index
    %59 = vector.load %arg14[%c0_38, %c0_39] : memref<1x512xf32, #tpu.memory_space<vmem>>, vector<1x512xf32>
    %60 = vector.broadcast %59 : vector<1x512xf32> to vector<8x512xf32>
    %61 = arith.addf %58, %60 : vector<8x512xf32>
    %cst_40 = arith.constant 0.000000e+00 : f32
    %62 = vector.broadcast %cst_40 : f32 to vector<8x512xf32>
    %63 = arith.maximumf %61, %62 : vector<8x512xf32>
    %64 = arith.truncf %63 : vector<8x512xf32> to vector<8x512xbf16>
    %c0_41 = arith.constant 0 : index
    %c0_42 = arith.constant 0 : index
    %65 = vector.load %arg15[%c0_41, %c0_42] : memref<512x256xbf16, #tpu.memory_space<vmem>>, vector<512x256xbf16>
    %cst_43 = arith.constant dense<0.000000e+00> : vector<8x256xf32>
    %66 = tpu.matmul %64, %65, %cst_43 {dimension_numbers = #tpu.dot_dimension_numbers<[1], [0], [0], [1], [0, 0, 1, 1], [], []>} : vector<8x512xbf16>, vector<512x256xbf16>, vector<8x256xf32> -> vector<8x256xf32>
    %c0_44 = arith.constant 0 : index
    %c0_45 = arith.constant 0 : index
    %67 = vector.load %arg16[%c0_44, %c0_45] : memref<1x256xf32, #tpu.memory_space<vmem>>, vector<1x256xf32>
    %68 = vector.broadcast %67 : vector<1x256xf32> to vector<8x256xf32>
    %69 = arith.addf %66, %68 : vector<8x256xf32>
    %70 = math.tanh %69 : vector<8x256xf32>
    %71 = arith.truncf %70 : vector<8x256xf32> to vector<8x256xbf16>
    %c0_46 = arith.constant 0 : index
    %c0_47 = arith.constant 0 : index
    %72 = vector.load %arg17[%c0_46, %c0_47] : memref<256x128xbf16, #tpu.memory_space<vmem>>, vector<256x128xbf16>
    %cst_48 = arith.constant dense<0.000000e+00> : vector<8x128xf32>
    %73 = tpu.matmul %71, %72, %cst_48 {dimension_numbers = #tpu.dot_dimension_numbers<[1], [0], [0], [1], [0, 0, 1, 1], [], []>} : vector<8x256xbf16>, vector<256x128xbf16>, vector<8x128xf32> -> vector<8x128xf32>
    %c0_49 = arith.constant 0 : index
    %c0_50 = arith.constant 0 : index
    %74 = vector.load %arg18[%c0_49, %c0_50] : memref<1x128xf32, #tpu.memory_space<vmem>>, vector<1x128xf32>
    %75 = vector.broadcast %74 : vector<1x128xf32> to vector<8x128xf32>
    %76 = arith.addf %73, %75 : vector<8x128xf32>
    %77 = math.tanh %76 : vector<8x128xf32>
    %78 = arith.truncf %77 : vector<8x128xf32> to vector<8x128xbf16>
    %c0_51 = arith.constant 0 : index
    %c0_52 = arith.constant 0 : index
    %79 = vector.load %arg19[%c0_51, %c0_52] : memref<128x128xbf16, #tpu.memory_space<vmem>>, vector<128x128xbf16>
    %cst_53 = arith.constant dense<0.000000e+00> : vector<8x128xf32>
    %80 = tpu.matmul %78, %79, %cst_53 {dimension_numbers = #tpu.dot_dimension_numbers<[1], [0], [0], [1], [0, 0, 1, 1], [], []>} : vector<8x128xbf16>, vector<128x128xbf16>, vector<8x128xf32> -> vector<8x128xf32>
    %c0_54 = arith.constant 0 : index
    %c0_55 = arith.constant 0 : index
    %81 = vector.load %arg20[%c0_54, %c0_55] : memref<1x128xf32, #tpu.memory_space<vmem>>, vector<1x128xf32>
    %82 = vector.broadcast %81 : vector<1x128xf32> to vector<8x128xf32>
    %83 = arith.addf %80, %82 : vector<8x128xf32>
    %c0_56 = arith.constant 0 : index
    %c0_57 = arith.constant 0 : index
    %84 = vector.load %arg21[%c0_56, %c0_57] : memref<8x128xf32, #tpu.memory_space<vmem>>, vector<8x128xf32>
    tpu.vector_store %arg21[%c0_56, %c0_57], %83 {strides = array<i32>} : memref<8x128xf32, #tpu.memory_space<vmem>>, vector<8x128xf32>,
    return
  }
  func.func @transform_0(%arg0: i32) -> (i32, i32) {
    %c0_i32 = arith.constant 0 : i32
    %c0_i32_0 = arith.constant 0 : i32
    return %arg0, %c0_i32 : i32, i32
  }
  func.func @transform_1(%arg0: i32) -> (i32, i32) {
    %c0_i32 = arith.constant 0 : i32
    %c0_i32_0 = arith.constant 0 : i32
    %c0_i32_1 = arith.constant 0 : i32
    return %c0_i32, %c0_i32_0 : i32, i32
  }
  func.func @transform_2(%arg0: i32) -> (i32, i32) {
    %c0_i32 = arith.constant 0 : i32
    %c0_i32_0 = arith.constant 0 : i32
    %c0_i32_1 = arith.constant 0 : i32
    return %c0_i32, %c0_i32_0 : i32, i32
  }
  func.func @transform_3(%arg0: i32) -> (i32, i32) {
    %c0_i32 = arith.constant 0 : i32
    %c0_i32_0 = arith.constant 0 : i32
    %c0_i32_1 = arith.constant 0 : i32
    return %c0_i32, %c0_i32_0 : i32, i32
  }
  func.func @transform_4(%arg0: i32) -> (i32, i32) {
    %c0_i32 = arith.constant 0 : i32
    %c0_i32_0 = arith.constant 0 : i32
    %c0_i32_1 = arith.constant 0 : i32
    return %c0_i32, %c0_i32_0 : i32, i32
  }
  func.func @transform_5(%arg0: i32) -> (i32, i32) {
    %c0_i32 = arith.constant 0 : i32
    %c0_i32_0 = arith.constant 0 : i32
    %c0_i32_1 = arith.constant 0 : i32
    return %c0_i32, %c0_i32_0 : i32, i32
  }
  func.func @transform_6(%arg0: i32) -> (i32, i32) {
    %c0_i32 = arith.constant 0 : i32
    %c0_i32_0 = arith.constant 0 : i32
    %c0_i32_1 = arith.constant 0 : i32
    return %c0_i32, %c0_i32_0 : i32, i32
  }
  func.func @transform_7(%arg0: i32) -> (i32, i32) {
    %c0_i32 = arith.constant 0 : i32
    %c0_i32_0 = arith.constant 0 : i32
    %c0_i32_1 = arith.constant 0 : i32
    return %c0_i32, %c0_i32_0 : i32, i32
  }
  func.func @transform_8(%arg0: i32) -> (i32, i32) {
    %c0_i32 = arith.constant 0 : i32
    %c0_i32_0 = arith.constant 0 : i32
    %c0_i32_1 = arith.constant 0 : i32
    return %c0_i32, %c0_i32_0 : i32, i32
  }
  func.func @transform_9(%arg0: i32) -> (i32, i32) {
    %c0_i32 = arith.constant 0 : i32
    %c0_i32_0 = arith.constant 0 : i32
    %c0_i32_1 = arith.constant 0 : i32
    return %c0_i32, %c0_i32_0 : i32, i32
  }
  func.func @transform_10(%arg0: i32) -> (i32, i32) {
    %c0_i32 = arith.constant 0 : i32
    %c0_i32_0 = arith.constant 0 : i32
    %c0_i32_1 = arith.constant 0 : i32
    return %c0_i32, %c0_i32_0 : i32, i32
  }
  func.func @transform_11(%arg0: i32) -> (i32, i32) {
    %c0_i32 = arith.constant 0 : i32
    %c0_i32_0 = arith.constant 0 : i32
    %c0_i32_1 = arith.constant 0 : i32
    return %c0_i32, %c0_i32_0 : i32, i32
  }
  func.func @transform_12(%arg0: i32) -> (i32, i32) {
    %c0_i32 = arith.constant 0 : i32
    %c0_i32_0 = arith.constant 0 : i32
    %c0_i32_1 = arith.constant 0 : i32
    return %c0_i32, %c0_i32_0 : i32, i32
  }
  func.func @transform_13(%arg0: i32) -> (i32, i32) {
    %c0_i32 = arith.constant 0 : i32
    %c0_i32_0 = arith.constant 0 : i32
    %c0_i32_1 = arith.constant 0 : i32
    return %c0_i32, %c0_i32_0 : i32, i32
  }
  func.func @transform_14(%arg0: i32) -> (i32, i32) {
    %c0_i32 = arith.constant 0 : i32
    %c0_i32_0 = arith.constant 0 : i32
    %c0_i32_1 = arith.constant 0 : i32
    return %c0_i32, %c0_i32_0 : i32, i32
  }
  func.func @transform_15(%arg0: i32) -> (i32, i32) {
    %c0_i32 = arith.constant 0 : i32
    %c0_i32_0 = arith.constant 0 : i32
    %c0_i32_1 = arith.constant 0 : i32
    return %c0_i32, %c0_i32_0 : i32, i32
  }
  func.func @transform_16(%arg0: i32) -> (i32, i32) {
    %c0_i32 = arith.constant 0 : i32
    %c0_i32_0 = arith.constant 0 : i32
    %c0_i32_1 = arith.constant 0 : i32
    return %c0_i32, %c0_i32_0 : i32, i32
  }
  func.func @transform_17(%arg0: i32) -> (i32, i32) {
    %c0_i32 = arith.constant 0 : i32
    %c0_i32_0 = arith.constant 0 : i32
    %c0_i32_1 = arith.constant 0 : i32
    return %c0_i32, %c0_i32_0 : i32, i32
  }
  func.func @transform_18(%arg0: i32) -> (i32, i32) {
    %c0_i32 = arith.constant 0 : i32
    %c0_i32_0 = arith.constant 0 : i32
    %c0_i32_1 = arith.constant 0 : i32
    return %c0_i32, %c0_i32_0 : i32, i32
  }
  func.func @transform_19(%arg0: i32) -> (i32, i32) {
    %c0_i32 = arith.constant 0 : i32
    %c0_i32_0 = arith.constant 0 : i32
    %c0_i32_1 = arith.constant 0 : i32
    return %c0_i32, %c0_i32_0 : i32, i32
  }
  func.func @transform_20(%arg0: i32) -> (i32, i32) {
    %c0_i32 = arith.constant 0 : i32
    %c0_i32_0 = arith.constant 0 : i32
    return %arg0, %c0_i32 : i32, i32
  }
}

</mosaic_0001>

<llo_original>
// kernel: tpu_custom_call.1
$region0: #{tpu_custom_call.1}
  #allocation0 [shape = 'u32[]', space=smem, size = 0x4, offset = 0x4, fixed_abs, tag = 'smem constant byte address 0x4 - core index']
  #allocation1 [shape = 'u32[72,128]{1,0:T(1,128)}', space=vmem, size = 0x9000, scoped, tag = 'internal scratch']
  %s0 = inlined_call_operand.vmem [shape: f32[8,4], index: 0, kind: input, shape index: {}]
  %s1 = inlined_call_operand.hbm [shape: bf16[4,64], index: 1, kind: input, shape index: {}]
  %s2 = inlined_call_operand.hbm [shape: f32[1,64], index: 2, kind: input, shape index: {}]
  %s3 = inlined_call_operand.hbm [shape: bf16[64,128], index: 3, kind: input, shape index: {}]
  %s4 = inlined_call_operand.hbm [shape: f32[1,128], index: 4, kind: input, shape index: {}]
  %s5 = inlined_call_operand.hbm [shape: bf16[128,256], index: 5, kind: input, shape index: {}]
  %s6 = inlined_call_operand.hbm [shape: f32[1,256], index: 6, kind: input, shape index: {}]
  %s7 = inlined_call_operand.hbm [shape: bf16[256,512], index: 7, kind: input, shape index: {}]
  %s8 = inlined_call_operand.hbm [shape: f32[1,512], index: 8, kind: input, shape index: {}]
  %s9 = inlined_call_operand.hbm [shape: bf16[512,1024], index: 9, kind: input, shape index: {}]
  %s10 = inlined_call_operand.hbm [shape: f32[1,1024], index: 10, kind: input, shape index: {}]
  %s11 = inlined_call_operand.hbm [shape: bf16[1024,1024], index: 11, kind: input, shape index: {}]
  %s12 = inlined_call_operand.hbm [shape: bf16[1024,512], index: 12, kind: input, shape index: {}]
  %s13 = inlined_call_operand.hbm [shape: f32[1,512], index: 13, kind: input, shape index: {}]
  %s14 = inlined_call_operand.hbm [shape: bf16[512,256], index: 14, kind: input, shape index: {}]
  %s15 = inlined_call_operand.hbm [shape: f32[1,256], index: 15, kind: input, shape index: {}]
  %s16 = inlined_call_operand.hbm [shape: bf16[256,128], index: 16, kind: input, shape index: {}]
  %s17 = inlined_call_operand.hbm [shape: f32[1,128], index: 17, kind: input, shape index: {}]
  %s18 = inlined_call_operand.hbm [shape: bf16[128,128], index: 18, kind: input, shape index: {}]
  %s19 = inlined_call_operand.hbm [shape: f32[1,128], index: 19, kind: input, shape index: {}]
  %s20 = inlined_call_operand.hbm [shape: f32[8,128], index: 20, kind: output, shape index: {}]
  %s21 = sld [smem:[#allocation0]]
  $region166: #{tpu_custom_call.1} parent=0
    _
  %s23 = ssub.s32 1, %s21
  %s24 = scalar_select 0, %s23, %s21
  $region1: #{tpu_custom_call.1} parent=0
    #allocation2 [shape = 'u8[1024]{0}', space=vmem, size = 0x400, scoped, tag = 'input window, operand 1, single buffered']
    #allocation3 [shape = 's32[1]{0}', space=sflag, size = 0x4, scoped, tag = 'scoped memory for tpu_custom_call.1']
    #allocation4 [shape = 's32[1]{0}', space=sflag, size = 0x4, scoped, tag = 'scoped memory for tpu_custom_call.1']
    #allocation5 [shape = 'u8[512]{0}', space=vmem, size = 0x400, scoped, tag = 'input window, operand 2, single buffered']
    #allocation6 [shape = 's32[1]{0}', space=sflag, size = 0x4, scoped, tag = 'scoped memory for tpu_custom_call.1']
    #allocation7 [shape = 'u8[16384]{0}', space=vmem, size = 0x4000, scoped, tag = 'input window, operand 3, single buffered']
    #allocation8 [shape = 'u8[512]{0}', space=vmem, size = 0x400, scoped, tag = 'input window, operand 4, single buffered']
    #allocation9 [shape = 's32[1]{0}', space=sflag, size = 0x4, scoped, tag = 'scoped memory for tpu_custom_call.1']
    #allocation10 [shape = 'u8[65536]{0}', space=vmem, size = 0x10000, scoped, tag = 'input window, operand 5, single buffered']
    #allocation11 [shape = 'u8[1024]{0}', space=vmem, size = 0x400, scoped, tag = 'input window, operand 6, single buffered']
    #allocation12 [shape = 's32[1]{0}', space=sflag, size = 0x4, scoped, tag = 'scoped memory for tpu_custom_call.1']
    #allocation13 [shape = 'u8[262144]{0}', space=vmem, size = 0x40000, scoped, tag = 'input window, operand 7, single buffered']
    #allocation14 [shape = 'u8[2048]{0}', space=vmem, size = 0x800, scoped, tag = 'input window, operand 8, single buffered']
    #allocation15 [shape = 's32[1]{0}', space=sflag, size = 0x4, scoped, tag = 'scoped memory for tpu_custom_call.1']
    #allocation16 [shape = 'u8[1048576]{0}', space=vmem, size = 0x100000, scoped, tag = 'input window, operand 9, single buffered']
    #allocation17 [shape = 'u8[4096]{0}', space=vmem, size = 0x1000, scoped, tag = 'input window, operand 10, single buffered']
    #allocation18 [shape = 's32[1]{0}', space=sflag, size = 0x4, scoped, tag = 'scoped memory for tpu_custom_call.1']
    #allocation19 [shape = 'u8[2097152]{0}', space=vmem, size = 0x200000, scoped, tag = 'input window, operand 11, single buffered']
    #allocation20 [shape = 'u8[1048576]{0}', space=vmem, size = 0x100000, scoped, tag = 'input window, operand 12, single buffered']
    #allocation21 [shape = 's32[1]{0}', space=sflag, size = 0x4, scoped, tag = 'scoped memory for tpu_custom_call.1']
    #allocation22 [shape = 'u8[2048]{0}', space=vmem, size = 0x800, scoped, tag = 'input window, operand 13, single buffered']
    #allocation23 [shape = 'u8[262144]{0}', space=vmem, size = 0x40000, scoped, tag = 'input window, operand 14, single buffered']
    #allocation24 [shape = 's32[1]{0}', space=sflag, size = 0x4, scoped, tag = 'scoped memory for tpu_custom_call.1']
    #allocation25 [shape = 'u8[1024]{0}', space=vmem, size = 0x400, scoped, tag = 'input window, operand 15, single buffered']
    #allocation26 [shape = 'u8[65536]{0}', space=vmem, size = 0x10000, scoped, tag = 'input window, operand 16, single buffered']
    #allocation27 [shape = 's32[1]{0}', space=sflag, size = 0x4, scoped, tag = 'scoped memory for tpu_custom_call.1']
    #allocation28 [shape = 'u8[512]{0}', space=vmem, size = 0x400, scoped, tag = 'input window, operand 17, single buffered']
    #allocation29 [shape = 'u8[32768]{0}', space=vmem, size = 0x8000, scoped, tag = 'input window, operand 18, single buffered']
    #allocation30 [shape = 's32[1]{0}', space=sflag, size = 0x4, scoped, tag = 'scoped memory for tpu_custom_call.1']
    #allocation31 [shape = 'u8[512]{0}', space=vmem, size = 0x400, scoped, tag = 'input window, operand 19, single buffered']
    #allocation32 [shape = 'u8[4096]{0}', space=vmem, size = 0x1000, scoped, tag = 'output window, operand 0, single buffered']
    %25 = vsyncpa [#allocation3], 0
    %26 = vsyncpa [#allocation6], 0
    %27 = vsyncpa [#allocation9], 0
    %28 = vsyncpa [#allocation12], 0
    %29 = vsyncpa [#allocation15], 0
    %30 = vsyncpa [#allocation18], 0
    %31 = vsyncpa [#allocation21], 0
    %32 = vsyncpa [#allocation24], 0
    %33 = vsyncpa [#allocation27], 0
    %34 = vsyncpa [#allocation30], 0
    %35 = vsyncpa [#allocation4], 0
    // Predicated region
    $region2: #{tpu_custom_call.1} parent=1 // pred_check
      _
    $region3: #{tpu_custom_call.1} parent=1 // pred_check_branch
      %37 = sbr.rel (0) target = $region5
    $region4: #{tpu_custom_call.1} parent=1 // pred_region
      _
    $region5: #{tpu_custom_call.1} parent=1 // pred_fallthru
      _
    // Predicated region
    $region6: #{tpu_custom_call.1} parent=1 // pred_check
      _
    $region7: #{tpu_custom_call.1} parent=1 // pred_check_branch
      %39 = sbr.rel (0) target = $region9
    $region8: #{tpu_custom_call.1} parent=1 // pred_region
      %41 = vsyncadd [#allocation3], 0
      %s43 = sshll.u32 %s1, 4
      %s44 = int_to_ptr.hbm [resolvable:$true] %s43
      %s45 = sshll.u32 [#allocation2], 4
      %s46 = int_to_ptr.vmem [resolvable:$true] %s45
      %48 = dma.hbm_to_vmem [thread:$0]  %s44, 32, %s46, [#allocation3]
    $region9: #{tpu_custom_call.1} parent=1 // pred_fallthru
      _
    // Predicated region
    $region10: #{tpu_custom_call.1} parent=1 // pred_check
      _
    $region11: #{tpu_custom_call.1} parent=1 // pred_check_branch
      %50 = sbr.rel (0) target = $region13
    $region12: #{tpu_custom_call.1} parent=1 // pred_region
      %52 = vsyncadd [#allocation6], 0
      %s54 = sshll.u32 %s2, 4
      %s55 = int_to_ptr.hbm [resolvable:$true] %s54
      %s56 = sshll.u32 [#allocation5], 4
      %s57 = int_to_ptr.vmem [resolvable:$true] %s56
      %59 = dma.hbm_to_vmem [thread:$0]  %s55, 16, %s57, [#allocation6]
    $region13: #{tpu_custom_call.1} parent=1 // pred_fallthru
      _
    // Predicated region
    $region14: #{tpu_custom_call.1} parent=1 // pred_check
      _
    $region15: #{tpu_custom_call.1} parent=1 // pred_check_branch
      %61 = sbr.rel (0) target = $region17
    $region16: #{tpu_custom_call.1} parent=1 // pred_region
      %63 = vsyncadd [#allocation6], 0
      %s64 = sshll.u32 %s3, 4
      %s65 = int_to_ptr.hbm [resolvable:$true] %s64
      %s66 = sshll.u32 [#allocation7], 4
      %s67 = int_to_ptr.vmem [resolvable:$true] %s66
      %72 = dma.hbm_to_vmem [thread:$0]  %s65, 512, %s67, [#allocation6], 64, 64, 4
    $region17: #{tpu_custom_call.1} parent=1 // pred_fallthru
      _
    // Predicated region
    $region18: #{tpu_custom_call.1} parent=1 // pred_check
      _
    $region19: #{tpu_custom_call.1} parent=1 // pred_check_branch
      %74 = sbr.rel (0) target = $region21
    $region20: #{tpu_custom_call.1} parent=1 // pred_region
      %76 = vsyncadd [#allocation9], 0
      %s78 = sshll.u32 %s4, 4
      %s79 = int_to_ptr.hbm [resolvable:$true] %s78
      %s80 = sshll.u32 [#allocation8], 4
      %s81 = int_to_ptr.vmem [resolvable:$true] %s80
      %83 = dma.hbm_to_vmem [thread:$0]  %s79, 16, %s81, [#allocation9]
    $region21: #{tpu_custom_call.1} parent=1 // pred_fallthru
      _
    // Predicated region
    $region22: #{tpu_custom_call.1} parent=1 // pred_check
      _
    $region23: #{tpu_custom_call.1} parent=1 // pred_check_branch
      %85 = sbr.rel (0) target = $region25
    $region24: #{tpu_custom_call.1} parent=1 // pred_region
      %87 = vsyncadd [#allocation9], 0
      %s88 = sshll.u32 %s5, 4
      %s89 = int_to_ptr.hbm [resolvable:$true] %s88
      %s90 = sshll.u32 [#allocation10], 4
      %s91 = int_to_ptr.vmem [resolvable:$true] %s90
      %96 = dma.hbm_to_vmem [thread:$0]  %s89, 2048, %s91, [#allocation9], 128, 128, 8
    $region25: #{tpu_custom_call.1} parent=1 // pred_fallthru
      _
    // Predicated region
    $region26: #{tpu_custom_call.1} parent=1 // pred_check
      _
    $region27: #{tpu_custom_call.1} parent=1 // pred_check_branch
      %98 = sbr.rel (0) target = $region29
    $region28: #{tpu_custom_call.1} parent=1 // pred_region
      %100 = vsyncadd [#allocation12], 0
      %s102 = sshll.u32 %s6, 4
      %s103 = int_to_ptr.hbm [resolvable:$true] %s102
      %s104 = sshll.u32 [#allocation11], 4
      %s105 = int_to_ptr.vmem [resolvable:$true] %s104
      %107 = dma.hbm_to_vmem [thread:$0]  %s103, 32, %s105, [#allocation12]
    $region29: #{tpu_custom_call.1} parent=1 // pred_fallthru
      _
    // Predicated region
    $region30: #{tpu_custom_call.1} parent=1 // pred_check
      _
    $region31: #{tpu_custom_call.1} parent=1 // pred_check_branch
      %109 = sbr.rel (0) target = $region33
    $region32: #{tpu_custom_call.1} parent=1 // pred_region
      %111 = vsyncadd [#allocation12], 0
      %s112 = sshll.u32 %s7, 4
      %s113 = int_to_ptr.hbm [resolvable:$true] %s112
      %s114 = sshll.u32 [#allocation13], 4
      %s115 = int_to_ptr.vmem [resolvable:$true] %s114
      %120 = dma.hbm_to_vmem [thread:$0]  %s113, 8192, %s115, [#allocation12], 256, 256, 16
    $region33: #{tpu_custom_call.1} parent=1 // pred_fallthru
      _
    // Predicated region
    $region34: #{tpu_custom_call.1} parent=1 // pred_check
      _
    $region35: #{tpu_custom_call.1} parent=1 // pred_check_branch
      %122 = sbr.rel (0) target = $region37
    $region36: #{tpu_custom_call.1} parent=1 // pred_region
      %124 = vsyncadd [#allocation15], 0
      %s126 = sshll.u32 %s8, 4
      %s127 = int_to_ptr.hbm [resolvable:$true] %s126
      %s128 = sshll.u32 [#allocation14], 4
      %s129 = int_to_ptr.vmem [resolvable:$true] %s128
      %131 = dma.hbm_to_vmem [thread:$0]  %s127, 64, %s129, [#allocation15]
    $region37: #{tpu_custom_call.1} parent=1 // pred_fallthru
      _
    // Predicated region
    $region38: #{tpu_custom_call.1} parent=1 // pred_check
      _
    $region39: #{tpu_custom_call.1} parent=1 // pred_check_branch
      %133 = sbr.rel (0) target = $region41
    $region40: #{tpu_custom_call.1} parent=1 // pred_region
      %135 = vsyncadd [#allocation15], 0
      %s136 = sshll.u32 %s9, 4
      %s137 = int_to_ptr.hbm [resolvable:$true] %s136
      %s138 = sshll.u32 [#allocation16], 4
      %s139 = int_to_ptr.vmem [resolvable:$true] %s138
      %144 = dma.hbm_to_vmem [thread:$0]  %s137, 32768, %s139, [#allocation15], 512, 512, 32
    $region41: #{tpu_custom_call.1} parent=1 // pred_fallthru
      _
    // Predicated region
    $region42: #{tpu_custom_call.1} parent=1 // pred_check
      _
    $region43: #{tpu_custom_call.1} parent=1 // pred_check_branch
      %146 = sbr.rel (0) target = $region45
    $region44: #{tpu_custom_call.1} parent=1 // pred_region
      %148 = vsyncadd [#allocation18], 0
      %s150 = sshll.u32 %s10, 4
      %s151 = int_to_ptr.hbm [resolvable:$true] %s150
      %s152 = sshll.u32 [#allocation17], 4
      %s153 = int_to_ptr.vmem [resolvable:$true] %s152
      %155 = dma.hbm_to_vmem [thread:$0]  %s151, 128, %s153, [#allocation18]
    $region45: #{tpu_custom_call.1} parent=1 // pred_fallthru
      _
    // Predicated region
    $region46: #{tpu_custom_call.1} parent=1 // pred_check
      _
    $region47: #{tpu_custom_call.1} parent=1 // pred_check_branch
      %157 = sbr.rel (0) target = $region49
    $region48: #{tpu_custom_call.1} parent=1 // pred_region
      %159 = vsyncadd [#allocation18], 0
      %s160 = sshll.u32 %s11, 4
      %s161 = int_to_ptr.hbm [resolvable:$true] %s160
      %s162 = sshll.u32 [#allocation19], 4
      %s163 = int_to_ptr.vmem [resolvable:$true] %s162
      %168 = dma.hbm_to_vmem [thread:$0]  %s161, 65536, %s163, [#allocation18], 512, 512, 32
    $region49: #{tpu_custom_call.1} parent=1 // pred_fallthru
      _
    // Predicated region
    $region50: #{tpu_custom_call.1} parent=1 // pred_check
      _
    $region51: #{tpu_custom_call.1} parent=1 // pred_check_branch
      %170 = sbr.rel (0) target = $region53
    $region52: #{tpu_custom_call.1} parent=1 // pred_region
      %172 = vsyncadd [#allocation21], 0
      %s173 = sshll.u32 %s12, 4
      %s174 = int_to_ptr.hbm [resolvable:$true] %s173
      %s175 = sshll.u32 [#allocation20], 4
      %s176 = int_to_ptr.vmem [resolvable:$true] %s175
      %181 = dma.hbm_to_vmem [thread:$0]  %s174, 32768, %s176, [#allocation21], 256, 256, 16
    $region53: #{tpu_custom_call.1} parent=1 // pred_fallthru
      _
    // Predicated region
    $region54: #{tpu_custom_call.1} parent=1 // pred_check
      _
    $region55: #{tpu_custom_call.1} parent=1 // pred_check_branch
      %183 = sbr.rel (0) target = $region57
    $region56: #{tpu_custom_call.1} parent=1 // pred_region
      %185 = vsyncadd [#allocation21], 0
      %s187 = sshll.u32 %s13, 4
      %s188 = int_to_ptr.hbm [resolvable:$true] %s187
      %s189 = sshll.u32 [#allocation22], 4
      %s190 = int_to_ptr.vmem [resolvable:$true] %s189
      %192 = dma.hbm_to_vmem [thread:$0]  %s188, 64, %s190, [#allocation21]
    $region57: #{tpu_custom_call.1} parent=1 // pred_fallthru
      _
    // Predicated region
    $region58: #{tpu_custom_call.1} parent=1 // pred_check
      _
    $region59: #{tpu_custom_call.1} parent=1 // pred_check_branch
      %194 = sbr.rel (0) target = $region61
    $region60: #{tpu_custom_call.1} parent=1 // pred_region
      %196 = vsyncadd [#allocation24], 0
      %s197 = sshll.u32 %s14, 4
      %s198 = int_to_ptr.hbm [resolvable:$true] %s197
      %s199 = sshll.u32 [#allocation23], 4
      %s200 = int_to_ptr.vmem [resolvable:$true] %s199
      %205 = dma.hbm_to_vmem [thread:$0]  %s198, 8192, %s200, [#allocation24], 128, 128, 8
    $region61: #{tpu_custom_call.1} parent=1 // pred_fallthru
      _
    // Predicated region
    $region62: #{tpu_custom_call.1} parent=1 // pred_check
      _
    $region63: #{tpu_custom_call.1} parent=1 // pred_check_branch
      %207 = sbr.rel (0) target = $region65
    $region64: #{tpu_custom_call.1} parent=1 // pred_region
      %209 = vsyncadd [#allocation24], 0
      %s211 = sshll.u32 %s15, 4
      %s212 = int_to_ptr.hbm [resolvable:$true] %s211
      %s213 = sshll.u32 [#allocation25], 4
      %s214 = int_to_ptr.vmem [resolvable:$true] %s213
      %216 = dma.hbm_to_vmem [thread:$0]  %s212, 32, %s214, [#allocation24]
    $region65: #{tpu_custom_call.1} parent=1 // pred_fallthru
      _
    // Predicated region
    $region66: #{tpu_custom_call.1} parent=1 // pred_check
      _
    $region67: #{tpu_custom_call.1} parent=1 // pred_check_branch
      %218 = sbr.rel (0) target = $region69
    $region68: #{tpu_custom_call.1} parent=1 // pred_region
      %220 = vsyncadd [#allocation27], 0
      %s221 = sshll.u32 %s16, 4
      %s222 = int_to_ptr.hbm [resolvable:$true] %s221
      %s223 = sshll.u32 [#allocation26], 4
      %s224 = int_to_ptr.vmem [resolvable:$true] %s223
      %229 = dma.hbm_to_vmem [thread:$0]  %s222, 2048, %s224, [#allocation27], 64, 64, 4
    $region69: #{tpu_custom_call.1} parent=1 // pred_fallthru
      _
    // Predicated region
    $region70: #{tpu_custom_call.1} parent=1 // pred_check
      _
    $region71: #{tpu_custom_call.1} parent=1 // pred_check_branch
      %231 = sbr.rel (0) target = $region73
    $region72: #{tpu_custom_call.1} parent=1 // pred_region
      %233 = vsyncadd [#allocation27], 0
      %s235 = sshll.u32 %s17, 4
      %s236 = int_to_ptr.hbm [resolvable:$true] %s235
      %s237 = sshll.u32 [#allocation28], 4
      %s238 = int_to_ptr.vmem [resolvable:$true] %s237
      %240 = dma.hbm_to_vmem [thread:$0]  %s236, 16, %s238, [#allocation27]
    $region73: #{tpu_custom_call.1} parent=1 // pred_fallthru
      _
    // Predicated region
    $region74: #{tpu_custom_call.1} parent=1 // pred_check
      _
    $region75: #{tpu_custom_call.1} parent=1 // pred_check_branch
      %242 = sbr.rel (0) target = $region77
    $region76: #{tpu_custom_call.1} parent=1 // pred_region
      %244 = vsyncadd [#allocation30], 0
      %s245 = sshll.u32 %s18, 4
      %s246 = int_to_ptr.hbm [resolvable:$true] %s245
      %s247 = sshll.u32 [#allocation29], 4
      %s248 = int_to_ptr.vmem [resolvable:$true] %s247
      %253 = dma.hbm_to_vmem [thread:$0]  %s246, 1024, %s248, [#allocation30], 64, 64, 4
    $region77: #{tpu_custom_call.1} parent=1 // pred_fallthru
      _
    // Predicated region
    $region78: #{tpu_custom_call.1} parent=1 // pred_check
      _
    $region79: #{tpu_custom_call.1} parent=1 // pred_check_branch
      %255 = sbr.rel (0) target = $region81
    $region80: #{tpu_custom_call.1} parent=1 // pred_region
      %257 = vsyncadd [#allocation30], 0
      %s259 = sshll.u32 %s19, 4
      %s260 = int_to_ptr.hbm [resolvable:$true] %s259
      %s261 = sshll.u32 [#allocation31], 4
      %s262 = int_to_ptr.vmem [resolvable:$true] %s261
      %264 = dma.hbm_to_vmem [thread:$0]  %s260, 16, %s262, [#allocation30]
    $region81: #{tpu_custom_call.1} parent=1 // pred_fallthru
      _
    // Predicated region
    $region82: #{tpu_custom_call.1} parent=1 // pred_check
      _
    $region83: #{tpu_custom_call.1} parent=1 // pred_check_branch
      %266 = sbr.rel (0) target = $region85
    $region84: #{tpu_custom_call.1} parent=1 // pred_region
      %268 = dma.done [#allocation3], 32
    $region85: #{tpu_custom_call.1} parent=1 // pred_fallthru
      _
    // Predicated region
    $region86: #{tpu_custom_call.1} parent=1 // pred_check
      _
    $region87: #{tpu_custom_call.1} parent=1 // pred_check_branch
      %270 = sbr.rel (0) target = $region89
    $region88: #{tpu_custom_call.1} parent=1 // pred_region
      %272 = dma.done [#allocation6], 16
    $region89: #{tpu_custom_call.1} parent=1 // pred_fallthru
      _
    // Predicated region
    $region90: #{tpu_custom_call.1} parent=1 // pred_check
      _
    $region91: #{tpu_custom_call.1} parent=1 // pred_check_branch
      %274 = sbr.rel (0) target = $region93
    $region92: #{tpu_custom_call.1} parent=1 // pred_region
      %276 = dma.done [#allocation6], 512
    $region93: #{tpu_custom_call.1} parent=1 // pred_fallthru
      _
    // Predicated region
    $region94: #{tpu_custom_call.1} parent=1 // pred_check
      _
    $region95: #{tpu_custom_call.1} parent=1 // pred_check_branch
      %278 = sbr.rel (0) target = $region97
    $region96: #{tpu_custom_call.1} parent=1 // pred_region
      %280 = dma.done [#allocation9], 16
    $region97: #{tpu_custom_call.1} parent=1 // pred_fallthru
      _
    // Predicated region
    $region98: #{tpu_custom_call.1} parent=1 // pred_check
      _
    $region99: #{tpu_custom_call.1} parent=1 // pred_check_branch
      %282 = sbr.rel (0) target = $region101
    $region100: #{tpu_custom_call.1} parent=1 // pred_region
      %284 = dma.done [#allocation9], 2048
    $region101: #{tpu_custom_call.1} parent=1 // pred_fallthru
      _
    // Predicated region
    $region102: #{tpu_custom_call.1} parent=1 // pred_check
      _
    $region103: #{tpu_custom_call.1} parent=1 // pred_check_branch
      %286 = sbr.rel (0) target = $region105
    $region104: #{tpu_custom_call.1} parent=1 // pred_region
      %288 = dma.done [#allocation12], 32
    $region105: #{tpu_custom_call.1} parent=1 // pred_fallthru
      _
    // Predicated region
    $region106: #{tpu_custom_call.1} parent=1 // pred_check
      _
    $region107: #{tpu_custom_call.1} parent=1 // pred_check_branch
      %290 = sbr.rel (0) target = $region109
    $region108: #{tpu_custom_call.1} parent=1 // pred_region
      %292 = dma.done [#allocation12], 8192
    $region109: #{tpu_custom_call.1} parent=1 // pred_fallthru
      _
    // Predicated region
    $region110: #{tpu_custom_call.1} parent=1 // pred_check
      _
    $region111: #{tpu_custom_call.1} parent=1 // pred_check_branch
      %294 = sbr.rel (0) target = $region113
    $region112: #{tpu_custom_call.1} parent=1 // pred_region
      %296 = dma.done [#allocation15], 64
    $region113: #{tpu_custom_call.1} parent=1 // pred_fallthru
      _
    // Predicated region
    $region114: #{tpu_custom_call.1} parent=1 // pred_check
      _
    $region115: #{tpu_custom_call.1} parent=1 // pred_check_branch
      %298 = sbr.rel (0) target = $region117
    $region116: #{tpu_custom_call.1} parent=1 // pred_region
      %300 = dma.done [#allocation15], 32768
    $region117: #{tpu_custom_call.1} parent=1 // pred_fallthru
      _
    // Predicated region
    $region118: #{tpu_custom_call.1} parent=1 // pred_check
      _
    $region119: #{tpu_custom_call.1} parent=1 // pred_check_branch
      %302 = sbr.rel (0) target = $region121
    $region120: #{tpu_custom_call.1} parent=1 // pred_region
      %304 = dma.done [#allocation18], 128
    $region121: #{tpu_custom_call.1} parent=1 // pred_fallthru
      _
    // Predicated region
    $region122: #{tpu_custom_call.1} parent=1 // pred_check
      _
    $region123: #{tpu_custom_call.1} parent=1 // pred_check_branch
      %306 = sbr.rel (0) target = $region125
    $region124: #{tpu_custom_call.1} parent=1 // pred_region
      %308 = dma.done [#allocation18], 65536
    $region125: #{tpu_custom_call.1} parent=1 // pred_fallthru
      _
    // Predicated region
    $region126: #{tpu_custom_call.1} parent=1 // pred_check
      _
    $region127: #{tpu_custom_call.1} parent=1 // pred_check_branch
      %310 = sbr.rel (0) target = $region129
    $region128: #{tpu_custom_call.1} parent=1 // pred_region
      %312 = dma.done [#allocation21], 32768
    $region129: #{tpu_custom_call.1} parent=1 // pred_fallthru
      _
    // Predicated region
    $region130: #{tpu_custom_call.1} parent=1 // pred_check
      _
    $region131: #{tpu_custom_call.1} parent=1 // pred_check_branch
      %314 = sbr.rel (0) target = $region133
    $region132: #{tpu_custom_call.1} parent=1 // pred_region
      %316 = dma.done [#allocation21], 64
    $region133: #{tpu_custom_call.1} parent=1 // pred_fallthru
      _
    // Predicated region
    $region134: #{tpu_custom_call.1} parent=1 // pred_check
      _
    $region135: #{tpu_custom_call.1} parent=1 // pred_check_branch
      %318 = sbr.rel (0) target = $region137
    $region136: #{tpu_custom_call.1} parent=1 // pred_region
      %320 = dma.done [#allocation24], 8192
    $region137: #{tpu_custom_call.1} parent=1 // pred_fallthru
      _
    // Predicated region
    $region138: #{tpu_custom_call.1} parent=1 // pred_check
      _
    $region139: #{tpu_custom_call.1} parent=1 // pred_check_branch
      %322 = sbr.rel (0) target = $region141
    $region140: #{tpu_custom_call.1} parent=1 // pred_region
      %324 = dma.done [#allocation24], 32
    $region141: #{tpu_custom_call.1} parent=1 // pred_fallthru
      _
    // Predicated region
    $region142: #{tpu_custom_call.1} parent=1 // pred_check
      _
    $region143: #{tpu_custom_call.1} parent=1 // pred_check_branch
      %326 = sbr.rel (0) target = $region145
    $region144: #{tpu_custom_call.1} parent=1 // pred_region
      %328 = dma.done [#allocation27], 2048
    $region145: #{tpu_custom_call.1} parent=1 // pred_fallthru
      _
    // Predicated region
    $region146: #{tpu_custom_call.1} parent=1 // pred_check
      _
    $region147: #{tpu_custom_call.1} parent=1 // pred_check_branch
      %330 = sbr.rel (0) target = $region149
    $region148: #{tpu_custom_call.1} parent=1 // pred_region
      %332 = dma.done [#allocation27], 16
    $region149: #{tpu_custom_call.1} parent=1 // pred_fallthru
      _
    // Predicated region
    $region150: #{tpu_custom_call.1} parent=1 // pred_check
      _
    $region151: #{tpu_custom_call.1} parent=1 // pred_check_branch
      %334 = sbr.rel (0) target = $region153
    $region152: #{tpu_custom_call.1} parent=1 // pred_region
      %336 = dma.done [#allocation30], 1024
    $region153: #{tpu_custom_call.1} parent=1 // pred_fallthru
      _
    // Predicated region
    $region154: #{tpu_custom_call.1} parent=1 // pred_check
      _
    $region155: #{tpu_custom_call.1} parent=1 // pred_check_branch
      %338 = sbr.rel (0) target = $region157
    $region156: #{tpu_custom_call.1} parent=1 // pred_region
      %340 = dma.done [#allocation30], 16
    $region157: #{tpu_custom_call.1} parent=1 // pred_fallthru
      _
    %v342 = vld [vmem:[%s0] sm:$0xff]
    %v343 = vld [vmem:[#allocation5] sm:$0x1]
    %v344 = vpack.c.bf16 %v342, %v342
    %v345 = vld [vmem:[#allocation2] sm:$0x3]
    %vm346 = vcmask 31744
    %v348 = vsel %vm346, %v344, 0
    %vm350 = vcmask 1041408
    %v352 = vsel %vm350, %v345, 0
    %354 = vmatpush.bf16.msra.mxu0 0
    %355 = vmatpush.bf16.msra.mxu0 0
    %356 = vmatpush.bf16.msra.mxu0 0
    %357 = vmatpush.bf16.msra.mxu0 0
    %358 = vmatpush.bf16.msra.mxu0 0
    %359 = vmatpush.bf16.msra.mxu0 0
    %360 = vmatpush.bf16.msra.mxu0 0
    %361 = vmatpush.bf16.msra.mxu0 %v352
    %362 = vmatmul.bf16.gmra.mxu0 %v348
    %v363 = vpop.f32.mrf.mxu0
    %v364 = vadd.f32 0.0, %v363
    %v365 = vpop.f32.mrf.mxu0
    %366 = vdwg.mxu0
    %v367 = vmax.f32 %v364, 0.0
    %v369 = vperm.slane %v343, 0
    %v371 = vadd.f32 %v369, %v367
    %v372 = vtanh.pop %v371
    %v373 = vld [vmem:[#allocation8] sm:$0x1]
    %v374 = vpack.c.bf16 %v372, %v372
    %v375 = vld [vmem:[#allocation7] sm:$0xf]
    %v376 = vld [vmem:[#allocation7 + $0x4] sm:$0xf]
    %v377 = vld [vmem:[#allocation7 + $0x8] sm:$0xf]
    %v378 = vld [vmem:[#allocation7 + $0xc] sm:$0xf]
    %v379 = vld [vmem:[#allocation7 + $0x10] sm:$0xf]
    %v380 = vld [vmem:[#allocation7 + $0x14] sm:$0xf]
    %v381 = vld [vmem:[#allocation7 + $0x18] sm:$0xf]
    %v382 = vld [vmem:[#allocation7 + $0x1c] sm:$0xf]
    %v391 = vunpack.c.l.b16 %v375
    %v392 = vunpack.c.l.b16 %v376
    %v393 = vunpack.c.l.b16 %v377
    %v394 = vunpack.c.l.b16 %v378
    %v395 = vunpack.c.l.b16 %v379
    %v396 = vunpack.c.l.b16 %v380
    %v397 = vunpack.c.l.b16 %v381
    %v398 = vunpack.c.l.b16 %v382
    %v399 = vpack.c.b16 %v392, %v391
    %v400 = vpack.c.b16 %v394, %v393
    %v401 = vpack.c.b16 %v396, %v395
    %v402 = vpack.c.b16 %v398, %v397
    %vm407 = vcmask 523264
    %v409 = vsel %vm407, %v374, 0
    %411 = vmatpush.bf16.msra.mxu0 0
    %412 = vmatpush.bf16.msra.mxu0 0
    %413 = vmatpush.bf16.msra.mxu0 0
    %414 = vmatpush.bf16.msra.mxu0 0
    %415 = vmatpush.bf16.msra.mxu0 %v402
    %416 = vmatpush.bf16.msra.mxu0 %v401
    %417 = vmatpush.bf16.msra.mxu0 %v400
    %418 = vmatpush.bf16.msra.mxu0 %v399
    %419 = vmatmul.bf16.gmra.mxu0 %v409
    %v420 = vpop.f32.mrf.mxu0
    %v421 = vadd.f32 0.0, %v420
    %v422 = vpop.f32.mrf.mxu0
    %423 = vdwg.mxu0
    %v424 = vmax.f32 %v421, 0.0
    %v426 = vperm.slane %v373, 0
    %v428 = vadd.f32 %v426, %v424
    %v429 = vtanh.pop %v428
    %v430 = vld [vmem:[#allocation11] sm:$0x3]
    %v431 = vpack.c.bf16 %v429, %v429
    %v432 = vld [vmem:[#allocation10] sm:$0xff]
    %v433 = vld [vmem:[#allocation10 + $0x8] sm:$0xff]
    %v434 = vld [vmem:[#allocation10 + $0x10] sm:$0xff]
    %v435 = vld [vmem:[#allocation10 + $0x18] sm:$0xff]
    %v436 = vld [vmem:[#allocation10 + $0x20] sm:$0xff]
    %v437 = vld [vmem:[#allocation10 + $0x28] sm:$0xff]
    %v438 = vld [vmem:[#allocation10 + $0x30] sm:$0xff]
    %v439 = vld [vmem:[#allocation10 + $0x38] sm:$0xff]
    %v440 = vld [vmem:[#allocation10 + $0x40] sm:$0xff]
    %v441 = vld [vmem:[#allocation10 + $0x48] sm:$0xff]
    %v442 = vld [vmem:[#allocation10 + $0x50] sm:$0xff]
    %v443 = vld [vmem:[#allocation10 + $0x58] sm:$0xff]
    %v444 = vld [vmem:[#allocation10 + $0x60] sm:$0xff]
    %v445 = vld [vmem:[#allocation10 + $0x68] sm:$0xff]
    %v446 = vld [vmem:[#allocation10 + $0x70] sm:$0xff]
    %v447 = vld [vmem:[#allocation10 + $0x78] sm:$0xff]
    %v464 = vunpack.c.l.b16 %v432
    %v465 = vunpack.c.h.b16 %v432
    %v466 = vunpack.c.l.b16 %v433
    %v467 = vunpack.c.h.b16 %v433
    %v468 = vunpack.c.l.b16 %v434
    %v469 = vunpack.c.h.b16 %v434
    %v470 = vunpack.c.l.b16 %v435
    %v471 = vunpack.c.h.b16 %v435
    %v472 = vunpack.c.l.b16 %v436
    %v473 = vunpack.c.h.b16 %v436
    %v474 = vunpack.c.l.b16 %v437
    %v475 = vunpack.c.h.b16 %v437
    %v476 = vunpack.c.l.b16 %v438
    %v477 = vunpack.c.h.b16 %v438
    %v478 = vunpack.c.l.b16 %v439
    %v479 = vunpack.c.h.b16 %v439
    %v480 = vunpack.c.l.b16 %v440
    %v481 = vunpack.c.h.b16 %v440
    %v482 = vunpack.c.l.b16 %v441
    %v483 = vunpack.c.h.b16 %v441
    %v484 = vunpack.c.l.b16 %v442
    %v485 = vunpack.c.h.b16 %v442
    %v486 = vunpack.c.l.b16 %v443
    %v487 = vunpack.c.h.b16 %v443
    %v488 = vunpack.c.l.b16 %v444
    %v489 = vunpack.c.h.b16 %v444
    %v490 = vunpack.c.l.b16 %v445
    %v491 = vunpack.c.h.b16 %v445
    %v492 = vunpack.c.l.b16 %v446
    %v493 = vunpack.c.h.b16 %v446
    %v494 = vunpack.c.l.b16 %v447
    %v495 = vunpack.c.h.b16 %v447
    %v496 = vpack.c.b16 %v466, %v464
    %v497 = vpack.c.b16 %v467, %v465
    %v498 = vpack.c.b16 %v470, %v468
    %v499 = vpack.c.b16 %v471, %v469
    %v500 = vpack.c.b16 %v474, %v472
    %v501 = vpack.c.b16 %v475, %v473
    %v502 = vpack.c.b16 %v478, %v476
    %v503 = vpack.c.b16 %v479, %v477
    %v504 = vpack.c.b16 %v482, %v480
    %v505 = vpack.c.b16 %v483, %v481
    %v506 = vpack.c.b16 %v486, %v484
    %v507 = vpack.c.b16 %v487, %v485
    %v508 = vpack.c.b16 %v490, %v488
    %v509 = vpack.c.b16 %v491, %v489
    %v510 = vpack.c.b16 %v494, %v492
    %v511 = vpack.c.b16 %v495, %v493
    %528 = vmatpush.bf16.msra.mxu0 %v510
    %529 = vmatpush.bf16.msra.mxu0 %v508
    %530 = vmatpush.bf16.msra.mxu0 %v506
    %531 = vmatpush.bf16.msra.mxu0 %v504
    %532 = vmatpush.bf16.msra.mxu0 %v502
    %533 = vmatpush.bf16.msra.mxu0 %v500
    %534 = vmatpush.bf16.msra.mxu0 %v498
    %535 = vmatpush.bf16.msra.mxu0 %v496
    %536 = vmatmul.bf16.gmra.mxu0 %v431
    %v537 = vpop.f32.mrf.mxu0
    %v538 = vadd.f32 0.0, %v537
    %v539 = vpop.f32.mrf.mxu0
    %540 = vdwg.mxu0
    %541 = vmatpush.bf16.msra.mxu0 %v511
    %542 = vmatpush.bf16.msra.mxu0 %v509
    %543 = vmatpush.bf16.msra.mxu0 %v507
    %544 = vmatpush.bf16.msra.mxu0 %v505
    %545 = vmatpush.bf16.msra.mxu0 %v503
    %546 = vmatpush.bf16.msra.mxu0 %v501
    %547 = vmatpush.bf16.msra.mxu0 %v499
    %548 = vmatpush.bf16.msra.mxu0 %v497
    %549 = vmatmul.bf16.gmra.mxu0 %v431
    %v550 = vpop.f32.mrf.mxu0
    %v551 = vadd.f32 0.0, %v550
    %v552 = vpop.f32.mrf.mxu0
    %553 = vdwg.mxu0
    %v554 = vmax.f32 %v538, 0.0
    %v555 = vmax.f32 %v551, 0.0
    %v557 = vperm.slane %v430, 0
    %v558 = vperm.slane %v430, 1
    %v561 = vadd.f32 %v557, %v554
    %v562 = vadd.f32 %v558, %v555
    %v563 = vtanh.pop %v561
    %v564 = vtanh.pop %v562
    %v565 = vld [vmem:[#allocation14] sm:$0xf]
    %v566 = vpack.c.bf16 %v563, %v563
    %v567 = vpack.c.bf16 %v564, %v564
    %v568 = vld [vmem:[#allocation13] sm:$0xff]
    %v569 = vld [vmem:[#allocation13 + $0x8] sm:$0xff]
    %v570 = vld [vmem:[#allocation13 + $0x10] sm:$0xff]
    %v571 = vld [vmem:[#allocation13 + $0x18] sm:$0xff]
    %v572 = vld [vmem:[#allocation13 + $0x20] sm:$0xff]
    %v573 = vld [vmem:[#allocation13 + $0x28] sm:$0xff]
    %v574 = vld [vmem:[#allocation13 + $0x30] sm:$0xff]
    %v575 = vld [vmem:[#allocation13 + $0x38] sm:$0xff]
    %v576 = vld [vmem:[#allocation13 + $0x40] sm:$0xff]
    %v577 = vld [vmem:[#allocation13 + $0x48] sm:$0xff]
    %v578 = vld [vmem:[#allocation13 + $0x50] sm:$0xff]
    %v579 = vld [vmem:[#allocation13 + $0x58] sm:$0xff]
    %v580 = vld [vmem:[#allocation13 + $0x60] sm:$0xff]
    %v581 = vld [vmem:[#allocation13 + $0x68] sm:$0xff]
    %v582 = vld [vmem:[#allocation13 + $0x70] sm:$0xff]
    %v583 = vld [vmem:[#allocation13 + $0x78] sm:$0xff]
    %v584 = vld [vmem:[#allocation13 + $0x80] sm:$0xff]
    %v585 = vld [vmem:[#allocation13 + $0x88] sm:$0xff]
    %v586 = vld [vmem:[#allocation13 + $0x90] sm:$0xff]
    %v587 = vld [vmem:[#allocation13 + $0x98] sm:$0xff]
    %v588 = vld [vmem:[#allocation13 + $0xa0] sm:$0xff]
    %v589 = vld [vmem:[#allocation13 + $0xa8] sm:$0xff]
    %v590 = vld [vmem:[#allocation13 + $0xb0] sm:$0xff]
    %v591 = vld [vmem:[#allocation13 + $0xb8] sm:$0xff]
    %v592 = vld [vmem:[#allocation13 + $0xc0] sm:$0xff]
    %v593 = vld [vmem:[#allocation13 + $0xc8] sm:$0xff]
    %v594 = vld [vmem:[#allocation13 + $0xd0] sm:$0xff]
    %v595 = vld [vmem:[#allocation13 + $0xd8] sm:$0xff]
    %v596 = vld [vmem:[#allocation13 + $0xe0] sm:$0xff]
    %v597 = vld [vmem:[#allocation13 + $0xe8] sm:$0xff]
    %v598 = vld [vmem:[#allocation13 + $0xf0] sm:$0xff]
    %v599 = vld [vmem:[#allocation13 + $0xf8] sm:$0xff]
    %v600 = vld [vmem:[#allocation13 + $0x100] sm:$0xff]
    %v601 = vld [vmem:[#allocation13 + $0x108] sm:$0xff]
    %v602 = vld [vmem:[#allocation13 + $0x110] sm:$0xff]
    %v603 = vld [vmem:[#allocation13 + $0x118] sm:$0xff]
    %v604 = vld [vmem:[#allocation13 + $0x120] sm:$0xff]
    %v605 = vld [vmem:[#allocation13 + $0x128] sm:$0xff]
    %v606 = vld [vmem:[#allocation13 + $0x130] sm:$0xff]
    %v607 = vld [vmem:[#allocation13 + $0x138] sm:$0xff]
    %v608 = vld [vmem:[#allocation13 + $0x140] sm:$0xff]
    %v609 = vld [vmem:[#allocation13 + $0x148] sm:$0xff]
    %v610 = vld [vmem:[#allocation13 + $0x150] sm:$0xff]
    %v611 = vld [vmem:[#allocation13 + $0x158] sm:$0xff]
    %v612 = vld [vmem:[#allocation13 + $0x160] sm:$0xff]
    %v613 = vld [vmem:[#allocation13 + $0x168] sm:$0xff]
    %v614 = vld [vmem:[#allocation13 + $0x170] sm:$0xff]
    %v615 = vld [vmem:[#allocation13 + $0x178] sm:$0xff]
    %v616 = vld [vmem:[#allocation13 + $0x180] sm:$0xff]
    %v617 = vld [vmem:[#allocation13 + $0x188] sm:$0xff]
    %v618 = vld [vmem:[#allocation13 + $0x190] sm:$0xff]
    %v619 = vld [vmem:[#allocation13 + $0x198] sm:$0xff]
    %v620 = vld [vmem:[#allocation13 + $0x1a0] sm:$0xff]
    %v621 = vld [vmem:[#allocation13 + $0x1a8] sm:$0xff]
    %v622 = vld [vmem:[#allocation13 + $0x1b0] sm:$0xff]
    %v623 = vld [vmem:[#allocation13 + $0x1b8] sm:$0xff]
    %v624 = vld [vmem:[#allocation13 + $0x1c0] sm:$0xff]
    %v625 = vld [vmem:[#allocation13 + $0x1c8] sm:$0xff]
    %v626 = vld [vmem:[#allocation13 + $0x1d0] sm:$0xff]
    %v627 = vld [vmem:[#allocation13 + $0x1d8] sm:$0xff]
    %v628 = vld [vmem:[#allocation13 + $0x1e0] sm:$0xff]
    %v629 = vld [vmem:[#allocation13 + $0x1e8] sm:$0xff]
    %v630 = vld [vmem:[#allocation13 + $0x1f0] sm:$0xff]
    %v631 = vld [vmem:[#allocation13 + $0x1f8] sm:$0xff]
    %v696 = vunpack.c.l.b16 %v568
    %v697 = vunpack.c.h.b16 %v568
    %v698 = vunpack.c.l.b16 %v569
    %v699 = vunpack.c.h.b16 %v569
    %v700 = vunpack.c.l.b16 %v570
    %v701 = vunpack.c.h.b16 %v570
    %v702 = vunpack.c.l.b16 %v571
    %v703 = vunpack.c.h.b16 %v571
    %v704 = vunpack.c.l.b16 %v572
    %v705 = vunpack.c.h.b16 %v572
    %v706 = vunpack.c.l.b16 %v573
    %v707 = vunpack.c.h.b16 %v573
    %v708 = vunpack.c.l.b16 %v574
    %v709 = vunpack.c.h.b16 %v574
    %v710 = vunpack.c.l.b16 %v575
    %v711 = vunpack.c.h.b16 %v575
    %v712 = vunpack.c.l.b16 %v576
    %v713 = vunpack.c.h.b16 %v576
    %v714 = vunpack.c.l.b16 %v577
    %v715 = vunpack.c.h.b16 %v577
    %v716 = vunpack.c.l.b16 %v578
    %v717 = vunpack.c.h.b16 %v578
    %v718 = vunpack.c.l.b16 %v579
    %v719 = vunpack.c.h.b16 %v579
    %v720 = vunpack.c.l.b16 %v580
    %v721 = vunpack.c.h.b16 %v580
    %v722 = vunpack.c.l.b16 %v581
    %v723 = vunpack.c.h.b16 %v581
    %v724 = vunpack.c.l.b16 %v582
    %v725 = vunpack.c.h.b16 %v582
    %v726 = vunpack.c.l.b16 %v583
    %v727 = vunpack.c.h.b16 %v583
    %v728 = vunpack.c.l.b16 %v584
    %v729 = vunpack.c.h.b16 %v584
    %v730 = vunpack.c.l.b16 %v585
    %v731 = vunpack.c.h.b16 %v585
    %v732 = vunpack.c.l.b16 %v586
    %v733 = vunpack.c.h.b16 %v586
    %v734 = vunpack.c.l.b16 %v587
    %v735 = vunpack.c.h.b16 %v587
    %v736 = vunpack.c.l.b16 %v588
    %v737 = vunpack.c.h.b16 %v588
    %v738 = vunpack.c.l.b16 %v589
    %v739 = vunpack.c.h.b16 %v589
    %v740 = vunpack.c.l.b16 %v590
    %v741 = vunpack.c.h.b16 %v590
    %v742 = vunpack.c.l.b16 %v591
    %v743 = vunpack.c.h.b16 %v591
    %v744 = vunpack.c.l.b16 %v592
    %v745 = vunpack.c.h.b16 %v592
    %v746 = vunpack.c.l.b16 %v593
    %v747 = vunpack.c.h.b16 %v593
    %v748 = vunpack.c.l.b16 %v594
    %v749 = vunpack.c.h.b16 %v594
    %v750 = vunpack.c.l.b16 %v595
    %v751 = vunpack.c.h.b16 %v595
    %v752 = vunpack.c.l.b16 %v596
    %v753 = vunpack.c.h.b16 %v596
    %v754 = vunpack.c.l.b16 %v597
    %v755 = vunpack.c.h.b16 %v597
    %v756 = vunpack.c.l.b16 %v598
    %v757 = vunpack.c.h.b16 %v598
    %v758 = vunpack.c.l.b16 %v599
    %v759 = vunpack.c.h.b16 %v599
    %v760 = vunpack.c.l.b16 %v600
    %v761 = vunpack.c.h.b16 %v600
    %v762 = vunpack.c.l.b16 %v601
    %v763 = vunpack.c.h.b16 %v601
    %v764 = vunpack.c.l.b16 %v602
    %v765 = vunpack.c.h.b16 %v602
    %v766 = vunpack.c.l.b16 %v603
    %v767 = vunpack.c.h.b16 %v603
    %v768 = vunpack.c.l.b16 %v604
    %v769 = vunpack.c.h.b16 %v604
    %v770 = vunpack.c.l.b16 %v605
    %v771 = vunpack.c.h.b16 %v605
    %v772 = vunpack.c.l.b16 %v606
    %v773 = vunpack.c.h.b16 %v606
    %v774 = vunpack.c.l.b16 %v607
    %v775 = vunpack.c.h.b16 %v607
    %v776 = vunpack.c.l.b16 %v608
    %v777 = vunpack.c.h.b16 %v608
    %v778 = vunpack.c.l.b16 %v609
    %v779 = vunpack.c.h.b16 %v609
    %v780 = vunpack.c.l.b16 %v610
    %v781 = vunpack.c.h.b16 %v610
    %v782 = vunpack.c.l.b16 %v611
    %v783 = vunpack.c.h.b16 %v611
    %v784 = vunpack.c.l.b16 %v612
    %v785 = vunpack.c.h.b16 %v612
    %v786 = vunpack.c.l.b16 %v613
    %v787 = vunpack.c.h.b16 %v613
    %v788 = vunpack.c.l.b16 %v614
    %v789 = vunpack.c.h.b16 %v614
    %v790 = vunpack.c.l.b16 %v615
    %v791 = vunpack.c.h.b16 %v615
    %v792 = vunpack.c.l.b16 %v616
    %v793 = vunpack.c.h.b16 %v616
    %v794 = vunpack.c.l.b16 %v617
    %v795 = vunpack.c.h.b16 %v617
    %v796 = vunpack.c.l.b16 %v618
    %v797 = vunpack.c.h.b16 %v618
    %v798 = vunpack.c.l.b16 %v619
    %v799 = vunpack.c.h.b16 %v619
    %v800 = vunpack.c.l.b16 %v620
    %v801 = vunpack.c.h.b16 %v620
    %v802 = vunpack.c.l.b16 %v621
    %v803 = vunpack.c.h.b16 %v621
    %v804 = vunpack.c.l.b16 %v622
    %v805 = vunpack.c.h.b16 %v622
    %v806 = vunpack.c.l.b16 %v623
    %v807 = vunpack.c.h.b16 %v623
    %v808 = vunpack.c.l.b16 %v624
    %v809 = vunpack.c.h.b16 %v624
    %v810 = vunpack.c.l.b16 %v625
    %v811 = vunpack.c.h.b16 %v625
    %v812 = vunpack.c.l.b16 %v626
    %v813 = vunpack.c.h.b16 %v626
    %v814 = vunpack.c.l.b16 %v627
    %v815 = vunpack.c.h.b16 %v627
    %v816 = vunpack.c.l.b16 %v628
    %v817 = vunpack.c.h.b16 %v628
    %v818 = vunpack.c.l.b16 %v629
    %v819 = vunpack.c.h.b16 %v629
    %v820 = vunpack.c.l.b16 %v630
    %v821 = vunpack.c.h.b16 %v630
    %v822 = vunpack.c.l.b16 %v631
    %v823 = vunpack.c.h.b16 %v631
    %v824 = vpack.c.b16 %v700, %v696
    %v825 = vpack.c.b16 %v701, %v697
    %v826 = vpack.c.b16 %v702, %v698
    %v827 = vpack.c.b16 %v703, %v699
    %v828 = vpack.c.b16 %v708, %v704
    %v829 = vpack.c.b16 %v709, %v705
    %v830 = vpack.c.b16 %v710, %v706
    %v831 = vpack.c.b16 %v711, %v707
    %v832 = vpack.c.b16 %v716, %v712
    %v833 = vpack.c.b16 %v717, %v713
    %v834 = vpack.c.b16 %v718, %v714
    %v835 = vpack.c.b16 %v719, %v715
    %v836 = vpack.c.b16 %v724, %v720
    %v837 = vpack.c.b16 %v725, %v721
    %v838 = vpack.c.b16 %v726, %v722
    %v839 = vpack.c.b16 %v727, %v723
    %v840 = vpack.c.b16 %v732, %v728
    %v841 = vpack.c.b16 %v733, %v729
    %v842 = vpack.c.b16 %v734, %v730
    %v843 = vpack.c.b16 %v735, %v731
    %v844 = vpack.c.b16 %v740, %v736
    %v845 = vpack.c.b16 %v741, %v737
    %v846 = vpack.c.b16 %v742, %v738
    %v847 = vpack.c.b16 %v743, %v739
    %v848 = vpack.c.b16 %v748, %v744
    %v849 = vpack.c.b16 %v749, %v745
    %v850 = vpack.c.b16 %v750, %v746
    %v851 = vpack.c.b16 %v751, %v747
    %v852 = vpack.c.b16 %v756, %v752
    %v853 = vpack.c.b16 %v757, %v753
    %v854 = vpack.c.b16 %v758, %v754
    %v855 = vpack.c.b16 %v759, %v755
    %v856 = vpack.c.b16 %v764, %v760
    %v857 = vpack.c.b16 %v765, %v761
    %v858 = vpack.c.b16 %v766, %v762
    %v859 = vpack.c.b16 %v767, %v763
    %v860 = vpack.c.b16 %v772, %v768
    %v861 = vpack.c.b16 %v773, %v769
    %v862 = vpack.c.b16 %v774, %v770
    %v863 = vpack.c.b16 %v775, %v771
    %v864 = vpack.c.b16 %v780, %v776
    %v865 = vpack.c.b16 %v781, %v777
    %v866 = vpack.c.b16 %v782, %v778
    %v867 = vpack.c.b16 %v783, %v779
    %v868 = vpack.c.b16 %v788, %v784
    %v869 = vpack.c.b16 %v789, %v785
    %v870 = vpack.c.b16 %v790, %v786
    %v871 = vpack.c.b16 %v791, %v787
    %v872 = vpack.c.b16 %v796, %v792
    %v873 = vpack.c.b16 %v797, %v793
    %v874 = vpack.c.b16 %v798, %v794
    %v875 = vpack.c.b16 %v799, %v795
    %v876 = vpack.c.b16 %v804, %v800
    %v877 = vpack.c.b16 %v805, %v801
    %v878 = vpack.c.b16 %v806, %v802
    %v879 = vpack.c.b16 %v807, %v803
    %v880 = vpack.c.b16 %v812, %v808
    %v881 = vpack.c.b16 %v813, %v809
    %v882 = vpack.c.b16 %v814, %v810
    %v883 = vpack.c.b16 %v815, %v811
    %v884 = vpack.c.b16 %v820, %v816
    %v885 = vpack.c.b16 %v821, %v817
    %v886 = vpack.c.b16 %v822, %v818
    %v887 = vpack.c.b16 %v823, %v819
    %952 = vmatpush.bf16.msra.mxu0 %v852
    %953 = vmatpush.bf16.msra.mxu0 %v848
    %954 = vmatpush.bf16.msra.mxu0 %v844
    %955 = vmatpush.bf16.msra.mxu0 %v840
    %956 = vmatpush.bf16.msra.mxu0 %v836
    %957 = vmatpush.bf16.msra.mxu0 %v832
    %958 = vmatpush.bf16.msra.mxu0 %v828
    %959 = vmatpush.bf16.msra.mxu0 %v824
    %960 = vmatmul.bf16.gmra.mxu0 %v566
    %v961 = vpop.f32.mrf.mxu0
    %v962 = vadd.f32 0.0, %v961
    %v963 = vpop.f32.mrf.mxu0
    %964 = vdwg.mxu0
    %965 = vmatpush.bf16.msra.mxu0 %v884
    %966 = vmatpush.bf16.msra.mxu0 %v880
    %967 = vmatpush.bf16.msra.mxu0 %v876
    %968 = vmatpush.bf16.msra.mxu0 %v872
    %969 = vmatpush.bf16.msra.mxu0 %v868
    %970 = vmatpush.bf16.msra.mxu0 %v864
    %971 = vmatpush.bf16.msra.mxu0 %v860
    %972 = vmatpush.bf16.msra.mxu0 %v856
    %973 = vmatmul.bf16.gmra.mxu0 %v567
    %v974 = vpop.f32.mrf.mxu0
    %v975 = vadd.f32 %v962, %v974
    %v976 = vpop.f32.mrf.mxu0
    %977 = vdwg.mxu0
    %978 = vmatpush.bf16.msra.mxu0 %v853
    %979 = vmatpush.bf16.msra.mxu0 %v849
    %980 = vmatpush.bf16.msra.mxu0 %v845
    %981 = vmatpush.bf16.msra.mxu0 %v841
    %982 = vmatpush.bf16.msra.mxu0 %v837
    %983 = vmatpush.bf16.msra.mxu0 %v833
    %984 = vmatpush.bf16.msra.mxu0 %v829
    %985 = vmatpush.bf16.msra.mxu0 %v825
    %986 = vmatmul.bf16.gmra.mxu0 %v566
    %v987 = vpop.f32.mrf.mxu0
    %v988 = vadd.f32 0.0, %v987
    %v989 = vpop.f32.mrf.mxu0
    %990 = vdwg.mxu0
    %991 = vmatpush.bf16.msra.mxu0 %v885
    %992 = vmatpush.bf16.msra.mxu0 %v881
    %993 = vmatpush.bf16.msra.mxu0 %v877
    %994 = vmatpush.bf16.msra.mxu0 %v873
    %995 = vmatpush.bf16.msra.mxu0 %v869
    %996 = vmatpush.bf16.msra.mxu0 %v865
    %997 = vmatpush.bf16.msra.mxu0 %v861
    %998 = vmatpush.bf16.msra.mxu0 %v857
    %999 = vmatmul.bf16.gmra.mxu0 %v567
    %v1000 = vpop.f32.mrf.mxu0
    %v1001 = vadd.f32 %v988, %v1000
    %v1002 = vpop.f32.mrf.mxu0
    %1003 = vdwg.mxu0
    %1004 = vmatpush.bf16.msra.mxu0 %v854
    %1005 = vmatpush.bf16.msra.mxu0 %v850
    %1006 = vmatpush.bf16.msra.mxu0 %v846
    %1007 = vmatpush.bf16.msra.mxu0 %v842
    %1008 = vmatpush.bf16.msra.mxu0 %v838
    %1009 = vmatpush.bf16.msra.mxu0 %v834
    %1010 = vmatpush.bf16.msra.mxu0 %v830
    %1011 = vmatpush.bf16.msra.mxu0 %v826
    %1012 = vmatmul.bf16.gmra.mxu0 %v566
    %v1013 = vpop.f32.mrf.mxu0
    %v1014 = vadd.f32 0.0, %v1013
    %v1015 = vpop.f32.mrf.mxu0
    %1016 = vdwg.mxu0
    %1017 = vmatpush.bf16.msra.mxu0 %v886
    %1018 = vmatpush.bf16.msra.mxu0 %v882
    %1019 = vmatpush.bf16.msra.mxu0 %v878
    %1020 = vmatpush.bf16.msra.mxu0 %v874
    %1021 = vmatpush.bf16.msra.mxu0 %v870
    %1022 = vmatpush.bf16.msra.mxu0 %v866
    %1023 = vmatpush.bf16.msra.mxu0 %v862
    %1024 = vmatpush.bf16.msra.mxu0 %v858
    %1025 = vmatmul.bf16.gmra.mxu0 %v567
    %v1026 = vpop.f32.mrf.mxu0
    %v1027 = vadd.f32 %v1014, %v1026
    %v1028 = vpop.f32.mrf.mxu0
    %1029 = vdwg.mxu0
    %1030 = vmatpush.bf16.msra.mxu0 %v855
    %1031 = vmatpush.bf16.msra.mxu0 %v851
    %1032 = vmatpush.bf16.msra.mxu0 %v847
    %1033 = vmatpush.bf16.msra.mxu0 %v843
    %1034 = vmatpush.bf16.msra.mxu0 %v839
    %1035 = vmatpush.bf16.msra.mxu0 %v835
    %1036 = vmatpush.bf16.msra.mxu0 %v831
    %1037 = vmatpush.bf16.msra.mxu0 %v827
    %1038 = vmatmul.bf16.gmra.mxu0 %v566
    %v1039 = vpop.f32.mrf.mxu0
    %v1040 = vadd.f32 0.0, %v1039
    %v1041 = vpop.f32.mrf.mxu0
    %1042 = vdwg.mxu0
    %1043 = vmatpush.bf16.msra.mxu0 %v887
    %1044 = vmatpush.bf16.msra.mxu0 %v883
    %1045 = vmatpush.bf16.msra.mxu0 %v879
    %1046 = vmatpush.bf16.msra.mxu0 %v875
    %1047 = vmatpush.bf16.msra.mxu0 %v871
    %1048 = vmatpush.bf16.msra.mxu0 %v867
    %1049 = vmatpush.bf16.msra.mxu0 %v863
    %1050 = vmatpush.bf16.msra.mxu0 %v859
    %1051 = vmatmul.bf16.gmra.mxu0 %v567
    %v1052 = vpop.f32.mrf.mxu0
    %v1053 = vadd.f32 %v1040, %v1052
    %v1054 = vpop.f32.mrf.mxu0
    %1055 = vdwg.mxu0
    %v1056 = vmax.f32 %v975, 0.0
    %v1057 = vmax.f32 %v1001, 0.0
    %v1058 = vmax.f32 %v1027, 0.0
    %v1059 = vmax.f32 %v1053, 0.0
    %v1061 = vperm.slane %v565, 0
    %v1062 = vperm.slane %v565, 1
    %v1063 = vperm.slane %v565, 2
    %v1064 = vperm.slane %v565, 3
    %v1069 = vadd.f32 %v1061, %v1056
    %v1070 = vadd.f32 %v1062, %v1057
    %v1071 = vadd.f32 %v1063, %v1058
    %v1072 = vadd.f32 %v1064, %v1059
    %v1073 = vtanh.pop %v1069
    %v1074 = vtanh.pop %v1070
    %v1075 = vtanh.pop %v1071
    %v1076 = vtanh.pop %v1072
    %v1077 = vld [vmem:[#allocation17] sm:$0xff]
    %v1078 = vpack.c.bf16 %v1073, %v1073
    %v1079 = vpack.c.bf16 %v1074, %v1074
    %v1080 = vpack.c.bf16 %v1075, %v1075
    %v1081 = vpack.c.bf16 %v1076, %v1076
    %v1082 = vld [vmem:[#allocation16] sm:$0xff]
    %v1083 = vld [vmem:[#allocation16 + $0x8] sm:$0xff]
    %v1084 = vld [vmem:[#allocation16 + $0x10] sm:$0xff]
    %v1085 = vld [vmem:[#allocation16 + $0x18] sm:$0xff]
    %v1086 = vld [vmem:[#allocation16 + $0x20] sm:$0xff]
    %v1087 = vld [vmem:[#allocation16 + $0x28] sm:$0xff]
    %v1088 = vld [vmem:[#allocation16 + $0x30] sm:$0xff]
    %v1089 = vld [vmem:[#allocation16 + $0x38] sm:$0xff]
    %v1090 = vld [vmem:[#allocation16 + $0x40] sm:$0xff]
    %v1091 = vld [vmem:[#allocation16 + $0x48] sm:$0xff]
    %v1092 = vld [vmem:[#allocation16 + $0x50] sm:$0xff]
    %v1093 = vld [vmem:[#allocation16 + $0x58] sm:$0xff]
    %v1094 = vld [vmem:[#allocation16 + $0x60] sm:$0xff]
    %v1095 = vld [vmem:[#allocation16 + $0x68] sm:$0xff]
    %v1096 = vld [vmem:[#allocation16 + $0x70] sm:$0xff]
    %v1097 = vld [vmem:[#allocation16 + $0x78] sm:$0xff]
    %v1098 = vld [vmem:[#allocation16 + $0x80] sm:$0xff]
    %v1099 = vld [vmem:[#allocation16 + $0x88] sm:$0xff]
    %v1100 = vld [vmem:[#allocation16 + $0x90] sm:$0xff]
    %v1101 = vld [vmem:[#allocation16 + $0x98] sm:$0xff]
    %v1102 = vld [vmem:[#allocation16 + $0xa0] sm:$0xff]
    %v1103 = vld [vmem:[#allocation16 + $0xa8] sm:$0xff]
    %v1104 = vld [vmem:[#allocation16 + $0xb0] sm:$0xff]
    %v1105 = vld [vmem:[#allocation16 + $0xb8] sm:$0xff]
    %v1106 = vld [vmem:[#allocation16 + $0xc0] sm:$0xff]
    %v1107 = vld [vmem:[#allocation16 + $0xc8] sm:$0xff]
    %v1108 = vld [vmem:[#allocation16 + $0xd0] sm:$0xff]
    %v1109 = vld [vmem:[#allocation16 + $0xd8] sm:$0xff]
    %v1110 = vld [vmem:[#allocation16 + $0xe0] sm:$0xff]
    %v1111 = vld [vmem:[#allocation16 + $0xe8] sm:$0xff]
    %v1112 = vld [vmem:[#allocation16 + $0xf0] sm:$0xff]
    %v1113 = vld [vmem:[#allocation16 + $0xf8] sm:$0xff]
    %v1114 = vld [vmem:[#allocation16 + $0x100] sm:$0xff]
    %v1115 = vld [vmem:[#allocation16 + $0x108] sm:$0xff]
    %v1116 = vld [vmem:[#allocation16 + $0x110] sm:$0xff]
    %v1117 = vld [vmem:[#allocation16 + $0x118] sm:$0xff]
    %v1118 = vld [vmem:[#allocation16 + $0x120] sm:$0xff]
    %v1119 = vld [vmem:[#allocation16 + $0x128] sm:$0xff]
    %v1120 = vld [vmem:[#allocation16 + $0x130] sm:$0xff]
    %v1121 = vld [vmem:[#allocation16 + $0x138] sm:$0xff]
    %v1122 = vld [vmem:[#allocation16 + $0x140] sm:$0xff]
    %v1123 = vld [vmem:[#allocation16 + $0x148] sm:$0xff]
    %v1124 = vld [vmem:[#allocation16 + $0x150] sm:$0xff]
    %v1125 = vld [vmem:[#allocation16 + $0x158] sm:$0xff]
    %v1126 = vld [vmem:[#allocation16 + $0x160] sm:$0xff]
    %v1127 = vld [vmem:[#allocation16 + $0x168] sm:$0xff]
    %v1128 = vld [vmem:[#allocation16 + $0x170] sm:$0xff]
    %v1129 = vld [vmem:[#allocation16 + $0x178] sm:$0xff]
    %v1130 = vld [vmem:[#allocation16 + $0x180] sm:$0xff]
    %v1131 = vld [vmem:[#allocation16 + $0x188] sm:$0xff]
    %v1132 = vld [vmem:[#allocation16 + $0x190] sm:$0xff]
    %v1133 = vld [vmem:[#allocation16 + $0x198] sm:$0xff]
    %v1134 = vld [vmem:[#allocation16 + $0x1a0] sm:$0xff]
    %v1135 = vld [vmem:[#allocation16 + $0x1a8] sm:$0xff]
    %v1136 = vld [vmem:[#allocation16 + $0x1b0] sm:$0xff]
    %v1137 = vld [vmem:[#allocation16 + $0x1b8] sm:$0xff]
    %v1138 = vld [vmem:[#allocation16 + $0x1c0] sm:$0xff]
    %v1139 = vld [vmem:[#allocation16 + $0x1c8] sm:$0xff]
    %v1140 = vld [vmem:[#allocation16 + $0x1d0] sm:$0xff]
    %v1141 = vld [vmem:[#allocation16 + $0x1d8] sm:$0xff]
    %v1142 = vld [vmem:[#allocation16 + $0x1e0] sm:$0xff]
    %v1143 = vld [vmem:[#allocation16 + $0x1e8] sm:$0xff]
    %v1144 = vld [vmem:[#allocation16 + $0x1f0] sm:$0xff]
    %v1145 = vld [vmem:[#allocation16 + $0x1f8] sm:$0xff]
    %v1146 = vld [vmem:[#allocation16 + $0x200] sm:$0xff]
    %v1147 = vld [vmem:[#allocation16 + $0x208] sm:$0xff]
    %v1148 = vld [vmem:[#allocation16 + $0x210] sm:$0xff]
    %v1149 = vld [vmem:[#allocation16 + $0x218] sm:$0xff]
    %v1150 = vld [vmem:[#allocation16 + $0x220] sm:$0xff]
    %v1151 = vld [vmem:[#allocation16 + $0x228] sm:$0xff]
    %v1152 = vld [vmem:[#allocation16 + $0x230] sm:$0xff]
    %v1153 = vld [vmem:[#allocation16 + $0x238] sm:$0xff]
    %v1154 = vld [vmem:[#allocation16 + $0x240] sm:$0xff]
    %v1155 = vld [vmem:[#allocation16 + $0x248] sm:$0xff]
    %v1156 = vld [vmem:[#allocation16 + $0x250] sm:$0xff]
    %v1157 = vld [vmem:[#allocation16 + $0x258] sm:$0xff]
    %v1158 = vld [vmem:[#allocation16 + $0x260] sm:$0xff]
    %v1159 = vld [vmem:[#allocation16 + $0x268] sm:$0xff]
    %v1160 = vld [vmem:[#allocation16 + $0x270] sm:$0xff]
    %v1161 = vld [vmem:[#allocation16 + $0x278] sm:$0xff]
    %v1162 = vld [vmem:[#allocation16 + $0x280] sm:$0xff]
    %v1163 = vld [vmem:[#allocation16 + $0x288] sm:$0xff]
    %v1164 = vld [vmem:[#allocation16 + $0x290] sm:$0xff]
    %v1165 = vld [vmem:[#allocation16 + $0x298] sm:$0xff]
    %v1166 = vld [vmem:[#allocation16 + $0x2a0] sm:$0xff]
    %v1167 = vld [vmem:[#allocation16 + $0x2a8] sm:$0xff]
    %v1168 = vld [vmem:[#allocation16 + $0x2b0] sm:$0xff]
    %v1169 = vld [vmem:[#allocation16 + $0x2b8] sm:$0xff]
    %v1170 = vld [vmem:[#allocation16 + $0x2c0] sm:$0xff]
    %v1171 = vld [vmem:[#allocation16 + $0x2c8] sm:$0xff]
    %v1172 = vld [vmem:[#allocation16 + $0x2d0] sm:$0xff]
    %v1173 = vld [vmem:[#allocation16 + $0x2d8] sm:$0xff]
    %v1174 = vld [vmem:[#allocation16 + $0x2e0] sm:$0xff]
    %v1175 = vld [vmem:[#allocation16 + $0x2e8] sm:$0xff]
    %v1176 = vld [vmem:[#allocation16 + $0x2f0] sm:$0xff]
    %v1177 = vld [vmem:[#allocation16 + $0x2f8] sm:$0xff]
    %v1178 = vld [vmem:[#allocation16 + $0x300] sm:$0xff]
    %v1179 = vld [vmem:[#allocation16 + $0x308] sm:$0xff]
    %v1180 = vld [vmem:[#allocation16 + $0x310] sm:$0xff]
    %v1181 = vld [vmem:[#allocation16 + $0x318] sm:$0xff]
    %v1182 = vld [vmem:[#allocation16 + $0x320] sm:$0xff]
    %v1183 = vld [vmem:[#allocation16 + $0x328] sm:$0xff]
    %v1184 = vld [vmem:[#allocation16 + $0x330] sm:$0xff]
    %v1185 = vld [vmem:[#allocation16 + $0x338] sm:$0xff]
    %v1186 = vld [vmem:[#allocation16 + $0x340] sm:$0xff]
    %v1187 = vld [vmem:[#allocation16 + $0x348] sm:$0xff]
    %v1188 = vld [vmem:[#allocation16 + $0x350] sm:$0xff]
    %v1189 = vld [vmem:[#allocation16 + $0x358] sm:$0xff]
    %v1190 = vld [vmem:[#allocation16 + $0x360] sm:$0xff]
    %v1191 = vld [vmem:[#allocation16 + $0x368] sm:$0xff]
    %v1192 = vld [vmem:[#allocation16 + $0x370] sm:$0xff]
    %v1193 = vld [vmem:[#allocation16 + $0x378] sm:$0xff]
    %v1194 = vld [vmem:[#allocation16 + $0x380] sm:$0xff]
    %v1195 = vld [vmem:[#allocation16 + $0x388] sm:$0xff]
    %v1196 = vld [vmem:[#allocation16 + $0x390] sm:$0xff]
    %v1197 = vld [vmem:[#allocation16 + $0x398] sm:$0xff]
    %v1198 = vld [vmem:[#allocation16 + $0x3a0] sm:$0xff]
    %v1199 = vld [vmem:[#allocation16 + $0x3a8] sm:$0xff]
    %v1200 = vld [vmem:[#allocation16 + $0x3b0] sm:$0xff]
    %v1201 = vld [vmem:[#allocation16 + $0x3b8] sm:$0xff]
    %v1202 = vld [vmem:[#allocation16 + $0x3c0] sm:$0xff]
    %v1203 = vld [vmem:[#allocation16 + $0x3c8] sm:$0xff]
    %v1204 = vld [vmem:[#allocation16 + $0x3d0] sm:$0xff]
    %v1205 = vld [vmem:[#allocation16 + $0x3d8] sm:$0xff]
    %v1206 = vld [vmem:[#allocation16 + $0x3e0] sm:$0xff]
    %v1207 = vld [vmem:[#allocation16 + $0x3e8] sm:$0xff]
    %v1208 = vld [vmem:[#allocation16 + $0x3f0] sm:$0xff]
    %v1209 = vld [vmem:[#allocation16 + $0x3f8] sm:$0xff]
    %v1210 = vld [vmem:[#allocation16 + $0x400] sm:$0xff]
    %v1211 = vld [vmem:[#allocation16 + $0x408] sm:$0xff]
    %v1212 = vld [vmem:[#allocation16 + $0x410] sm:$0xff]
    %v1213 = vld [vmem:[#allocation16 + $0x418] sm:$0xff]
    %v1214 = vld [vmem:[#allocation16 + $0x420] sm:$0xff]
    %v1215 = vld [vmem:[#allocation16 + $0x428] sm:$0xff]
    %v1216 = vld [vmem:[#allocation16 + $0x430] sm:$0xff]
    %v1217 = vld [vmem:[#allocation16 + $0x438] sm:$0xff]
    %v1218 = vld [vmem:[#allocation16 + $0x440] sm:$0xff]
    %v1219 = vld [vmem:[#allocation16 + $0x448] sm:$0xff]
    %v1220 = vld [vmem:[#allocation16 + $0x450] sm:$0xff]
    %v1221 = vld [vmem:[#allocation16 + $0x458] sm:$0xff]
    %v1222 = vld [vmem:[#allocation16 + $0x460] sm:$0xff]
    %v1223 = vld [vmem:[#allocation16 + $0x468] sm:$0xff]
    %v1224 = vld [vmem:[#allocation16 + $0x470] sm:$0xff]
    %v1225 = vld [vmem:[#allocation16 + $0x478] sm:$0xff]
    %v1226 = vld [vmem:[#allocation16 + $0x480] sm:$0xff]
    %v1227 = vld [vmem:[#allocation16 + $0x488] sm:$0xff]
    %v1228 = vld [vmem:[#allocation16 + $0x490] sm:$0xff]
    %v1229 = vld [vmem:[#allocation16 + $0x498] sm:$0xff]
    %v1230 = vld [vmem:[#allocation16 + $0x4a0] sm:$0xff]
    %v1231 = vld [vmem:[#allocation16 + $0x4a8] sm:$0xff]
    %v1232 = vld [vmem:[#allocation16 + $0x4b0] sm:$0xff]
    %v1233 = vld [vmem:[#allocation16 + $0x4b8] sm:$0xff]
    %v1234 = vld [vmem:[#allocation16 + $0x4c0] sm:$0xff]
    %v1235 = vld [vmem:[#allocation16 + $0x4c8] sm:$0xff]
    %v1236 = vld [vmem:[#allocation16 + $0x4d0] sm:$0xff]
    %v1237 = vld [vmem:[#allocation16 + $0x4d8] sm:$0xff]
    %v1238 = vld [vmem:[#allocation16 + $0x4e0] sm:$0xff]
    %v1239 = vld [vmem:[#allocation16 + $0x4e8] sm:$0xff]
    %v1240 = vld [vmem:[#allocation16 + $0x4f0] sm:$0xff]
    %v1241 = vld [vmem:[#allocation16 + $0x4f8] sm:$0xff]
    %v1242 = vld [vmem:[#allocation16 + $0x500] sm:$0xff]
    %v1243 = vld [vmem:[#allocation16 + $0x508] sm:$0xff]
    %v1244 = vld [vmem:[#allocation16 + $0x510] sm:$0xff]
    %v1245 = vld [vmem:[#allocation16 + $0x518] sm:$0xff]
    %v1246 = vld [vmem:[#allocation16 + $0x520] sm:$0xff]
    %v1247 = vld [vmem:[#allocation16 + $0x528] sm:$0xff]
    %v1248 = vld [vmem:[#allocation16 + $0x530] sm:$0xff]
    %v1249 = vld [vmem:[#allocation16 + $0x538] sm:$0xff]
    %v1250 = vld [vmem:[#allocation16 + $0x540] sm:$0xff]
    %v1251 = vld [vmem:[#allocation16 + $0x548] sm:$0xff]
    %v1252 = vld [vmem:[#allocation16 + $0x550] sm:$0xff]
    %v1253 = vld [vmem:[#allocation16 + $0x558] sm:$0xff]
    %v1254 = vld [vmem:[#allocation16 + $0x560] sm:$0xff]
    %v1255 = vld [vmem:[#allocation16 + $0x568] sm:$0xff]
    %v1256 = vld [vmem:[#allocation16 + $0x570] sm:$0xff]
    %v1257 = vld [vmem:[#allocation16 + $0x578] sm:$0xff]
    %v1258 = vld [vmem:[#allocation16 + $0x580] sm:$0xff]
    %v1259 = vld [vmem:[#allocation16 + $0x588] sm:$0xff]
    %v1260 = vld [vmem:[#allocation16 + $0x590] sm:$0xff]
    %v1261 = vld [vmem:[#allocation16 + $0x598] sm:$0xff]
    %v1262 = vld [vmem:[#allocation16 + $0x5a0] sm:$0xff]
    %v1263 = vld [vmem:[#allocation16 + $0x5a8] sm:$0xff]
    %v1264 = vld [vmem:[#allocation16 + $0x5b0] sm:$0xff]
    %v1265 = vld [vmem:[#allocation16 + $0x5b8] sm:$0xff]
    %v1266 = vld [vmem:[#allocation16 + $0x5c0] sm:$0xff]
    %v1267 = vld [vmem:[#allocation16 + $0x5c8] sm:$0xff]
    %v1268 = vld [vmem:[#allocation16 + $0x5d0] sm:$0xff]
    %v1269 = vld [vmem:[#allocation16 + $0x5d8] sm:$0xff]
    %v1270 = vld [vmem:[#allocation16 + $0x5e0] sm:$0xff]
    %v1271 = vld [vmem:[#allocation16 + $0x5e8] sm:$0xff]
    %v1272 = vld [vmem:[#allocation16 + $0x5f0] sm:$0xff]
    %v1273 = vld [vmem:[#allocation16 + $0x5f8] sm:$0xff]
    %v1274 = vld [vmem:[#allocation16 + $0x600] sm:$0xff]
    %v1275 = vld [vmem:[#allocation16 + $0x608] sm:$0xff]
    %v1276 = vld [vmem:[#allocation16 + $0x610] sm:$0xff]
    %v1277 = vld [vmem:[#allocation16 + $0x618] sm:$0xff]
    %v1278 = vld [vmem:[#allocation16 + $0x620] sm:$0xff]
    %v1279 = vld [vmem:[#allocation16 + $0x628] sm:$0xff]
    %v1280 = vld [vmem:[#allocation16 + $0x630] sm:$0xff]
    %v1281 = vld [vmem:[#allocation16 + $0x638] sm:$0xff]
    %v1282 = vld [vmem:[#allocation16 + $0x640] sm:$0xff]
    %v1283 = vld [vmem:[#allocation16 + $0x648] sm:$0xff]
    %v1284 = vld [vmem:[#allocation16 + $0x650] sm:$0xff]
    %v1285 = vld [vmem:[#allocation16 + $0x658] sm:$0xff]
    %v1286 = vld [vmem:[#allocation16 + $0x660] sm:$0xff]
    %v1287 = vld [vmem:[#allocation16 + $0x668] sm:$0xff]
    %v1288 = vld [vmem:[#allocation16 + $0x670] sm:$0xff]
    %v1289 = vld [vmem:[#allocation16 + $0x678] sm:$0xff]
    %v1290 = vld [vmem:[#allocation16 + $0x680] sm:$0xff]
    %v1291 = vld [vmem:[#allocation16 + $0x688] sm:$0xff]
    %v1292 = vld [vmem:[#allocation16 + $0x690] sm:$0xff]
    %v1293 = vld [vmem:[#allocation16 + $0x698] sm:$0xff]
    %v1294 = vld [vmem:[#allocation16 + $0x6a0] sm:$0xff]
    %v1295 = vld [vmem:[#allocation16 + $0x6a8] sm:$0xff]
    %v1296 = vld [vmem:[#allocation16 + $0x6b0] sm:$0xff]
    %v1297 = vld [vmem:[#allocation16 + $0x6b8] sm:$0xff]
    %v1298 = vld [vmem:[#allocation16 + $0x6c0] sm:$0xff]
    %v1299 = vld [vmem:[#allocation16 + $0x6c8] sm:$0xff]
    %v1300 = vld [vmem:[#allocation16 + $0x6d0] sm:$0xff]
    %v1301 = vld [vmem:[#allocation16 + $0x6d8] sm:$0xff]
    %v1302 = vld [vmem:[#allocation16 + $0x6e0] sm:$0xff]
    %v1303 = vld [vmem:[#allocation16 + $0x6e8] sm:$0xff]
    %v1304 = vld [vmem:[#allocation16 + $0x6f0] sm:$0xff]
    %v1305 = vld [vmem:[#allocation16 + $0x6f8] sm:$0xff]
    %v1306 = vld [vmem:[#allocation16 + $0x700] sm:$0xff]
    %v1307 = vld [vmem:[#allocation16 + $0x708] sm:$0xff]
    %v1308 = vld [vmem:[#allocation16 + $0x710] sm:$0xff]
    %v1309 = vld [vmem:[#allocation16 + $0x718] sm:$0xff]
    %v1310 = vld [vmem:[#allocation16 + $0x720] sm:$0xff]
    %v1311 = vld [vmem:[#allocation16 + $0x728] sm:$0xff]
    %v1312 = vld [vmem:[#allocation16 + $0x730] sm:$0xff]
    %v1313 = vld [vmem:[#allocation16 + $0x738] sm:$0xff]
    %v1314 = vld [vmem:[#allocation16 + $0x740] sm:$0xff]
    %v1315 = vld [vmem:[#allocation16 + $0x748] sm:$0xff]
    %v1316 = vld [vmem:[#allocation16 + $0x750] sm:$0xff]
    %v1317 = vld [vmem:[#allocation16 + $0x758] sm:$0xff]
    %v1318 = vld [vmem:[#allocation16 + $0x760] sm:$0xff]
    %v1319 = vld [vmem:[#allocation16 + $0x768] sm:$0xff]
    %v1320 = vld [vmem:[#allocation16 + $0x770] sm:$0xff]
    %v1321 = vld [vmem:[#allocation16 + $0x778] sm:$0xff]
    %v1322 = vld [vmem:[#allocation16 + $0x780] sm:$0xff]
    %v1323 = vld [vmem:[#allocation16 + $0x788] sm:$0xff]
    %v1324 = vld [vmem:[#allocation16 + $0x790] sm:$0xff]
    %v1325 = vld [vmem:[#allocation16 + $0x798] sm:$0xff]
    %v1326 = vld [vmem:[#allocation16 + $0x7a0] sm:$0xff]
    %v1327 = vld [vmem:[#allocation16 + $0x7a8] sm:$0xff]
    %v1328 = vld [vmem:[#allocation16 + $0x7b0] sm:$0xff]
    %v1329 = vld [vmem:[#allocation16 + $0x7b8] sm:$0xff]
    %v1330 = vld [vmem:[#allocation16 + $0x7c0] sm:$0xff]
    %v1331 = vld [vmem:[#allocation16 + $0x7c8] sm:$0xff]
    %v1332 = vld [vmem:[#allocation16 + $0x7d0] sm:$0xff]
    %v1333 = vld [vmem:[#allocation16 + $0x7d8] sm:$0xff]
    %v1334 = vld [vmem:[#allocation16 + $0x7e0] sm:$0xff]
    %v1335 = vld [vmem:[#allocation16 + $0x7e8] sm:$0xff]
    %v1336 = vld [vmem:[#allocation16 + $0x7f0] sm:$0xff]
    %v1337 = vld [vmem:[#allocation16 + $0x7f8] sm:$0xff]
    %v1594 = vunpack.c.l.b16 %v1082
    %v1595 = vunpack.c.h.b16 %v1082
    %v1596 = vunpack.c.l.b16 %v1083
    %v1597 = vunpack.c.h.b16 %v1083
    %v1598 = vunpack.c.l.b16 %v1084
    %v1599 = vunpack.c.h.b16 %v1084
    %v1600 = vunpack.c.l.b16 %v1085
    %v1601 = vunpack.c.h.b16 %v1085
    %v1602 = vunpack.c.l.b16 %v1086
    %v1603 = vunpack.c.h.b16 %v1086
    %v1604 = vunpack.c.l.b16 %v1087
    %v1605 = vunpack.c.h.b16 %v1087
    %v1606 = vunpack.c.l.b16 %v1088
    %v1607 = vunpack.c.h.b16 %v1088
    %v1608 = vunpack.c.l.b16 %v1089
    %v1609 = vunpack.c.h.b16 %v1089
    %v1610 = vunpack.c.l.b16 %v1090
    %v1611 = vunpack.c.h.b16 %v1090
    %v1612 = vunpack.c.l.b16 %v1091
    %v1613 = vunpack.c.h.b16 %v1091
    %v1614 = vunpack.c.l.b16 %v1092
    %v1615 = vunpack.c.h.b16 %v1092
    %v1616 = vunpack.c.l.b16 %v1093
    %v1617 = vunpack.c.h.b16 %v1093
    %v1618 = vunpack.c.l.b16 %v1094
    %v1619 = vunpack.c.h.b16 %v1094
    %v1620 = vunpack.c.l.b16 %v1095
    %v1621 = vunpack.c.h.b16 %v1095
    %v1622 = vunpack.c.l.b16 %v1096
    %v1623 = vunpack.c.h.b16 %v1096
    %v1624 = vunpack.c.l.b16 %v1097
    %v1625 = vunpack.c.h.b16 %v1097
    %v1626 = vunpack.c.l.b16 %v1098
    %v1627 = vunpack.c.h.b16 %v1098
    %v1628 = vunpack.c.l.b16 %v1099
    %v1629 = vunpack.c.h.b16 %v1099
    %v1630 = vunpack.c.l.b16 %v1100
    %v1631 = vunpack.c.h.b16 %v1100
    %v1632 = vunpack.c.l.b16 %v1101
    %v1633 = vunpack.c.h.b16 %v1101
    %v1634 = vunpack.c.l.b16 %v1102
    %v1635 = vunpack.c.h.b16 %v1102
    %v1636 = vunpack.c.l.b16 %v1103
    %v1637 = vunpack.c.h.b16 %v1103
    %v1638 = vunpack.c.l.b16 %v1104
    %v1639 = vunpack.c.h.b16 %v1104
    %v1640 = vunpack.c.l.b16 %v1105
    %v1641 = vunpack.c.h.b16 %v1105
    %v1642 = vunpack.c.l.b16 %v1106
    %v1643 = vunpack.c.h.b16 %v1106
    %v1644 = vunpack.c.l.b16 %v1107
    %v1645 = vunpack.c.h.b16 %v1107
    %v1646 = vunpack.c.l.b16 %v1108
    %v1647 = vunpack.c.h.b16 %v1108
    %v1648 = vunpack.c.l.b16 %v1109
    %v1649 = vunpack.c.h.b16 %v1109
    %v1650 = vunpack.c.l.b16 %v1110
    %v1651 = vunpack.c.h.b16 %v1110
    %v1652 = vunpack.c.l.b16 %v1111
    %v1653 = vunpack.c.h.b16 %v1111
    %v1654 = vunpack.c.l.b16 %v1112
    %v1655 = vunpack.c.h.b16 %v1112
    %v1656 = vunpack.c.l.b16 %v1113
    %v1657 = vunpack.c.h.b16 %v1113
    %v1658 = vunpack.c.l.b16 %v1114
    %v1659 = vunpack.c.h.b16 %v1114
    %v1660 = vunpack.c.l.b16 %v1115
    %v1661 = vunpack.c.h.b16 %v1115
    %v1662 = vunpack.c.l.b16 %v1116
    %v1663 = vunpack.c.h.b16 %v1116
    %v1664 = vunpack.c.l.b16 %v1117
    %v1665 = vunpack.c.h.b16 %v1117
    %v1666 = vunpack.c.l.b16 %v1118
    %v1667 = vunpack.c.h.b16 %v1118
    %v1668 = vunpack.c.l.b16 %v1119
    %v1669 = vunpack.c.h.b16 %v1119
    %v1670 = vunpack.c.l.b16 %v1120
    %v1671 = vunpack.c.h.b16 %v1120
    %v1672 = vunpack.c.l.b16 %v1121
    %v1673 = vunpack.c.h.b16 %v1121
    %v1674 = vunpack.c.l.b16 %v1122
    %v1675 = vunpack.c.h.b16 %v1122
    %v1676 = vunpack.c.l.b16 %v1123
    %v1677 = vunpack.c.h.b16 %v1123
    %v1678 = vunpack.c.l.b16 %v1124
    %v1679 = vunpack.c.h.b16 %v1124
    %v1680 = vunpack.c.l.b16 %v1125
    %v1681 = vunpack.c.h.b16 %v1125
    %v1682 = vunpack.c.l.b16 %v1126
    %v1683 = vunpack.c.h.b16 %v1126
    %v1684 = vunpack.c.l.b16 %v1127
    %v1685 = vunpack.c.h.b16 %v1127
    %v1686 = vunpack.c.l.b16 %v1128
    %v1687 = vunpack.c.h.b16 %v1128
    %v1688 = vunpack.c.l.b16 %v1129
    %v1689 = vunpack.c.h.b16 %v1129
    %v1690 = vunpack.c.l.b16 %v1130
    %v1691 = vunpack.c.h.b16 %v1130
    %v1692 = vunpack.c.l.b16 %v1131
    %v1693 = vunpack.c.h.b16 %v1131
    %v1694 = vunpack.c.l.b16 %v1132
    %v1695 = vunpack.c.h.b16 %v1132
    %v1696 = vunpack.c.l.b16 %v1133
    %v1697 = vunpack.c.h.b16 %v1133
    %v1698 = vunpack.c.l.b16 %v1134
    %v1699 = vunpack.c.h.b16 %v1134
    %v1700 = vunpack.c.l.b16 %v1135
    %v1701 = vunpack.c.h.b16 %v1135
    %v1702 = vunpack.c.l.b16 %v1136
    %v1703 = vunpack.c.h.b16 %v1136
    %v1704 = vunpack.c.l.b16 %v1137
    %v1705 = vunpack.c.h.b16 %v1137
    %v1706 = vunpack.c.l.b16 %v1138
    %v1707 = vunpack.c.h.b16 %v1138
    %v1708 = vunpack.c.l.b16 %v1139
    %v1709 = vunpack.c.h.b16 %v1139
    %v1710 = vunpack.c.l.b16 %v1140
    %v1711 = vunpack.c.h.b16 %v1140
    %v1712 = vunpack.c.l.b16 %v1141
    %v1713 = vunpack.c.h.b16 %v1141
    %v1714 = vunpack.c.l.b16 %v1142
    %v1715 = vunpack.c.h.b16 %v1142
    %v1716 = vunpack.c.l.b16 %v1143
    %v1717 = vunpack.c.h.b16 %v1143
    %v1718 = vunpack.c.l.b16 %v1144
    %v1719 = vunpack.c.h.b16 %v1144
    %v1720 = vunpack.c.l.b16 %v1145
    %v1721 = vunpack.c.h.b16 %v1145
    %v1722 = vunpack.c.l.b16 %v1146
    %v1723 = vunpack.c.h.b16 %v1146
    %v1724 = vunpack.c.l.b16 %v1147
    %v1725 = vunpack.c.h.b16 %v1147
    %v1726 = vunpack.c.l.b16 %v1148
    %v1727 = vunpack.c.h.b16 %v1148
    %v1728 = vunpack.c.l.b16 %v1149
    %v1729 = vunpack.c.h.b16 %v1149
    %v1730 = vunpack.c.l.b16 %v1150
    %v1731 = vunpack.c.h.b16 %v1150
    %v1732 = vunpack.c.l.b16 %v1151
    %v1733 = vunpack.c.h.b16 %v1151
    %v1734 = vunpack.c.l.b16 %v1152
    %v1735 = vunpack.c.h.b16 %v1152
    %v1736 = vunpack.c.l.b16 %v1153
    %v1737 = vunpack.c.h.b16 %v1153
    %v1738 = vunpack.c.l.b16 %v1154
    %v1739 = vunpack.c.h.b16 %v1154
    %v1740 = vunpack.c.l.b16 %v1155
    %v1741 = vunpack.c.h.b16 %v1155
    %v1742 = vunpack.c.l.b16 %v1156
    %v1743 = vunpack.c.h.b16 %v1156
    %v1744 = vunpack.c.l.b16 %v1157
    %v1745 = vunpack.c.h.b16 %v1157
    %v1746 = vunpack.c.l.b16 %v1158
    %v1747 = vunpack.c.h.b16 %v1158
    %v1748 = vunpack.c.l.b16 %v1159
    %v1749 = vunpack.c.h.b16 %v1159
    %v1750 = vunpack.c.l.b16 %v1160
    %v1751 = vunpack.c.h.b16 %v1160
    %v1752 = vunpack.c.l.b16 %v1161
    %v1753 = vunpack.c.h.b16 %v1161
    %v1754 = vunpack.c.l.b16 %v1162
    %v1755 = vunpack.c.h.b16 %v1162
    %v1756 = vunpack.c.l.b16 %v1163
    %v1757 = vunpack.c.h.b16 %v1163
    %v1758 = vunpack.c.l.b16 %v1164
    %v1759 = vunpack.c.h.b16 %v1164
    %v1760 = vunpack.c.l.b16 %v1165
    %v1761 = vunpack.c.h.b16 %v1165
    %v1762 = vunpack.c.l.b16 %v1166
    %v1763 = vunpack.c.h.b16 %v1166
    %v1764 = vunpack.c.l.b16 %v1167
    %v1765 = vunpack.c.h.b16 %v1167
    %v1766 = vunpack.c.l.b16 %v1168
    %v1767 = vunpack.c.h.b16 %v1168
    %v1768 = vunpack.c.l.b16 %v1169
    %v1769 = vunpack.c.h.b16 %v1169
    %v1770 = vunpack.c.l.b16 %v1170
    %v1771 = vunpack.c.h.b16 %v1170
    %v1772 = vunpack.c.l.b16 %v1171
    %v1773 = vunpack.c.h.b16 %v1171
    %v1774 = vunpack.c.l.b16 %v1172
    %v1775 = vunpack.c.h.b16 %v1172
    %v1776 = vunpack.c.l.b16 %v1173
    %v1777 = vunpack.c.h.b16 %v1173
    %v1778 = vunpack.c.l.b16 %v1174
    %v1779 = vunpack.c.h.b16 %v1174
    %v1780 = vunpack.c.l.b16 %v1175
    %v1781 = vunpack.c.h.b16 %v1175
    %v1782 = vunpack.c.l.b16 %v1176
    %v1783 = vunpack.c.h.b16 %v1176
    %v1784 = vunpack.c.l.b16 %v1177
    %v1785 = vunpack.c.h.b16 %v1177
    %v1786 = vunpack.c.l.b16 %v1178
    %v1787 = vunpack.c.h.b16 %v1178
    %v1788 = vunpack.c.l.b16 %v1179
    %v1789 = vunpack.c.h.b16 %v1179
    %v1790 = vunpack.c.l.b16 %v1180
    %v1791 = vunpack.c.h.b16 %v1180
    %v1792 = vunpack.c.l.b16 %v1181
    %v1793 = vunpack.c.h.b16 %v1181
    %v1794 = vunpack.c.l.b16 %v1182
    %v1795 = vunpack.c.h.b16 %v1182
    %v1796 = vunpack.c.l.b16 %v1183
    %v1797 = vunpack.c.h.b16 %v1183
    %v1798 = vunpack.c.l.b16 %v1184
    %v1799 = vunpack.c.h.b16 %v1184
    %v1800 = vunpack.c.l.b16 %v1185
    %v1801 = vunpack.c.h.b16 %v1185
    %v1802 = vunpack.c.l.b16 %v1186
    %v1803 = vunpack.c.h.b16 %v1186
    %v1804 = vunpack.c.l.b16 %v1187
    %v1805 = vunpack.c.h.b16 %v1187
    %v1806 = vunpack.c.l.b16 %v1188
    %v1807 = vunpack.c.h.b16 %v1188
    %v1808 = vunpack.c.l.b16 %v1189
    %v1809 = vunpack.c.h.b16 %v1189
    %v1810 = vunpack.c.l.b16 %v1190
    %v1811 = vunpack.c.h.b16 %v1190
    %v1812 = vunpack.c.l.b16 %v1191
    %v1813 = vunpack.c.h.b16 %v1191
    %v1814 = vunpack.c.l.b16 %v1192
    %v1815 = vunpack.c.h.b16 %v1192
    %v1816 = vunpack.c.l.b16 %v1193
    %v1817 = vunpack.c.h.b16 %v1193
    %v1818 = vunpack.c.l.b16 %v1194
    %v1819 = vunpack.c.h.b16 %v1194
    %v1820 = vunpack.c.l.b16 %v1195
    %v1821 = vunpack.c.h.b16 %v1195
    %v1822 = vunpack.c.l.b16 %v1196
    %v1823 = vunpack.c.h.b16 %v1196
    %v1824 = vunpack.c.l.b16 %v1197
    %v1825 = vunpack.c.h.b16 %v1197
    %v1826 = vunpack.c.l.b16 %v1198
    %v1827 = vunpack.c.h.b16 %v1198
    %v1828 = vunpack.c.l.b16 %v1199
    %v1829 = vunpack.c.h.b16 %v1199
    %v1830 = vunpack.c.l.b16 %v1200
    %v1831 = vunpack.c.h.b16 %v1200
    %v1832 = vunpack.c.l.b16 %v1201
    %v1833 = vunpack.c.h.b16 %v1201
    %v1834 = vunpack.c.l.b16 %v1202
    %v1835 = vunpack.c.h.b16 %v1202
    %v1836 = vunpack.c.l.b16 %v1203
    %v1837 = vunpack.c.h.b16 %v1203
    %v1838 = vunpack.c.l.b16 %v1204
    %v1839 = vunpack.c.h.b16 %v1204
    %v1840 = vunpack.c.l.b16 %v1205
    %v1841 = vunpack.c.h.b16 %v1205
    %v1842 = vunpack.c.l.b16 %v1206
    %v1843 = vunpack.c.h.b16 %v1206
    %v1844 = vunpack.c.l.b16 %v1207
    %v1845 = vunpack.c.h.b16 %v1207
    %v1846 = vunpack.c.l.b16 %v1208
    %v1847 = vunpack.c.h.b16 %v1208
    %v1848 = vunpack.c.l.b16 %v1209
    %v1849 = vunpack.c.h.b16 %v1209
    %v1850 = vunpack.c.l.b16 %v1210
    %v1851 = vunpack.c.h.b16 %v1210
    %v1852 = vunpack.c.l.b16 %v1211
    %v1853 = vunpack.c.h.b16 %v1211
    %v1854 = vunpack.c.l.b16 %v1212
    %v1855 = vunpack.c.h.b16 %v1212
    %v1856 = vunpack.c.l.b16 %v1213
    %v1857 = vunpack.c.h.b16 %v1213
    %v1858 = vunpack.c.l.b16 %v1214
    %v1859 = vunpack.c.h.b16 %v1214
    %v1860 = vunpack.c.l.b16 %v1215
    %v1861 = vunpack.c.h.b16 %v1215
    %v1862 = vunpack.c.l.b16 %v1216
    %v1863 = vunpack.c.h.b16 %v1216
    %v1864 = vunpack.c.l.b16 %v1217
    %v1865 = vunpack.c.h.b16 %v1217
    %v1866 = vunpack.c.l.b16 %v1218
    %v1867 = vunpack.c.h.b16 %v1218
    %v1868 = vunpack.c.l.b16 %v1219
    %v1869 = vunpack.c.h.b16 %v1219
    %v1870 = vunpack.c.l.b16 %v1220
    %v1871 = vunpack.c.h.b16 %v1220
    %v1872 = vunpack.c.l.b16 %v1221
    %v1873 = vunpack.c.h.b16 %v1221
    %v1874 = vunpack.c.l.b16 %v1222
    %v1875 = vunpack.c.h.b16 %v1222
    %v1876 = vunpack.c.l.b16 %v1223
    %v1877 = vunpack.c.h.b16 %v1223
    %v1878 = vunpack.c.l.b16 %v1224
    %v1879 = vunpack.c.h.b16 %v1224
    %v1880 = vunpack.c.l.b16 %v1225
    %v1881 = vunpack.c.h.b16 %v1225
    %v1882 = vunpack.c.l.b16 %v1226
    %v1883 = vunpack.c.h.b16 %v1226
    %v1884 = vunpack.c.l.b16 %v1227
    %v1885 = vunpack.c.h.b16 %v1227
    %v1886 = vunpack.c.l.b16 %v1228
    %v1887 = vunpack.c.h.b16 %v1228
    %v1888 = vunpack.c.l.b16 %v1229
    %v1889 = vunpack.c.h.b16 %v1229
    %v1890 = vunpack.c.l.b16 %v1230
    %v1891 = vunpack.c.h.b16 %v1230
    %v1892 = vunpack.c.l.b16 %v1231
    %v1893 = vunpack.c.h.b16 %v1231
    %v1894 = vunpack.c.l.b16 %v1232
    %v1895 = vunpack.c.h.b16 %v1232
    %v1896 = vunpack.c.l.b16 %v1233
    %v1897 = vunpack.c.h.b16 %v1233
    %v1898 = vunpack.c.l.b16 %v1234
    %v1899 = vunpack.c.h.b16 %v1234
    %v1900 = vunpack.c.l.b16 %v1235
    %v1901 = vunpack.c.h.b16 %v1235
    %v1902 = vunpack.c.l.b16 %v1236
    %v1903 = vunpack.c.h.b16 %v1236
    %v1904 = vunpack.c.l.b16 %v1237
    %v1905 = vunpack.c.h.b16 %v1237
    %v1906 = vunpack.c.l.b16 %v1238
    %v1907 = vunpack.c.h.b16 %v1238
    %v1908 = vunpack.c.l.b16 %v1239
    %v1909 = vunpack.c.h.b16 %v1239
    %v1910 = vunpack.c.l.b16 %v1240
    %v1911 = vunpack.c.h.b16 %v1240
    %v1912 = vunpack.c.l.b16 %v1241
    %v1913 = vunpack.c.h.b16 %v1241
    %v1914 = vunpack.c.l.b16 %v1242
    %v1915 = vunpack.c.h.b16 %v1242
    %v1916 = vunpack.c.l.b16 %v1243
    %v1917 = vunpack.c.h.b16 %v1243
    %v1918 = vunpack.c.l.b16 %v1244
    %v1919 = vunpack.c.h.b16 %v1244
    %v1920 = vunpack.c.l.b16 %v1245
    %v1921 = vunpack.c.h.b16 %v1245
    %v1922 = vunpack.c.l.b16 %v1246
    %v1923 = vunpack.c.h.b16 %v1246
    %v1924 = vunpack.c.l.b16 %v1247
    %v1925 = vunpack.c.h.b16 %v1247
    %v1926 = vunpack.c.l.b16 %v1248
    %v1927 = vunpack.c.h.b16 %v1248
    %v1928 = vunpack.c.l.b16 %v1249
    %v1929 = vunpack.c.h.b16 %v1249
    %v1930 = vunpack.c.l.b16 %v1250
    %v1931 = vunpack.c.h.b16 %v1250
    %v1932 = vunpack.c.l.b16 %v1251
    %v1933 = vunpack.c.h.b16 %v1251
    %v1934 = vunpack.c.l.b16 %v1252
    %v1935 = vunpack.c.h.b16 %v1252
    %v1936 = vunpack.c.l.b16 %v1253
    %v1937 = vunpack.c.h.b16 %v1253
    %v1938 = vunpack.c.l.b16 %v1254
    %v1939 = vunpack.c.h.b16 %v1254
    %v1940 = vunpack.c.l.b16 %v1255
    %v1941 = vunpack.c.h.b16 %v1255
    %v1942 = vunpack.c.l.b16 %v1256
    %v1943 = vunpack.c.h.b16 %v1256
    %v1944 = vunpack.c.l.b16 %v1257
    %v1945 = vunpack.c.h.b16 %v1257
    %v1946 = vunpack.c.l.b16 %v1258
    %v1947 = vunpack.c.h.b16 %v1258
    %v1948 = vunpack.c.l.b16 %v1259
    %v1949 = vunpack.c.h.b16 %v1259
    %v1950 = vunpack.c.l.b16 %v1260
    %v1951 = vunpack.c.h.b16 %v1260
    %v1952 = vunpack.c.l.b16 %v1261
    %v1953 = vunpack.c.h.b16 %v1261
    %v1954 = vunpack.c.l.b16 %v1262
    %v1955 = vunpack.c.h.b16 %v1262
    %v1956 = vunpack.c.l.b16 %v1263
    %v1957 = vunpack.c.h.b16 %v1263
    %v1958 = vunpack.c.l.b16 %v1264
    %v1959 = vunpack.c.h.b16 %v1264
    %v1960 = vunpack.c.l.b16 %v1265
    %v1961 = vunpack.c.h.b16 %v1265
    %v1962 = vunpack.c.l.b16 %v1266
    %v1963 = vunpack.c.h.b16 %v1266
    %v1964 = vunpack.c.l.b16 %v1267
    %v1965 = vunpack.c.h.b16 %v1267
    %v1966 = vunpack.c.l.b16 %v1268
    %v1967 = vunpack.c.h.b16 %v1268
    %v1968 = vunpack.c.l.b16 %v1269
    %v1969 = vunpack.c.h.b16 %v1269
    %v1970 = vunpack.c.l.b16 %v1270
    %v1971 = vunpack.c.h.b16 %v1270
    %v1972 = vunpack.c.l.b16 %v1271
    %v1973 = vunpack.c.h.b16 %v1271
    %v1974 = vunpack.c.l.b16 %v1272
    %v1975 = vunpack.c.h.b16 %v1272
    %v1976 = vunpack.c.l.b16 %v1273
    %v1977 = vunpack.c.h.b16 %v1273
    %v1978 = vunpack.c.l.b16 %v1274
    %v1979 = vunpack.c.h.b16 %v1274
    %v1980 = vunpack.c.l.b16 %v1275
    %v1981 = vunpack.c.h.b16 %v1275
    %v1982 = vunpack.c.l.b16 %v1276
    %v1983 = vunpack.c.h.b16 %v1276
    %v1984 = vunpack.c.l.b16 %v1277
    %v1985 = vunpack.c.h.b16 %v1277
    %v1986 = vunpack.c.l.b16 %v1278
    %v1987 = vunpack.c.h.b16 %v1278
    %v1988 = vunpack.c.l.b16 %v1279
    %v1989 = vunpack.c.h.b16 %v1279
    %v1990 = vunpack.c.l.b16 %v1280
    %v1991 = vunpack.c.h.b16 %v1280
    %v1992 = vunpack.c.l.b16 %v1281
    %v1993 = vunpack.c.h.b16 %v1281
    %v1994 = vunpack.c.l.b16 %v1282
    %v1995 = vunpack.c.h.b16 %v1282
    %v1996 = vunpack.c.l.b16 %v1283
    %v1997 = vunpack.c.h.b16 %v1283
    %v1998 = vunpack.c.l.b16 %v1284
    %v1999 = vunpack.c.h.b16 %v1284
    %v2000 = vunpack.c.l.b16 %v1285
    %v2001 = vunpack.c.h.b16 %v1285
    %v2002 = vunpack.c.l.b16 %v1286
    %v2003 = vunpack.c.h.b16 %v1286
    %v2004 = vunpack.c.l.b16 %v1287
    %v2005 = vunpack.c.h.b16 %v1287
    %v2006 = vunpack.c.l.b16 %v1288
    %v2007 = vunpack.c.h.b16 %v1288
    %v2008 = vunpack.c.l.b16 %v1289
    %v2009 = vunpack.c.h.b16 %v1289
    %v2010 = vunpack.c.l.b16 %v1290
    %v2011 = vunpack.c.h.b16 %v1290
    %v2012 = vunpack.c.l.b16 %v1291
    %v2013 = vunpack.c.h.b16 %v1291
    %v2014 = vunpack.c.l.b16 %v1292
    %v2015 = vunpack.c.h.b16 %v1292
    %v2016 = vunpack.c.l.b16 %v1293
    %v2017 = vunpack.c.h.b16 %v1293
    %v2018 = vunpack.c.l.b16 %v1294
    %v2019 = vunpack.c.h.b16 %v1294
    %v2020 = vunpack.c.l.b16 %v1295
    %v2021 = vunpack.c.h.b16 %v1295
    %v2022 = vunpack.c.l.b16 %v1296
    %v2023 = vunpack.c.h.b16 %v1296
    %v2024 = vunpack.c.l.b16 %v1297
    %v2025 = vunpack.c.h.b16 %v1297
    %v2026 = vunpack.c.l.b16 %v1298
    %v2027 = vunpack.c.h.b16 %v1298
    %v2028 = vunpack.c.l.b16 %v1299
    %v2029 = vunpack.c.h.b16 %v1299
    %v2030 = vunpack.c.l.b16 %v1300
    %v2031 = vunpack.c.h.b16 %v1300
    %v2032 = vunpack.c.l.b16 %v1301
    %v2033 = vunpack.c.h.b16 %v1301
    %v2034 = vunpack.c.l.b16 %v1302
    %v2035 = vunpack.c.h.b16 %v1302
    %v2036 = vunpack.c.l.b16 %v1303
    %v2037 = vunpack.c.h.b16 %v1303
    %v2038 = vunpack.c.l.b16 %v1304
    %v2039 = vunpack.c.h.b16 %v1304
    %v2040 = vunpack.c.l.b16 %v1305
    %v2041 = vunpack.c.h.b16 %v1305
    %v2042 = vunpack.c.l.b16 %v1306
    %v2043 = vunpack.c.h.b16 %v1306
    %v2044 = vunpack.c.l.b16 %v1307
    %v2045 = vunpack.c.h.b16 %v1307
    %v2046 = vunpack.c.l.b16 %v1308
    %v2047 = vunpack.c.h.b16 %v1308
    %v2048 = vunpack.c.l.b16 %v1309
    %v2049 = vunpack.c.h.b16 %v1309
    %v2050 = vunpack.c.l.b16 %v1310
    %v2051 = vunpack.c.h.b16 %v1310
    %v2052 = vunpack.c.l.b16 %v1311
    %v2053 = vunpack.c.h.b16 %v1311
    %v2054 = vunpack.c.l.b16 %v1312
    %v2055 = vunpack.c.h.b16 %v1312
    %v2056 = vunpack.c.l.b16 %v1313
    %v2057 = vunpack.c.h.b16 %v1313
    %v2058 = vunpack.c.l.b16 %v1314
    %v2059 = vunpack.c.h.b16 %v1314
    %v2060 = vunpack.c.l.b16 %v1315
    %v2061 = vunpack.c.h.b16 %v1315
    %v2062 = vunpack.c.l.b16 %v1316
    %v2063 = vunpack.c.h.b16 %v1316
    %v2064 = vunpack.c.l.b16 %v1317
    %v2065 = vunpack.c.h.b16 %v1317
    %v2066 = vunpack.c.l.b16 %v1318
    %v2067 = vunpack.c.h.b16 %v1318
    %v2068 = vunpack.c.l.b16 %v1319
    %v2069 = vunpack.c.h.b16 %v1319
    %v2070 = vunpack.c.l.b16 %v1320
    %v2071 = vunpack.c.h.b16 %v1320
    %v2072 = vunpack.c.l.b16 %v1321
    %v2073 = vunpack.c.h.b16 %v1321
    %v2074 = vunpack.c.l.b16 %v1322
    %v2075 = vunpack.c.h.b16 %v1322
    %v2076 = vunpack.c.l.b16 %v1323
    %v2077 = vunpack.c.h.b16 %v1323
    %v2078 = vunpack.c.l.b16 %v1324
    %v2079 = vunpack.c.h.b16 %v1324
    %v2080 = vunpack.c.l.b16 %v1325
    %v2081 = vunpack.c.h.b16 %v1325
    %v2082 = vunpack.c.l.b16 %v1326
    %v2083 = vunpack.c.h.b16 %v1326
    %v2084 = vunpack.c.l.b16 %v1327
    %v2085 = vunpack.c.h.b16 %v1327
    %v2086 = vunpack.c.l.b16 %v1328
    %v2087 = vunpack.c.h.b16 %v1328
    %v2088 = vunpack.c.l.b16 %v1329
    %v2089 = vunpack.c.h.b16 %v1329
    %v2090 = vunpack.c.l.b16 %v1330
    %v2091 = vunpack.c.h.b16 %v1330
    %v2092 = vunpack.c.l.b16 %v1331
    %v2093 = vunpack.c.h.b16 %v1331
    %v2094 = vunpack.c.l.b16 %v1332
    %v2095 = vunpack.c.h.b16 %v1332
    %v2096 = vunpack.c.l.b16 %v1333
    %v2097 = vunpack.c.h.b16 %v1333
    %v2098 = vunpack.c.l.b16 %v1334
    %v2099 = vunpack.c.h.b16 %v1334
    %v2100 = vunpack.c.l.b16 %v1335
    %v2101 = vunpack.c.h.b16 %v1335
    %v2102 = vunpack.c.l.b16 %v1336
    %v2103 = vunpack.c.h.b16 %v1336
    %v2104 = vunpack.c.l.b16 %v1337
    %v2105 = vunpack.c.h.b16 %v1337
    %v2106 = vpack.c.b16 %v1602, %v1594
    %v2107 = vpack.c.b16 %v1603, %v1595
    %v2108 = vpack.c.b16 %v1604, %v1596
    %v2109 = vpack.c.b16 %v1605, %v1597
    %v2110 = vpack.c.b16 %v1606, %v1598
    %v2111 = vpack.c.b16 %v1607, %v1599
    %v2112 = vpack.c.b16 %v1608, %v1600
    %v2113 = vpack.c.b16 %v1609, %v1601
    %v2114 = vpack.c.b16 %v1618, %v1610
    %v2115 = vpack.c.b16 %v1619, %v1611
    %v2116 = vpack.c.b16 %v1620, %v1612
    %v2117 = vpack.c.b16 %v1621, %v1613
    %v2118 = vpack.c.b16 %v1622, %v1614
    %v2119 = vpack.c.b16 %v1623, %v1615
    %v2120 = vpack.c.b16 %v1624, %v1616
    %v2121 = vpack.c.b16 %v1625, %v1617
    %v2122 = vpack.c.b16 %v1634, %v1626
    %v2123 = vpack.c.b16 %v1635, %v1627
    %v2124 = vpack.c.b16 %v1636, %v1628
    %v2125 = vpack.c.b16 %v1637, %v1629
    %v2126 = vpack.c.b16 %v1638, %v1630
    %v2127 = vpack.c.b16 %v1639, %v1631
    %v2128 = vpack.c.b16 %v1640, %v1632
    %v2129 = vpack.c.b16 %v1641, %v1633
    %v2130 = vpack.c.b16 %v1650, %v1642
    %v2131 = vpack.c.b16 %v1651, %v1643
    %v2132 = vpack.c.b16 %v1652, %v1644
    %v2133 = vpack.c.b16 %v1653, %v1645
    %v2134 = vpack.c.b16 %v1654, %v1646
    %v2135 = vpack.c.b16 %v1655, %v1647
    %v2136 = vpack.c.b16 %v1656, %v1648
    %v2137 = vpack.c.b16 %v1657, %v1649
    %v2138 = vpack.c.b16 %v1666, %v1658
    %v2139 = vpack.c.b16 %v1667, %v1659
    %v2140 = vpack.c.b16 %v1668, %v1660
    %v2141 = vpack.c.b16 %v1669, %v1661
    %v2142 = vpack.c.b16 %v1670, %v1662
    %v2143 = vpack.c.b16 %v1671, %v1663
    %v2144 = vpack.c.b16 %v1672, %v1664
    %v2145 = vpack.c.b16 %v1673, %v1665
    %v2146 = vpack.c.b16 %v1682, %v1674
    %v2147 = vpack.c.b16 %v1683, %v1675
    %v2148 = vpack.c.b16 %v1684, %v1676
    %v2149 = vpack.c.b16 %v1685, %v1677
    %v2150 = vpack.c.b16 %v1686, %v1678
    %v2151 = vpack.c.b16 %v1687, %v1679
    %v2152 = vpack.c.b16 %v1688, %v1680
    %v2153 = vpack.c.b16 %v1689, %v1681
    %v2154 = vpack.c.b16 %v1698, %v1690
    %v2155 = vpack.c.b16 %v1699, %v1691
    %v2156 = vpack.c.b16 %v1700, %v1692
    %v2157 = vpack.c.b16 %v1701, %v1693
    %v2158 = vpack.c.b16 %v1702, %v1694
    %v2159 = vpack.c.b16 %v1703, %v1695
    %v2160 = vpack.c.b16 %v1704, %v1696
    %v2161 = vpack.c.b16 %v1705, %v1697
    %v2162 = vpack.c.b16 %v1714, %v1706
    %v2163 = vpack.c.b16 %v1715, %v1707
    %v2164 = vpack.c.b16 %v1716, %v1708
    %v2165 = vpack.c.b16 %v1717, %v1709
    %v2166 = vpack.c.b16 %v1718, %v1710
    %v2167 = vpack.c.b16 %v1719, %v1711
    %v2168 = vpack.c.b16 %v1720, %v1712
    %v2169 = vpack.c.b16 %v1721, %v1713
    %v2170 = vpack.c.b16 %v1730, %v1722
    %v2171 = vpack.c.b16 %v1731, %v1723
    %v2172 = vpack.c.b16 %v1732, %v1724
    %v2173 = vpack.c.b16 %v1733, %v1725
    %v2174 = vpack.c.b16 %v1734, %v1726
    %v2175 = vpack.c.b16 %v1735, %v1727
    %v2176 = vpack.c.b16 %v1736, %v1728
    %v2177 = vpack.c.b16 %v1737, %v1729
    %v2178 = vpack.c.b16 %v1746, %v1738
    %v2179 = vpack.c.b16 %v1747, %v1739
    %v2180 = vpack.c.b16 %v1748, %v1740
    %v2181 = vpack.c.b16 %v1749, %v1741
    %v2182 = vpack.c.b16 %v1750, %v1742
    %v2183 = vpack.c.b16 %v1751, %v1743
    %v2184 = vpack.c.b16 %v1752, %v1744
    %v2185 = vpack.c.b16 %v1753, %v1745
    %v2186 = vpack.c.b16 %v1762, %v1754
    %v2187 = vpack.c.b16 %v1763, %v1755
    %v2188 = vpack.c.b16 %v1764, %v1756
    %v2189 = vpack.c.b16 %v1765, %v1757
    %v2190 = vpack.c.b16 %v1766, %v1758
    %v2191 = vpack.c.b16 %v1767, %v1759
    %v2192 = vpack.c.b16 %v1768, %v1760
    %v2193 = vpack.c.b16 %v1769, %v1761
    %v2194 = vpack.c.b16 %v1778, %v1770
    %v2195 = vpack.c.b16 %v1779, %v1771
    %v2196 = vpack.c.b16 %v1780, %v1772
    %v2197 = vpack.c.b16 %v1781, %v1773
    %v2198 = vpack.c.b16 %v1782, %v1774
    %v2199 = vpack.c.b16 %v1783, %v1775
    %v2200 = vpack.c.b16 %v1784, %v1776
    %v2201 = vpack.c.b16 %v1785, %v1777
    %v2202 = vpack.c.b16 %v1794, %v1786
    %v2203 = vpack.c.b16 %v1795, %v1787
    %v2204 = vpack.c.b16 %v1796, %v1788
    %v2205 = vpack.c.b16 %v1797, %v1789
    %v2206 = vpack.c.b16 %v1798, %v1790
    %v2207 = vpack.c.b16 %v1799, %v1791
    %v2208 = vpack.c.b16 %v1800, %v1792
    %v2209 = vpack.c.b16 %v1801, %v1793
    %v2210 = vpack.c.b16 %v1810, %v1802
    %v2211 = vpack.c.b16 %v1811, %v1803
    %v2212 = vpack.c.b16 %v1812, %v1804
    %v2213 = vpack.c.b16 %v1813, %v1805
    %v2214 = vpack.c.b16 %v1814, %v1806
    %v2215 = vpack.c.b16 %v1815, %v1807
    %v2216 = vpack.c.b16 %v1816, %v1808
    %v2217 = vpack.c.b16 %v1817, %v1809
    %v2218 = vpack.c.b16 %v1826, %v1818
    %v2219 = vpack.c.b16 %v1827, %v1819
    %v2220 = vpack.c.b16 %v1828, %v1820
    %v2221 = vpack.c.b16 %v1829, %v1821
    %v2222 = vpack.c.b16 %v1830, %v1822
    %v2223 = vpack.c.b16 %v1831, %v1823
    %v2224 = vpack.c.b16 %v1832, %v1824
    %v2225 = vpack.c.b16 %v1833, %v1825
    %v2226 = vpack.c.b16 %v1842, %v1834
    %v2227 = vpack.c.b16 %v1843, %v1835
    %v2228 = vpack.c.b16 %v1844, %v1836
    %v2229 = vpack.c.b16 %v1845, %v1837
    %v2230 = vpack.c.b16 %v1846, %v1838
    %v2231 = vpack.c.b16 %v1847, %v1839
    %v2232 = vpack.c.b16 %v1848, %v1840
    %v2233 = vpack.c.b16 %v1849, %v1841
    %v2234 = vpack.c.b16 %v1858, %v1850
    %v2235 = vpack.c.b16 %v1859, %v1851
    %v2236 = vpack.c.b16 %v1860, %v1852
    %v2237 = vpack.c.b16 %v1861, %v1853
    %v2238 = vpack.c.b16 %v1862, %v1854
    %v2239 = vpack.c.b16 %v1863, %v1855
    %v2240 = vpack.c.b16 %v1864, %v1856
    %v2241 = vpack.c.b16 %v1865, %v1857
    %v2242 = vpack.c.b16 %v1874, %v1866
    %v2243 = vpack.c.b16 %v1875, %v1867
    %v2244 = vpack.c.b16 %v1876, %v1868
    %v2245 = vpack.c.b16 %v1877, %v1869
    %v2246 = vpack.c.b16 %v1878, %v1870
    %v2247 = vpack.c.b16 %v1879, %v1871
    %v2248 = vpack.c.b16 %v1880, %v1872
    %v2249 = vpack.c.b16 %v1881, %v1873
    %v2250 = vpack.c.b16 %v1890, %v1882
    %v2251 = vpack.c.b16 %v1891, %v1883
    %v2252 = vpack.c.b16 %v1892, %v1884
    %v2253 = vpack.c.b16 %v1893, %v1885
    %v2254 = vpack.c.b16 %v1894, %v1886
    %v2255 = vpack.c.b16 %v1895, %v1887
    %v2256 = vpack.c.b16 %v1896, %v1888
    %v2257 = vpack.c.b16 %v1897, %v1889
    %v2258 = vpack.c.b16 %v1906, %v1898
    %v2259 = vpack.c.b16 %v1907, %v1899
    %v2260 = vpack.c.b16 %v1908, %v1900
    %v2261 = vpack.c.b16 %v1909, %v1901
    %v2262 = vpack.c.b16 %v1910, %v1902
    %v2263 = vpack.c.b16 %v1911, %v1903
    %v2264 = vpack.c.b16 %v1912, %v1904
    %v2265 = vpack.c.b16 %v1913, %v1905
    %v2266 = vpack.c.b16 %v1922, %v1914
    %v2267 = vpack.c.b16 %v1923, %v1915
    %v2268 = vpack.c.b16 %v1924, %v1916
    %v2269 = vpack.c.b16 %v1925, %v1917
    %v2270 = vpack.c.b16 %v1926, %v1918
    %v2271 = vpack.c.b16 %v1927, %v1919
    %v2272 = vpack.c.b16 %v1928, %v1920
    %v2273 = vpack.c.b16 %v1929, %v1921
    %v2274 = vpack.c.b16 %v1938, %v1930
    %v2275 = vpack.c.b16 %v1939, %v1931
    %v2276 = vpack.c.b16 %v1940, %v1932
    %v2277 = vpack.c.b16 %v1941, %v1933
    %v2278 = vpack.c.b16 %v1942, %v1934
    %v2279 = vpack.c.b16 %v1943, %v1935
    %v2280 = vpack.c.b16 %v1944, %v1936
    %v2281 = vpack.c.b16 %v1945, %v1937
    %v2282 = vpack.c.b16 %v1954, %v1946
    %v2283 = vpack.c.b16 %v1955, %v1947
    %v2284 = vpack.c.b16 %v1956, %v1948
    %v2285 = vpack.c.b16 %v1957, %v1949
    %v2286 = vpack.c.b16 %v1958, %v1950
    %v2287 = vpack.c.b16 %v1959, %v1951
    %v2288 = vpack.c.b16 %v1960, %v1952
    %v2289 = vpack.c.b16 %v1961, %v1953
    %v2290 = vpack.c.b16 %v1970, %v1962
    %v2291 = vpack.c.b16 %v1971, %v1963
    %v2292 = vpack.c.b16 %v1972, %v1964
    %v2293 = vpack.c.b16 %v1973, %v1965
    %v2294 = vpack.c.b16 %v1974, %v1966
    %v2295 = vpack.c.b16 %v1975, %v1967
    %v2296 = vpack.c.b16 %v1976, %v1968
    %v2297 = vpack.c.b16 %v1977, %v1969
    %v2298 = vpack.c.b16 %v1986, %v1978
    %v2299 = vpack.c.b16 %v1987, %v1979
    %v2300 = vpack.c.b16 %v1988, %v1980
    %v2301 = vpack.c.b16 %v1989, %v1981
    %v2302 = vpack.c.b16 %v1990, %v1982
    %v2303 = vpack.c.b16 %v1991, %v1983
    %v2304 = vpack.c.b16 %v1992, %v1984
    %v2305 = vpack.c.b16 %v1993, %v1985
    %v2306 = vpack.c.b16 %v2002, %v1994
    %v2307 = vpack.c.b16 %v2003, %v1995
    %v2308 = vpack.c.b16 %v2004, %v1996
    %v2309 = vpack.c.b16 %v2005, %v1997
    %v2310 = vpack.c.b16 %v2006, %v1998
    %v2311 = vpack.c.b16 %v2007, %v1999
    %v2312 = vpack.c.b16 %v2008, %v2000
    %v2313 = vpack.c.b16 %v2009, %v2001
    %v2314 = vpack.c.b16 %v2018, %v2010
    %v2315 = vpack.c.b16 %v2019, %v2011
    %v2316 = vpack.c.b16 %v2020, %v2012
    %v2317 = vpack.c.b16 %v2021, %v2013
    %v2318 = vpack.c.b16 %v2022, %v2014
    %v2319 = vpack.c.b16 %v2023, %v2015
    %v2320 = vpack.c.b16 %v2024, %v2016
    %v2321 = vpack.c.b16 %v2025, %v2017
    %v2322 = vpack.c.b16 %v2034, %v2026
    %v2323 = vpack.c.b16 %v2035, %v2027
    %v2324 = vpack.c.b16 %v2036, %v2028
    %v2325 = vpack.c.b16 %v2037, %v2029
    %v2326 = vpack.c.b16 %v2038, %v2030
    %v2327 = vpack.c.b16 %v2039, %v2031
    %v2328 = vpack.c.b16 %v2040, %v2032
    %v2329 = vpack.c.b16 %v2041, %v2033
    %v2330 = vpack.c.b16 %v2050, %v2042
    %v2331 = vpack.c.b16 %v2051, %v2043
    %v2332 = vpack.c.b16 %v2052, %v2044
    %v2333 = vpack.c.b16 %v2053, %v2045
    %v2334 = vpack.c.b16 %v2054, %v2046
    %v2335 = vpack.c.b16 %v2055, %v2047
    %v2336 = vpack.c.b16 %v2056, %v2048
    %v2337 = vpack.c.b16 %v2057, %v2049
    %v2338 = vpack.c.b16 %v2066, %v2058
    %v2339 = vpack.c.b16 %v2067, %v2059
    %v2340 = vpack.c.b16 %v2068, %v2060
    %v2341 = vpack.c.b16 %v2069, %v2061
    %v2342 = vpack.c.b16 %v2070, %v2062
    %v2343 = vpack.c.b16 %v2071, %v2063
    %v2344 = vpack.c.b16 %v2072, %v2064
    %v2345 = vpack.c.b16 %v2073, %v2065
    %v2346 = vpack.c.b16 %v2082, %v2074
    %v2347 = vpack.c.b16 %v2083, %v2075
    %v2348 = vpack.c.b16 %v2084, %v2076
    %v2349 = vpack.c.b16 %v2085, %v2077
    %v2350 = vpack.c.b16 %v2086, %v2078
    %v2351 = vpack.c.b16 %v2087, %v2079
    %v2352 = vpack.c.b16 %v2088, %v2080
    %v2353 = vpack.c.b16 %v2089, %v2081
    %v2354 = vpack.c.b16 %v2098, %v2090
    %v2355 = vpack.c.b16 %v2099, %v2091
    %v2356 = vpack.c.b16 %v2100, %v2092
    %v2357 = vpack.c.b16 %v2101, %v2093
    %v2358 = vpack.c.b16 %v2102, %v2094
    %v2359 = vpack.c.b16 %v2103, %v2095
    %v2360 = vpack.c.b16 %v2104, %v2096
    %v2361 = vpack.c.b16 %v2105, %v2097
    %2618 = vmatpush.bf16.msra.mxu0 %v2162
    %2619 = vmatpush.bf16.msra.mxu0 %v2154
    %2620 = vmatpush.bf16.msra.mxu0 %v2146
    %2621 = vmatpush.bf16.msra.mxu0 %v2138
    %2622 = vmatpush.bf16.msra.mxu0 %v2130
    %2623 = vmatpush.bf16.msra.mxu0 %v2122
    %2624 = vmatpush.bf16.msra.mxu0 %v2114
    %2625 = vmatpush.bf16.msra.mxu0 %v2106
    %2626 = vmatmul.bf16.gmra.mxu0 %v1078
    %v2627 = vpop.f32.mrf.mxu0
    %v2628 = vadd.f32 0.0, %v2627
    %v2629 = vpop.f32.mrf.mxu0
    %2630 = vdwg.mxu0
    %2631 = vmatpush.bf16.msra.mxu0 %v2226
    %2632 = vmatpush.bf16.msra.mxu0 %v2218
    %2633 = vmatpush.bf16.msra.mxu0 %v2210
    %2634 = vmatpush.bf16.msra.mxu0 %v2202
    %2635 = vmatpush.bf16.msra.mxu0 %v2194
    %2636 = vmatpush.bf16.msra.mxu0 %v2186
    %2637 = vmatpush.bf16.msra.mxu0 %v2178
    %2638 = vmatpush.bf16.msra.mxu0 %v2170
    %2639 = vmatmul.bf16.gmra.mxu0 %v1079
    %v2640 = vpop.f32.mrf.mxu0
    %v2641 = vadd.f32 %v2628, %v2640
    %v2642 = vpop.f32.mrf.mxu0
    %2643 = vdwg.mxu0
    %2644 = vmatpush.bf16.msra.mxu0 %v2290
    %2645 = vmatpush.bf16.msra.mxu0 %v2282
    %2646 = vmatpush.bf16.msra.mxu0 %v2274
    %2647 = vmatpush.bf16.msra.mxu0 %v2266
    %2648 = vmatpush.bf16.msra.mxu0 %v2258
    %2649 = vmatpush.bf16.msra.mxu0 %v2250
    %2650 = vmatpush.bf16.msra.mxu0 %v2242
    %2651 = vmatpush.bf16.msra.mxu0 %v2234
    %2652 = vmatmul.bf16.gmra.mxu0 %v1080
    %v2653 = vpop.f32.mrf.mxu0
    %v2654 = vadd.f32 %v2641, %v2653
    %v2655 = vpop.f32.mrf.mxu0
    %2656 = vdwg.mxu0
    %2657 = vmatpush.bf16.msra.mxu0 %v2354
    %2658 = vmatpush.bf16.msra.mxu0 %v2346
    %2659 = vmatpush.bf16.msra.mxu0 %v2338
    %2660 = vmatpush.bf16.msra.mxu0 %v2330
    %2661 = vmatpush.bf16.msra.mxu0 %v2322
    %2662 = vmatpush.bf16.msra.mxu0 %v2314
    %2663 = vmatpush.bf16.msra.mxu0 %v2306
    %2664 = vmatpush.bf16.msra.mxu0 %v2298
    %2665 = vmatmul.bf16.gmra.mxu0 %v1081
    %v2666 = vpop.f32.mrf.mxu0
    %v2667 = vadd.f32 %v2654, %v2666
    %v2668 = vpop.f32.mrf.mxu0
    %2669 = vdwg.mxu0
    %2670 = vmatpush.bf16.msra.mxu0 %v2163
    %2671 = vmatpush.bf16.msra.mxu0 %v2155
    %2672 = vmatpush.bf16.msra.mxu0 %v2147
    %2673 = vmatpush.bf16.msra.mxu0 %v2139
    %2674 = vmatpush.bf16.msra.mxu0 %v2131
    %2675 = vmatpush.bf16.msra.mxu0 %v2123
    %2676 = vmatpush.bf16.msra.mxu0 %v2115
    %2677 = vmatpush.bf16.msra.mxu0 %v2107
    %2678 = vmatmul.bf16.gmra.mxu0 %v1078
    %v2679 = vpop.f32.mrf.mxu0
    %v2680 = vadd.f32 0.0, %v2679
    %v2681 = vpop.f32.mrf.mxu0
    %2682 = vdwg.mxu0
    %2683 = vmatpush.bf16.msra.mxu0 %v2227
    %2684 = vmatpush.bf16.msra.mxu0 %v2219
    %2685 = vmatpush.bf16.msra.mxu0 %v2211
    %2686 = vmatpush.bf16.msra.mxu0 %v2203
    %2687 = vmatpush.bf16.msra.mxu0 %v2195
    %2688 = vmatpush.bf16.msra.mxu0 %v2187
    %2689 = vmatpush.bf16.msra.mxu0 %v2179
    %2690 = vmatpush.bf16.msra.mxu0 %v2171
    %2691 = vmatmul.bf16.gmra.mxu0 %v1079
    %v2692 = vpop.f32.mrf.mxu0
    %v2693 = vadd.f32 %v2680, %v2692
    %v2694 = vpop.f32.mrf.mxu0
    %2695 = vdwg.mxu0
    %2696 = vmatpush.bf16.msra.mxu0 %v2291
    %2697 = vmatpush.bf16.msra.mxu0 %v2283
    %2698 = vmatpush.bf16.msra.mxu0 %v2275
    %2699 = vmatpush.bf16.msra.mxu0 %v2267
    %2700 = vmatpush.bf16.msra.mxu0 %v2259
    %2701 = vmatpush.bf16.msra.mxu0 %v2251
    %2702 = vmatpush.bf16.msra.mxu0 %v2243
    %2703 = vmatpush.bf16.msra.mxu0 %v2235
    %2704 = vmatmul.bf16.gmra.mxu0 %v1080
    %v2705 = vpop.f32.mrf.mxu0
    %v2706 = vadd.f32 %v2693, %v2705
    %v2707 = vpop.f32.mrf.mxu0
    %2708 = vdwg.mxu0
    %2709 = vmatpush.bf16.msra.mxu0 %v2355
    %2710 = vmatpush.bf16.msra.mxu0 %v2347
    %2711 = vmatpush.bf16.msra.mxu0 %v2339
    %2712 = vmatpush.bf16.msra.mxu0 %v2331
    %2713 = vmatpush.bf16.msra.mxu0 %v2323
    %2714 = vmatpush.bf16.msra.mxu0 %v2315
    %2715 = vmatpush.bf16.msra.mxu0 %v2307
    %2716 = vmatpush.bf16.msra.mxu0 %v2299
    %2717 = vmatmul.bf16.gmra.mxu0 %v1081
    %v2718 = vpop.f32.mrf.mxu0
    %v2719 = vadd.f32 %v2706, %v2718
    %v2720 = vpop.f32.mrf.mxu0
    %2721 = vdwg.mxu0
    %2722 = vmatpush.bf16.msra.mxu0 %v2164
    %2723 = vmatpush.bf16.msra.mxu0 %v2156
    %2724 = vmatpush.bf16.msra.mxu0 %v2148
    %2725 = vmatpush.bf16.msra.mxu0 %v2140
    %2726 = vmatpush.bf16.msra.mxu0 %v2132
    %2727 = vmatpush.bf16.msra.mxu0 %v2124
    %2728 = vmatpush.bf16.msra.mxu0 %v2116
    %2729 = vmatpush.bf16.msra.mxu0 %v2108
    %2730 = vmatmul.bf16.gmra.mxu0 %v1078
    %v2731 = vpop.f32.mrf.mxu0
    %v2732 = vadd.f32 0.0, %v2731
    %v2733 = vpop.f32.mrf.mxu0
    %2734 = vdwg.mxu0
    %2735 = vmatpush.bf16.msra.mxu0 %v2228
    %2736 = vmatpush.bf16.msra.mxu0 %v2220
    %2737 = vmatpush.bf16.msra.mxu0 %v2212
    %2738 = vmatpush.bf16.msra.mxu0 %v2204
    %2739 = vmatpush.bf16.msra.mxu0 %v2196
    %2740 = vmatpush.bf16.msra.mxu0 %v2188
    %2741 = vmatpush.bf16.msra.mxu0 %v2180
    %2742 = vmatpush.bf16.msra.mxu0 %v2172
    %2743 = vmatmul.bf16.gmra.mxu0 %v1079
    %v2744 = vpop.f32.mrf.mxu0
    %v2745 = vadd.f32 %v2732, %v2744
    %v2746 = vpop.f32.mrf.mxu0
    %2747 = vdwg.mxu0
    %2748 = vmatpush.bf16.msra.mxu0 %v2292
    %2749 = vmatpush.bf16.msra.mxu0 %v2284
    %2750 = vmatpush.bf16.msra.mxu0 %v2276
    %2751 = vmatpush.bf16.msra.mxu0 %v2268
    %2752 = vmatpush.bf16.msra.mxu0 %v2260
    %2753 = vmatpush.bf16.msra.mxu0 %v2252
    %2754 = vmatpush.bf16.msra.mxu0 %v2244
    %2755 = vmatpush.bf16.msra.mxu0 %v2236
    %2756 = vmatmul.bf16.gmra.mxu0 %v1080
    %v2757 = vpop.f32.mrf.mxu0
    %v2758 = vadd.f32 %v2745, %v2757
    %v2759 = vpop.f32.mrf.mxu0
    %2760 = vdwg.mxu0
    %2761 = vmatpush.bf16.msra.mxu0 %v2356
    %2762 = vmatpush.bf16.msra.mxu0 %v2348
    %2763 = vmatpush.bf16.msra.mxu0 %v2340
    %2764 = vmatpush.bf16.msra.mxu0 %v2332
    %2765 = vmatpush.bf16.msra.mxu0 %v2324
    %2766 = vmatpush.bf16.msra.mxu0 %v2316
    %2767 = vmatpush.bf16.msra.mxu0 %v2308
    %2768 = vmatpush.bf16.msra.mxu0 %v2300
    %2769 = vmatmul.bf16.gmra.mxu0 %v1081
    %v2770 = vpop.f32.mrf.mxu0
    %v2771 = vadd.f32 %v2758, %v2770
    %v2772 = vpop.f32.mrf.mxu0
    %2773 = vdwg.mxu0
    %2774 = vmatpush.bf16.msra.mxu0 %v2165
    %2775 = vmatpush.bf16.msra.mxu0 %v2157
    %2776 = vmatpush.bf16.msra.mxu0 %v2149
    %2777 = vmatpush.bf16.msra.mxu0 %v2141
    %2778 = vmatpush.bf16.msra.mxu0 %v2133
    %2779 = vmatpush.bf16.msra.mxu0 %v2125
    %2780 = vmatpush.bf16.msra.mxu0 %v2117
    %2781 = vmatpush.bf16.msra.mxu0 %v2109
    %2782 = vmatmul.bf16.gmra.mxu0 %v1078
    %v2783 = vpop.f32.mrf.mxu0
    %v2784 = vadd.f32 0.0, %v2783
    %v2785 = vpop.f32.mrf.mxu0
    %2786 = vdwg.mxu0
    %2787 = vmatpush.bf16.msra.mxu0 %v2229
    %2788 = vmatpush.bf16.msra.mxu0 %v2221
    %2789 = vmatpush.bf16.msra.mxu0 %v2213
    %2790 = vmatpush.bf16.msra.mxu0 %v2205
    %2791 = vmatpush.bf16.msra.mxu0 %v2197
    %2792 = vmatpush.bf16.msra.mxu0 %v2189
    %2793 = vmatpush.bf16.msra.mxu0 %v2181
    %2794 = vmatpush.bf16.msra.mxu0 %v2173
    %2795 = vmatmul.bf16.gmra.mxu0 %v1079
    %v2796 = vpop.f32.mrf.mxu0
    %v2797 = vadd.f32 %v2784, %v2796
    %v2798 = vpop.f32.mrf.mxu0
    %2799 = vdwg.mxu0
    %2800 = vmatpush.bf16.msra.mxu0 %v2293
    %2801 = vmatpush.bf16.msra.mxu0 %v2285
    %2802 = vmatpush.bf16.msra.mxu0 %v2277
    %2803 = vmatpush.bf16.msra.mxu0 %v2269
    %2804 = vmatpush.bf16.msra.mxu0 %v2261
    %2805 = vmatpush.bf16.msra.mxu0 %v2253
    %2806 = vmatpush.bf16.msra.mxu0 %v2245
    %2807 = vmatpush.bf16.msra.mxu0 %v2237
    %2808 = vmatmul.bf16.gmra.mxu0 %v1080
    %v2809 = vpop.f32.mrf.mxu0
    %v2810 = vadd.f32 %v2797, %v2809
    %v2811 = vpop.f32.mrf.mxu0
    %2812 = vdwg.mxu0
    %2813 = vmatpush.bf16.msra.mxu0 %v2357
    %2814 = vmatpush.bf16.msra.mxu0 %v2349
    %2815 = vmatpush.bf16.msra.mxu0 %v2341
    %2816 = vmatpush.bf16.msra.mxu0 %v2333
    %2817 = vmatpush.bf16.msra.mxu0 %v2325
    %2818 = vmatpush.bf16.msra.mxu0 %v2317
    %2819 = vmatpush.bf16.msra.mxu0 %v2309
    %2820 = vmatpush.bf16.msra.mxu0 %v2301
    %2821 = vmatmul.bf16.gmra.mxu0 %v1081
    %v2822 = vpop.f32.mrf.mxu0
    %v2823 = vadd.f32 %v2810, %v2822
    %v2824 = vpop.f32.mrf.mxu0
    %2825 = vdwg.mxu0
    %2826 = vmatpush.bf16.msra.mxu0 %v2166
    %2827 = vmatpush.bf16.msra.mxu0 %v2158
    %2828 = vmatpush.bf16.msra.mxu0 %v2150
    %2829 = vmatpush.bf16.msra.mxu0 %v2142
    %2830 = vmatpush.bf16.msra.mxu0 %v2134
    %2831 = vmatpush.bf16.msra.mxu0 %v2126
    %2832 = vmatpush.bf16.msra.mxu0 %v2118
    %2833 = vmatpush.bf16.msra.mxu0 %v2110
    %2834 = vmatmul.bf16.gmra.mxu0 %v1078
    %v2835 = vpop.f32.mrf.mxu0
    %v2836 = vadd.f32 0.0, %v2835
    %v2837 = vpop.f32.mrf.mxu0
    %2838 = vdwg.mxu0
    %2839 = vmatpush.bf16.msra.mxu0 %v2230
    %2840 = vmatpush.bf16.msra.mxu0 %v2222
    %2841 = vmatpush.bf16.msra.mxu0 %v2214
    %2842 = vmatpush.bf16.msra.mxu0 %v2206
    %2843 = vmatpush.bf16.msra.mxu0 %v2198
    %2844 = vmatpush.bf16.msra.mxu0 %v2190
    %2845 = vmatpush.bf16.msra.mxu0 %v2182
    %2846 = vmatpush.bf16.msra.mxu0 %v2174
    %2847 = vmatmul.bf16.gmra.mxu0 %v1079
    %v2848 = vpop.f32.mrf.mxu0
    %v2849 = vadd.f32 %v2836, %v2848
    %v2850 = vpop.f32.mrf.mxu0
    %2851 = vdwg.mxu0
    %2852 = vmatpush.bf16.msra.mxu0 %v2294
    %2853 = vmatpush.bf16.msra.mxu0 %v2286
    %2854 = vmatpush.bf16.msra.mxu0 %v2278
    %2855 = vmatpush.bf16.msra.mxu0 %v2270
    %2856 = vmatpush.bf16.msra.mxu0 %v2262
    %2857 = vmatpush.bf16.msra.mxu0 %v2254
    %2858 = vmatpush.bf16.msra.mxu0 %v2246
    %2859 = vmatpush.bf16.msra.mxu0 %v2238
    %2860 = vmatmul.bf16.gmra.mxu0 %v1080
    %v2861 = vpop.f32.mrf.mxu0
    %v2862 = vadd.f32 %v2849, %v2861
    %v2863 = vpop.f32.mrf.mxu0
    %2864 = vdwg.mxu0
    %2865 = vmatpush.bf16.msra.mxu0 %v2358
    %2866 = vmatpush.bf16.msra.mxu0 %v2350
    %2867 = vmatpush.bf16.msra.mxu0 %v2342
    %2868 = vmatpush.bf16.msra.mxu0 %v2334
    %2869 = vmatpush.bf16.msra.mxu0 %v2326
    %2870 = vmatpush.bf16.msra.mxu0 %v2318
    %2871 = vmatpush.bf16.msra.mxu0 %v2310
    %2872 = vmatpush.bf16.msra.mxu0 %v2302
    %2873 = vmatmul.bf16.gmra.mxu0 %v1081
    %v2874 = vpop.f32.mrf.mxu0
    %v2875 = vadd.f32 %v2862, %v2874
    %v2876 = vpop.f32.mrf.mxu0
    %2877 = vdwg.mxu0
    %2878 = vmatpush.bf16.msra.mxu0 %v2167
    %2879 = vmatpush.bf16.msra.mxu0 %v2159
    %2880 = vmatpush.bf16.msra.mxu0 %v2151
    %2881 = vmatpush.bf16.msra.mxu0 %v2143
    %2882 = vmatpush.bf16.msra.mxu0 %v2135
    %2883 = vmatpush.bf16.msra.mxu0 %v2127
    %2884 = vmatpush.bf16.msra.mxu0 %v2119
    %2885 = vmatpush.bf16.msra.mxu0 %v2111
    %2886 = vmatmul.bf16.gmra.mxu0 %v1078
    %v2887 = vpop.f32.mrf.mxu0
    %v2888 = vadd.f32 0.0, %v2887
    %v2889 = vpop.f32.mrf.mxu0
    %2890 = vdwg.mxu0
    %2891 = vmatpush.bf16.msra.mxu0 %v2231
    %2892 = vmatpush.bf16.msra.mxu0 %v2223
    %2893 = vmatpush.bf16.msra.mxu0 %v2215
    %2894 = vmatpush.bf16.msra.mxu0 %v2207
    %2895 = vmatpush.bf16.msra.mxu0 %v2199
    %2896 = vmatpush.bf16.msra.mxu0 %v2191
    %2897 = vmatpush.bf16.msra.mxu0 %v2183
    %2898 = vmatpush.bf16.msra.mxu0 %v2175
    %2899 = vmatmul.bf16.gmra.mxu0 %v1079
    %v2900 = vpop.f32.mrf.mxu0
    %v2901 = vadd.f32 %v2888, %v2900
    %v2902 = vpop.f32.mrf.mxu0
    %2903 = vdwg.mxu0
    %2904 = vmatpush.bf16.msra.mxu0 %v2295
    %2905 = vmatpush.bf16.msra.mxu0 %v2287
    %2906 = vmatpush.bf16.msra.mxu0 %v2279
    %2907 = vmatpush.bf16.msra.mxu0 %v2271
    %2908 = vmatpush.bf16.msra.mxu0 %v2263
    %2909 = vmatpush.bf16.msra.mxu0 %v2255
    %2910 = vmatpush.bf16.msra.mxu0 %v2247
    %2911 = vmatpush.bf16.msra.mxu0 %v2239
    %2912 = vmatmul.bf16.gmra.mxu0 %v1080
    %v2913 = vpop.f32.mrf.mxu0
    %v2914 = vadd.f32 %v2901, %v2913
    %v2915 = vpop.f32.mrf.mxu0
    %2916 = vdwg.mxu0
    %2917 = vmatpush.bf16.msra.mxu0 %v2359
    %2918 = vmatpush.bf16.msra.mxu0 %v2351
    %2919 = vmatpush.bf16.msra.mxu0 %v2343
    %2920 = vmatpush.bf16.msra.mxu0 %v2335
    %2921 = vmatpush.bf16.msra.mxu0 %v2327
    %2922 = vmatpush.bf16.msra.mxu0 %v2319
    %2923 = vmatpush.bf16.msra.mxu0 %v2311
    %2924 = vmatpush.bf16.msra.mxu0 %v2303
    %2925 = vmatmul.bf16.gmra.mxu0 %v1081
    %v2926 = vpop.f32.mrf.mxu0
    %v2927 = vadd.f32 %v2914, %v2926
    %v2928 = vpop.f32.mrf.mxu0
    %2929 = vdwg.mxu0
    %2930 = vmatpush.bf16.msra.mxu0 %v2168
    %2931 = vmatpush.bf16.msra.mxu0 %v2160
    %2932 = vmatpush.bf16.msra.mxu0 %v2152
    %2933 = vmatpush.bf16.msra.mxu0 %v2144
    %2934 = vmatpush.bf16.msra.mxu0 %v2136
    %2935 = vmatpush.bf16.msra.mxu0 %v2128
    %2936 = vmatpush.bf16.msra.mxu0 %v2120
    %2937 = vmatpush.bf16.msra.mxu0 %v2112
    %2938 = vmatmul.bf16.gmra.mxu0 %v1078
    %v2939 = vpop.f32.mrf.mxu0
    %v2940 = vadd.f32 0.0, %v2939
    %v2941 = vpop.f32.mrf.mxu0
    %2942 = vdwg.mxu0
    %2943 = vmatpush.bf16.msra.mxu0 %v2232
    %2944 = vmatpush.bf16.msra.mxu0 %v2224
    %2945 = vmatpush.bf16.msra.mxu0 %v2216
    %2946 = vmatpush.bf16.msra.mxu0 %v2208
    %2947 = vmatpush.bf16.msra.mxu0 %v2200
    %2948 = vmatpush.bf16.msra.mxu0 %v2192
    %2949 = vmatpush.bf16.msra.mxu0 %v2184
    %2950 = vmatpush.bf16.msra.mxu0 %v2176
    %2951 = vmatmul.bf16.gmra.mxu0 %v1079
    %v2952 = vpop.f32.mrf.mxu0
    %v2953 = vadd.f32 %v2940, %v2952
    %v2954 = vpop.f32.mrf.mxu0
    %2955 = vdwg.mxu0
    %2956 = vmatpush.bf16.msra.mxu0 %v2296
    %2957 = vmatpush.bf16.msra.mxu0 %v2288
    %2958 = vmatpush.bf16.msra.mxu0 %v2280
    %2959 = vmatpush.bf16.msra.mxu0 %v2272
    %2960 = vmatpush.bf16.msra.mxu0 %v2264
    %2961 = vmatpush.bf16.msra.mxu0 %v2256
    %2962 = vmatpush.bf16.msra.mxu0 %v2248
    %2963 = vmatpush.bf16.msra.mxu0 %v2240
    %2964 = vmatmul.bf16.gmra.mxu0 %v1080
    %v2965 = vpop.f32.mrf.mxu0
    %v2966 = vadd.f32 %v2953, %v2965
    %v2967 = vpop.f32.mrf.mxu0
    %2968 = vdwg.mxu0
    %2969 = vmatpush.bf16.msra.mxu0 %v2360
    %2970 = vmatpush.bf16.msra.mxu0 %v2352
    %2971 = vmatpush.bf16.msra.mxu0 %v2344
    %2972 = vmatpush.bf16.msra.mxu0 %v2336
    %2973 = vmatpush.bf16.msra.mxu0 %v2328
    %2974 = vmatpush.bf16.msra.mxu0 %v2320
    %2975 = vmatpush.bf16.msra.mxu0 %v2312
    %2976 = vmatpush.bf16.msra.mxu0 %v2304
    %2977 = vmatmul.bf16.gmra.mxu0 %v1081
    %v2978 = vpop.f32.mrf.mxu0
    %v2979 = vadd.f32 %v2966, %v2978
    %v2980 = vpop.f32.mrf.mxu0
    %2981 = vdwg.mxu0
    %2982 = vmatpush.bf16.msra.mxu0 %v2169
    %2983 = vmatpush.bf16.msra.mxu0 %v2161
    %2984 = vmatpush.bf16.msra.mxu0 %v2153
    %2985 = vmatpush.bf16.msra.mxu0 %v2145
    %2986 = vmatpush.bf16.msra.mxu0 %v2137
    %2987 = vmatpush.bf16.msra.mxu0 %v2129
    %2988 = vmatpush.bf16.msra.mxu0 %v2121
    %2989 = vmatpush.bf16.msra.mxu0 %v2113
    %2990 = vmatmul.bf16.gmra.mxu0 %v1078
    %v2991 = vpop.f32.mrf.mxu0
    %v2992 = vadd.f32 0.0, %v2991
    %v2993 = vpop.f32.mrf.mxu0
    %2994 = vdwg.mxu0
    %2995 = vmatpush.bf16.msra.mxu0 %v2233
    %2996 = vmatpush.bf16.msra.mxu0 %v2225
    %2997 = vmatpush.bf16.msra.mxu0 %v2217
    %2998 = vmatpush.bf16.msra.mxu0 %v2209
    %2999 = vmatpush.bf16.msra.mxu0 %v2201
    %3000 = vmatpush.bf16.msra.mxu0 %v2193
    %3001 = vmatpush.bf16.msra.mxu0 %v2185
    %3002 = vmatpush.bf16.msra.mxu0 %v2177
    %3003 = vmatmul.bf16.gmra.mxu0 %v1079
    %v3004 = vpop.f32.mrf.mxu0
    %v3005 = vadd.f32 %v2992, %v3004
    %v3006 = vpop.f32.mrf.mxu0
    %3007 = vdwg.mxu0
    %3008 = vmatpush.bf16.msra.mxu0 %v2297
    %3009 = vmatpush.bf16.msra.mxu0 %v2289
    %3010 = vmatpush.bf16.msra.mxu0 %v2281
    %3011 = vmatpush.bf16.msra.mxu0 %v2273
    %3012 = vmatpush.bf16.msra.mxu0 %v2265
    %3013 = vmatpush.bf16.msra.mxu0 %v2257
    %3014 = vmatpush.bf16.msra.mxu0 %v2249
    %3015 = vmatpush.bf16.msra.mxu0 %v2241
    %3016 = vmatmul.bf16.gmra.mxu0 %v1080
    %v3017 = vpop.f32.mrf.mxu0
    %v3018 = vadd.f32 %v3005, %v3017
    %v3019 = vpop.f32.mrf.mxu0
    %3020 = vdwg.mxu0
    %3021 = vmatpush.bf16.msra.mxu0 %v2361
    %3022 = vmatpush.bf16.msra.mxu0 %v2353
    %3023 = vmatpush.bf16.msra.mxu0 %v2345
    %3024 = vmatpush.bf16.msra.mxu0 %v2337
    %3025 = vmatpush.bf16.msra.mxu0 %v2329
    %3026 = vmatpush.bf16.msra.mxu0 %v2321
    %3027 = vmatpush.bf16.msra.mxu0 %v2313
    %3028 = vmatpush.bf16.msra.mxu0 %v2305
    %3029 = vmatmul.bf16.gmra.mxu0 %v1081
    %v3030 = vpop.f32.mrf.mxu0
    %v3031 = vadd.f32 %v3018, %v3030
    %v3032 = vpop.f32.mrf.mxu0
    %3033 = vdwg.mxu0
    %v3034 = vmax.f32 %v2667, 0.0
    %v3035 = vmax.f32 %v2719, 0.0
    %v3036 = vmax.f32 %v2771, 0.0
    %v3037 = vmax.f32 %v2823, 0.0
    %v3038 = vmax.f32 %v2875, 0.0
    %v3039 = vmax.f32 %v2927, 0.0
    %v3040 = vmax.f32 %v2979, 0.0
    %v3041 = vmax.f32 %v3031, 0.0
    %v3043 = vperm.slane %v1077, 0
    %v3044 = vperm.slane %v1077, 1
    %v3045 = vperm.slane %v1077, 2
    %v3046 = vperm.slane %v1077, 3
    %v3047 = vperm.slane %v1077, 4
    %v3048 = vperm.slane %v1077, 5
    %v3049 = vperm.slane %v1077, 6
    %v3050 = vperm.slane %v1077, 7
    %v3059 = vadd.f32 %v3043, %v3034
    %v3060 = vadd.f32 %v3044, %v3035
    %v3061 = vadd.f32 %v3045, %v3036
    %v3062 = vadd.f32 %v3046, %v3037
    %v3063 = vadd.f32 %v3047, %v3038
    %v3064 = vadd.f32 %v3048, %v3039
    %v3065 = vadd.f32 %v3049, %v3040
    %v3066 = vadd.f32 %v3050, %v3041
    %v3067 = vmax.f32 %v3059, 0.0
    %v3068 = vmax.f32 %v3060, 0.0
    %v3069 = vmax.f32 %v3061, 0.0
    %v3070 = vmax.f32 %v3062, 0.0
    %v3071 = vmax.f32 %v3063, 0.0
    %v3072 = vmax.f32 %v3064, 0.0
    %v3073 = vmax.f32 %v3065, 0.0
    %v3074 = vmax.f32 %v3066, 0.0
    %v3075 = vpack.c.bf16 %v3067, %v3067
    %v3076 = vpack.c.bf16 %v3068, %v3068
    %v3077 = vpack.c.bf16 %v3069, %v3069
    %v3078 = vpack.c.bf16 %v3070, %v3070
    %v3079 = vpack.c.bf16 %v3071, %v3071
    %v3080 = vpack.c.bf16 %v3072, %v3072
    %v3081 = vpack.c.bf16 %v3073, %v3073
    %v3082 = vpack.c.bf16 %v3074, %v3074
    %v3083 = vld [vmem:[#allocation19] sm:$0xff]
    %v3084 = vld [vmem:[#allocation19 + $0x8] sm:$0xff]
    %v3085 = vld [vmem:[#allocation19 + $0x10] sm:$0xff]
    %v3086 = vld [vmem:[#allocation19 + $0x18] sm:$0xff]
    %v3087 = vld [vmem:[#allocation19 + $0x20] sm:$0xff]
    %v3088 = vld [vmem:[#allocation19 + $0x28] sm:$0xff]
    %v3089 = vld [vmem:[#allocation19 + $0x30] sm:$0xff]
    %v3090 = vld [vmem:[#allocation19 + $0x38] sm:$0xff]
    %v3091 = vld [vmem:[#allocation19 + $0x40] sm:$0xff]
    %v3092 = vld [vmem:[#allocation19 + $0x48] sm:$0xff]
    %v3093 = vld [vmem:[#allocation19 + $0x50] sm:$0xff]
    %v3094 = vld [vmem:[#allocation19 + $0x58] sm:$0xff]
    %v3095 = vld [vmem:[#allocation19 + $0x60] sm:$0xff]
    %v3096 = vld [vmem:[#allocation19 + $0x68] sm:$0xff]
    %v3097 = vld [vmem:[#allocation19 + $0x70] sm:$0xff]
    %v3098 = vld [vmem:[#allocation19 + $0x78] sm:$0xff]
    %v3099 = vld [vmem:[#allocation19 + $0x80] sm:$0xff]
    %v3100 = vld [vmem:[#allocation19 + $0x88] sm:$0xff]
    %v3101 = vld [vmem:[#allocation19 + $0x90] sm:$0xff]
    %v3102 = vld [vmem:[#allocation19 + $0x98] sm:$0xff]
    %v3103 = vld [vmem:[#allocation19 + $0xa0] sm:$0xff]
    %v3104 = vld [vmem:[#allocation19 + $0xa8] sm:$0xff]
    %v3105 = vld [vmem:[#allocation19 + $0xb0] sm:$0xff]
    %v3106 = vld [vmem:[#allocation19 + $0xb8] sm:$0xff]
    %v3107 = vld [vmem:[#allocation19 + $0xc0] sm:$0xff]
    %v3108 = vld [vmem:[#allocation19 + $0xc8] sm:$0xff]
    %v3109 = vld [vmem:[#allocation19 + $0xd0] sm:$0xff]
    %v3110 = vld [vmem:[#allocation19 + $0xd8] sm:$0xff]
    %v3111 = vld [vmem:[#allocation19 + $0xe0] sm:$0xff]
    %v3112 = vld [vmem:[#allocation19 + $0xe8] sm:$0xff]
    %v3113 = vld [vmem:[#allocation19 + $0xf0] sm:$0xff]
    %v3114 = vld [vmem:[#allocation19 + $0xf8] sm:$0xff]
    %v3115 = vld [vmem:[#allocation19 + $0x100] sm:$0xff]
    %v3116 = vld [vmem:[#allocation19 + $0x108] sm:$0xff]
    %v3117 = vld [vmem:[#allocation19 + $0x110] sm:$0xff]
    %v3118 = vld [vmem:[#allocation19 + $0x118] sm:$0xff]
    %v3119 = vld [vmem:[#allocation19 + $0x120] sm:$0xff]
    %v3120 = vld [vmem:[#allocation19 + $0x128] sm:$0xff]
    %v3121 = vld [vmem:[#allocation19 + $0x130] sm:$0xff]
    %v3122 = vld [vmem:[#allocation19 + $0x138] sm:$0xff]
    %v3123 = vld [vmem:[#allocation19 + $0x140] sm:$0xff]
    %v3124 = vld [vmem:[#allocation19 + $0x148] sm:$0xff]
    %v3125 = vld [vmem:[#allocation19 + $0x150] sm:$0xff]
    %v3126 = vld [vmem:[#allocation19 + $0x158] sm:$0xff]
    %v3127 = vld [vmem:[#allocation19 + $0x160] sm:$0xff]
    %v3128 = vld [vmem:[#allocation19 + $0x168] sm:$0xff]
    %v3129 = vld [vmem:[#allocation19 + $0x170] sm:$0xff]
    %v3130 = vld [vmem:[#allocation19 + $0x178] sm:$0xff]
    %v3131 = vld [vmem:[#allocation19 + $0x180] sm:$0xff]
    %v3132 = vld [vmem:[#allocation19 + $0x188] sm:$0xff]
    %v3133 = vld [vmem:[#allocation19 + $0x190] sm:$0xff]
    %v3134 = vld [vmem:[#allocation19 + $0x198] sm:$0xff]
    %v3135 = vld [vmem:[#allocation19 + $0x1a0] sm:$0xff]
    %v3136 = vld [vmem:[#allocation19 + $0x1a8] sm:$0xff]
    %v3137 = vld [vmem:[#allocation19 + $0x1b0] sm:$0xff]
    %v3138 = vld [vmem:[#allocation19 + $0x1b8] sm:$0xff]
    %v3139 = vld [vmem:[#allocation19 + $0x1c0] sm:$0xff]
    %v3140 = vld [vmem:[#allocation19 + $0x1c8] sm:$0xff]
    %v3141 = vld [vmem:[#allocation19 + $0x1d0] sm:$0xff]
    %v3142 = vld [vmem:[#allocation19 + $0x1d8] sm:$0xff]
    %v3143 = vld [vmem:[#allocation19 + $0x1e0] sm:$0xff]
    %v3144 = vld [vmem:[#allocation19 + $0x1e8] sm:$0xff]
    %v3145 = vld [vmem:[#allocation19 + $0x1f0] sm:$0xff]
    %v3146 = vld [vmem:[#allocation19 + $0x1f8] sm:$0xff]
    %v3147 = vld [vmem:[#allocation19 + $0x200] sm:$0xff]
    %v3148 = vld [vmem:[#allocation19 + $0x208] sm:$0xff]
    %v3149 = vld [vmem:[#allocation19 + $0x210] sm:$0xff]
    %v3150 = vld [vmem:[#allocation19 + $0x218] sm:$0xff]
    %v3151 = vld [vmem:[#allocation19 + $0x220] sm:$0xff]
    %v3152 = vld [vmem:[#allocation19 + $0x228] sm:$0xff]
    %v3153 = vld [vmem:[#allocation19 + $0x230] sm:$0xff]
    %v3154 = vld [vmem:[#allocation19 + $0x238] sm:$0xff]
    %v3155 = vld [vmem:[#allocation19 + $0x240] sm:$0xff]
    %v3156 = vld [vmem:[#allocation19 + $0x248] sm:$0xff]
    %v3157 = vld [vmem:[#allocation19 + $0x250] sm:$0xff]
    %v3158 = vld [vmem:[#allocation19 + $0x258] sm:$0xff]
    %v3159 = vld [vmem:[#allocation19 + $0x260] sm:$0xff]
    %v3160 = vld [vmem:[#allocation19 + $0x268] sm:$0xff]
    %v3161 = vld [vmem:[#allocation19 + $0x270] sm:$0xff]
    %v3162 = vld [vmem:[#allocation19 + $0x278] sm:$0xff]
    %v3163 = vld [vmem:[#allocation19 + $0x280] sm:$0xff]
    %v3164 = vld [vmem:[#allocation19 + $0x288] sm:$0xff]
    %v3165 = vld [vmem:[#allocation19 + $0x290] sm:$0xff]
    %v3166 = vld [vmem:[#allocation19 + $0x298] sm:$0xff]
    %v3167 = vld [vmem:[#allocation19 + $0x2a0] sm:$0xff]
    %v3168 = vld [vmem:[#allocation19 + $0x2a8] sm:$0xff]
    %v3169 = vld [vmem:[#allocation19 + $0x2b0] sm:$0xff]
    %v3170 = vld [vmem:[#allocation19 + $0x2b8] sm:$0xff]
    %v3171 = vld [vmem:[#allocation19 + $0x2c0] sm:$0xff]
    %v3172 = vld [vmem:[#allocation19 + $0x2c8] sm:$0xff]
    %v3173 = vld [vmem:[#allocation19 + $0x2d0] sm:$0xff]
    %v3174 = vld [vmem:[#allocation19 + $0x2d8] sm:$0xff]
    %v3175 = vld [vmem:[#allocation19 + $0x2e0] sm:$0xff]
    %v3176 = vld [vmem:[#allocation19 + $0x2e8] sm:$0xff]
    %v3177 = vld [vmem:[#allocation19 + $0x2f0] sm:$0xff]
    %v3178 = vld [vmem:[#allocation19 + $0x2f8] sm:$0xff]
    %v3179 = vld [vmem:[#allocation19 + $0x300] sm:$0xff]
    %v3180 = vld [vmem:[#allocation19 + $0x308] sm:$0xff]
    %v3181 = vld [vmem:[#allocation19 + $0x310] sm:$0xff]
    %v3182 = vld [vmem:[#allocation19 + $0x318] sm:$0xff]
    %v3183 = vld [vmem:[#allocation19 + $0x320] sm:$0xff]
    %v3184 = vld [vmem:[#allocation19 + $0x328] sm:$0xff]
    %v3185 = vld [vmem:[#allocation19 + $0x330] sm:$0xff]
    %v3186 = vld [vmem:[#allocation19 + $0x338] sm:$0xff]
    %v3187 = vld [vmem:[#allocation19 + $0x340] sm:$0xff]
    %v3188 = vld [vmem:[#allocation19 + $0x348] sm:$0xff]
    %v3189 = vld [vmem:[#allocation19 + $0x350] sm:$0xff]
    %v3190 = vld [vmem:[#allocation19 + $0x358] sm:$0xff]
    %v3191 = vld [vmem:[#allocation19 + $0x360] sm:$0xff]
    %v3192 = vld [vmem:[#allocation19 + $0x368] sm:$0xff]
    %v3193 = vld [vmem:[#allocation19 + $0x370] sm:$0xff]
    %v3194 = vld [vmem:[#allocation19 + $0x378] sm:$0xff]
    %v3195 = vld [vmem:[#allocation19 + $0x380] sm:$0xff]
    %v3196 = vld [vmem:[#allocation19 + $0x388] sm:$0xff]
    %v3197 = vld [vmem:[#allocation19 + $0x390] sm:$0xff]
    %v3198 = vld [vmem:[#allocation19 + $0x398] sm:$0xff]
    %v3199 = vld [vmem:[#allocation19 + $0x3a0] sm:$0xff]
    %v3200 = vld [vmem:[#allocation19 + $0x3a8] sm:$0xff]
    %v3201 = vld [vmem:[#allocation19 + $0x3b0] sm:$0xff]
    %v3202 = vld [vmem:[#allocation19 + $0x3b8] sm:$0xff]
    %v3203 = vld [vmem:[#allocation19 + $0x3c0] sm:$0xff]
    %v3204 = vld [vmem:[#allocation19 + $0x3c8] sm:$0xff]
    %v3205 = vld [vmem:[#allocation19 + $0x3d0] sm:$0xff]
    %v3206 = vld [vmem:[#allocation19 + $0x3d8] sm:$0xff]
    %v3207 = vld [vmem:[#allocation19 + $0x3e0] sm:$0xff]
    %v3208 = vld [vmem:[#allocation19 + $0x3e8] sm:$0xff]
    %v3209 = vld [vmem:[#allocation19 + $0x3f0] sm:$0xff]
    %v3210 = vld [vmem:[#allocation19 + $0x3f8] sm:$0xff]
    %v3211 = vld [vmem:[#allocation19 + $0x400] sm:$0xff]
    %v3212 = vld [vmem:[#allocation19 + $0x408] sm:$0xff]
    %v3213 = vld [vmem:[#allocation19 + $0x410] sm:$0xff]
    %v3214 = vld [vmem:[#allocation19 + $0x418] sm:$0xff]
    %v3215 = vld [vmem:[#allocation19 + $0x420] sm:$0xff]
    %v3216 = vld [vmem:[#allocation19 + $0x428] sm:$0xff]
    %v3217 = vld [vmem:[#allocation19 + $0x430] sm:$0xff]
    %v3218 = vld [vmem:[#allocation19 + $0x438] sm:$0xff]
    %v3219 = vld [vmem:[#allocation19 + $0x440] sm:$0xff]
    %v3220 = vld [vmem:[#allocation19 + $0x448] sm:$0xff]
    %v3221 = vld [vmem:[#allocation19 + $0x450] sm:$0xff]
    %v3222 = vld [vmem:[#allocation19 + $0x458] sm:$0xff]
    %v3223 = vld [vmem:[#allocation19 + $0x460] sm:$0xff]
    %v3224 = vld [vmem:[#allocation19 + $0x468] sm:$0xff]
    %v3225 = vld [vmem:[#allocation19 + $0x470] sm:$0xff]
    %v3226 = vld [vmem:[#allocation19 + $0x478] sm:$0xff]
    %v3227 = vld [vmem:[#allocation19 + $0x480] sm:$0xff]
    %v3228 = vld [vmem:[#allocation19 + $0x488] sm:$0xff]
    %v3229 = vld [vmem:[#allocation19 + $0x490] sm:$0xff]
    %v3230 = vld [vmem:[#allocation19 + $0x498] sm:$0xff]
    %v3231 = vld [vmem:[#allocation19 + $0x4a0] sm:$0xff]
    %v3232 = vld [vmem:[#allocation19 + $0x4a8] sm:$0xff]
    %v3233 = vld [vmem:[#allocation19 + $0x4b0] sm:$0xff]
    %v3234 = vld [vmem:[#allocation19 + $0x4b8] sm:$0xff]
    %v3235 = vld [vmem:[#allocation19 + $0x4c0] sm:$0xff]
    %v3236 = vld [vmem:[#allocation19 + $0x4c8] sm:$0xff]
    %v3237 = vld [vmem:[#allocation19 + $0x4d0] sm:$0xff]
    %v3238 = vld [vmem:[#allocation19 + $0x4d8] sm:$0xff]
    %v3239 = vld [vmem:[#allocation19 + $0x4e0] sm:$0xff]
    %v3240 = vld [vmem:[#allocation19 + $0x4e8] sm:$0xff]
    %v3241 = vld [vmem:[#allocation19 + $0x4f0] sm:$0xff]
    %v3242 = vld [vmem:[#allocation19 + $0x4f8] sm:$0xff]
    %v3243 = vld [vmem:[#allocation19 + $0x500] sm:$0xff]
    %v3244 = vld [vmem:[#allocation19 + $0x508] sm:$0xff]
    %v3245 = vld [vmem:[#allocation19 + $0x510] sm:$0xff]
    %v3246 = vld [vmem:[#allocation19 + $0x518] sm:$0xff]
    %v3247 = vld [vmem:[#allocation19 + $0x520] sm:$0xff]
    %v3248 = vld [vmem:[#allocation19 + $0x528] sm:$0xff]
    %v3249 = vld [vmem:[#allocation19 + $0x530] sm:$0xff]
    %v3250 = vld [vmem:[#allocation19 + $0x538] sm:$0xff]
    %v3251 = vld [vmem:[#allocation19 + $0x540] sm:$0xff]
    %v3252 = vld [vmem:[#allocation19 + $0x548] sm:$0xff]
    %v3253 = vld [vmem:[#allocation19 + $0x550] sm:$0xff]
    %v3254 = vld [vmem:[#allocation19 + $0x558] sm:$0xff]
    %v3255 = vld [vmem:[#allocation19 + $0x560] sm:$0xff]
    %v3256 = vld [vmem:[#allocation19 + $0x568] sm:$0xff]
    %v3257 = vld [vmem:[#allocation19 + $0x570] sm:$0xff]
    %v3258 = vld [vmem:[#allocation19 + $0x578] sm:$0xff]
    %v3259 = vld [vmem:[#allocation19 + $0x580] sm:$0xff]
    %v3260 = vld [vmem:[#allocation19 + $0x588] sm:$0xff]
    %v3261 = vld [vmem:[#allocation19 + $0x590] sm:$0xff]
    %v3262 = vld [vmem:[#allocation19 + $0x598] sm:$0xff]
    %v3263 = vld [vmem:[#allocation19 + $0x5a0] sm:$0xff]
    %v3264 = vld [vmem:[#allocation19 + $0x5a8] sm:$0xff]
    %v3265 = vld [vmem:[#allocation19 + $0x5b0] sm:$0xff]
    %v3266 = vld [vmem:[#allocation19 + $0x5b8] sm:$0xff]
    %v3267 = vld [vmem:[#allocation19 + $0x5c0] sm:$0xff]
    %v3268 = vld [vmem:[#allocation19 + $0x5c8] sm:$0xff]
    %v3269 = vld [vmem:[#allocation19 + $0x5d0] sm:$0xff]
    %v3270 = vld [vmem:[#allocation19 + $0x5d8] sm:$0xff]
    %v3271 = vld [vmem:[#allocation19 + $0x5e0] sm:$0xff]
    %v3272 = vld [vmem:[#allocation19 + $0x5e8] sm:$0xff]
    %v3273 = vld [vmem:[#allocation19 + $0x5f0] sm:$0xff]
    %v3274 = vld [vmem:[#allocation19 + $0x5f8] sm:$0xff]
    %v3275 = vld [vmem:[#allocation19 + $0x600] sm:$0xff]
    %v3276 = vld [vmem:[#allocation19 + $0x608] sm:$0xff]
    %v3277 = vld [vmem:[#allocation19 + $0x610] sm:$0xff]
    %v3278 = vld [vmem:[#allocation19 + $0x618] sm:$0xff]
    %v3279 = vld [vmem:[#allocation19 + $0x620] sm:$0xff]
    %v3280 = vld [vmem:[#allocation19 + $0x628] sm:$0xff]
    %v3281 = vld [vmem:[#allocation19 + $0x630] sm:$0xff]
    %v3282 = vld [vmem:[#allocation19 + $0x638] sm:$0xff]
    %v3283 = vld [vmem:[#allocation19 + $0x640] sm:$0xff]
    %v3284 = vld [vmem:[#allocation19 + $0x648] sm:$0xff]
    %v3285 = vld [vmem:[#allocation19 + $0x650] sm:$0xff]
    %v3286 = vld [vmem:[#allocation19 + $0x658] sm:$0xff]
    %v3287 = vld [vmem:[#allocation19 + $0x660] sm:$0xff]
    %v3288 = vld [vmem:[#allocation19 + $0x668] sm:$0xff]
    %v3289 = vld [vmem:[#allocation19 + $0x670] sm:$0xff]
    %v3290 = vld [vmem:[#allocation19 + $0x678] sm:$0xff]
    %v3291 = vld [vmem:[#allocation19 + $0x680] sm:$0xff]
    %v3292 = vld [vmem:[#allocation19 + $0x688] sm:$0xff]
    %v3293 = vld [vmem:[#allocation19 + $0x690] sm:$0xff]
    %v3294 = vld [vmem:[#allocation19 + $0x698] sm:$0xff]
    %v3295 = vld [vmem:[#allocation19 + $0x6a0] sm:$0xff]
    %v3296 = vld [vmem:[#allocation19 + $0x6a8] sm:$0xff]
    %v3297 = vld [vmem:[#allocation19 + $0x6b0] sm:$0xff]
    %v3298 = vld [vmem:[#allocation19 + $0x6b8] sm:$0xff]
    %v3299 = vld [vmem:[#allocation19 + $0x6c0] sm:$0xff]
    %v3300 = vld [vmem:[#allocation19 + $0x6c8] sm:$0xff]
    %v3301 = vld [vmem:[#allocation19 + $0x6d0] sm:$0xff]
    %v3302 = vld [vmem:[#allocation19 + $0x6d8] sm:$0xff]
    %v3303 = vld [vmem:[#allocation19 + $0x6e0] sm:$0xff]
    %v3304 = vld [vmem:[#allocation19 + $0x6e8] sm:$0xff]
    %v3305 = vld [vmem:[#allocation19 + $0x6f0] sm:$0xff]
    %v3306 = vld [vmem:[#allocation19 + $0x6f8] sm:$0xff]
    %v3307 = vld [vmem:[#allocation19 + $0x700] sm:$0xff]
    %v3308 = vld [vmem:[#allocation19 + $0x708] sm:$0xff]
    %v3309 = vld [vmem:[#allocation19 + $0x710] sm:$0xff]
    %v3310 = vld [vmem:[#allocation19 + $0x718] sm:$0xff]
    %v3311 = vld [vmem:[#allocation19 + $0x720] sm:$0xff]
    %v3312 = vld [vmem:[#allocation19 + $0x728] sm:$0xff]
    %v3313 = vld [vmem:[#allocation19 + $0x730] sm:$0xff]
    %v3314 = vld [vmem:[#allocation19 + $0x738] sm:$0xff]
    %v3315 = vld [vmem:[#allocation19 + $0x740] sm:$0xff]
    %v3316 = vld [vmem:[#allocation19 + $0x748] sm:$0xff]
    %v3317 = vld [vmem:[#allocation19 + $0x750] sm:$0xff]
    %v3318 = vld [vmem:[#allocation19 + $0x758] sm:$0xff]
    %v3319 = vld [vmem:[#allocation19 + $0x760] sm:$0xff]
    %v3320 = vld [vmem:[#allocation19 + $0x768] sm:$0xff]
    %v3321 = vld [vmem:[#allocation19 + $0x770] sm:$0xff]
    %v3322 = vld [vmem:[#allocation19 + $0x778] sm:$0xff]
    %v3323 = vld [vmem:[#allocation19 + $0x780] sm:$0xff]
    %v3324 = vld [vmem:[#allocation19 + $0x788] sm:$0xff]
    %v3325 = vld [vmem:[#allocation19 + $0x790] sm:$0xff]
    %v3326 = vld [vmem:[#allocation19 + $0x798] sm:$0xff]
    %v3327 = vld [vmem:[#allocation19 + $0x7a0] sm:$0xff]
    %v3328 = vld [vmem:[#allocation19 + $0x7a8] sm:$0xff]
    %v3329 = vld [vmem:[#allocation19 + $0x7b0] sm:$0xff]
    %v3330 = vld [vmem:[#allocation19 + $0x7b8] sm:$0xff]
    %v3331 = vld [vmem:[#allocation19 + $0x7c0] sm:$0xff]
    %v3332 = vld [vmem:[#allocation19 + $0x7c8] sm:$0xff]
    %v3333 = vld [vmem:[#allocation19 + $0x7d0] sm:$0xff]
    %v3334 = vld [vmem:[#allocation19 + $0x7d8] sm:$0xff]
    %v3335 = vld [vmem:[#allocation19 + $0x7e0] sm:$0xff]
    %v3336 = vld [vmem:[#allocation19 + $0x7e8] sm:$0xff]
    %v3337 = vld [vmem:[#allocation19 + $0x7f0] sm:$0xff]
    %v3338 = vld [vmem:[#allocation19 + $0x7f8] sm:$0xff]
    %v3339 = vld [vmem:[#allocation19 + $0x800] sm:$0xff]
    %v3340 = vld [vmem:[#allocation19 + $0x808] sm:$0xff]
    %v3341 = vld [vmem:[#allocation19 + $0x810] sm:$0xff]
    %v3342 = vld [vmem:[#allocation19 + $0x818] sm:$0xff]
    %v3343 = vld [vmem:[#allocation19 + $0x820] sm:$0xff]
    %v3344 = vld [vmem:[#allocation19 + $0x828] sm:$0xff]
    %v3345 = vld [vmem:[#allocation19 + $0x830] sm:$0xff]
    %v3346 = vld [vmem:[#allocation19 + $0x838] sm:$0xff]
    %v3347 = vld [vmem:[#allocation19 + $0x840] sm:$0xff]
    %v3348 = vld [vmem:[#allocation19 + $0x848] sm:$0xff]
    %v3349 = vld [vmem:[#allocation19 + $0x850] sm:$0xff]
    %v3350 = vld [vmem:[#allocation19 + $0x858] sm:$0xff]
    %v3351 = vld [vmem:[#allocation19 + $0x860] sm:$0xff]
    %v3352 = vld [vmem:[#allocation19 + $0x868] sm:$0xff]
    %v3353 = vld [vmem:[#allocation19 + $0x870] sm:$0xff]
    %v3354 = vld [vmem:[#allocation19 + $0x878] sm:$0xff]
    %v3355 = vld [vmem:[#allocation19 + $0x880] sm:$0xff]
    %v3356 = vld [vmem:[#allocation19 + $0x888] sm:$0xff]
    %v3357 = vld [vmem:[#allocation19 + $0x890] sm:$0xff]
    %v3358 = vld [vmem:[#allocation19 + $0x898] sm:$0xff]
    %v3359 = vld [vmem:[#allocation19 + $0x8a0] sm:$0xff]
    %v3360 = vld [vmem:[#allocation19 + $0x8a8] sm:$0xff]
    %v3361 = vld [vmem:[#allocation19 + $0x8b0] sm:$0xff]
    %v3362 = vld [vmem:[#allocation19 + $0x8b8] sm:$0xff]
    %v3363 = vld [vmem:[#allocation19 + $0x8c0] sm:$0xff]
    %v3364 = vld [vmem:[#allocation19 + $0x8c8] sm:$0xff]
    %v3365 = vld [vmem:[#allocation19 + $0x8d0] sm:$0xff]
    %v3366 = vld [vmem:[#allocation19 + $0x8d8] sm:$0xff]
    %v3367 = vld [vmem:[#allocation19 + $0x8e0] sm:$0xff]
    %v3368 = vld [vmem:[#allocation19 + $0x8e8] sm:$0xff]
    %v3369 = vld [vmem:[#allocation19 + $0x8f0] sm:$0xff]
    %v3370 = vld [vmem:[#allocation19 + $0x8f8] sm:$0xff]
    %v3371 = vld [vmem:[#allocation19 + $0x900] sm:$0xff]
    %v3372 = vld [vmem:[#allocation19 + $0x908] sm:$0xff]
    %v3373 = vld [vmem:[#allocation19 + $0x910] sm:$0xff]
    %v3374 = vld [vmem:[#allocation19 + $0x918] sm:$0xff]
    %v3375 = vld [vmem:[#allocation19 + $0x920] sm:$0xff]
    %v3376 = vld [vmem:[#allocation19 + $0x928] sm:$0xff]
    %v3377 = vld [vmem:[#allocation19 + $0x930] sm:$0xff]
    %v3378 = vld [vmem:[#allocation19 + $0x938] sm:$0xff]
    %v3379 = vld [vmem:[#allocation19 + $0x940] sm:$0xff]
    %v3380 = vld [vmem:[#allocation19 + $0x948] sm:$0xff]
    %v3381 = vld [vmem:[#allocation19 + $0x950] sm:$0xff]
    %v3382 = vld [vmem:[#allocation19 + $0x958] sm:$0xff]
    %v3383 = vld [vmem:[#allocation19 + $0x960] sm:$0xff]
    %v3384 = vld [vmem:[#allocation19 + $0x968] sm:$0xff]
    %v3385 = vld [vmem:[#allocation19 + $0x970] sm:$0xff]
    %v3386 = vld [vmem:[#allocation19 + $0x978] sm:$0xff]
    %v3387 = vld [vmem:[#allocation19 + $0x980] sm:$0xff]
    %v3388 = vld [vmem:[#allocation19 + $0x988] sm:$0xff]
    %v3389 = vld [vmem:[#allocation19 + $0x990] sm:$0xff]
    %v3390 = vld [vmem:[#allocation19 + $0x998] sm:$0xff]
    %v3391 = vld [vmem:[#allocation19 + $0x9a0] sm:$0xff]
    %v3392 = vld [vmem:[#allocation19 + $0x9a8] sm:$0xff]
    %v3393 = vld [vmem:[#allocation19 + $0x9b0] sm:$0xff]
    %v3394 = vld [vmem:[#allocation19 + $0x9b8] sm:$0xff]
    %v3395 = vld [vmem:[#allocation19 + $0x9c0] sm:$0xff]
    %v3396 = vld [vmem:[#allocation19 + $0x9c8] sm:$0xff]
    %v3397 = vld [vmem:[#allocation19 + $0x9d0] sm:$0xff]
    %v3398 = vld [vmem:[#allocation19 + $0x9d8] sm:$0xff]
    %v3399 = vld [vmem:[#allocation19 + $0x9e0] sm:$0xff]
    %v3400 = vld [vmem:[#allocation19 + $0x9e8] sm:$0xff]
    %v3401 = vld [vmem:[#allocation19 + $0x9f0] sm:$0xff]
    %v3402 = vld [vmem:[#allocation19 + $0x9f8] sm:$0xff]
    %v3403 = vld [vmem:[#allocation19 + $0xa00] sm:$0xff]
    %v3404 = vld [vmem:[#allocation19 + $0xa08] sm:$0xff]
    %v3405 = vld [vmem:[#allocation19 + $0xa10] sm:$0xff]
    %v3406 = vld [vmem:[#allocation19 + $0xa18] sm:$0xff]
    %v3407 = vld [vmem:[#allocation19 + $0xa20] sm:$0xff]
    %v3408 = vld [vmem:[#allocation19 + $0xa28] sm:$0xff]
    %v3409 = vld [vmem:[#allocation19 + $0xa30] sm:$0xff]
    %v3410 = vld [vmem:[#allocation19 + $0xa38] sm:$0xff]
    %v3411 = vld [vmem:[#allocation19 + $0xa40] sm:$0xff]
    %v3412 = vld [vmem:[#allocation19 + $0xa48] sm:$0xff]
    %v3413 = vld [vmem:[#allocation19 + $0xa50] sm:$0xff]
    %v3414 = vld [vmem:[#allocation19 + $0xa58] sm:$0xff]
    %v3415 = vld [vmem:[#allocation19 + $0xa60] sm:$0xff]
    %v3416 = vld [vmem:[#allocation19 + $0xa68] sm:$0xff]
    %v3417 = vld [vmem:[#allocation19 + $0xa70] sm:$0xff]
    %v3418 = vld [vmem:[#allocation19 + $0xa78] sm:$0xff]
    %v3419 = vld [vmem:[#allocation19 + $0xa80] sm:$0xff]
    %v3420 = vld [vmem:[#allocation19 + $0xa88] sm:$0xff]
    %v3421 = vld [vmem:[#allocation19 + $0xa90] sm:$0xff]
    %v3422 = vld [vmem:[#allocation19 + $0xa98] sm:$0xff]
    %v3423 = vld [vmem:[#allocation19 + $0xaa0] sm:$0xff]
    %v3424 = vld [vmem:[#allocation19 + $0xaa8] sm:$0xff]
    %v3425 = vld [vmem:[#allocation19 + $0xab0] sm:$0xff]
    %v3426 = vld [vmem:[#allocation19 + $0xab8] sm:$0xff]
    %v3427 = vld [vmem:[#allocation19 + $0xac0] sm:$0xff]
    %v3428 = vld [vmem:[#allocation19 + $0xac8] sm:$0xff]
    %v3429 = vld [vmem:[#allocation19 + $0xad0] sm:$0xff]
    %v3430 = vld [vmem:[#allocation19 + $0xad8] sm:$0xff]
    %v3431 = vld [vmem:[#allocation19 + $0xae0] sm:$0xff]
    %v3432 = vld [vmem:[#allocation19 + $0xae8] sm:$0xff]
    %v3433 = vld [vmem:[#allocation19 + $0xaf0] sm:$0xff]
    %v3434 = vld [vmem:[#allocation19 + $0xaf8] sm:$0xff]
    %v3435 = vld [vmem:[#allocation19 + $0xb00] sm:$0xff]
    %v3436 = vld [vmem:[#allocation19 + $0xb08] sm:$0xff]
    %v3437 = vld [vmem:[#allocation19 + $0xb10] sm:$0xff]
    %v3438 = vld [vmem:[#allocation19 + $0xb18] sm:$0xff]
    %v3439 = vld [vmem:[#allocation19 + $0xb20] sm:$0xff]
    %v3440 = vld [vmem:[#allocation19 + $0xb28] sm:$0xff]
    %v3441 = vld [vmem:[#allocation19 + $0xb30] sm:$0xff]
    %v3442 = vld [vmem:[#allocation19 + $0xb38] sm:$0xff]
    %v3443 = vld [vmem:[#allocation19 + $0xb40] sm:$0xff]
    %v3444 = vld [vmem:[#allocation19 + $0xb48] sm:$0xff]
    %v3445 = vld [vmem:[#allocation19 + $0xb50] sm:$0xff]
    %v3446 = vld [vmem:[#allocation19 + $0xb58] sm:$0xff]
    %v3447 = vld [vmem:[#allocation19 + $0xb60] sm:$0xff]
    %v3448 = vld [vmem:[#allocation19 + $0xb68] sm:$0xff]
    %v3449 = vld [vmem:[#allocation19 + $0xb70] sm:$0xff]
    %v3450 = vld [vmem:[#allocation19 + $0xb78] sm:$0xff]
    %v3451 = vld [vmem:[#allocation19 + $0xb80] sm:$0xff]
    %v3452 = vld [vmem:[#allocation19 + $0xb88] sm:$0xff]
    %v3453 = vld [vmem:[#allocation19 + $0xb90] sm:$0xff]
    %v3454 = vld [vmem:[#allocation19 + $0xb98] sm:$0xff]
    %v3455 = vld [vmem:[#allocation19 + $0xba0] sm:$0xff]
    %v3456 = vld [vmem:[#allocation19 + $0xba8] sm:$0xff]
    %v3457 = vld [vmem:[#allocation19 + $0xbb0] sm:$0xff]
    %v3458 = vld [vmem:[#allocation19 + $0xbb8] sm:$0xff]
    %v3459 = vld [vmem:[#allocation19 + $0xbc0] sm:$0xff]
    %v3460 = vld [vmem:[#allocation19 + $0xbc8] sm:$0xff]
    %v3461 = vld [vmem:[#allocation19 + $0xbd0] sm:$0xff]
    %v3462 = vld [vmem:[#allocation19 + $0xbd8] sm:$0xff]
    %v3463 = vld [vmem:[#allocation19 + $0xbe0] sm:$0xff]
    %v3464 = vld [vmem:[#allocation19 + $0xbe8] sm:$0xff]
    %v3465 = vld [vmem:[#allocation19 + $0xbf0] sm:$0xff]
    %v3466 = vld [vmem:[#allocation19 + $0xbf8] sm:$0xff]
    %v3467 = vld [vmem:[#allocation19 + $0xc00] sm:$0xff]
    %v3468 = vld [vmem:[#allocation19 + $0xc08] sm:$0xff]
    %v3469 = vld [vmem:[#allocation19 + $0xc10] sm:$0xff]
    %v3470 = vld [vmem:[#allocation19 + $0xc18] sm:$0xff]
    %v3471 = vld [vmem:[#allocation19 + $0xc20] sm:$0xff]
    %v3472 = vld [vmem:[#allocation19 + $0xc28] sm:$0xff]
    %v3473 = vld [vmem:[#allocation19 + $0xc30] sm:$0xff]
    %v3474 = vld [vmem:[#allocation19 + $0xc38] sm:$0xff]
    %v3475 = vld [vmem:[#allocation19 + $0xc40] sm:$0xff]
    %v3476 = vld [vmem:[#allocation19 + $0xc48] sm:$0xff]
    %v3477 = vld [vmem:[#allocation19 + $0xc50] sm:$0xff]
    %v3478 = vld [vmem:[#allocation19 + $0xc58] sm:$0xff]
    %v3479 = vld [vmem:[#allocation19 + $0xc60] sm:$0xff]
    %v3480 = vld [vmem:[#allocation19 + $0xc68] sm:$0xff]
    %v3481 = vld [vmem:[#allocation19 + $0xc70] sm:$0xff]
    %v3482 = vld [vmem:[#allocation19 + $0xc78] sm:$0xff]
    %v3483 = vld [vmem:[#allocation19 + $0xc80] sm:$0xff]
    %v3484 = vld [vmem:[#allocation19 + $0xc88] sm:$0xff]
    %v3485 = vld [vmem:[#allocation19 + $0xc90] sm:$0xff]
    %v3486 = vld [vmem:[#allocation19 + $0xc98] sm:$0xff]
    %v3487 = vld [vmem:[#allocation19 + $0xca0] sm:$0xff]
    %v3488 = vld [vmem:[#allocation19 + $0xca8] sm:$0xff]
    %v3489 = vld [vmem:[#allocation19 + $0xcb0] sm:$0xff]
    %v3490 = vld [vmem:[#allocation19 + $0xcb8] sm:$0xff]
    %v3491 = vld [vmem:[#allocation19 + $0xcc0] sm:$0xff]
    %v3492 = vld [vmem:[#allocation19 + $0xcc8] sm:$0xff]
    %v3493 = vld [vmem:[#allocation19 + $0xcd0] sm:$0xff]
    %v3494 = vld [vmem:[#allocation19 + $0xcd8] sm:$0xff]
    %v3495 = vld [vmem:[#allocation19 + $0xce0] sm:$0xff]
    %v3496 = vld [vmem:[#allocation19 + $0xce8] sm:$0xff]
    %v3497 = vld [vmem:[#allocation19 + $0xcf0] sm:$0xff]
    %v3498 = vld [vmem:[#allocation19 + $0xcf8] sm:$0xff]
    %v3499 = vld [vmem:[#allocation19 + $0xd00] sm:$0xff]
    %v3500 = vld [vmem:[#allocation19 + $0xd08] sm:$0xff]
    %v3501 = vld [vmem:[#allocation19 + $0xd10] sm:$0xff]
    %v3502 = vld [vmem:[#allocation19 + $0xd18] sm:$0xff]
    %v3503 = vld [vmem:[#allocation19 + $0xd20] sm:$0xff]
    %v3504 = vld [vmem:[#allocation19 + $0xd28] sm:$0xff]
    %v3505 = vld [vmem:[#allocation19 + $0xd30] sm:$0xff]
    %v3506 = vld [vmem:[#allocation19 + $0xd38] sm:$0xff]
    %v3507 = vld [vmem:[#allocation19 + $0xd40] sm:$0xff]
    %v3508 = vld [vmem:[#allocation19 + $0xd48] sm:$0xff]
    %v3509 = vld [vmem:[#allocation19 + $0xd50] sm:$0xff]
    %v3510 = vld [vmem:[#allocation19 + $0xd58] sm:$0xff]
    %v3511 = vld [vmem:[#allocation19 + $0xd60] sm:$0xff]
    %v3512 = vld [vmem:[#allocation19 + $0xd68] sm:$0xff]
    %v3513 = vld [vmem:[#allocation19 + $0xd70] sm:$0xff]
    %v3514 = vld [vmem:[#allocation19 + $0xd78] sm:$0xff]
    %v3515 = vld [vmem:[#allocation19 + $0xd80] sm:$0xff]
    %v3516 = vld [vmem:[#allocation19 + $0xd88] sm:$0xff]
    %v3517 = vld [vmem:[#allocation19 + $0xd90] sm:$0xff]
    %v3518 = vld [vmem:[#allocation19 + $0xd98] sm:$0xff]
    %v3519 = vld [vmem:[#allocation19 + $0xda0] sm:$0xff]
    %v3520 = vld [vmem:[#allocation19 + $0xda8] sm:$0xff]
    %v3521 = vld [vmem:[#allocation19 + $0xdb0] sm:$0xff]
    %v3522 = vld [vmem:[#allocation19 + $0xdb8] sm:$0xff]
    %v3523 = vld [vmem:[#allocation19 + $0xdc0] sm:$0xff]
    %v3524 = vld [vmem:[#allocation19 + $0xdc8] sm:$0xff]
    %v3525 = vld [vmem:[#allocation19 + $0xdd0] sm:$0xff]
    %v3526 = vld [vmem:[#allocation19 + $0xdd8] sm:$0xff]
    %v3527 = vld [vmem:[#allocation19 + $0xde0] sm:$0xff]
    %v3528 = vld [vmem:[#allocation19 + $0xde8] sm:$0xff]
    %v3529 = vld [vmem:[#allocation19 + $0xdf0] sm:$0xff]
    %v3530 = vld [vmem:[#allocation19 + $0xdf8] sm:$0xff]
    %v3531 = vld [vmem:[#allocation19 + $0xe00] sm:$0xff]
    %v3532 = vld [vmem:[#allocation19 + $0xe08] sm:$0xff]
    %v3533 = vld [vmem:[#allocation19 + $0xe10] sm:$0xff]
    %v3534 = vld [vmem:[#allocation19 + $0xe18] sm:$0xff]
    %v3535 = vld [vmem:[#allocation19 + $0xe20] sm:$0xff]
    %v3536 = vld [vmem:[#allocation19 + $0xe28] sm:$0xff]
    %v3537 = vld [vmem:[#allocation19 + $0xe30] sm:$0xff]
    %v3538 = vld [vmem:[#allocation19 + $0xe38] sm:$0xff]
    %v3539 = vld [vmem:[#allocation19 + $0xe40] sm:$0xff]
    %v3540 = vld [vmem:[#allocation19 + $0xe48] sm:$0xff]
    %v3541 = vld [vmem:[#allocation19 + $0xe50] sm:$0xff]
    %v3542 = vld [vmem:[#allocation19 + $0xe58] sm:$0xff]
    %v3543 = vld [vmem:[#allocation19 + $0xe60] sm:$0xff]
    %v3544 = vld [vmem:[#allocation19 + $0xe68] sm:$0xff]
    %v3545 = vld [vmem:[#allocation19 + $0xe70] sm:$0xff]
    %v3546 = vld [vmem:[#allocation19 + $0xe78] sm:$0xff]
    %v3547 = vld [vmem:[#allocation19 + $0xe80] sm:$0xff]
    %v3548 = vld [vmem:[#allocation19 + $0xe88] sm:$0xff]
    %v3549 = vld [vmem:[#allocation19 + $0xe90] sm:$0xff]
    %v3550 = vld [vmem:[#allocation19 + $0xe98] sm:$0xff]
    %v3551 = vld [vmem:[#allocation19 + $0xea0] sm:$0xff]
    %v3552 = vld [vmem:[#allocation19 + $0xea8] sm:$0xff]
    %v3553 = vld [vmem:[#allocation19 + $0xeb0] sm:$0xff]
    %v3554 = vld [vmem:[#allocation19 + $0xeb8] sm:$0xff]
    %v3555 = vld [vmem:[#allocation19 + $0xec0] sm:$0xff]
    %v3556 = vld [vmem:[#allocation19 + $0xec8] sm:$0xff]
    %v3557 = vld [vmem:[#allocation19 + $0xed0] sm:$0xff]
    %v3558 = vld [vmem:[#allocation19 + $0xed8] sm:$0xff]
    %v3559 = vld [vmem:[#allocation19 + $0xee0] sm:$0xff]
    %v3560 = vld [vmem:[#allocation19 + $0xee8] sm:$0xff]
    %v3561 = vld [vmem:[#allocation19 + $0xef0] sm:$0xff]
    %v3562 = vld [vmem:[#allocation19 + $0xef8] sm:$0xff]
    %v3563 = vld [vmem:[#allocation19 + $0xf00] sm:$0xff]
    %v3564 = vld [vmem:[#allocation19 + $0xf08] sm:$0xff]
    %v3565 = vld [vmem:[#allocation19 + $0xf10] sm:$0xff]
    %v3566 = vld [vmem:[#allocation19 + $0xf18] sm:$0xff]
    %v3567 = vld [vmem:[#allocation19 + $0xf20] sm:$0xff]
    %v3568 = vld [vmem:[#allocation19 + $0xf28] sm:$0xff]
    %v3569 = vld [vmem:[#allocation19 + $0xf30] sm:$0xff]
    %v3570 = vld [vmem:[#allocation19 + $0xf38] sm:$0xff]
    %v3571 = vld [vmem:[#allocation19 + $0xf40] sm:$0xff]
    %v3572 = vld [vmem:[#allocation19 + $0xf48] sm:$0xff]
    %v3573 = vld [vmem:[#allocation19 + $0xf50] sm:$0xff]
    %v3574 = vld [vmem:[#allocation19 + $0xf58] sm:$0xff]
    %v3575 = vld [vmem:[#allocation19 + $0xf60] sm:$0xff]
    %v3576 = vld [vmem:[#allocation19 + $0xf68] sm:$0xff]
    %v3577 = vld [vmem:[#allocation19 + $0xf70] sm:$0xff]
    %v3578 = vld [vmem:[#allocation19 + $0xf78] sm:$0xff]
    %v3579 = vld [vmem:[#allocation19 + $0xf80] sm:$0xff]
    %v3580 = vld [vmem:[#allocation19 + $0xf88] sm:$0xff]
    %v3581 = vld [vmem:[#allocation19 + $0xf90] sm:$0xff]
    %v3582 = vld [vmem:[#allocation19 + $0xf98] sm:$0xff]
    %v3583 = vld [vmem:[#allocation19 + $0xfa0] sm:$0xff]
    %v3584 = vld [vmem:[#allocation19 + $0xfa8] sm:$0xff]
    %v3585 = vld [vmem:[#allocation19 + $0xfb0] sm:$0xff]
    %v3586 = vld [vmem:[#allocation19 + $0xfb8] sm:$0xff]
    %v3587 = vld [vmem:[#allocation19 + $0xfc0] sm:$0xff]
    %v3588 = vld [vmem:[#allocation19 + $0xfc8] sm:$0xff]
    %v3589 = vld [vmem:[#allocation19 + $0xfd0] sm:$0xff]
    %v3590 = vld [vmem:[#allocation19 + $0xfd8] sm:$0xff]
    %v3591 = vld [vmem:[#allocation19 + $0xfe0] sm:$0xff]
    %v3592 = vld [vmem:[#allocation19 + $0xfe8] sm:$0xff]
    %v3593 = vld [vmem:[#allocation19 + $0xff0] sm:$0xff]
    %v3594 = vld [vmem:[#allocation19 + $0xff8] sm:$0xff]
    %v4107 = vunpack.c.l.b16 %v3083
    %v4108 = vunpack.c.h.b16 %v3083
    %v4109 = vunpack.c.l.b16 %v3084
    %v4110 = vunpack.c.h.b16 %v3084
    %v4111 = vunpack.c.l.b16 %v3085
    %v4112 = vunpack.c.h.b16 %v3085
    %v4113 = vunpack.c.l.b16 %v3086
    %v4114 = vunpack.c.h.b16 %v3086
    %v4115 = vunpack.c.l.b16 %v3087
    %v4116 = vunpack.c.h.b16 %v3087
    %v4117 = vunpack.c.l.b16 %v3088
    %v4118 = vunpack.c.h.b16 %v3088
    %v4119 = vunpack.c.l.b16 %v3089
    %v4120 = vunpack.c.h.b16 %v3089
    %v4121 = vunpack.c.l.b16 %v3090
    %v4122 = vunpack.c.h.b16 %v3090
    %v4123 = vunpack.c.l.b16 %v3091
    %v4124 = vunpack.c.h.b16 %v3091
    %v4125 = vunpack.c.l.b16 %v3092
    %v4126 = vunpack.c.h.b16 %v3092
    %v4127 = vunpack.c.l.b16 %v3093
    %v4128 = vunpack.c.h.b16 %v3093
    %v4129 = vunpack.c.l.b16 %v3094
    %v4130 = vunpack.c.h.b16 %v3094
    %v4131 = vunpack.c.l.b16 %v3095
    %v4132 = vunpack.c.h.b16 %v3095
    %v4133 = vunpack.c.l.b16 %v3096
    %v4134 = vunpack.c.h.b16 %v3096
    %v4135 = vunpack.c.l.b16 %v3097
    %v4136 = vunpack.c.h.b16 %v3097
    %v4137 = vunpack.c.l.b16 %v3098
    %v4138 = vunpack.c.h.b16 %v3098
    %v4139 = vunpack.c.l.b16 %v3099
    %v4140 = vunpack.c.h.b16 %v3099
    %v4141 = vunpack.c.l.b16 %v3100
    %v4142 = vunpack.c.h.b16 %v3100
    %v4143 = vunpack.c.l.b16 %v3101
    %v4144 = vunpack.c.h.b16 %v3101
    %v4145 = vunpack.c.l.b16 %v3102
    %v4146 = vunpack.c.h.b16 %v3102
    %v4147 = vunpack.c.l.b16 %v3103
    %v4148 = vunpack.c.h.b16 %v3103
    %v4149 = vunpack.c.l.b16 %v3104
    %v4150 = vunpack.c.h.b16 %v3104
    %v4151 = vunpack.c.l.b16 %v3105
    %v4152 = vunpack.c.h.b16 %v3105
    %v4153 = vunpack.c.l.b16 %v3106
    %v4154 = vunpack.c.h.b16 %v3106
    %v4155 = vunpack.c.l.b16 %v3107
    %v4156 = vunpack.c.h.b16 %v3107
    %v4157 = vunpack.c.l.b16 %v3108
    %v4158 = vunpack.c.h.b16 %v3108
    %v4159 = vunpack.c.l.b16 %v3109
    %v4160 = vunpack.c.h.b16 %v3109
    %v4161 = vunpack.c.l.b16 %v3110
    %v4162 = vunpack.c.h.b16 %v3110
    %v4163 = vunpack.c.l.b16 %v3111
    %v4164 = vunpack.c.h.b16 %v3111
    %v4165 = vunpack.c.l.b16 %v3112
    %v4166 = vunpack.c.h.b16 %v3112
    %v4167 = vunpack.c.l.b16 %v3113
    %v4168 = vunpack.c.h.b16 %v3113
    %v4169 = vunpack.c.l.b16 %v3114
    %v4170 = vunpack.c.h.b16 %v3114
    %v4171 = vunpack.c.l.b16 %v3115
    %v4172 = vunpack.c.h.b16 %v3115
    %v4173 = vunpack.c.l.b16 %v3116
    %v4174 = vunpack.c.h.b16 %v3116
    %v4175 = vunpack.c.l.b16 %v3117
    %v4176 = vunpack.c.h.b16 %v3117
    %v4177 = vunpack.c.l.b16 %v3118
    %v4178 = vunpack.c.h.b16 %v3118
    %v4179 = vunpack.c.l.b16 %v3119
    %v4180 = vunpack.c.h.b16 %v3119
    %v4181 = vunpack.c.l.b16 %v3120
    %v4182 = vunpack.c.h.b16 %v3120
    %v4183 = vunpack.c.l.b16 %v3121
    %v4184 = vunpack.c.h.b16 %v3121
    %v4185 = vunpack.c.l.b16 %v3122
    %v4186 = vunpack.c.h.b16 %v3122
    %v4187 = vunpack.c.l.b16 %v3123
    %v4188 = vunpack.c.h.b16 %v3123
    %v4189 = vunpack.c.l.b16 %v3124
    %v4190 = vunpack.c.h.b16 %v3124
    %v4191 = vunpack.c.l.b16 %v3125
    %v4192 = vunpack.c.h.b16 %v3125
    %v4193 = vunpack.c.l.b16 %v3126
    %v4194 = vunpack.c.h.b16 %v3126
    %v4195 = vunpack.c.l.b16 %v3127
    %v4196 = vunpack.c.h.b16 %v3127
    %v4197 = vunpack.c.l.b16 %v3128
    %v4198 = vunpack.c.h.b16 %v3128
    %v4199 = vunpack.c.l.b16 %v3129
    %v4200 = vunpack.c.h.b16 %v3129
    %v4201 = vunpack.c.l.b16 %v3130
    %v4202 = vunpack.c.h.b16 %v3130
    %v4203 = vunpack.c.l.b16 %v3131
    %v4204 = vunpack.c.h.b16 %v3131
    %v4205 = vunpack.c.l.b16 %v3132
    %v4206 = vunpack.c.h.b16 %v3132
    %v4207 = vunpack.c.l.b16 %v3133
    %v4208 = vunpack.c.h.b16 %v3133
    %v4209 = vunpack.c.l.b16 %v3134
    %v4210 = vunpack.c.h.b16 %v3134
    %v4211 = vunpack.c.l.b16 %v3135
    %v4212 = vunpack.c.h.b16 %v3135
    %v4213 = vunpack.c.l.b16 %v3136
    %v4214 = vunpack.c.h.b16 %v3136
    %v4215 = vunpack.c.l.b16 %v3137
    %v4216 = vunpack.c.h.b16 %v3137
    %v4217 = vunpack.c.l.b16 %v3138
    %v4218 = vunpack.c.h.b16 %v3138
    %v4219 = vunpack.c.l.b16 %v3139
    %v4220 = vunpack.c.h.b16 %v3139
    %v4221 = vunpack.c.l.b16 %v3140
    %v4222 = vunpack.c.h.b16 %v3140
    %v4223 = vunpack.c.l.b16 %v3141
    %v4224 = vunpack.c.h.b16 %v3141
    %v4225 = vunpack.c.l.b16 %v3142
    %v4226 = vunpack.c.h.b16 %v3142
    %v4227 = vunpack.c.l.b16 %v3143
    %v4228 = vunpack.c.h.b16 %v3143
    %v4229 = vunpack.c.l.b16 %v3144
    %v4230 = vunpack.c.h.b16 %v3144
    %v4231 = vunpack.c.l.b16 %v3145
    %v4232 = vunpack.c.h.b16 %v3145
    %v4233 = vunpack.c.l.b16 %v3146
    %v4234 = vunpack.c.h.b16 %v3146
    %v4235 = vunpack.c.l.b16 %v3147
    %v4236 = vunpack.c.h.b16 %v3147
    %v4237 = vunpack.c.l.b16 %v3148
    %v4238 = vunpack.c.h.b16 %v3148
    %v4239 = vunpack.c.l.b16 %v3149
    %v4240 = vunpack.c.h.b16 %v3149
    %v4241 = vunpack.c.l.b16 %v3150
    %v4242 = vunpack.c.h.b16 %v3150
    %v4243 = vunpack.c.l.b16 %v3151
    %v4244 = vunpack.c.h.b16 %v3151
    %v4245 = vunpack.c.l.b16 %v3152
    %v4246 = vunpack.c.h.b16 %v3152
    %v4247 = vunpack.c.l.b16 %v3153
    %v4248 = vunpack.c.h.b16 %v3153
    %v4249 = vunpack.c.l.b16 %v3154
    %v4250 = vunpack.c.h.b16 %v3154
    %v4251 = vunpack.c.l.b16 %v3155
    %v4252 = vunpack.c.h.b16 %v3155
    %v4253 = vunpack.c.l.b16 %v3156
    %v4254 = vunpack.c.h.b16 %v3156
    %v4255 = vunpack.c.l.b16 %v3157
    %v4256 = vunpack.c.h.b16 %v3157
    %v4257 = vunpack.c.l.b16 %v3158
    %v4258 = vunpack.c.h.b16 %v3158
    %v4259 = vunpack.c.l.b16 %v3159
    %v4260 = vunpack.c.h.b16 %v3159
    %v4261 = vunpack.c.l.b16 %v3160
    %v4262 = vunpack.c.h.b16 %v3160
    %v4263 = vunpack.c.l.b16 %v3161
    %v4264 = vunpack.c.h.b16 %v3161
    %v4265 = vunpack.c.l.b16 %v3162
    %v4266 = vunpack.c.h.b16 %v3162
    %v4267 = vunpack.c.l.b16 %v3163
    %v4268 = vunpack.c.h.b16 %v3163
    %v4269 = vunpack.c.l.b16 %v3164
    %v4270 = vunpack.c.h.b16 %v3164
    %v4271 = vunpack.c.l.b16 %v3165
    %v4272 = vunpack.c.h.b16 %v3165
    %v4273 = vunpack.c.l.b16 %v3166
    %v4274 = vunpack.c.h.b16 %v3166
    %v4275 = vunpack.c.l.b16 %v3167
    %v4276 = vunpack.c.h.b16 %v3167
    %v4277 = vunpack.c.l.b16 %v3168
    %v4278 = vunpack.c.h.b16 %v3168
    %v4279 = vunpack.c.l.b16 %v3169
    %v4280 = vunpack.c.h.b16 %v3169
    %v4281 = vunpack.c.l.b16 %v3170
    %v4282 = vunpack.c.h.b16 %v3170
    %v4283 = vunpack.c.l.b16 %v3171
    %v4284 = vunpack.c.h.b16 %v3171
    %v4285 = vunpack.c.l.b16 %v3172
    %v4286 = vunpack.c.h.b16 %v3172
    %v4287 = vunpack.c.l.b16 %v3173
    %v4288 = vunpack.c.h.b16 %v3173
    %v4289 = vunpack.c.l.b16 %v3174
    %v4290 = vunpack.c.h.b16 %v3174
    %v4291 = vunpack.c.l.b16 %v3175
    %v4292 = vunpack.c.h.b16 %v3175
    %v4293 = vunpack.c.l.b16 %v3176
    %v4294 = vunpack.c.h.b16 %v3176
    %v4295 = vunpack.c.l.b16 %v3177
    %v4296 = vunpack.c.h.b16 %v3177
    %v4297 = vunpack.c.l.b16 %v3178
    %v4298 = vunpack.c.h.b16 %v3178
    %v4299 = vunpack.c.l.b16 %v3179
    %v4300 = vunpack.c.h.b16 %v3179
    %v4301 = vunpack.c.l.b16 %v3180
    %v4302 = vunpack.c.h.b16 %v3180
    %v4303 = vunpack.c.l.b16 %v3181
    %v4304 = vunpack.c.h.b16 %v3181
    %v4305 = vunpack.c.l.b16 %v3182
    %v4306 = vunpack.c.h.b16 %v3182
    %v4307 = vunpack.c.l.b16 %v3183
    %v4308 = vunpack.c.h.b16 %v3183
    %v4309 = vunpack.c.l.b16 %v3184
    %v4310 = vunpack.c.h.b16 %v3184
    %v4311 = vunpack.c.l.b16 %v3185
    %v4312 = vunpack.c.h.b16 %v3185
    %v4313 = vunpack.c.l.b16 %v3186
    %v4314 = vunpack.c.h.b16 %v3186
    %v4315 = vunpack.c.l.b16 %v3187
    %v4316 = vunpack.c.h.b16 %v3187
    %v4317 = vunpack.c.l.b16 %v3188
    %v4318 = vunpack.c.h.b16 %v3188
    %v4319 = vunpack.c.l.b16 %v3189
    %v4320 = vunpack.c.h.b16 %v3189
    %v4321 = vunpack.c.l.b16 %v3190
    %v4322 = vunpack.c.h.b16 %v3190
    %v4323 = vunpack.c.l.b16 %v3191
    %v4324 = vunpack.c.h.b16 %v3191
    %v4325 = vunpack.c.l.b16 %v3192
    %v4326 = vunpack.c.h.b16 %v3192
    %v4327 = vunpack.c.l.b16 %v3193
    %v4328 = vunpack.c.h.b16 %v3193
    %v4329 = vunpack.c.l.b16 %v3194
    %v4330 = vunpack.c.h.b16 %v3194
    %v4331 = vunpack.c.l.b16 %v3195
    %v4332 = vunpack.c.h.b16 %v3195
    %v4333 = vunpack.c.l.b16 %v3196
    %v4334 = vunpack.c.h.b16 %v3196
    %v4335 = vunpack.c.l.b16 %v3197
    %v4336 = vunpack.c.h.b16 %v3197
    %v4337 = vunpack.c.l.b16 %v3198
    %v4338 = vunpack.c.h.b16 %v3198
    %v4339 = vunpack.c.l.b16 %v3199
    %v4340 = vunpack.c.h.b16 %v3199
    %v4341 = vunpack.c.l.b16 %v3200
    %v4342 = vunpack.c.h.b16 %v3200
    %v4343 = vunpack.c.l.b16 %v3201
    %v4344 = vunpack.c.h.b16 %v3201
    %v4345 = vunpack.c.l.b16 %v3202
    %v4346 = vunpack.c.h.b16 %v3202
    %v4347 = vunpack.c.l.b16 %v3203
    %v4348 = vunpack.c.h.b16 %v3203
    %v4349 = vunpack.c.l.b16 %v3204
    %v4350 = vunpack.c.h.b16 %v3204
    %v4351 = vunpack.c.l.b16 %v3205
    %v4352 = vunpack.c.h.b16 %v3205
    %v4353 = vunpack.c.l.b16 %v3206
    %v4354 = vunpack.c.h.b16 %v3206
    %v4355 = vunpack.c.l.b16 %v3207
    %v4356 = vunpack.c.h.b16 %v3207
    %v4357 = vunpack.c.l.b16 %v3208
    %v4358 = vunpack.c.h.b16 %v3208
    %v4359 = vunpack.c.l.b16 %v3209
    %v4360 = vunpack.c.h.b16 %v3209
    %v4361 = vunpack.c.l.b16 %v3210
    %v4362 = vunpack.c.h.b16 %v3210
    %v4363 = vunpack.c.l.b16 %v3211
    %v4364 = vunpack.c.h.b16 %v3211
    %v4365 = vunpack.c.l.b16 %v3212
    %v4366 = vunpack.c.h.b16 %v3212
    %v4367 = vunpack.c.l.b16 %v3213
    %v4368 = vunpack.c.h.b16 %v3213
    %v4369 = vunpack.c.l.b16 %v3214
    %v4370 = vunpack.c.h.b16 %v3214
    %v4371 = vunpack.c.l.b16 %v3215
    %v4372 = vunpack.c.h.b16 %v3215
    %v4373 = vunpack.c.l.b16 %v3216
    %v4374 = vunpack.c.h.b16 %v3216
    %v4375 = vunpack.c.l.b16 %v3217
    %v4376 = vunpack.c.h.b16 %v3217
    %v4377 = vunpack.c.l.b16 %v3218
    %v4378 = vunpack.c.h.b16 %v3218
    %v4379 = vunpack.c.l.b16 %v3219
    %v4380 = vunpack.c.h.b16 %v3219
    %v4381 = vunpack.c.l.b16 %v3220
    %v4382 = vunpack.c.h.b16 %v3220
    %v4383 = vunpack.c.l.b16 %v3221
    %v4384 = vunpack.c.h.b16 %v3221
    %v4385 = vunpack.c.l.b16 %v3222
    %v4386 = vunpack.c.h.b16 %v3222
    %v4387 = vunpack.c.l.b16 %v3223
    %v4388 = vunpack.c.h.b16 %v3223
    %v4389 = vunpack.c.l.b16 %v3224
    %v4390 = vunpack.c.h.b16 %v3224
    %v4391 = vunpack.c.l.b16 %v3225
    %v4392 = vunpack.c.h.b16 %v3225
    %v4393 = vunpack.c.l.b16 %v3226
    %v4394 = vunpack.c.h.b16 %v3226
    %v4395 = vunpack.c.l.b16 %v3227
    %v4396 = vunpack.c.h.b16 %v3227
    %v4397 = vunpack.c.l.b16 %v3228
    %v4398 = vunpack.c.h.b16 %v3228
    %v4399 = vunpack.c.l.b16 %v3229
    %v4400 = vunpack.c.h.b16 %v3229
    %v4401 = vunpack.c.l.b16 %v3230
    %v4402 = vunpack.c.h.b16 %v3230
    %v4403 = vunpack.c.l.b16 %v3231
    %v4404 = vunpack.c.h.b16 %v3231
    %v4405 = vunpack.c.l.b16 %v3232
    %v4406 = vunpack.c.h.b16 %v3232
    %v4407 = vunpack.c.l.b16 %v3233
    %v4408 = vunpack.c.h.b16 %v3233
    %v4409 = vunpack.c.l.b16 %v3234
    %v4410 = vunpack.c.h.b16 %v3234
    %v4411 = vunpack.c.l.b16 %v3235
    %v4412 = vunpack.c.h.b16 %v3235
    %v4413 = vunpack.c.l.b16 %v3236
    %v4414 = vunpack.c.h.b16 %v3236
    %v4415 = vunpack.c.l.b16 %v3237
    %v4416 = vunpack.c.h.b16 %v3237
    %v4417 = vunpack.c.l.b16 %v3238
    %v4418 = vunpack.c.h.b16 %v3238
    %v4419 = vunpack.c.l.b16 %v3239
    %v4420 = vunpack.c.h.b16 %v3239
    %v4421 = vunpack.c.l.b16 %v3240
    %v4422 = vunpack.c.h.b16 %v3240
    %v4423 = vunpack.c.l.b16 %v3241
    %v4424 = vunpack.c.h.b16 %v3241
    %v4425 = vunpack.c.l.b16 %v3242
    %v4426 = vunpack.c.h.b16 %v3242
    %v4427 = vunpack.c.l.b16 %v3243
    %v4428 = vunpack.c.h.b16 %v3243
    %v4429 = vunpack.c.l.b16 %v3244
    %v4430 = vunpack.c.h.b16 %v3244
    %v4431 = vunpack.c.l.b16 %v3245
    %v4432 = vunpack.c.h.b16 %v3245
    %v4433 = vunpack.c.l.b16 %v3246
    %v4434 = vunpack.c.h.b16 %v3246
    %v4435 = vunpack.c.l.b16 %v3247
    %v4436 = vunpack.c.h.b16 %v3247
    %v4437 = vunpack.c.l.b16 %v3248
    %v4438 = vunpack.c.h.b16 %v3248
    %v4439 = vunpack.c.l.b16 %v3249
    %v4440 = vunpack.c.h.b16 %v3249
    %v4441 = vunpack.c.l.b16 %v3250
    %v4442 = vunpack.c.h.b16 %v3250
    %v4443 = vunpack.c.l.b16 %v3251
    %v4444 = vunpack.c.h.b16 %v3251
    %v4445 = vunpack.c.l.b16 %v3252
    %v4446 = vunpack.c.h.b16 %v3252
    %v4447 = vunpack.c.l.b16 %v3253
    %v4448 = vunpack.c.h.b16 %v3253
    %v4449 = vunpack.c.l.b16 %v3254
    %v4450 = vunpack.c.h.b16 %v3254
    %v4451 = vunpack.c.l.b16 %v3255
    %v4452 = vunpack.c.h.b16 %v3255
    %v4453 = vunpack.c.l.b16 %v3256
    %v4454 = vunpack.c.h.b16 %v3256
    %v4455 = vunpack.c.l.b16 %v3257
    %v4456 = vunpack.c.h.b16 %v3257
    %v4457 = vunpack.c.l.b16 %v3258
    %v4458 = vunpack.c.h.b16 %v3258
    %v4459 = vunpack.c.l.b16 %v3259
    %v4460 = vunpack.c.h.b16 %v3259
    %v4461 = vunpack.c.l.b16 %v3260
    %v4462 = vunpack.c.h.b16 %v3260
    %v4463 = vunpack.c.l.b16 %v3261
    %v4464 = vunpack.c.h.b16 %v3261
    %v4465 = vunpack.c.l.b16 %v3262
    %v4466 = vunpack.c.h.b16 %v3262
    %v4467 = vunpack.c.l.b16 %v3263
    %v4468 = vunpack.c.h.b16 %v3263
    %v4469 = vunpack.c.l.b16 %v3264
    %v4470 = vunpack.c.h.b16 %v3264
    %v4471 = vunpack.c.l.b16 %v3265
    %v4472 = vunpack.c.h.b16 %v3265
    %v4473 = vunpack.c.l.b16 %v3266
    %v4474 = vunpack.c.h.b16 %v3266
    %v4475 = vunpack.c.l.b16 %v3267
    %v4476 = vunpack.c.h.b16 %v3267
    %v4477 = vunpack.c.l.b16 %v3268
    %v4478 = vunpack.c.h.b16 %v3268
    %v4479 = vunpack.c.l.b16 %v3269
    %v4480 = vunpack.c.h.b16 %v3269
    %v4481 = vunpack.c.l.b16 %v3270
    %v4482 = vunpack.c.h.b16 %v3270
    %v4483 = vunpack.c.l.b16 %v3271
    %v4484 = vunpack.c.h.b16 %v3271
    %v4485 = vunpack.c.l.b16 %v3272
    %v4486 = vunpack.c.h.b16 %v3272
    %v4487 = vunpack.c.l.b16 %v3273
    %v4488 = vunpack.c.h.b16 %v3273
    %v4489 = vunpack.c.l.b16 %v3274
    %v4490 = vunpack.c.h.b16 %v3274
    %v4491 = vunpack.c.l.b16 %v3275
    %v4492 = vunpack.c.h.b16 %v3275
    %v4493 = vunpack.c.l.b16 %v3276
    %v4494 = vunpack.c.h.b16 %v3276
    %v4495 = vunpack.c.l.b16 %v3277
    %v4496 = vunpack.c.h.b16 %v3277
    %v4497 = vunpack.c.l.b16 %v3278
    %v4498 = vunpack.c.h.b16 %v3278
    %v4499 = vunpack.c.l.b16 %v3279
    %v4500 = vunpack.c.h.b16 %v3279
    %v4501 = vunpack.c.l.b16 %v3280
    %v4502 = vunpack.c.h.b16 %v3280
    %v4503 = vunpack.c.l.b16 %v3281
    %v4504 = vunpack.c.h.b16 %v3281
    %v4505 = vunpack.c.l.b16 %v3282
    %v4506 = vunpack.c.h.b16 %v3282
    %v4507 = vunpack.c.l.b16 %v3283
    %v4508 = vunpack.c.h.b16 %v3283
    %v4509 = vunpack.c.l.b16 %v3284
    %v4510 = vunpack.c.h.b16 %v3284
    %v4511 = vunpack.c.l.b16 %v3285
    %v4512 = vunpack.c.h.b16 %v3285
    %v4513 = vunpack.c.l.b16 %v3286
    %v4514 = vunpack.c.h.b16 %v3286
    %v4515 = vunpack.c.l.b16 %v3287
    %v4516 = vunpack.c.h.b16 %v3287
    %v4517 = vunpack.c.l.b16 %v3288
    %v4518 = vunpack.c.h.b16 %v3288
    %v4519 = vunpack.c.l.b16 %v3289
    %v4520 = vunpack.c.h.b16 %v3289
    %v4521 = vunpack.c.l.b16 %v3290
    %v4522 = vunpack.c.h.b16 %v3290
    %v4523 = vunpack.c.l.b16 %v3291
    %v4524 = vunpack.c.h.b16 %v3291
    %v4525 = vunpack.c.l.b16 %v3292
    %v4526 = vunpack.c.h.b16 %v3292
    %v4527 = vunpack.c.l.b16 %v3293
    %v4528 = vunpack.c.h.b16 %v3293
    %v4529 = vunpack.c.l.b16 %v3294
    %v4530 = vunpack.c.h.b16 %v3294
    %v4531 = vunpack.c.l.b16 %v3295
    %v4532 = vunpack.c.h.b16 %v3295
    %v4533 = vunpack.c.l.b16 %v3296
    %v4534 = vunpack.c.h.b16 %v3296
    %v4535 = vunpack.c.l.b16 %v3297
    %v4536 = vunpack.c.h.b16 %v3297
    %v4537 = vunpack.c.l.b16 %v3298
    %v4538 = vunpack.c.h.b16 %v3298
    %v4539 = vunpack.c.l.b16 %v3299
    %v4540 = vunpack.c.h.b16 %v3299
    %v4541 = vunpack.c.l.b16 %v3300
    %v4542 = vunpack.c.h.b16 %v3300
    %v4543 = vunpack.c.l.b16 %v3301
    %v4544 = vunpack.c.h.b16 %v3301
    %v4545 = vunpack.c.l.b16 %v3302
    %v4546 = vunpack.c.h.b16 %v3302
    %v4547 = vunpack.c.l.b16 %v3303
    %v4548 = vunpack.c.h.b16 %v3303
    %v4549 = vunpack.c.l.b16 %v3304
    %v4550 = vunpack.c.h.b16 %v3304
    %v4551 = vunpack.c.l.b16 %v3305
    %v4552 = vunpack.c.h.b16 %v3305
    %v4553 = vunpack.c.l.b16 %v3306
    %v4554 = vunpack.c.h.b16 %v3306
    %v4555 = vunpack.c.l.b16 %v3307
    %v4556 = vunpack.c.h.b16 %v3307
    %v4557 = vunpack.c.l.b16 %v3308
    %v4558 = vunpack.c.h.b16 %v3308
    %v4559 = vunpack.c.l.b16 %v3309
    %v4560 = vunpack.c.h.b16 %v3309
    %v4561 = vunpack.c.l.b16 %v3310
    %v4562 = vunpack.c.h.b16 %v3310
    %v4563 = vunpack.c.l.b16 %v3311
    %v4564 = vunpack.c.h.b16 %v3311
    %v4565 = vunpack.c.l.b16 %v3312
    %v4566 = vunpack.c.h.b16 %v3312
    %v4567 = vunpack.c.l.b16 %v3313
    %v4568 = vunpack.c.h.b16 %v3313
    %v4569 = vunpack.c.l.b16 %v3314
    %v4570 = vunpack.c.h.b16 %v3314
    %v4571 = vunpack.c.l.b16 %v3315
    %v4572 = vunpack.c.h.b16 %v3315
    %v4573 = vunpack.c.l.b16 %v3316
    %v4574 = vunpack.c.h.b16 %v3316
    %v4575 = vunpack.c.l.b16 %v3317
    %v4576 = vunpack.c.h.b16 %v3317
    %v4577 = vunpack.c.l.b16 %v3318
    %v4578 = vunpack.c.h.b16 %v3318
    %v4579 = vunpack.c.l.b16 %v3319
    %v4580 = vunpack.c.h.b16 %v3319
    %v4581 = vunpack.c.l.b16 %v3320
    %v4582 = vunpack.c.h.b16 %v3320
    %v4583 = vunpack.c.l.b16 %v3321
    %v4584 = vunpack.c.h.b16 %v3321
    %v4585 = vunpack.c.l.b16 %v3322
    %v4586 = vunpack.c.h.b16 %v3322
    %v4587 = vunpack.c.l.b16 %v3323
    %v4588 = vunpack.c.h.b16 %v3323
    %v4589 = vunpack.c.l.b16 %v3324
    %v4590 = vunpack.c.h.b16 %v3324
    %v4591 = vunpack.c.l.b16 %v3325
    %v4592 = vunpack.c.h.b16 %v3325
    %v4593 = vunpack.c.l.b16 %v3326
    %v4594 = vunpack.c.h.b16 %v3326
    %v4595 = vunpack.c.l.b16 %v3327
    %v4596 = vunpack.c.h.b16 %v3327
    %v4597 = vunpack.c.l.b16 %v3328
    %v4598 = vunpack.c.h.b16 %v3328
    %v4599 = vunpack.c.l.b16 %v3329
    %v4600 = vunpack.c.h.b16 %v3329
    %v4601 = vunpack.c.l.b16 %v3330
    %v4602 = vunpack.c.h.b16 %v3330
    %v4603 = vunpack.c.l.b16 %v3331
    %v4604 = vunpack.c.h.b16 %v3331
    %v4605 = vunpack.c.l.b16 %v3332
    %v4606 = vunpack.c.h.b16 %v3332
    %v4607 = vunpack.c.l.b16 %v3333
    %v4608 = vunpack.c.h.b16 %v3333
    %v4609 = vunpack.c.l.b16 %v3334
    %v4610 = vunpack.c.h.b16 %v3334
    %v4611 = vunpack.c.l.b16 %v3335
    %v4612 = vunpack.c.h.b16 %v3335
    %v4613 = vunpack.c.l.b16 %v3336
    %v4614 = vunpack.c.h.b16 %v3336
    %v4615 = vunpack.c.l.b16 %v3337
    %v4616 = vunpack.c.h.b16 %v3337
    %v4617 = vunpack.c.l.b16 %v3338
    %v4618 = vunpack.c.h.b16 %v3338
    %v4619 = vunpack.c.l.b16 %v3339
    %v4620 = vunpack.c.h.b16 %v3339
    %v4621 = vunpack.c.l.b16 %v3340
    %v4622 = vunpack.c.h.b16 %v3340
    %v4623 = vunpack.c.l.b16 %v3341
    %v4624 = vunpack.c.h.b16 %v3341
    %v4625 = vunpack.c.l.b16 %v3342
    %v4626 = vunpack.c.h.b16 %v3342
    %v4627 = vunpack.c.l.b16 %v3343
    %v4628 = vunpack.c.h.b16 %v3343
    %v4629 = vunpack.c.l.b16 %v3344
    %v4630 = vunpack.c.h.b16 %v3344
    %v4631 = vunpack.c.l.b16 %v3345
    %v4632 = vunpack.c.h.b16 %v3345
    %v4633 = vunpack.c.l.b16 %v3346
    %v4634 = vunpack.c.h.b16 %v3346
    %v4635 = vunpack.c.l.b16 %v3347
    %v4636 = vunpack.c.h.b16 %v3347
    %v4637 = vunpack.c.l.b16 %v3348
    %v4638 = vunpack.c.h.b16 %v3348
    %v4639 = vunpack.c.l.b16 %v3349
    %v4640 = vunpack.c.h.b16 %v3349
    %v4641 = vunpack.c.l.b16 %v3350
    %v4642 = vunpack.c.h.b16 %v3350
    %v4643 = vunpack.c.l.b16 %v3351
    %v4644 = vunpack.c.h.b16 %v3351
    %v4645 = vunpack.c.l.b16 %v3352
    %v4646 = vunpack.c.h.b16 %v3352
    %v4647 = vunpack.c.l.b16 %v3353
    %v4648 = vunpack.c.h.b16 %v3353
    %v4649 = vunpack.c.l.b16 %v3354
    %v4650 = vunpack.c.h.b16 %v3354
    %v4651 = vunpack.c.l.b16 %v3355
    %v4652 = vunpack.c.h.b16 %v3355
    %v4653 = vunpack.c.l.b16 %v3356
    %v4654 = vunpack.c.h.b16 %v3356
    %v4655 = vunpack.c.l.b16 %v3357
    %v4656 = vunpack.c.h.b16 %v3357
    %v4657 = vunpack.c.l.b16 %v3358
    %v4658 = vunpack.c.h.b16 %v3358
    %v4659 = vunpack.c.l.b16 %v3359
    %v4660 = vunpack.c.h.b16 %v3359
    %v4661 = vunpack.c.l.b16 %v3360
    %v4662 = vunpack.c.h.b16 %v3360
    %v4663 = vunpack.c.l.b16 %v3361
    %v4664 = vunpack.c.h.b16 %v3361
    %v4665 = vunpack.c.l.b16 %v3362
    %v4666 = vunpack.c.h.b16 %v3362
    %v4667 = vunpack.c.l.b16 %v3363
    %v4668 = vunpack.c.h.b16 %v3363
    %v4669 = vunpack.c.l.b16 %v3364
    %v4670 = vunpack.c.h.b16 %v3364
    %v4671 = vunpack.c.l.b16 %v3365
    %v4672 = vunpack.c.h.b16 %v3365
    %v4673 = vunpack.c.l.b16 %v3366
    %v4674 = vunpack.c.h.b16 %v3366
    %v4675 = vunpack.c.l.b16 %v3367
    %v4676 = vunpack.c.h.b16 %v3367
    %v4677 = vunpack.c.l.b16 %v3368
    %v4678 = vunpack.c.h.b16 %v3368
    %v4679 = vunpack.c.l.b16 %v3369
    %v4680 = vunpack.c.h.b16 %v3369
    %v4681 = vunpack.c.l.b16 %v3370
    %v4682 = vunpack.c.h.b16 %v3370
    %v4683 = vunpack.c.l.b16 %v3371
    %v4684 = vunpack.c.h.b16 %v3371
    %v4685 = vunpack.c.l.b16 %v3372
    %v4686 = vunpack.c.h.b16 %v3372
    %v4687 = vunpack.c.l.b16 %v3373
    %v4688 = vunpack.c.h.b16 %v3373
    %v4689 = vunpack.c.l.b16 %v3374
    %v4690 = vunpack.c.h.b16 %v3374
    %v4691 = vunpack.c.l.b16 %v3375
    %v4692 = vunpack.c.h.b16 %v3375
    %v4693 = vunpack.c.l.b16 %v3376
    %v4694 = vunpack.c.h.b16 %v3376
    %v4695 = vunpack.c.l.b16 %v3377
    %v4696 = vunpack.c.h.b16 %v3377
    %v4697 = vunpack.c.l.b16 %v3378
    %v4698 = vunpack.c.h.b16 %v3378
    %v4699 = vunpack.c.l.b16 %v3379
    %v4700 = vunpack.c.h.b16 %v3379
    %v4701 = vunpack.c.l.b16 %v3380
    %v4702 = vunpack.c.h.b16 %v3380
    %v4703 = vunpack.c.l.b16 %v3381
    %v4704 = vunpack.c.h.b16 %v3381
    %v4705 = vunpack.c.l.b16 %v3382
    %v4706 = vunpack.c.h.b16 %v3382
    %v4707 = vunpack.c.l.b16 %v3383
    %v4708 = vunpack.c.h.b16 %v3383
    %v4709 = vunpack.c.l.b16 %v3384
    %v4710 = vunpack.c.h.b16 %v3384
    %v4711 = vunpack.c.l.b16 %v3385
    %v4712 = vunpack.c.h.b16 %v3385
    %v4713 = vunpack.c.l.b16 %v3386
    %v4714 = vunpack.c.h.b16 %v3386
    %v4715 = vunpack.c.l.b16 %v3387
    %v4716 = vunpack.c.h.b16 %v3387
    %v4717 = vunpack.c.l.b16 %v3388
    %v4718 = vunpack.c.h.b16 %v3388
    %v4719 = vunpack.c.l.b16 %v3389
    %v4720 = vunpack.c.h.b16 %v3389
    %v4721 = vunpack.c.l.b16 %v3390
    %v4722 = vunpack.c.h.b16 %v3390
    %v4723 = vunpack.c.l.b16 %v3391
    %v4724 = vunpack.c.h.b16 %v3391
    %v4725 = vunpack.c.l.b16 %v3392
    %v4726 = vunpack.c.h.b16 %v3392
    %v4727 = vunpack.c.l.b16 %v3393
    %v4728 = vunpack.c.h.b16 %v3393
    %v4729 = vunpack.c.l.b16 %v3394
    %v4730 = vunpack.c.h.b16 %v3394
    %v4731 = vunpack.c.l.b16 %v3395
    %v4732 = vunpack.c.h.b16 %v3395
    %v4733 = vunpack.c.l.b16 %v3396
    %v4734 = vunpack.c.h.b16 %v3396
    %v4735 = vunpack.c.l.b16 %v3397
    %v4736 = vunpack.c.h.b16 %v3397
    %v4737 = vunpack.c.l.b16 %v3398
    %v4738 = vunpack.c.h.b16 %v3398
    %v4739 = vunpack.c.l.b16 %v3399
    %v4740 = vunpack.c.h.b16 %v3399
    %v4741 = vunpack.c.l.b16 %v3400
    %v4742 = vunpack.c.h.b16 %v3400
    %v4743 = vunpack.c.l.b16 %v3401
    %v4744 = vunpack.c.h.b16 %v3401
    %v4745 = vunpack.c.l.b16 %v3402
    %v4746 = vunpack.c.h.b16 %v3402
    %v4747 = vunpack.c.l.b16 %v3403
    %v4748 = vunpack.c.h.b16 %v3403
    %v4749 = vunpack.c.l.b16 %v3404
    %v4750 = vunpack.c.h.b16 %v3404
    %v4751 = vunpack.c.l.b16 %v3405
    %v4752 = vunpack.c.h.b16 %v3405
    %v4753 = vunpack.c.l.b16 %v3406
    %v4754 = vunpack.c.h.b16 %v3406
    %v4755 = vunpack.c.l.b16 %v3407
    %v4756 = vunpack.c.h.b16 %v3407
    %v4757 = vunpack.c.l.b16 %v3408
    %v4758 = vunpack.c.h.b16 %v3408
    %v4759 = vunpack.c.l.b16 %v3409
    %v4760 = vunpack.c.h.b16 %v3409
    %v4761 = vunpack.c.l.b16 %v3410
    %v4762 = vunpack.c.h.b16 %v3410
    %v4763 = vunpack.c.l.b16 %v3411
    %v4764 = vunpack.c.h.b16 %v3411
    %v4765 = vunpack.c.l.b16 %v3412
    %v4766 = vunpack.c.h.b16 %v3412
    %v4767 = vunpack.c.l.b16 %v3413
    %v4768 = vunpack.c.h.b16 %v3413
    %v4769 = vunpack.c.l.b16 %v3414
    %v4770 = vunpack.c.h.b16 %v3414
    %v4771 = vunpack.c.l.b16 %v3415
    %v4772 = vunpack.c.h.b16 %v3415
    %v4773 = vunpack.c.l.b16 %v3416
    %v4774 = vunpack.c.h.b16 %v3416
    %v4775 = vunpack.c.l.b16 %v3417
    %v4776 = vunpack.c.h.b16 %v3417
    %v4777 = vunpack.c.l.b16 %v3418
    %v4778 = vunpack.c.h.b16 %v3418
    %v4779 = vunpack.c.l.b16 %v3419
    %v4780 = vunpack.c.h.b16 %v3419
    %v4781 = vunpack.c.l.b16 %v3420
    %v4782 = vunpack.c.h.b16 %v3420
    %v4783 = vunpack.c.l.b16 %v3421
    %v4784 = vunpack.c.h.b16 %v3421
    %v4785 = vunpack.c.l.b16 %v3422
    %v4786 = vunpack.c.h.b16 %v3422
    %v4787 = vunpack.c.l.b16 %v3423
    %v4788 = vunpack.c.h.b16 %v3423
    %v4789 = vunpack.c.l.b16 %v3424
    %v4790 = vunpack.c.h.b16 %v3424
    %v4791 = vunpack.c.l.b16 %v3425
    %v4792 = vunpack.c.h.b16 %v3425
    %v4793 = vunpack.c.l.b16 %v3426
    %v4794 = vunpack.c.h.b16 %v3426
    %v4795 = vunpack.c.l.b16 %v3427
    %v4796 = vunpack.c.h.b16 %v3427
    %v4797 = vunpack.c.l.b16 %v3428
    %v4798 = vunpack.c.h.b16 %v3428
    %v4799 = vunpack.c.l.b16 %v3429
    %v4800 = vunpack.c.h.b16 %v3429
    %v4801 = vunpack.c.l.b16 %v3430
    %v4802 = vunpack.c.h.b16 %v3430
    %v4803 = vunpack.c.l.b16 %v3431
    %v4804 = vunpack.c.h.b16 %v3431
    %v4805 = vunpack.c.l.b16 %v3432
    %v4806 = vunpack.c.h.b16 %v3432
    %v4807 = vunpack.c.l.b16 %v3433
    %v4808 = vunpack.c.h.b16 %v3433
    %v4809 = vunpack.c.l.b16 %v3434
    %v4810 = vunpack.c.h.b16 %v3434
    %v4811 = vunpack.c.l.b16 %v3435
    %v4812 = vunpack.c.h.b16 %v3435
    %v4813 = vunpack.c.l.b16 %v3436
    %v4814 = vunpack.c.h.b16 %v3436
    %v4815 = vunpack.c.l.b16 %v3437
    %v4816 = vunpack.c.h.b16 %v3437
    %v4817 = vunpack.c.l.b16 %v3438
    %v4818 = vunpack.c.h.b16 %v3438
    %v4819 = vunpack.c.l.b16 %v3439
    %v4820 = vunpack.c.h.b16 %v3439
    %v4821 = vunpack.c.l.b16 %v3440
    %v4822 = vunpack.c.h.b16 %v3440
    %v4823 = vunpack.c.l.b16 %v3441
    %v4824 = vunpack.c.h.b16 %v3441
    %v4825 = vunpack.c.l.b16 %v3442
    %v4826 = vunpack.c.h.b16 %v3442
    %v4827 = vunpack.c.l.b16 %v3443
    %v4828 = vunpack.c.h.b16 %v3443
    %v4829 = vunpack.c.l.b16 %v3444
    %v4830 = vunpack.c.h.b16 %v3444
    %v4831 = vunpack.c.l.b16 %v3445
    %v4832 = vunpack.c.h.b16 %v3445
    %v4833 = vunpack.c.l.b16 %v3446
    %v4834 = vunpack.c.h.b16 %v3446
    %v4835 = vunpack.c.l.b16 %v3447
    %v4836 = vunpack.c.h.b16 %v3447
    %v4837 = vunpack.c.l.b16 %v3448
    %v4838 = vunpack.c.h.b16 %v3448
    %v4839 = vunpack.c.l.b16 %v3449
    %v4840 = vunpack.c.h.b16 %v3449
    %v4841 = vunpack.c.l.b16 %v3450
    %v4842 = vunpack.c.h.b16 %v3450
    %v4843 = vunpack.c.l.b16 %v3451
    %v4844 = vunpack.c.h.b16 %v3451
    %v4845 = vunpack.c.l.b16 %v3452
    %v4846 = vunpack.c.h.b16 %v3452
    %v4847 = vunpack.c.l.b16 %v3453
    %v4848 = vunpack.c.h.b16 %v3453
    %v4849 = vunpack.c.l.b16 %v3454
    %v4850 = vunpack.c.h.b16 %v3454
    %v4851 = vunpack.c.l.b16 %v3455
    %v4852 = vunpack.c.h.b16 %v3455
    %v4853 = vunpack.c.l.b16 %v3456
    %v4854 = vunpack.c.h.b16 %v3456
    %v4855 = vunpack.c.l.b16 %v3457
    %v4856 = vunpack.c.h.b16 %v3457
    %v4857 = vunpack.c.l.b16 %v3458
    %v4858 = vunpack.c.h.b16 %v3458
    %v4859 = vunpack.c.l.b16 %v3459
    %v4860 = vunpack.c.h.b16 %v3459
    %v4861 = vunpack.c.l.b16 %v3460
    %v4862 = vunpack.c.h.b16 %v3460
    %v4863 = vunpack.c.l.b16 %v3461
    %v4864 = vunpack.c.h.b16 %v3461
    %v4865 = vunpack.c.l.b16 %v3462
    %v4866 = vunpack.c.h.b16 %v3462
    %v4867 = vunpack.c.l.b16 %v3463
    %v4868 = vunpack.c.h.b16 %v3463
    %v4869 = vunpack.c.l.b16 %v3464
    %v4870 = vunpack.c.h.b16 %v3464
    %v4871 = vunpack.c.l.b16 %v3465
    %v4872 = vunpack.c.h.b16 %v3465
    %v4873 = vunpack.c.l.b16 %v3466
    %v4874 = vunpack.c.h.b16 %v3466
    %v4875 = vunpack.c.l.b16 %v3467
    %v4876 = vunpack.c.h.b16 %v3467
    %v4877 = vunpack.c.l.b16 %v3468
    %v4878 = vunpack.c.h.b16 %v3468
    %v4879 = vunpack.c.l.b16 %v3469
    %v4880 = vunpack.c.h.b16 %v3469
    %v4881 = vunpack.c.l.b16 %v3470
    %v4882 = vunpack.c.h.b16 %v3470
    %v4883 = vunpack.c.l.b16 %v3471
    %v4884 = vunpack.c.h.b16 %v3471
    %v4885 = vunpack.c.l.b16 %v3472
    %v4886 = vunpack.c.h.b16 %v3472
    %v4887 = vunpack.c.l.b16 %v3473
    %v4888 = vunpack.c.h.b16 %v3473
    %v4889 = vunpack.c.l.b16 %v3474
    %v4890 = vunpack.c.h.b16 %v3474
    %v4891 = vunpack.c.l.b16 %v3475
    %v4892 = vunpack.c.h.b16 %v3475
    %v4893 = vunpack.c.l.b16 %v3476
    %v4894 = vunpack.c.h.b16 %v3476
    %v4895 = vunpack.c.l.b16 %v3477
    %v4896 = vunpack.c.h.b16 %v3477
    %v4897 = vunpack.c.l.b16 %v3478
    %v4898 = vunpack.c.h.b16 %v3478
    %v4899 = vunpack.c.l.b16 %v3479
    %v4900 = vunpack.c.h.b16 %v3479
    %v4901 = vunpack.c.l.b16 %v3480
    %v4902 = vunpack.c.h.b16 %v3480
    %v4903 = vunpack.c.l.b16 %v3481
    %v4904 = vunpack.c.h.b16 %v3481
    %v4905 = vunpack.c.l.b16 %v3482
    %v4906 = vunpack.c.h.b16 %v3482
    %v4907 = vunpack.c.l.b16 %v3483
    %v4908 = vunpack.c.h.b16 %v3483
    %v4909 = vunpack.c.l.b16 %v3484
    %v4910 = vunpack.c.h.b16 %v3484
    %v4911 = vunpack.c.l.b16 %v3485
    %v4912 = vunpack.c.h.b16 %v3485
    %v4913 = vunpack.c.l.b16 %v3486
    %v4914 = vunpack.c.h.b16 %v3486
    %v4915 = vunpack.c.l.b16 %v3487
    %v4916 = vunpack.c.h.b16 %v3487
    %v4917 = vunpack.c.l.b16 %v3488
    %v4918 = vunpack.c.h.b16 %v3488
    %v4919 = vunpack.c.l.b16 %v3489
    %v4920 = vunpack.c.h.b16 %v3489
    %v4921 = vunpack.c.l.b16 %v3490
    %v4922 = vunpack.c.h.b16 %v3490
    %v4923 = vunpack.c.l.b16 %v3491
    %v4924 = vunpack.c.h.b16 %v3491
    %v4925 = vunpack.c.l.b16 %v3492
    %v4926 = vunpack.c.h.b16 %v3492
    %v4927 = vunpack.c.l.b16 %v3493
    %v4928 = vunpack.c.h.b16 %v3493
    %v4929 = vunpack.c.l.b16 %v3494
    %v4930 = vunpack.c.h.b16 %v3494
    %v4931 = vunpack.c.l.b16 %v3495
    %v4932 = vunpack.c.h.b16 %v3495
    %v4933 = vunpack.c.l.b16 %v3496
    %v4934 = vunpack.c.h.b16 %v3496
    %v4935 = vunpack.c.l.b16 %v3497
    %v4936 = vunpack.c.h.b16 %v3497
    %v4937 = vunpack.c.l.b16 %v3498
    %v4938 = vunpack.c.h.b16 %v3498
    %v4939 = vunpack.c.l.b16 %v3499
    %v4940 = vunpack.c.h.b16 %v3499
    %v4941 = vunpack.c.l.b16 %v3500
    %v4942 = vunpack.c.h.b16 %v3500
    %v4943 = vunpack.c.l.b16 %v3501
    %v4944 = vunpack.c.h.b16 %v3501
    %v4945 = vunpack.c.l.b16 %v3502
    %v4946 = vunpack.c.h.b16 %v3502
    %v4947 = vunpack.c.l.b16 %v3503
    %v4948 = vunpack.c.h.b16 %v3503
    %v4949 = vunpack.c.l.b16 %v3504
    %v4950 = vunpack.c.h.b16 %v3504
    %v4951 = vunpack.c.l.b16 %v3505
    %v4952 = vunpack.c.h.b16 %v3505
    %v4953 = vunpack.c.l.b16 %v3506
    %v4954 = vunpack.c.h.b16 %v3506
    %v4955 = vunpack.c.l.b16 %v3507
    %v4956 = vunpack.c.h.b16 %v3507
    %v4957 = vunpack.c.l.b16 %v3508
    %v4958 = vunpack.c.h.b16 %v3508
    %v4959 = vunpack.c.l.b16 %v3509
    %v4960 = vunpack.c.h.b16 %v3509
    %v4961 = vunpack.c.l.b16 %v3510
    %v4962 = vunpack.c.h.b16 %v3510
    %v4963 = vunpack.c.l.b16 %v3511
    %v4964 = vunpack.c.h.b16 %v3511
    %v4965 = vunpack.c.l.b16 %v3512
    %v4966 = vunpack.c.h.b16 %v3512
    %v4967 = vunpack.c.l.b16 %v3513
    %v4968 = vunpack.c.h.b16 %v3513
    %v4969 = vunpack.c.l.b16 %v3514
    %v4970 = vunpack.c.h.b16 %v3514
    %v4971 = vunpack.c.l.b16 %v3515
    %v4972 = vunpack.c.h.b16 %v3515
    %v4973 = vunpack.c.l.b16 %v3516
    %v4974 = vunpack.c.h.b16 %v3516
    %v4975 = vunpack.c.l.b16 %v3517
    %v4976 = vunpack.c.h.b16 %v3517
    %v4977 = vunpack.c.l.b16 %v3518
    %v4978 = vunpack.c.h.b16 %v3518
    %v4979 = vunpack.c.l.b16 %v3519
    %v4980 = vunpack.c.h.b16 %v3519
    %v4981 = vunpack.c.l.b16 %v3520
    %v4982 = vunpack.c.h.b16 %v3520
    %v4983 = vunpack.c.l.b16 %v3521
    %v4984 = vunpack.c.h.b16 %v3521
    %v4985 = vunpack.c.l.b16 %v3522
    %v4986 = vunpack.c.h.b16 %v3522
    %v4987 = vunpack.c.l.b16 %v3523
    %v4988 = vunpack.c.h.b16 %v3523
    %v4989 = vunpack.c.l.b16 %v3524
    %v4990 = vunpack.c.h.b16 %v3524
    %v4991 = vunpack.c.l.b16 %v3525
    %v4992 = vunpack.c.h.b16 %v3525
    %v4993 = vunpack.c.l.b16 %v3526
    %v4994 = vunpack.c.h.b16 %v3526
    %v4995 = vunpack.c.l.b16 %v3527
    %v4996 = vunpack.c.h.b16 %v3527
    %v4997 = vunpack.c.l.b16 %v3528
    %v4998 = vunpack.c.h.b16 %v3528
    %v4999 = vunpack.c.l.b16 %v3529
    %v5000 = vunpack.c.h.b16 %v3529
    %v5001 = vunpack.c.l.b16 %v3530
    %v5002 = vunpack.c.h.b16 %v3530
    %v5003 = vunpack.c.l.b16 %v3531
    %v5004 = vunpack.c.h.b16 %v3531
    %v5005 = vunpack.c.l.b16 %v3532
    %v5006 = vunpack.c.h.b16 %v3532
    %v5007 = vunpack.c.l.b16 %v3533
    %v5008 = vunpack.c.h.b16 %v3533
    %v5009 = vunpack.c.l.b16 %v3534
    %v5010 = vunpack.c.h.b16 %v3534
    %v5011 = vunpack.c.l.b16 %v3535
    %v5012 = vunpack.c.h.b16 %v3535
    %v5013 = vunpack.c.l.b16 %v3536
    %v5014 = vunpack.c.h.b16 %v3536
    %v5015 = vunpack.c.l.b16 %v3537
    %v5016 = vunpack.c.h.b16 %v3537
    %v5017 = vunpack.c.l.b16 %v3538
    %v5018 = vunpack.c.h.b16 %v3538
    %v5019 = vunpack.c.l.b16 %v3539
    %v5020 = vunpack.c.h.b16 %v3539
    %v5021 = vunpack.c.l.b16 %v3540
    %v5022 = vunpack.c.h.b16 %v3540
    %v5023 = vunpack.c.l.b16 %v3541
    %v5024 = vunpack.c.h.b16 %v3541
    %v5025 = vunpack.c.l.b16 %v3542
    %v5026 = vunpack.c.h.b16 %v3542
    %v5027 = vunpack.c.l.b16 %v3543
    %v5028 = vunpack.c.h.b16 %v3543
    %v5029 = vunpack.c.l.b16 %v3544
    %v5030 = vunpack.c.h.b16 %v3544
    %v5031 = vunpack.c.l.b16 %v3545
    %v5032 = vunpack.c.h.b16 %v3545
    %v5033 = vunpack.c.l.b16 %v3546
    %v5034 = vunpack.c.h.b16 %v3546
    %v5035 = vunpack.c.l.b16 %v3547
    %v5036 = vunpack.c.h.b16 %v3547
    %v5037 = vunpack.c.l.b16 %v3548
    %v5038 = vunpack.c.h.b16 %v3548
    %v5039 = vunpack.c.l.b16 %v3549
    %v5040 = vunpack.c.h.b16 %v3549
    %v5041 = vunpack.c.l.b16 %v3550
    %v5042 = vunpack.c.h.b16 %v3550
    %v5043 = vunpack.c.l.b16 %v3551
    %v5044 = vunpack.c.h.b16 %v3551
    %v5045 = vunpack.c.l.b16 %v3552
    %v5046 = vunpack.c.h.b16 %v3552
    %v5047 = vunpack.c.l.b16 %v3553
    %v5048 = vunpack.c.h.b16 %v3553
    %v5049 = vunpack.c.l.b16 %v3554
    %v5050 = vunpack.c.h.b16 %v3554
    %v5051 = vunpack.c.l.b16 %v3555
    %v5052 = vunpack.c.h.b16 %v3555
    %v5053 = vunpack.c.l.b16 %v3556
    %v5054 = vunpack.c.h.b16 %v3556
    %v5055 = vunpack.c.l.b16 %v3557
    %v5056 = vunpack.c.h.b16 %v3557
    %v5057 = vunpack.c.l.b16 %v3558
    %v5058 = vunpack.c.h.b16 %v3558
    %v5059 = vunpack.c.l.b16 %v3559
    %v5060 = vunpack.c.h.b16 %v3559
    %v5061 = vunpack.c.l.b16 %v3560
    %v5062 = vunpack.c.h.b16 %v3560
    %v5063 = vunpack.c.l.b16 %v3561
    %v5064 = vunpack.c.h.b16 %v3561
    %v5065 = vunpack.c.l.b16 %v3562
    %v5066 = vunpack.c.h.b16 %v3562
    %v5067 = vunpack.c.l.b16 %v3563
    %v5068 = vunpack.c.h.b16 %v3563
    %v5069 = vunpack.c.l.b16 %v3564
    %v5070 = vunpack.c.h.b16 %v3564
    %v5071 = vunpack.c.l.b16 %v3565
    %v5072 = vunpack.c.h.b16 %v3565
    %v5073 = vunpack.c.l.b16 %v3566
    %v5074 = vunpack.c.h.b16 %v3566
    %v5075 = vunpack.c.l.b16 %v3567
    %v5076 = vunpack.c.h.b16 %v3567
    %v5077 = vunpack.c.l.b16 %v3568
    %v5078 = vunpack.c.h.b16 %v3568
    %v5079 = vunpack.c.l.b16 %v3569
    %v5080 = vunpack.c.h.b16 %v3569
    %v5081 = vunpack.c.l.b16 %v3570
    %v5082 = vunpack.c.h.b16 %v3570
    %v5083 = vunpack.c.l.b16 %v3571
    %v5084 = vunpack.c.h.b16 %v3571
    %v5085 = vunpack.c.l.b16 %v3572
    %v5086 = vunpack.c.h.b16 %v3572
    %v5087 = vunpack.c.l.b16 %v3573
    %v5088 = vunpack.c.h.b16 %v3573
    %v5089 = vunpack.c.l.b16 %v3574
    %v5090 = vunpack.c.h.b16 %v3574
    %v5091 = vunpack.c.l.b16 %v3575
    %v5092 = vunpack.c.h.b16 %v3575
    %v5093 = vunpack.c.l.b16 %v3576
    %v5094 = vunpack.c.h.b16 %v3576
    %v5095 = vunpack.c.l.b16 %v3577
    %v5096 = vunpack.c.h.b16 %v3577
    %v5097 = vunpack.c.l.b16 %v3578
    %v5098 = vunpack.c.h.b16 %v3578
    %v5099 = vunpack.c.l.b16 %v3579
    %v5100 = vunpack.c.h.b16 %v3579
    %v5101 = vunpack.c.l.b16 %v3580
    %v5102 = vunpack.c.h.b16 %v3580
    %v5103 = vunpack.c.l.b16 %v3581
    %v5104 = vunpack.c.h.b16 %v3581
    %v5105 = vunpack.c.l.b16 %v3582
    %v5106 = vunpack.c.h.b16 %v3582
    %v5107 = vunpack.c.l.b16 %v3583
    %v5108 = vunpack.c.h.b16 %v3583
    %v5109 = vunpack.c.l.b16 %v3584
    %v5110 = vunpack.c.h.b16 %v3584
    %v5111 = vunpack.c.l.b16 %v3585
    %v5112 = vunpack.c.h.b16 %v3585
    %v5113 = vunpack.c.l.b16 %v3586
    %v5114 = vunpack.c.h.b16 %v3586
    %v5115 = vunpack.c.l.b16 %v3587
    %v5116 = vunpack.c.h.b16 %v3587
    %v5117 = vunpack.c.l.b16 %v3588
    %v5118 = vunpack.c.h.b16 %v3588
    %v5119 = vunpack.c.l.b16 %v3589
    %v5120 = vunpack.c.h.b16 %v3589
    %v5121 = vunpack.c.l.b16 %v3590
    %v5122 = vunpack.c.h.b16 %v3590
    %v5123 = vunpack.c.l.b16 %v3591
    %v5124 = vunpack.c.h.b16 %v3591
    %v5125 = vunpack.c.l.b16 %v3592
    %v5126 = vunpack.c.h.b16 %v3592
    %v5127 = vunpack.c.l.b16 %v3593
    %v5128 = vunpack.c.h.b16 %v3593
    %v5129 = vunpack.c.l.b16 %v3594
    %v5130 = vunpack.c.h.b16 %v3594
    %v5131 = vpack.c.b16 %v4115, %v4107
    %v5132 = vpack.c.b16 %v4116, %v4108
    %v5133 = vpack.c.b16 %v4117, %v4109
    %v5134 = vpack.c.b16 %v4118, %v4110
    %v5135 = vpack.c.b16 %v4119, %v4111
    %v5136 = vpack.c.b16 %v4120, %v4112
    %v5137 = vpack.c.b16 %v4121, %v4113
    %v5138 = vpack.c.b16 %v4122, %v4114
    %v5139 = vpack.c.b16 %v4131, %v4123
    %v5140 = vpack.c.b16 %v4132, %v4124
    %v5141 = vpack.c.b16 %v4133, %v4125
    %v5142 = vpack.c.b16 %v4134, %v4126
    %v5143 = vpack.c.b16 %v4135, %v4127
    %v5144 = vpack.c.b16 %v4136, %v4128
    %v5145 = vpack.c.b16 %v4137, %v4129
    %v5146 = vpack.c.b16 %v4138, %v4130
    %v5147 = vpack.c.b16 %v4147, %v4139
    %v5148 = vpack.c.b16 %v4148, %v4140
    %v5149 = vpack.c.b16 %v4149, %v4141
    %v5150 = vpack.c.b16 %v4150, %v4142
    %v5151 = vpack.c.b16 %v4151, %v4143
    %v5152 = vpack.c.b16 %v4152, %v4144
    %v5153 = vpack.c.b16 %v4153, %v4145
    %v5154 = vpack.c.b16 %v4154, %v4146
    %v5155 = vpack.c.b16 %v4163, %v4155
    %v5156 = vpack.c.b16 %v4164, %v4156
    %v5157 = vpack.c.b16 %v4165, %v4157
    %v5158 = vpack.c.b16 %v4166, %v4158
    %v5159 = vpack.c.b16 %v4167, %v4159
    %v5160 = vpack.c.b16 %v4168, %v4160
    %v5161 = vpack.c.b16 %v4169, %v4161
    %v5162 = vpack.c.b16 %v4170, %v4162
    %v5163 = vpack.c.b16 %v4179, %v4171
    %v5164 = vpack.c.b16 %v4180, %v4172
    %v5165 = vpack.c.b16 %v4181, %v4173
    %v5166 = vpack.c.b16 %v4182, %v4174
    %v5167 = vpack.c.b16 %v4183, %v4175
    %v5168 = vpack.c.b16 %v4184, %v4176
    %v5169 = vpack.c.b16 %v4185, %v4177
    %v5170 = vpack.c.b16 %v4186, %v4178
    %v5171 = vpack.c.b16 %v4195, %v4187
    %v5172 = vpack.c.b16 %v4196, %v4188
    %v5173 = vpack.c.b16 %v4197, %v4189
    %v5174 = vpack.c.b16 %v4198, %v4190
    %v5175 = vpack.c.b16 %v4199, %v4191
    %v5176 = vpack.c.b16 %v4200, %v4192
    %v5177 = vpack.c.b16 %v4201, %v4193
    %v5178 = vpack.c.b16 %v4202, %v4194
    %v5179 = vpack.c.b16 %v4211, %v4203
    %v5180 = vpack.c.b16 %v4212, %v4204
    %v5181 = vpack.c.b16 %v4213, %v4205
    %v5182 = vpack.c.b16 %v4214, %v4206
    %v5183 = vpack.c.b16 %v4215, %v4207
    %v5184 = vpack.c.b16 %v4216, %v4208
    %v5185 = vpack.c.b16 %v4217, %v4209
    %v5186 = vpack.c.b16 %v4218, %v4210
    %v5187 = vpack.c.b16 %v4227, %v4219
    %v5188 = vpack.c.b16 %v4228, %v4220
    %v5189 = vpack.c.b16 %v4229, %v4221
    %v5190 = vpack.c.b16 %v4230, %v4222
    %v5191 = vpack.c.b16 %v4231, %v4223
    %v5192 = vpack.c.b16 %v4232, %v4224
    %v5193 = vpack.c.b16 %v4233, %v4225
    %v5194 = vpack.c.b16 %v4234, %v4226
    %v5195 = vpack.c.b16 %v4243, %v4235
    %v5196 = vpack.c.b16 %v4244, %v4236
    %v5197 = vpack.c.b16 %v4245, %v4237
    %v5198 = vpack.c.b16 %v4246, %v4238
    %v5199 = vpack.c.b16 %v4247, %v4239
    %v5200 = vpack.c.b16 %v4248, %v4240
    %v5201 = vpack.c.b16 %v4249, %v4241
    %v5202 = vpack.c.b16 %v4250, %v4242
    %v5203 = vpack.c.b16 %v4259, %v4251
    %v5204 = vpack.c.b16 %v4260, %v4252
    %v5205 = vpack.c.b16 %v4261, %v4253
    %v5206 = vpack.c.b16 %v4262, %v4254
    %v5207 = vpack.c.b16 %v4263, %v4255
    %v5208 = vpack.c.b16 %v4264, %v4256
    %v5209 = vpack.c.b16 %v4265, %v4257
    %v5210 = vpack.c.b16 %v4266, %v4258
    %v5211 = vpack.c.b16 %v4275, %v4267
    %v5212 = vpack.c.b16 %v4276, %v4268
    %v5213 = vpack.c.b16 %v4277, %v4269
    %v5214 = vpack.c.b16 %v4278, %v4270
    %v5215 = vpack.c.b16 %v4279, %v4271
    %v5216 = vpack.c.b16 %v4280, %v4272
    %v5217 = vpack.c.b16 %v4281, %v4273
    %v5218 = vpack.c.b16 %v4282, %v4274
    %v5219 = vpack.c.b16 %v4291, %v4283
    %v5220 = vpack.c.b16 %v4292, %v4284
    %v5221 = vpack.c.b16 %v4293, %v4285
    %v5222 = vpack.c.b16 %v4294, %v4286
    %v5223 = vpack.c.b16 %v4295, %v4287
    %v5224 = vpack.c.b16 %v4296, %v4288
    %v5225 = vpack.c.b16 %v4297, %v4289
    %v5226 = vpack.c.b16 %v4298, %v4290
    %v5227 = vpack.c.b16 %v4307, %v4299
    %v5228 = vpack.c.b16 %v4308, %v4300
    %v5229 = vpack.c.b16 %v4309, %v4301
    %v5230 = vpack.c.b16 %v4310, %v4302
    %v5231 = vpack.c.b16 %v4311, %v4303
    %v5232 = vpack.c.b16 %v4312, %v4304
    %v5233 = vpack.c.b16 %v4313, %v4305
    %v5234 = vpack.c.b16 %v4314, %v4306
    %v5235 = vpack.c.b16 %v4323, %v4315
    %v5236 = vpack.c.b16 %v4324, %v4316
    %v5237 = vpack.c.b16 %v4325, %v4317
    %v5238 = vpack.c.b16 %v4326, %v4318
    %v5239 = vpack.c.b16 %v4327, %v4319
    %v5240 = vpack.c.b16 %v4328, %v4320
    %v5241 = vpack.c.b16 %v4329, %v4321
    %v5242 = vpack.c.b16 %v4330, %v4322
    %v5243 = vpack.c.b16 %v4339, %v4331
    %v5244 = vpack.c.b16 %v4340, %v4332
    %v5245 = vpack.c.b16 %v4341, %v4333
    %v5246 = vpack.c.b16 %v4342, %v4334
    %v5247 = vpack.c.b16 %v4343, %v4335
    %v5248 = vpack.c.b16 %v4344, %v4336
    %v5249 = vpack.c.b16 %v4345, %v4337
    %v5250 = vpack.c.b16 %v4346, %v4338
    %v5251 = vpack.c.b16 %v4355, %v4347
    %v5252 = vpack.c.b16 %v4356, %v4348
    %v5253 = vpack.c.b16 %v4357, %v4349
    %v5254 = vpack.c.b16 %v4358, %v4350
    %v5255 = vpack.c.b16 %v4359, %v4351
    %v5256 = vpack.c.b16 %v4360, %v4352
    %v5257 = vpack.c.b16 %v4361, %v4353
    %v5258 = vpack.c.b16 %v4362, %v4354
    %v5259 = vpack.c.b16 %v4371, %v4363
    %v5260 = vpack.c.b16 %v4372, %v4364
    %v5261 = vpack.c.b16 %v4373, %v4365
    %v5262 = vpack.c.b16 %v4374, %v4366
    %v5263 = vpack.c.b16 %v4375, %v4367
    %v5264 = vpack.c.b16 %v4376, %v4368
    %v5265 = vpack.c.b16 %v4377, %v4369
    %v5266 = vpack.c.b16 %v4378, %v4370
    %v5267 = vpack.c.b16 %v4387, %v4379
    %v5268 = vpack.c.b16 %v4388, %v4380
    %v5269 = vpack.c.b16 %v4389, %v4381
    %v5270 = vpack.c.b16 %v4390, %v4382
    %v5271 = vpack.c.b16 %v4391, %v4383
    %v5272 = vpack.c.b16 %v4392, %v4384
    %v5273 = vpack.c.b16 %v4393, %v4385
    %v5274 = vpack.c.b16 %v4394, %v4386
    %v5275 = vpack.c.b16 %v4403, %v4395
    %v5276 = vpack.c.b16 %v4404, %v4396
    %v5277 = vpack.c.b16 %v4405, %v4397
    %v5278 = vpack.c.b16 %v4406, %v4398
    %v5279 = vpack.c.b16 %v4407, %v4399
    %v5280 = vpack.c.b16 %v4408, %v4400
    %v5281 = vpack.c.b16 %v4409, %v4401
    %v5282 = vpack.c.b16 %v4410, %v4402
    %v5283 = vpack.c.b16 %v4419, %v4411
    %v5284 = vpack.c.b16 %v4420, %v4412
    %v5285 = vpack.c.b16 %v4421, %v4413
    %v5286 = vpack.c.b16 %v4422, %v4414
    %v5287 = vpack.c.b16 %v4423, %v4415
    %v5288 = vpack.c.b16 %v4424, %v4416
    %v5289 = vpack.c.b16 %v4425, %v4417
    %v5290 = vpack.c.b16 %v4426, %v4418
    %v5291 = vpack.c.b16 %v4435, %v4427
    %v5292 = vpack.c.b16 %v4436, %v4428
    %v5293 = vpack.c.b16 %v4437, %v4429
    %v5294 = vpack.c.b16 %v4438, %v4430
    %v5295 = vpack.c.b16 %v4439, %v4431
    %v5296 = vpack.c.b16 %v4440, %v4432
    %v5297 = vpack.c.b16 %v4441, %v4433
    %v5298 = vpack.c.b16 %v4442, %v4434
    %v5299 = vpack.c.b16 %v4451, %v4443
    %v5300 = vpack.c.b16 %v4452, %v4444
    %v5301 = vpack.c.b16 %v4453, %v4445
    %v5302 = vpack.c.b16 %v4454, %v4446
    %v5303 = vpack.c.b16 %v4455, %v4447
    %v5304 = vpack.c.b16 %v4456, %v4448
    %v5305 = vpack.c.b16 %v4457, %v4449
    %v5306 = vpack.c.b16 %v4458, %v4450
    %v5307 = vpack.c.b16 %v4467, %v4459
    %v5308 = vpack.c.b16 %v4468, %v4460
    %v5309 = vpack.c.b16 %v4469, %v4461
    %v5310 = vpack.c.b16 %v4470, %v4462
    %v5311 = vpack.c.b16 %v4471, %v4463
    %v5312 = vpack.c.b16 %v4472, %v4464
    %v5313 = vpack.c.b16 %v4473, %v4465
    %v5314 = vpack.c.b16 %v4474, %v4466
    %v5315 = vpack.c.b16 %v4483, %v4475
    %v5316 = vpack.c.b16 %v4484, %v4476
    %v5317 = vpack.c.b16 %v4485, %v4477
    %v5318 = vpack.c.b16 %v4486, %v4478
    %v5319 = vpack.c.b16 %v4487, %v4479
    %v5320 = vpack.c.b16 %v4488, %v4480
    %v5321 = vpack.c.b16 %v4489, %v4481
    %v5322 = vpack.c.b16 %v4490, %v4482
    %v5323 = vpack.c.b16 %v4499, %v4491
    %v5324 = vpack.c.b16 %v4500, %v4492
    %v5325 = vpack.c.b16 %v4501, %v4493
    %v5326 = vpack.c.b16 %v4502, %v4494
    %v5327 = vpack.c.b16 %v4503, %v4495
    %v5328 = vpack.c.b16 %v4504, %v4496
    %v5329 = vpack.c.b16 %v4505, %v4497
    %v5330 = vpack.c.b16 %v4506, %v4498
    %v5331 = vpack.c.b16 %v4515, %v4507
    %v5332 = vpack.c.b16 %v4516, %v4508
    %v5333 = vpack.c.b16 %v4517, %v4509
    %v5334 = vpack.c.b16 %v4518, %v4510
    %v5335 = vpack.c.b16 %v4519, %v4511
    %v5336 = vpack.c.b16 %v4520, %v4512
    %v5337 = vpack.c.b16 %v4521, %v4513
    %v5338 = vpack.c.b16 %v4522, %v4514
    %v5339 = vpack.c.b16 %v4531, %v4523
    %v5340 = vpack.c.b16 %v4532, %v4524
    %v5341 = vpack.c.b16 %v4533, %v4525
    %v5342 = vpack.c.b16 %v4534, %v4526
    %v5343 = vpack.c.b16 %v4535, %v4527
    %v5344 = vpack.c.b16 %v4536, %v4528
    %v5345 = vpack.c.b16 %v4537, %v4529
    %v5346 = vpack.c.b16 %v4538, %v4530
    %v5347 = vpack.c.b16 %v4547, %v4539
    %v5348 = vpack.c.b16 %v4548, %v4540
    %v5349 = vpack.c.b16 %v4549, %v4541
    %v5350 = vpack.c.b16 %v4550, %v4542
    %v5351 = vpack.c.b16 %v4551, %v4543
    %v5352 = vpack.c.b16 %v4552, %v4544
    %v5353 = vpack.c.b16 %v4553, %v4545
    %v5354 = vpack.c.b16 %v4554, %v4546
    %v5355 = vpack.c.b16 %v4563, %v4555
    %v5356 = vpack.c.b16 %v4564, %v4556
    %v5357 = vpack.c.b16 %v4565, %v4557
    %v5358 = vpack.c.b16 %v4566, %v4558
    %v5359 = vpack.c.b16 %v4567, %v4559
    %v5360 = vpack.c.b16 %v4568, %v4560
    %v5361 = vpack.c.b16 %v4569, %v4561
    %v5362 = vpack.c.b16 %v4570, %v4562
    %v5363 = vpack.c.b16 %v4579, %v4571
    %v5364 = vpack.c.b16 %v4580, %v4572
    %v5365 = vpack.c.b16 %v4581, %v4573
    %v5366 = vpack.c.b16 %v4582, %v4574
    %v5367 = vpack.c.b16 %v4583, %v4575
    %v5368 = vpack.c.b16 %v4584, %v4576
    %v5369 = vpack.c.b16 %v4585, %v4577
    %v5370 = vpack.c.b16 %v4586, %v4578
    %v5371 = vpack.c.b16 %v4595, %v4587
    %v5372 = vpack.c.b16 %v4596, %v4588
    %v5373 = vpack.c.b16 %v4597, %v4589
    %v5374 = vpack.c.b16 %v4598, %v4590
    %v5375 = vpack.c.b16 %v4599, %v4591
    %v5376 = vpack.c.b16 %v4600, %v4592
    %v5377 = vpack.c.b16 %v4601, %v4593
    %v5378 = vpack.c.b16 %v4602, %v4594
    %v5379 = vpack.c.b16 %v4611, %v4603
    %v5380 = vpack.c.b16 %v4612, %v4604
    %v5381 = vpack.c.b16 %v4613, %v4605
    %v5382 = vpack.c.b16 %v4614, %v4606
    %v5383 = vpack.c.b16 %v4615, %v4607
    %v5384 = vpack.c.b16 %v4616, %v4608
    %v5385 = vpack.c.b16 %v4617, %v4609
    %v5386 = vpack.c.b16 %v4618, %v4610
    %v5387 = vpack.c.b16 %v4627, %v4619
    %v5388 = vpack.c.b16 %v4628, %v4620
    %v5389 = vpack.c.b16 %v4629, %v4621
    %v5390 = vpack.c.b16 %v4630, %v4622
    %v5391 = vpack.c.b16 %v4631, %v4623
    %v5392 = vpack.c.b16 %v4632, %v4624
    %v5393 = vpack.c.b16 %v4633, %v4625
    %v5394 = vpack.c.b16 %v4634, %v4626
    %v5395 = vpack.c.b16 %v4643, %v4635
    %v5396 = vpack.c.b16 %v4644, %v4636
    %v5397 = vpack.c.b16 %v4645, %v4637
    %v5398 = vpack.c.b16 %v4646, %v4638
    %v5399 = vpack.c.b16 %v4647, %v4639
    %v5400 = vpack.c.b16 %v4648, %v4640
    %v5401 = vpack.c.b16 %v4649, %v4641
    %v5402 = vpack.c.b16 %v4650, %v4642
    %v5403 = vpack.c.b16 %v4659, %v4651
    %v5404 = vpack.c.b16 %v4660, %v4652
    %v5405 = vpack.c.b16 %v4661, %v4653
    %v5406 = vpack.c.b16 %v4662, %v4654
    %v5407 = vpack.c.b16 %v4663, %v4655
    %v5408 = vpack.c.b16 %v4664, %v4656
    %v5409 = vpack.c.b16 %v4665, %v4657
    %v5410 = vpack.c.b16 %v4666, %v4658
    %v5411 = vpack.c.b16 %v4675, %v4667
    %v5412 = vpack.c.b16 %v4676, %v4668
    %v5413 = vpack.c.b16 %v4677, %v4669
    %v5414 = vpack.c.b16 %v4678, %v4670
    %v5415 = vpack.c.b16 %v4679, %v4671
    %v5416 = vpack.c.b16 %v4680, %v4672
    %v5417 = vpack.c.b16 %v4681, %v4673
    %v5418 = vpack.c.b16 %v4682, %v4674
    %v5419 = vpack.c.b16 %v4691, %v4683
    %v5420 = vpack.c.b16 %v4692, %v4684
    %v5421 = vpack.c.b16 %v4693, %v4685
    %v5422 = vpack.c.b16 %v4694, %v4686
    %v5423 = vpack.c.b16 %v4695, %v4687
    %v5424 = vpack.c.b16 %v4696, %v4688
    %v5425 = vpack.c.b16 %v4697, %v4689
    %v5426 = vpack.c.b16 %v4698, %v4690
    %v5427 = vpack.c.b16 %v4707, %v4699
    %v5428 = vpack.c.b16 %v4708, %v4700
    %v5429 = vpack.c.b16 %v4709, %v4701
    %v5430 = vpack.c.b16 %v4710, %v4702
    %v5431 = vpack.c.b16 %v4711, %v4703
    %v5432 = vpack.c.b16 %v4712, %v4704
    %v5433 = vpack.c.b16 %v4713, %v4705
    %v5434 = vpack.c.b16 %v4714, %v4706
    %v5435 = vpack.c.b16 %v4723, %v4715
    %v5436 = vpack.c.b16 %v4724, %v4716
    %v5437 = vpack.c.b16 %v4725, %v4717
    %v5438 = vpack.c.b16 %v4726, %v4718
    %v5439 = vpack.c.b16 %v4727, %v4719
    %v5440 = vpack.c.b16 %v4728, %v4720
    %v5441 = vpack.c.b16 %v4729, %v4721
    %v5442 = vpack.c.b16 %v4730, %v4722
    %v5443 = vpack.c.b16 %v4739, %v4731
    %v5444 = vpack.c.b16 %v4740, %v4732
    %v5445 = vpack.c.b16 %v4741, %v4733
    %v5446 = vpack.c.b16 %v4742, %v4734
    %v5447 = vpack.c.b16 %v4743, %v4735
    %v5448 = vpack.c.b16 %v4744, %v4736
    %v5449 = vpack.c.b16 %v4745, %v4737
    %v5450 = vpack.c.b16 %v4746, %v4738
    %v5451 = vpack.c.b16 %v4755, %v4747
    %v5452 = vpack.c.b16 %v4756, %v4748
    %v5453 = vpack.c.b16 %v4757, %v4749
    %v5454 = vpack.c.b16 %v4758, %v4750
    %v5455 = vpack.c.b16 %v4759, %v4751
    %v5456 = vpack.c.b16 %v4760, %v4752
    %v5457 = vpack.c.b16 %v4761, %v4753
    %v5458 = vpack.c.b16 %v4762, %v4754
    %v5459 = vpack.c.b16 %v4771, %v4763
    %v5460 = vpack.c.b16 %v4772, %v4764
    %v5461 = vpack.c.b16 %v4773, %v4765
    %v5462 = vpack.c.b16 %v4774, %v4766
    %v5463 = vpack.c.b16 %v4775, %v4767
    %v5464 = vpack.c.b16 %v4776, %v4768
    %v5465 = vpack.c.b16 %v4777, %v4769
    %v5466 = vpack.c.b16 %v4778, %v4770
    %v5467 = vpack.c.b16 %v4787, %v4779
    %v5468 = vpack.c.b16 %v4788, %v4780
    %v5469 = vpack.c.b16 %v4789, %v4781
    %v5470 = vpack.c.b16 %v4790, %v4782
    %v5471 = vpack.c.b16 %v4791, %v4783
    %v5472 = vpack.c.b16 %v4792, %v4784
    %v5473 = vpack.c.b16 %v4793, %v4785
    %v5474 = vpack.c.b16 %v4794, %v4786
    %v5475 = vpack.c.b16 %v4803, %v4795
    %v5476 = vpack.c.b16 %v4804, %v4796
    %v5477 = vpack.c.b16 %v4805, %v4797
    %v5478 = vpack.c.b16 %v4806, %v4798
    %v5479 = vpack.c.b16 %v4807, %v4799
    %v5480 = vpack.c.b16 %v4808, %v4800
    %v5481 = vpack.c.b16 %v4809, %v4801
    %v5482 = vpack.c.b16 %v4810, %v4802
    %v5483 = vpack.c.b16 %v4819, %v4811
    %v5484 = vpack.c.b16 %v4820, %v4812
    %v5485 = vpack.c.b16 %v4821, %v4813
    %v5486 = vpack.c.b16 %v4822, %v4814
    %v5487 = vpack.c.b16 %v4823, %v4815
    %v5488 = vpack.c.b16 %v4824, %v4816
    %v5489 = vpack.c.b16 %v4825, %v4817
    %v5490 = vpack.c.b16 %v4826, %v4818
    %v5491 = vpack.c.b16 %v4835, %v4827
    %v5492 = vpack.c.b16 %v4836, %v4828
    %v5493 = vpack.c.b16 %v4837, %v4829
    %v5494 = vpack.c.b16 %v4838, %v4830
    %v5495 = vpack.c.b16 %v4839, %v4831
    %v5496 = vpack.c.b16 %v4840, %v4832
    %v5497 = vpack.c.b16 %v4841, %v4833
    %v5498 = vpack.c.b16 %v4842, %v4834
    %v5499 = vpack.c.b16 %v4851, %v4843
    %v5500 = vpack.c.b16 %v4852, %v4844
    %v5501 = vpack.c.b16 %v4853, %v4845
    %v5502 = vpack.c.b16 %v4854, %v4846
    %v5503 = vpack.c.b16 %v4855, %v4847
    %v5504 = vpack.c.b16 %v4856, %v4848
    %v5505 = vpack.c.b16 %v4857, %v4849
    %v5506 = vpack.c.b16 %v4858, %v4850
    %v5507 = vpack.c.b16 %v4867, %v4859
    %v5508 = vpack.c.b16 %v4868, %v4860
    %v5509 = vpack.c.b16 %v4869, %v4861
    %v5510 = vpack.c.b16 %v4870, %v4862
    %v5511 = vpack.c.b16 %v4871, %v4863
    %v5512 = vpack.c.b16 %v4872, %v4864
    %v5513 = vpack.c.b16 %v4873, %v4865
    %v5514 = vpack.c.b16 %v4874, %v4866
    %v5515 = vpack.c.b16 %v4883, %v4875
    %v5516 = vpack.c.b16 %v4884, %v4876
    %v5517 = vpack.c.b16 %v4885, %v4877
    %v5518 = vpack.c.b16 %v4886, %v4878
    %v5519 = vpack.c.b16 %v4887, %v4879
    %v5520 = vpack.c.b16 %v4888, %v4880
    %v5521 = vpack.c.b16 %v4889, %v4881
    %v5522 = vpack.c.b16 %v4890, %v4882
    %v5523 = vpack.c.b16 %v4899, %v4891
    %v5524 = vpack.c.b16 %v4900, %v4892
    %v5525 = vpack.c.b16 %v4901, %v4893
    %v5526 = vpack.c.b16 %v4902, %v4894
    %v5527 = vpack.c.b16 %v4903, %v4895
    %v5528 = vpack.c.b16 %v4904, %v4896
    %v5529 = vpack.c.b16 %v4905, %v4897
    %v5530 = vpack.c.b16 %v4906, %v4898
    %v5531 = vpack.c.b16 %v4915, %v4907
    %v5532 = vpack.c.b16 %v4916, %v4908
    %v5533 = vpack.c.b16 %v4917, %v4909
    %v5534 = vpack.c.b16 %v4918, %v4910
    %v5535 = vpack.c.b16 %v4919, %v4911
    %v5536 = vpack.c.b16 %v4920, %v4912
    %v5537 = vpack.c.b16 %v4921, %v4913
    %v5538 = vpack.c.b16 %v4922, %v4914
    %v5539 = vpack.c.b16 %v4931, %v4923
    %v5540 = vpack.c.b16 %v4932, %v4924
    %v5541 = vpack.c.b16 %v4933, %v4925
    %v5542 = vpack.c.b16 %v4934, %v4926
    %v5543 = vpack.c.b16 %v4935, %v4927
    %v5544 = vpack.c.b16 %v4936, %v4928
    %v5545 = vpack.c.b16 %v4937, %v4929
    %v5546 = vpack.c.b16 %v4938, %v4930
    %v5547 = vpack.c.b16 %v4947, %v4939
    %v5548 = vpack.c.b16 %v4948, %v4940
    %v5549 = vpack.c.b16 %v4949, %v4941
    %v5550 = vpack.c.b16 %v4950, %v4942
    %v5551 = vpack.c.b16 %v4951, %v4943
    %v5552 = vpack.c.b16 %v4952, %v4944
    %v5553 = vpack.c.b16 %v4953, %v4945
    %v5554 = vpack.c.b16 %v4954, %v4946
    %v5555 = vpack.c.b16 %v4963, %v4955
    %v5556 = vpack.c.b16 %v4964, %v4956
    %v5557 = vpack.c.b16 %v4965, %v4957
    %v5558 = vpack.c.b16 %v4966, %v4958
    %v5559 = vpack.c.b16 %v4967, %v4959
    %v5560 = vpack.c.b16 %v4968, %v4960
    %v5561 = vpack.c.b16 %v4969, %v4961
    %v5562 = vpack.c.b16 %v4970, %v4962
    %v5563 = vpack.c.b16 %v4979, %v4971
    %v5564 = vpack.c.b16 %v4980, %v4972
    %v5565 = vpack.c.b16 %v4981, %v4973
    %v5566 = vpack.c.b16 %v4982, %v4974
    %v5567 = vpack.c.b16 %v4983, %v4975
    %v5568 = vpack.c.b16 %v4984, %v4976
    %v5569 = vpack.c.b16 %v4985, %v4977
    %v5570 = vpack.c.b16 %v4986, %v4978
    %v5571 = vpack.c.b16 %v4995, %v4987
    %v5572 = vpack.c.b16 %v4996, %v4988
    %v5573 = vpack.c.b16 %v4997, %v4989
    %v5574 = vpack.c.b16 %v4998, %v4990
    %v5575 = vpack.c.b16 %v4999, %v4991
    %v5576 = vpack.c.b16 %v5000, %v4992
    %v5577 = vpack.c.b16 %v5001, %v4993
    %v5578 = vpack.c.b16 %v5002, %v4994
    %v5579 = vpack.c.b16 %v5011, %v5003
    %v5580 = vpack.c.b16 %v5012, %v5004
    %v5581 = vpack.c.b16 %v5013, %v5005
    %v5582 = vpack.c.b16 %v5014, %v5006
    %v5583 = vpack.c.b16 %v5015, %v5007
    %v5584 = vpack.c.b16 %v5016, %v5008
    %v5585 = vpack.c.b16 %v5017, %v5009
    %v5586 = vpack.c.b16 %v5018, %v5010
    %v5587 = vpack.c.b16 %v5027, %v5019
    %v5588 = vpack.c.b16 %v5028, %v5020
    %v5589 = vpack.c.b16 %v5029, %v5021
    %v5590 = vpack.c.b16 %v5030, %v5022
    %v5591 = vpack.c.b16 %v5031, %v5023
    %v5592 = vpack.c.b16 %v5032, %v5024
    %v5593 = vpack.c.b16 %v5033, %v5025
    %v5594 = vpack.c.b16 %v5034, %v5026
    %v5595 = vpack.c.b16 %v5043, %v5035
    %v5596 = vpack.c.b16 %v5044, %v5036
    %v5597 = vpack.c.b16 %v5045, %v5037
    %v5598 = vpack.c.b16 %v5046, %v5038
    %v5599 = vpack.c.b16 %v5047, %v5039
    %v5600 = vpack.c.b16 %v5048, %v5040
    %v5601 = vpack.c.b16 %v5049, %v5041
    %v5602 = vpack.c.b16 %v5050, %v5042
    %v5603 = vpack.c.b16 %v5059, %v5051
    %v5604 = vpack.c.b16 %v5060, %v5052
    %v5605 = vpack.c.b16 %v5061, %v5053
    %v5606 = vpack.c.b16 %v5062, %v5054
    %v5607 = vpack.c.b16 %v5063, %v5055
    %v5608 = vpack.c.b16 %v5064, %v5056
    %v5609 = vpack.c.b16 %v5065, %v5057
    %v5610 = vpack.c.b16 %v5066, %v5058
    %v5611 = vpack.c.b16 %v5075, %v5067
    %v5612 = vpack.c.b16 %v5076, %v5068
    %v5613 = vpack.c.b16 %v5077, %v5069
    %v5614 = vpack.c.b16 %v5078, %v5070
    %v5615 = vpack.c.b16 %v5079, %v5071
    %v5616 = vpack.c.b16 %v5080, %v5072
    %v5617 = vpack.c.b16 %v5081, %v5073
    %v5618 = vpack.c.b16 %v5082, %v5074
    %v5619 = vpack.c.b16 %v5091, %v5083
    %v5620 = vpack.c.b16 %v5092, %v5084
    %v5621 = vpack.c.b16 %v5093, %v5085
    %v5622 = vpack.c.b16 %v5094, %v5086
    %v5623 = vpack.c.b16 %v5095, %v5087
    %v5624 = vpack.c.b16 %v5096, %v5088
    %v5625 = vpack.c.b16 %v5097, %v5089
    %v5626 = vpack.c.b16 %v5098, %v5090
    %v5627 = vpack.c.b16 %v5107, %v5099
    %v5628 = vpack.c.b16 %v5108, %v5100
    %v5629 = vpack.c.b16 %v5109, %v5101
    %v5630 = vpack.c.b16 %v5110, %v5102
    %v5631 = vpack.c.b16 %v5111, %v5103
    %v5632 = vpack.c.b16 %v5112, %v5104
    %v5633 = vpack.c.b16 %v5113, %v5105
    %v5634 = vpack.c.b16 %v5114, %v5106
    %v5635 = vpack.c.b16 %v5123, %v5115
    %v5636 = vpack.c.b16 %v5124, %v5116
    %v5637 = vpack.c.b16 %v5125, %v5117
    %v5638 = vpack.c.b16 %v5126, %v5118
    %v5639 = vpack.c.b16 %v5127, %v5119
    %v5640 = vpack.c.b16 %v5128, %v5120
    %v5641 = vpack.c.b16 %v5129, %v5121
    %v5642 = vpack.c.b16 %v5130, %v5122
    %6155 = vmatpush.bf16.msra.mxu0 %v5187
    %6156 = vmatpush.bf16.msra.mxu0 %v5179
    %6157 = vmatpush.bf16.msra.mxu0 %v5171
    %6158 = vmatpush.bf16.msra.mxu0 %v5163
    %6159 = vmatpush.bf16.msra.mxu0 %v5155
    %6160 = vmatpush.bf16.msra.mxu0 %v5147
    %6161 = vmatpush.bf16.msra.mxu0 %v5139
    %6162 = vmatpush.bf16.msra.mxu0 %v5131
    %6163 = vmatmul.bf16.gmra.mxu0 %v3075
    %v6164 = vpop.f32.mrf.mxu0
    %v6165 = vadd.f32 0.0, %v6164
    %v6166 = vpop.f32.mrf.mxu0
    %6167 = vdwg.mxu0
    %6168 = vmatpush.bf16.msra.mxu0 %v5251
    %6169 = vmatpush.bf16.msra.mxu0 %v5243
    %6170 = vmatpush.bf16.msra.mxu0 %v5235
    %6171 = vmatpush.bf16.msra.mxu0 %v5227
    %6172 = vmatpush.bf16.msra.mxu0 %v5219
    %6173 = vmatpush.bf16.msra.mxu0 %v5211
    %6174 = vmatpush.bf16.msra.mxu0 %v5203
    %6175 = vmatpush.bf16.msra.mxu0 %v5195
    %6176 = vmatmul.bf16.gmra.mxu0 %v3076
    %v6177 = vpop.f32.mrf.mxu0
    %v6178 = vadd.f32 %v6165, %v6177
    %v6179 = vpop.f32.mrf.mxu0
    %6180 = vdwg.mxu0
    %6181 = vmatpush.bf16.msra.mxu0 %v5315
    %6182 = vmatpush.bf16.msra.mxu0 %v5307
    %6183 = vmatpush.bf16.msra.mxu0 %v5299
    %6184 = vmatpush.bf16.msra.mxu0 %v5291
    %6185 = vmatpush.bf16.msra.mxu0 %v5283
    %6186 = vmatpush.bf16.msra.mxu0 %v5275
    %6187 = vmatpush.bf16.msra.mxu0 %v5267
    %6188 = vmatpush.bf16.msra.mxu0 %v5259
    %6189 = vmatmul.bf16.gmra.mxu0 %v3077
    %v6190 = vpop.f32.mrf.mxu0
    %v6191 = vadd.f32 %v6178, %v6190
    %v6192 = vpop.f32.mrf.mxu0
    %6193 = vdwg.mxu0
    %6194 = vmatpush.bf16.msra.mxu0 %v5379
    %6195 = vmatpush.bf16.msra.mxu0 %v5371
    %6196 = vmatpush.bf16.msra.mxu0 %v5363
    %6197 = vmatpush.bf16.msra.mxu0 %v5355
    %6198 = vmatpush.bf16.msra.mxu0 %v5347
    %6199 = vmatpush.bf16.msra.mxu0 %v5339
    %6200 = vmatpush.bf16.msra.mxu0 %v5331
    %6201 = vmatpush.bf16.msra.mxu0 %v5323
    %6202 = vmatmul.bf16.gmra.mxu0 %v3078
    %v6203 = vpop.f32.mrf.mxu0
    %v6204 = vadd.f32 %v6191, %v6203
    %v6205 = vpop.f32.mrf.mxu0
    %6206 = vdwg.mxu0
    %6207 = vmatpush.bf16.msra.mxu0 %v5443
    %6208 = vmatpush.bf16.msra.mxu0 %v5435
    %6209 = vmatpush.bf16.msra.mxu0 %v5427
    %6210 = vmatpush.bf16.msra.mxu0 %v5419
    %6211 = vmatpush.bf16.msra.mxu0 %v5411
    %6212 = vmatpush.bf16.msra.mxu0 %v5403
    %6213 = vmatpush.bf16.msra.mxu0 %v5395
    %6214 = vmatpush.bf16.msra.mxu0 %v5387
    %6215 = vmatmul.bf16.gmra.mxu0 %v3079
    %v6216 = vpop.f32.mrf.mxu0
    %v6217 = vadd.f32 %v6204, %v6216
    %v6218 = vpop.f32.mrf.mxu0
    %6219 = vdwg.mxu0
    %6220 = vmatpush.bf16.msra.mxu0 %v5507
    %6221 = vmatpush.bf16.msra.mxu0 %v5499
    %6222 = vmatpush.bf16.msra.mxu0 %v5491
    %6223 = vmatpush.bf16.msra.mxu0 %v5483
    %6224 = vmatpush.bf16.msra.mxu0 %v5475
    %6225 = vmatpush.bf16.msra.mxu0 %v5467
    %6226 = vmatpush.bf16.msra.mxu0 %v5459
    %6227 = vmatpush.bf16.msra.mxu0 %v5451
    %6228 = vmatmul.bf16.gmra.mxu0 %v3080
    %v6229 = vpop.f32.mrf.mxu0
    %v6230 = vadd.f32 %v6217, %v6229
    %v6231 = vpop.f32.mrf.mxu0
    %6232 = vdwg.mxu0
    %6233 = vmatpush.bf16.msra.mxu0 %v5571
    %6234 = vmatpush.bf16.msra.mxu0 %v5563
    %6235 = vmatpush.bf16.msra.mxu0 %v5555
    %6236 = vmatpush.bf16.msra.mxu0 %v5547
    %6237 = vmatpush.bf16.msra.mxu0 %v5539
    %6238 = vmatpush.bf16.msra.mxu0 %v5531
    %6239 = vmatpush.bf16.msra.mxu0 %v5523
    %6240 = vmatpush.bf16.msra.mxu0 %v5515
    %6241 = vmatmul.bf16.gmra.mxu0 %v3081
    %v6242 = vpop.f32.mrf.mxu0
    %v6243 = vadd.f32 %v6230, %v6242
    %v6244 = vpop.f32.mrf.mxu0
    %6245 = vdwg.mxu0
    %6246 = vmatpush.bf16.msra.mxu0 %v5635
    %6247 = vmatpush.bf16.msra.mxu0 %v5627
    %6248 = vmatpush.bf16.msra.mxu0 %v5619
    %6249 = vmatpush.bf16.msra.mxu0 %v5611
    %6250 = vmatpush.bf16.msra.mxu0 %v5603
    %6251 = vmatpush.bf16.msra.mxu0 %v5595
    %6252 = vmatpush.bf16.msra.mxu0 %v5587
    %6253 = vmatpush.bf16.msra.mxu0 %v5579
    %6254 = vmatmul.bf16.gmra.mxu0 %v3082
    %v6255 = vpop.f32.mrf.mxu0
    %v6256 = vadd.f32 %v6243, %v6255
    %v6257 = vpop.f32.mrf.mxu0
    %6258 = vdwg.mxu0
    %6259 = vmatpush.bf16.msra.mxu0 %v5188
    %6260 = vmatpush.bf16.msra.mxu0 %v5180
    %6261 = vmatpush.bf16.msra.mxu0 %v5172
    %6262 = vmatpush.bf16.msra.mxu0 %v5164
    %6263 = vmatpush.bf16.msra.mxu0 %v5156
    %6264 = vmatpush.bf16.msra.mxu0 %v5148
    %6265 = vmatpush.bf16.msra.mxu0 %v5140
    %6266 = vmatpush.bf16.msra.mxu0 %v5132
    %6267 = vmatmul.bf16.gmra.mxu0 %v3075
    %v6268 = vpop.f32.mrf.mxu0
    %v6269 = vadd.f32 0.0, %v6268
    %v6270 = vpop.f32.mrf.mxu0
    %6271 = vdwg.mxu0
    %6272 = vmatpush.bf16.msra.mxu0 %v5252
    %6273 = vmatpush.bf16.msra.mxu0 %v5244
    %6274 = vmatpush.bf16.msra.mxu0 %v5236
    %6275 = vmatpush.bf16.msra.mxu0 %v5228
    %6276 = vmatpush.bf16.msra.mxu0 %v5220
    %6277 = vmatpush.bf16.msra.mxu0 %v5212
    %6278 = vmatpush.bf16.msra.mxu0 %v5204
    %6279 = vmatpush.bf16.msra.mxu0 %v5196
    %6280 = vmatmul.bf16.gmra.mxu0 %v3076
    %v6281 = vpop.f32.mrf.mxu0
    %v6282 = vadd.f32 %v6269, %v6281
    %v6283 = vpop.f32.mrf.mxu0
    %6284 = vdwg.mxu0
    %6285 = vmatpush.bf16.msra.mxu0 %v5316
    %6286 = vmatpush.bf16.msra.mxu0 %v5308
    %6287 = vmatpush.bf16.msra.mxu0 %v5300
    %6288 = vmatpush.bf16.msra.mxu0 %v5292
    %6289 = vmatpush.bf16.msra.mxu0 %v5284
    %6290 = vmatpush.bf16.msra.mxu0 %v5276
    %6291 = vmatpush.bf16.msra.mxu0 %v5268
    %6292 = vmatpush.bf16.msra.mxu0 %v5260
    %6293 = vmatmul.bf16.gmra.mxu0 %v3077
    %v6294 = vpop.f32.mrf.mxu0
    %v6295 = vadd.f32 %v6282, %v6294
    %v6296 = vpop.f32.mrf.mxu0
    %6297 = vdwg.mxu0
    %6298 = vmatpush.bf16.msra.mxu0 %v5380
    %6299 = vmatpush.bf16.msra.mxu0 %v5372
    %6300 = vmatpush.bf16.msra.mxu0 %v5364
    %6301 = vmatpush.bf16.msra.mxu0 %v5356
    %6302 = vmatpush.bf16.msra.mxu0 %v5348
    %6303 = vmatpush.bf16.msra.mxu0 %v5340
    %6304 = vmatpush.bf16.msra.mxu0 %v5332
    %6305 = vmatpush.bf16.msra.mxu0 %v5324
    %6306 = vmatmul.bf16.gmra.mxu0 %v3078
    %v6307 = vpop.f32.mrf.mxu0
    %v6308 = vadd.f32 %v6295, %v6307
    %v6309 = vpop.f32.mrf.mxu0
    %6310 = vdwg.mxu0
    %6311 = vmatpush.bf16.msra.mxu0 %v5444
    %6312 = vmatpush.bf16.msra.mxu0 %v5436
    %6313 = vmatpush.bf16.msra.mxu0 %v5428
    %6314 = vmatpush.bf16.msra.mxu0 %v5420
    %6315 = vmatpush.bf16.msra.mxu0 %v5412
    %6316 = vmatpush.bf16.msra.mxu0 %v5404
    %6317 = vmatpush.bf16.msra.mxu0 %v5396
    %6318 = vmatpush.bf16.msra.mxu0 %v5388
    %6319 = vmatmul.bf16.gmra.mxu0 %v3079
    %v6320 = vpop.f32.mrf.mxu0
    %v6321 = vadd.f32 %v6308, %v6320
    %v6322 = vpop.f32.mrf.mxu0
    %6323 = vdwg.mxu0
    %6324 = vmatpush.bf16.msra.mxu0 %v5508
    %6325 = vmatpush.bf16.msra.mxu0 %v5500
    %6326 = vmatpush.bf16.msra.mxu0 %v5492
    %6327 = vmatpush.bf16.msra.mxu0 %v5484
    %6328 = vmatpush.bf16.msra.mxu0 %v5476
    %6329 = vmatpush.bf16.msra.mxu0 %v5468
    %6330 = vmatpush.bf16.msra.mxu0 %v5460
    %6331 = vmatpush.bf16.msra.mxu0 %v5452
    %6332 = vmatmul.bf16.gmra.mxu0 %v3080
    %v6333 = vpop.f32.mrf.mxu0
    %v6334 = vadd.f32 %v6321, %v6333
    %v6335 = vpop.f32.mrf.mxu0
    %6336 = vdwg.mxu0
    %6337 = vmatpush.bf16.msra.mxu0 %v5572
    %6338 = vmatpush.bf16.msra.mxu0 %v5564
    %6339 = vmatpush.bf16.msra.mxu0 %v5556
    %6340 = vmatpush.bf16.msra.mxu0 %v5548
    %6341 = vmatpush.bf16.msra.mxu0 %v5540
    %6342 = vmatpush.bf16.msra.mxu0 %v5532
    %6343 = vmatpush.bf16.msra.mxu0 %v5524
    %6344 = vmatpush.bf16.msra.mxu0 %v5516
    %6345 = vmatmul.bf16.gmra.mxu0 %v3081
    %v6346 = vpop.f32.mrf.mxu0
    %v6347 = vadd.f32 %v6334, %v6346
    %v6348 = vpop.f32.mrf.mxu0
    %6349 = vdwg.mxu0
    %6350 = vmatpush.bf16.msra.mxu0 %v5636
    %6351 = vmatpush.bf16.msra.mxu0 %v5628
    %6352 = vmatpush.bf16.msra.mxu0 %v5620
    %6353 = vmatpush.bf16.msra.mxu0 %v5612
    %6354 = vmatpush.bf16.msra.mxu0 %v5604
    %6355 = vmatpush.bf16.msra.mxu0 %v5596
    %6356 = vmatpush.bf16.msra.mxu0 %v5588
    %6357 = vmatpush.bf16.msra.mxu0 %v5580
    %6358 = vmatmul.bf16.gmra.mxu0 %v3082
    %v6359 = vpop.f32.mrf.mxu0
    %v6360 = vadd.f32 %v6347, %v6359
    %v6361 = vpop.f32.mrf.mxu0
    %6362 = vdwg.mxu0
    %6363 = vmatpush.bf16.msra.mxu0 %v5189
    %6364 = vmatpush.bf16.msra.mxu0 %v5181
    %6365 = vmatpush.bf16.msra.mxu0 %v5173
    %6366 = vmatpush.bf16.msra.mxu0 %v5165
    %6367 = vmatpush.bf16.msra.mxu0 %v5157
    %6368 = vmatpush.bf16.msra.mxu0 %v5149
    %6369 = vmatpush.bf16.msra.mxu0 %v5141
    %6370 = vmatpush.bf16.msra.mxu0 %v5133
    %6371 = vmatmul.bf16.gmra.mxu0 %v3075
    %v6372 = vpop.f32.mrf.mxu0
    %v6373 = vadd.f32 0.0, %v6372
    %v6374 = vpop.f32.mrf.mxu0
    %6375 = vdwg.mxu0
    %6376 = vmatpush.bf16.msra.mxu0 %v5253
    %6377 = vmatpush.bf16.msra.mxu0 %v5245
    %6378 = vmatpush.bf16.msra.mxu0 %v5237
    %6379 = vmatpush.bf16.msra.mxu0 %v5229
    %6380 = vmatpush.bf16.msra.mxu0 %v5221
    %6381 = vmatpush.bf16.msra.mxu0 %v5213
    %6382 = vmatpush.bf16.msra.mxu0 %v5205
    %6383 = vmatpush.bf16.msra.mxu0 %v5197
    %6384 = vmatmul.bf16.gmra.mxu0 %v3076
    %v6385 = vpop.f32.mrf.mxu0
    %v6386 = vadd.f32 %v6373, %v6385
    %v6387 = vpop.f32.mrf.mxu0
    %6388 = vdwg.mxu0
    %6389 = vmatpush.bf16.msra.mxu0 %v5317
    %6390 = vmatpush.bf16.msra.mxu0 %v5309
    %6391 = vmatpush.bf16.msra.mxu0 %v5301
    %6392 = vmatpush.bf16.msra.mxu0 %v5293
    %6393 = vmatpush.bf16.msra.mxu0 %v5285
    %6394 = vmatpush.bf16.msra.mxu0 %v5277
    %6395 = vmatpush.bf16.msra.mxu0 %v5269
    %6396 = vmatpush.bf16.msra.mxu0 %v5261
    %6397 = vmatmul.bf16.gmra.mxu0 %v3077
    %v6398 = vpop.f32.mrf.mxu0
    %v6399 = vadd.f32 %v6386, %v6398
    %v6400 = vpop.f32.mrf.mxu0
    %6401 = vdwg.mxu0
    %6402 = vmatpush.bf16.msra.mxu0 %v5381
    %6403 = vmatpush.bf16.msra.mxu0 %v5373
    %6404 = vmatpush.bf16.msra.mxu0 %v5365
    %6405 = vmatpush.bf16.msra.mxu0 %v5357
    %6406 = vmatpush.bf16.msra.mxu0 %v5349
    %6407 = vmatpush.bf16.msra.mxu0 %v5341
    %6408 = vmatpush.bf16.msra.mxu0 %v5333
    %6409 = vmatpush.bf16.msra.mxu0 %v5325
    %6410 = vmatmul.bf16.gmra.mxu0 %v3078
    %v6411 = vpop.f32.mrf.mxu0
    %v6412 = vadd.f32 %v6399, %v6411
    %v6413 = vpop.f32.mrf.mxu0
    %6414 = vdwg.mxu0
    %6415 = vmatpush.bf16.msra.mxu0 %v5445
    %6416 = vmatpush.bf16.msra.mxu0 %v5437
    %6417 = vmatpush.bf16.msra.mxu0 %v5429
    %6418 = vmatpush.bf16.msra.mxu0 %v5421
    %6419 = vmatpush.bf16.msra.mxu0 %v5413
    %6420 = vmatpush.bf16.msra.mxu0 %v5405
    %6421 = vmatpush.bf16.msra.mxu0 %v5397
    %6422 = vmatpush.bf16.msra.mxu0 %v5389
    %6423 = vmatmul.bf16.gmra.mxu0 %v3079
    %v6424 = vpop.f32.mrf.mxu0
    %v6425 = vadd.f32 %v6412, %v6424
    %v6426 = vpop.f32.mrf.mxu0
    %6427 = vdwg.mxu0
    %6428 = vmatpush.bf16.msra.mxu0 %v5509
    %6429 = vmatpush.bf16.msra.mxu0 %v5501
    %6430 = vmatpush.bf16.msra.mxu0 %v5493
    %6431 = vmatpush.bf16.msra.mxu0 %v5485
    %6432 = vmatpush.bf16.msra.mxu0 %v5477
    %6433 = vmatpush.bf16.msra.mxu0 %v5469
    %6434 = vmatpush.bf16.msra.mxu0 %v5461
    %6435 = vmatpush.bf16.msra.mxu0 %v5453
    %6436 = vmatmul.bf16.gmra.mxu0 %v3080
    %v6437 = vpop.f32.mrf.mxu0
    %v6438 = vadd.f32 %v6425, %v6437
    %v6439 = vpop.f32.mrf.mxu0
    %6440 = vdwg.mxu0
    %6441 = vmatpush.bf16.msra.mxu0 %v5573
    %6442 = vmatpush.bf16.msra.mxu0 %v5565
    %6443 = vmatpush.bf16.msra.mxu0 %v5557
    %6444 = vmatpush.bf16.msra.mxu0 %v5549
    %6445 = vmatpush.bf16.msra.mxu0 %v5541
    %6446 = vmatpush.bf16.msra.mxu0 %v5533
    %6447 = vmatpush.bf16.msra.mxu0 %v5525
    %6448 = vmatpush.bf16.msra.mxu0 %v5517
    %6449 = vmatmul.bf16.gmra.mxu0 %v3081
    %v6450 = vpop.f32.mrf.mxu0
    %v6451 = vadd.f32 %v6438, %v6450
    %v6452 = vpop.f32.mrf.mxu0
    %6453 = vdwg.mxu0
    %6454 = vmatpush.bf16.msra.mxu0 %v5637
    %6455 = vmatpush.bf16.msra.mxu0 %v5629
    %6456 = vmatpush.bf16.msra.mxu0 %v5621
    %6457 = vmatpush.bf16.msra.mxu0 %v5613
    %6458 = vmatpush.bf16.msra.mxu0 %v5605
    %6459 = vmatpush.bf16.msra.mxu0 %v5597
    %6460 = vmatpush.bf16.msra.mxu0 %v5589
    %6461 = vmatpush.bf16.msra.mxu0 %v5581
    %6462 = vmatmul.bf16.gmra.mxu0 %v3082
    %v6463 = vpop.f32.mrf.mxu0
    %v6464 = vadd.f32 %v6451, %v6463
    %v6465 = vpop.f32.mrf.mxu0
    %6466 = vdwg.mxu0
    %6467 = vmatpush.bf16.msra.mxu0 %v5190
    %6468 = vmatpush.bf16.msra.mxu0 %v5182
    %6469 = vmatpush.bf16.msra.mxu0 %v5174
    %6470 = vmatpush.bf16.msra.mxu0 %v5166
    %6471 = vmatpush.bf16.msra.mxu0 %v5158
    %6472 = vmatpush.bf16.msra.mxu0 %v5150
    %6473 = vmatpush.bf16.msra.mxu0 %v5142
    %6474 = vmatpush.bf16.msra.mxu0 %v5134
    %6475 = vmatmul.bf16.gmra.mxu0 %v3075
    %v6476 = vpop.f32.mrf.mxu0
    %v6477 = vadd.f32 0.0, %v6476
    %v6478 = vpop.f32.mrf.mxu0
    %6479 = vdwg.mxu0
    %6480 = vmatpush.bf16.msra.mxu0 %v5254
    %6481 = vmatpush.bf16.msra.mxu0 %v5246
    %6482 = vmatpush.bf16.msra.mxu0 %v5238
    %6483 = vmatpush.bf16.msra.mxu0 %v5230
    %6484 = vmatpush.bf16.msra.mxu0 %v5222
    %6485 = vmatpush.bf16.msra.mxu0 %v5214
    %6486 = vmatpush.bf16.msra.mxu0 %v5206
    %6487 = vmatpush.bf16.msra.mxu0 %v5198
    %6488 = vmatmul.bf16.gmra.mxu0 %v3076
    %v6489 = vpop.f32.mrf.mxu0
    %v6490 = vadd.f32 %v6477, %v6489
    %v6491 = vpop.f32.mrf.mxu0
    %6492 = vdwg.mxu0
    %6493 = vmatpush.bf16.msra.mxu0 %v5318
    %6494 = vmatpush.bf16.msra.mxu0 %v5310
    %6495 = vmatpush.bf16.msra.mxu0 %v5302
    %6496 = vmatpush.bf16.msra.mxu0 %v5294
    %6497 = vmatpush.bf16.msra.mxu0 %v5286
    %6498 = vmatpush.bf16.msra.mxu0 %v5278
    %6499 = vmatpush.bf16.msra.mxu0 %v5270
    %6500 = vmatpush.bf16.msra.mxu0 %v5262
    %6501 = vmatmul.bf16.gmra.mxu0 %v3077
    %v6502 = vpop.f32.mrf.mxu0
    %v6503 = vadd.f32 %v6490, %v6502
    %v6504 = vpop.f32.mrf.mxu0
    %6505 = vdwg.mxu0
    %6506 = vmatpush.bf16.msra.mxu0 %v5382
    %6507 = vmatpush.bf16.msra.mxu0 %v5374
    %6508 = vmatpush.bf16.msra.mxu0 %v5366
    %6509 = vmatpush.bf16.msra.mxu0 %v5358
    %6510 = vmatpush.bf16.msra.mxu0 %v5350
    %6511 = vmatpush.bf16.msra.mxu0 %v5342
    %6512 = vmatpush.bf16.msra.mxu0 %v5334
    %6513 = vmatpush.bf16.msra.mxu0 %v5326
    %6514 = vmatmul.bf16.gmra.mxu0 %v3078
    %v6515 = vpop.f32.mrf.mxu0
    %v6516 = vadd.f32 %v6503, %v6515
    %v6517 = vpop.f32.mrf.mxu0
    %6518 = vdwg.mxu0
    %6519 = vmatpush.bf16.msra.mxu0 %v5446
    %6520 = vmatpush.bf16.msra.mxu0 %v5438
    %6521 = vmatpush.bf16.msra.mxu0 %v5430
    %6522 = vmatpush.bf16.msra.mxu0 %v5422
    %6523 = vmatpush.bf16.msra.mxu0 %v5414
    %6524 = vmatpush.bf16.msra.mxu0 %v5406
    %6525 = vmatpush.bf16.msra.mxu0 %v5398
    %6526 = vmatpush.bf16.msra.mxu0 %v5390
    %6527 = vmatmul.bf16.gmra.mxu0 %v3079
    %v6528 = vpop.f32.mrf.mxu0
    %v6529 = vadd.f32 %v6516, %v6528
    %v6530 = vpop.f32.mrf.mxu0
    %6531 = vdwg.mxu0
    %6532 = vmatpush.bf16.msra.mxu0 %v5510
    %6533 = vmatpush.bf16.msra.mxu0 %v5502
    %6534 = vmatpush.bf16.msra.mxu0 %v5494
    %6535 = vmatpush.bf16.msra.mxu0 %v5486
    %6536 = vmatpush.bf16.msra.mxu0 %v5478
    %6537 = vmatpush.bf16.msra.mxu0 %v5470
    %6538 = vmatpush.bf16.msra.mxu0 %v5462
    %6539 = vmatpush.bf16.msra.mxu0 %v5454
    %6540 = vmatmul.bf16.gmra.mxu0 %v3080
    %v6541 = vpop.f32.mrf.mxu0
    %v6542 = vadd.f32 %v6529, %v6541
    %v6543 = vpop.f32.mrf.mxu0
    %6544 = vdwg.mxu0
    %6545 = vmatpush.bf16.msra.mxu0 %v5574
    %6546 = vmatpush.bf16.msra.mxu0 %v5566
    %6547 = vmatpush.bf16.msra.mxu0 %v5558
    %6548 = vmatpush.bf16.msra.mxu0 %v5550
    %6549 = vmatpush.bf16.msra.mxu0 %v5542
    %6550 = vmatpush.bf16.msra.mxu0 %v5534
    %6551 = vmatpush.bf16.msra.mxu0 %v5526
    %6552 = vmatpush.bf16.msra.mxu0 %v5518
    %6553 = vmatmul.bf16.gmra.mxu0 %v3081
    %v6554 = vpop.f32.mrf.mxu0
    %v6555 = vadd.f32 %v6542, %v6554
    %v6556 = vpop.f32.mrf.mxu0
    %6557 = vdwg.mxu0
    %6558 = vmatpush.bf16.msra.mxu0 %v5638
    %6559 = vmatpush.bf16.msra.mxu0 %v5630
    %6560 = vmatpush.bf16.msra.mxu0 %v5622
    %6561 = vmatpush.bf16.msra.mxu0 %v5614
    %6562 = vmatpush.bf16.msra.mxu0 %v5606
    %6563 = vmatpush.bf16.msra.mxu0 %v5598
    %6564 = vmatpush.bf16.msra.mxu0 %v5590
    %6565 = vmatpush.bf16.msra.mxu0 %v5582
    %6566 = vmatmul.bf16.gmra.mxu0 %v3082
    %v6567 = vpop.f32.mrf.mxu0
    %v6568 = vadd.f32 %v6555, %v6567
    %v6569 = vpop.f32.mrf.mxu0
    %6570 = vdwg.mxu0
    %6571 = vmatpush.bf16.msra.mxu0 %v5191
    %6572 = vmatpush.bf16.msra.mxu0 %v5183
    %6573 = vmatpush.bf16.msra.mxu0 %v5175
    %6574 = vmatpush.bf16.msra.mxu0 %v5167
    %6575 = vmatpush.bf16.msra.mxu0 %v5159
    %6576 = vmatpush.bf16.msra.mxu0 %v5151
    %6577 = vmatpush.bf16.msra.mxu0 %v5143
    %6578 = vmatpush.bf16.msra.mxu0 %v5135
    %6579 = vmatmul.bf16.gmra.mxu0 %v3075
    %v6580 = vpop.f32.mrf.mxu0
    %v6581 = vadd.f32 0.0, %v6580
    %v6582 = vpop.f32.mrf.mxu0
    %6583 = vdwg.mxu0
    %6584 = vmatpush.bf16.msra.mxu0 %v5255
    %6585 = vmatpush.bf16.msra.mxu0 %v5247
    %6586 = vmatpush.bf16.msra.mxu0 %v5239
    %6587 = vmatpush.bf16.msra.mxu0 %v5231
    %6588 = vmatpush.bf16.msra.mxu0 %v5223
    %6589 = vmatpush.bf16.msra.mxu0 %v5215
    %6590 = vmatpush.bf16.msra.mxu0 %v5207
    %6591 = vmatpush.bf16.msra.mxu0 %v5199
    %6592 = vmatmul.bf16.gmra.mxu0 %v3076
    %v6593 = vpop.f32.mrf.mxu0
    %v6594 = vadd.f32 %v6581, %v6593
    %v6595 = vpop.f32.mrf.mxu0
    %6596 = vdwg.mxu0
    %6597 = vmatpush.bf16.msra.mxu0 %v5319
    %6598 = vmatpush.bf16.msra.mxu0 %v5311
    %6599 = vmatpush.bf16.msra.mxu0 %v5303
    %6600 = vmatpush.bf16.msra.mxu0 %v5295
    %6601 = vmatpush.bf16.msra.mxu0 %v5287
    %6602 = vmatpush.bf16.msra.mxu0 %v5279
    %6603 = vmatpush.bf16.msra.mxu0 %v5271
    %6604 = vmatpush.bf16.msra.mxu0 %v5263
    %6605 = vmatmul.bf16.gmra.mxu0 %v3077
    %v6606 = vpop.f32.mrf.mxu0
    %v6607 = vadd.f32 %v6594, %v6606
    %v6608 = vpop.f32.mrf.mxu0
    %6609 = vdwg.mxu0
    %6610 = vmatpush.bf16.msra.mxu0 %v5383
    %6611 = vmatpush.bf16.msra.mxu0 %v5375
    %6612 = vmatpush.bf16.msra.mxu0 %v5367
    %6613 = vmatpush.bf16.msra.mxu0 %v5359
    %6614 = vmatpush.bf16.msra.mxu0 %v5351
    %6615 = vmatpush.bf16.msra.mxu0 %v5343
    %6616 = vmatpush.bf16.msra.mxu0 %v5335
    %6617 = vmatpush.bf16.msra.mxu0 %v5327
    %6618 = vmatmul.bf16.gmra.mxu0 %v3078
    %v6619 = vpop.f32.mrf.mxu0
    %v6620 = vadd.f32 %v6607, %v6619
    %v6621 = vpop.f32.mrf.mxu0
    %6622 = vdwg.mxu0
    %6623 = vmatpush.bf16.msra.mxu0 %v5447
    %6624 = vmatpush.bf16.msra.mxu0 %v5439
    %6625 = vmatpush.bf16.msra.mxu0 %v5431
    %6626 = vmatpush.bf16.msra.mxu0 %v5423
    %6627 = vmatpush.bf16.msra.mxu0 %v5415
    %6628 = vmatpush.bf16.msra.mxu0 %v5407
    %6629 = vmatpush.bf16.msra.mxu0 %v5399
    %6630 = vmatpush.bf16.msra.mxu0 %v5391
    %6631 = vmatmul.bf16.gmra.mxu0 %v3079
    %v6632 = vpop.f32.mrf.mxu0
    %v6633 = vadd.f32 %v6620, %v6632
    %v6634 = vpop.f32.mrf.mxu0
    %6635 = vdwg.mxu0
    %6636 = vmatpush.bf16.msra.mxu0 %v5511
    %6637 = vmatpush.bf16.msra.mxu0 %v5503
    %6638 = vmatpush.bf16.msra.mxu0 %v5495
    %6639 = vmatpush.bf16.msra.mxu0 %v5487
    %6640 = vmatpush.bf16.msra.mxu0 %v5479
    %6641 = vmatpush.bf16.msra.mxu0 %v5471
    %6642 = vmatpush.bf16.msra.mxu0 %v5463
    %6643 = vmatpush.bf16.msra.mxu0 %v5455
    %6644 = vmatmul.bf16.gmra.mxu0 %v3080
    %v6645 = vpop.f32.mrf.mxu0
    %v6646 = vadd.f32 %v6633, %v6645
    %v6647 = vpop.f32.mrf.mxu0
    %6648 = vdwg.mxu0
    %6649 = vmatpush.bf16.msra.mxu0 %v5575
    %6650 = vmatpush.bf16.msra.mxu0 %v5567
    %6651 = vmatpush.bf16.msra.mxu0 %v5559
    %6652 = vmatpush.bf16.msra.mxu0 %v5551
    %6653 = vmatpush.bf16.msra.mxu0 %v5543
    %6654 = vmatpush.bf16.msra.mxu0 %v5535
    %6655 = vmatpush.bf16.msra.mxu0 %v5527
    %6656 = vmatpush.bf16.msra.mxu0 %v5519
    %6657 = vmatmul.bf16.gmra.mxu0 %v3081
    %v6658 = vpop.f32.mrf.mxu0
    %v6659 = vadd.f32 %v6646, %v6658
    %v6660 = vpop.f32.mrf.mxu0
    %6661 = vdwg.mxu0
    %6662 = vmatpush.bf16.msra.mxu0 %v5639
    %6663 = vmatpush.bf16.msra.mxu0 %v5631
    %6664 = vmatpush.bf16.msra.mxu0 %v5623
    %6665 = vmatpush.bf16.msra.mxu0 %v5615
    %6666 = vmatpush.bf16.msra.mxu0 %v5607
    %6667 = vmatpush.bf16.msra.mxu0 %v5599
    %6668 = vmatpush.bf16.msra.mxu0 %v5591
    %6669 = vmatpush.bf16.msra.mxu0 %v5583
    %6670 = vmatmul.bf16.gmra.mxu0 %v3082
    %v6671 = vpop.f32.mrf.mxu0
    %v6672 = vadd.f32 %v6659, %v6671
    %v6673 = vpop.f32.mrf.mxu0
    %6674 = vdwg.mxu0
    %6675 = vmatpush.bf16.msra.mxu0 %v5192
    %6676 = vmatpush.bf16.msra.mxu0 %v5184
    %6677 = vmatpush.bf16.msra.mxu0 %v5176
    %6678 = vmatpush.bf16.msra.mxu0 %v5168
    %6679 = vmatpush.bf16.msra.mxu0 %v5160
    %6680 = vmatpush.bf16.msra.mxu0 %v5152
    %6681 = vmatpush.bf16.msra.mxu0 %v5144
    %6682 = vmatpush.bf16.msra.mxu0 %v5136
    %6683 = vmatmul.bf16.gmra.mxu0 %v3075
    %v6684 = vpop.f32.mrf.mxu0
    %v6685 = vadd.f32 0.0, %v6684
    %v6686 = vpop.f32.mrf.mxu0
    %6687 = vdwg.mxu0
    %6688 = vmatpush.bf16.msra.mxu0 %v5256
    %6689 = vmatpush.bf16.msra.mxu0 %v5248
    %6690 = vmatpush.bf16.msra.mxu0 %v5240
    %6691 = vmatpush.bf16.msra.mxu0 %v5232
    %6692 = vmatpush.bf16.msra.mxu0 %v5224
    %6693 = vmatpush.bf16.msra.mxu0 %v5216
    %6694 = vmatpush.bf16.msra.mxu0 %v5208
    %6695 = vmatpush.bf16.msra.mxu0 %v5200
    %6696 = vmatmul.bf16.gmra.mxu0 %v3076
    %v6697 = vpop.f32.mrf.mxu0
    %v6698 = vadd.f32 %v6685, %v6697
    %v6699 = vpop.f32.mrf.mxu0
    %6700 = vdwg.mxu0
    %6701 = vmatpush.bf16.msra.mxu0 %v5320
    %6702 = vmatpush.bf16.msra.mxu0 %v5312
    %6703 = vmatpush.bf16.msra.mxu0 %v5304
    %6704 = vmatpush.bf16.msra.mxu0 %v5296
    %6705 = vmatpush.bf16.msra.mxu0 %v5288
    %6706 = vmatpush.bf16.msra.mxu0 %v5280
    %6707 = vmatpush.bf16.msra.mxu0 %v5272
    %6708 = vmatpush.bf16.msra.mxu0 %v5264
    %6709 = vmatmul.bf16.gmra.mxu0 %v3077
    %v6710 = vpop.f32.mrf.mxu0
    %v6711 = vadd.f32 %v6698, %v6710
    %v6712 = vpop.f32.mrf.mxu0
    %6713 = vdwg.mxu0
    %6714 = vmatpush.bf16.msra.mxu0 %v5384
    %6715 = vmatpush.bf16.msra.mxu0 %v5376
    %6716 = vmatpush.bf16.msra.mxu0 %v5368
    %6717 = vmatpush.bf16.msra.mxu0 %v5360
    %6718 = vmatpush.bf16.msra.mxu0 %v5352
    %6719 = vmatpush.bf16.msra.mxu0 %v5344
    %6720 = vmatpush.bf16.msra.mxu0 %v5336
    %6721 = vmatpush.bf16.msra.mxu0 %v5328
    %6722 = vmatmul.bf16.gmra.mxu0 %v3078
    %v6723 = vpop.f32.mrf.mxu0
    %v6724 = vadd.f32 %v6711, %v6723
    %v6725 = vpop.f32.mrf.mxu0
    %6726 = vdwg.mxu0
    %6727 = vmatpush.bf16.msra.mxu0 %v5448
    %6728 = vmatpush.bf16.msra.mxu0 %v5440
    %6729 = vmatpush.bf16.msra.mxu0 %v5432
    %6730 = vmatpush.bf16.msra.mxu0 %v5424
    %6731 = vmatpush.bf16.msra.mxu0 %v5416
    %6732 = vmatpush.bf16.msra.mxu0 %v5408
    %6733 = vmatpush.bf16.msra.mxu0 %v5400
    %6734 = vmatpush.bf16.msra.mxu0 %v5392
    %6735 = vmatmul.bf16.gmra.mxu0 %v3079
    %v6736 = vpop.f32.mrf.mxu0
    %v6737 = vadd.f32 %v6724, %v6736
    %v6738 = vpop.f32.mrf.mxu0
    %6739 = vdwg.mxu0
    %6740 = vmatpush.bf16.msra.mxu0 %v5512
    %6741 = vmatpush.bf16.msra.mxu0 %v5504
    %6742 = vmatpush.bf16.msra.mxu0 %v5496
    %6743 = vmatpush.bf16.msra.mxu0 %v5488
    %6744 = vmatpush.bf16.msra.mxu0 %v5480
    %6745 = vmatpush.bf16.msra.mxu0 %v5472
    %6746 = vmatpush.bf16.msra.mxu0 %v5464
    %6747 = vmatpush.bf16.msra.mxu0 %v5456
    %6748 = vmatmul.bf16.gmra.mxu0 %v3080
    %v6749 = vpop.f32.mrf.mxu0
    %v6750 = vadd.f32 %v6737, %v6749
    %v6751 = vpop.f32.mrf.mxu0
    %6752 = vdwg.mxu0
    %6753 = vmatpush.bf16.msra.mxu0 %v5576
    %6754 = vmatpush.bf16.msra.mxu0 %v5568
    %6755 = vmatpush.bf16.msra.mxu0 %v5560
    %6756 = vmatpush.bf16.msra.mxu0 %v5552
    %6757 = vmatpush.bf16.msra.mxu0 %v5544
    %6758 = vmatpush.bf16.msra.mxu0 %v5536
    %6759 = vmatpush.bf16.msra.mxu0 %v5528
    %6760 = vmatpush.bf16.msra.mxu0 %v5520
    %6761 = vmatmul.bf16.gmra.mxu0 %v3081
    %v6762 = vpop.f32.mrf.mxu0
    %v6763 = vadd.f32 %v6750, %v6762
    %v6764 = vpop.f32.mrf.mxu0
    %6765 = vdwg.mxu0
    %6766 = vmatpush.bf16.msra.mxu0 %v5640
    %6767 = vmatpush.bf16.msra.mxu0 %v5632
    %6768 = vmatpush.bf16.msra.mxu0 %v5624
    %6769 = vmatpush.bf16.msra.mxu0 %v5616
    %6770 = vmatpush.bf16.msra.mxu0 %v5608
    %6771 = vmatpush.bf16.msra.mxu0 %v5600
    %6772 = vmatpush.bf16.msra.mxu0 %v5592
    %6773 = vmatpush.bf16.msra.mxu0 %v5584
    %6774 = vmatmul.bf16.gmra.mxu0 %v3082
    %v6775 = vpop.f32.mrf.mxu0
    %v6776 = vadd.f32 %v6763, %v6775
    %v6777 = vpop.f32.mrf.mxu0
    %6778 = vdwg.mxu0
    %6779 = vmatpush.bf16.msra.mxu0 %v5193
    %6780 = vmatpush.bf16.msra.mxu0 %v5185
    %6781 = vmatpush.bf16.msra.mxu0 %v5177
    %6782 = vmatpush.bf16.msra.mxu0 %v5169
    %6783 = vmatpush.bf16.msra.mxu0 %v5161
    %6784 = vmatpush.bf16.msra.mxu0 %v5153
    %6785 = vmatpush.bf16.msra.mxu0 %v5145
    %6786 = vmatpush.bf16.msra.mxu0 %v5137
    %6787 = vmatmul.bf16.gmra.mxu0 %v3075
    %v6788 = vpop.f32.mrf.mxu0
    %v6789 = vadd.f32 0.0, %v6788
    %v6790 = vpop.f32.mrf.mxu0
    %6791 = vdwg.mxu0
    %6792 = vmatpush.bf16.msra.mxu0 %v5257
    %6793 = vmatpush.bf16.msra.mxu0 %v5249
    %6794 = vmatpush.bf16.msra.mxu0 %v5241
    %6795 = vmatpush.bf16.msra.mxu0 %v5233
    %6796 = vmatpush.bf16.msra.mxu0 %v5225
    %6797 = vmatpush.bf16.msra.mxu0 %v5217
    %6798 = vmatpush.bf16.msra.mxu0 %v5209
    %6799 = vmatpush.bf16.msra.mxu0 %v5201
    %6800 = vmatmul.bf16.gmra.mxu0 %v3076
    %v6801 = vpop.f32.mrf.mxu0
    %v6802 = vadd.f32 %v6789, %v6801
    %v6803 = vpop.f32.mrf.mxu0
    %6804 = vdwg.mxu0
    %6805 = vmatpush.bf16.msra.mxu0 %v5321
    %6806 = vmatpush.bf16.msra.mxu0 %v5313
    %6807 = vmatpush.bf16.msra.mxu0 %v5305
    %6808 = vmatpush.bf16.msra.mxu0 %v5297
    %6809 = vmatpush.bf16.msra.mxu0 %v5289
    %6810 = vmatpush.bf16.msra.mxu0 %v5281
    %6811 = vmatpush.bf16.msra.mxu0 %v5273
    %6812 = vmatpush.bf16.msra.mxu0 %v5265
    %6813 = vmatmul.bf16.gmra.mxu0 %v3077
    %v6814 = vpop.f32.mrf.mxu0
    %v6815 = vadd.f32 %v6802, %v6814
    %v6816 = vpop.f32.mrf.mxu0
    %6817 = vdwg.mxu0
    %6818 = vmatpush.bf16.msra.mxu0 %v5385
    %6819 = vmatpush.bf16.msra.mxu0 %v5377
    %6820 = vmatpush.bf16.msra.mxu0 %v5369
    %6821 = vmatpush.bf16.msra.mxu0 %v5361
    %6822 = vmatpush.bf16.msra.mxu0 %v5353
    %6823 = vmatpush.bf16.msra.mxu0 %v5345
    %6824 = vmatpush.bf16.msra.mxu0 %v5337
    %6825 = vmatpush.bf16.msra.mxu0 %v5329
    %6826 = vmatmul.bf16.gmra.mxu0 %v3078
    %v6827 = vpop.f32.mrf.mxu0
    %v6828 = vadd.f32 %v6815, %v6827
    %v6829 = vpop.f32.mrf.mxu0
    %6830 = vdwg.mxu0
    %6831 = vmatpush.bf16.msra.mxu0 %v5449
    %6832 = vmatpush.bf16.msra.mxu0 %v5441
    %6833 = vmatpush.bf16.msra.mxu0 %v5433
    %6834 = vmatpush.bf16.msra.mxu0 %v5425
    %6835 = vmatpush.bf16.msra.mxu0 %v5417
    %6836 = vmatpush.bf16.msra.mxu0 %v5409
    %6837 = vmatpush.bf16.msra.mxu0 %v5401
    %6838 = vmatpush.bf16.msra.mxu0 %v5393
    %6839 = vmatmul.bf16.gmra.mxu0 %v3079
    %v6840 = vpop.f32.mrf.mxu0
    %v6841 = vadd.f32 %v6828, %v6840
    %v6842 = vpop.f32.mrf.mxu0
    %6843 = vdwg.mxu0
    %6844 = vmatpush.bf16.msra.mxu0 %v5513
    %6845 = vmatpush.bf16.msra.mxu0 %v5505
    %6846 = vmatpush.bf16.msra.mxu0 %v5497
    %6847 = vmatpush.bf16.msra.mxu0 %v5489
    %6848 = vmatpush.bf16.msra.mxu0 %v5481
    %6849 = vmatpush.bf16.msra.mxu0 %v5473
    %6850 = vmatpush.bf16.msra.mxu0 %v5465
    %6851 = vmatpush.bf16.msra.mxu0 %v5457
    %6852 = vmatmul.bf16.gmra.mxu0 %v3080
    %v6853 = vpop.f32.mrf.mxu0
    %v6854 = vadd.f32 %v6841, %v6853
    %v6855 = vpop.f32.mrf.mxu0
    %6856 = vdwg.mxu0
    %6857 = vmatpush.bf16.msra.mxu0 %v5577
    %6858 = vmatpush.bf16.msra.mxu0 %v5569
    %6859 = vmatpush.bf16.msra.mxu0 %v5561
    %6860 = vmatpush.bf16.msra.mxu0 %v5553
    %6861 = vmatpush.bf16.msra.mxu0 %v5545
    %6862 = vmatpush.bf16.msra.mxu0 %v5537
    %6863 = vmatpush.bf16.msra.mxu0 %v5529
    %6864 = vmatpush.bf16.msra.mxu0 %v5521
    %6865 = vmatmul.bf16.gmra.mxu0 %v3081
    %v6866 = vpop.f32.mrf.mxu0
    %v6867 = vadd.f32 %v6854, %v6866
    %v6868 = vpop.f32.mrf.mxu0
    %6869 = vdwg.mxu0
    %6870 = vmatpush.bf16.msra.mxu0 %v5641
    %6871 = vmatpush.bf16.msra.mxu0 %v5633
    %6872 = vmatpush.bf16.msra.mxu0 %v5625
    %6873 = vmatpush.bf16.msra.mxu0 %v5617
    %6874 = vmatpush.bf16.msra.mxu0 %v5609
    %6875 = vmatpush.bf16.msra.mxu0 %v5601
    %6876 = vmatpush.bf16.msra.mxu0 %v5593
    %6877 = vmatpush.bf16.msra.mxu0 %v5585
    %6878 = vmatmul.bf16.gmra.mxu0 %v3082
    %v6879 = vpop.f32.mrf.mxu0
    %v6880 = vadd.f32 %v6867, %v6879
    %v6881 = vpop.f32.mrf.mxu0
    %6882 = vdwg.mxu0
    %6883 = vmatpush.bf16.msra.mxu0 %v5194
    %6884 = vmatpush.bf16.msra.mxu0 %v5186
    %6885 = vmatpush.bf16.msra.mxu0 %v5178
    %6886 = vmatpush.bf16.msra.mxu0 %v5170
    %6887 = vmatpush.bf16.msra.mxu0 %v5162
    %6888 = vmatpush.bf16.msra.mxu0 %v5154
    %6889 = vmatpush.bf16.msra.mxu0 %v5146
    %6890 = vmatpush.bf16.msra.mxu0 %v5138
    %6891 = vmatmul.bf16.gmra.mxu0 %v3075
    %v6892 = vpop.f32.mrf.mxu0
    %v6893 = vadd.f32 0.0, %v6892
    %v6894 = vpop.f32.mrf.mxu0
    %6895 = vdwg.mxu0
    %6896 = vmatpush.bf16.msra.mxu0 %v5258
    %6897 = vmatpush.bf16.msra.mxu0 %v5250
    %6898 = vmatpush.bf16.msra.mxu0 %v5242
    %6899 = vmatpush.bf16.msra.mxu0 %v5234
    %6900 = vmatpush.bf16.msra.mxu0 %v5226
    %6901 = vmatpush.bf16.msra.mxu0 %v5218
    %6902 = vmatpush.bf16.msra.mxu0 %v5210
    %6903 = vmatpush.bf16.msra.mxu0 %v5202
    %6904 = vmatmul.bf16.gmra.mxu0 %v3076
    %v6905 = vpop.f32.mrf.mxu0
    %v6906 = vadd.f32 %v6893, %v6905
    %v6907 = vpop.f32.mrf.mxu0
    %6908 = vdwg.mxu0
    %6909 = vmatpush.bf16.msra.mxu0 %v5322
    %6910 = vmatpush.bf16.msra.mxu0 %v5314
    %6911 = vmatpush.bf16.msra.mxu0 %v5306
    %6912 = vmatpush.bf16.msra.mxu0 %v5298
    %6913 = vmatpush.bf16.msra.mxu0 %v5290
    %6914 = vmatpush.bf16.msra.mxu0 %v5282
    %6915 = vmatpush.bf16.msra.mxu0 %v5274
    %6916 = vmatpush.bf16.msra.mxu0 %v5266
    %6917 = vmatmul.bf16.gmra.mxu0 %v3077
    %v6918 = vpop.f32.mrf.mxu0
    %v6919 = vadd.f32 %v6906, %v6918
    %v6920 = vpop.f32.mrf.mxu0
    %6921 = vdwg.mxu0
    %6922 = vmatpush.bf16.msra.mxu0 %v5386
    %6923 = vmatpush.bf16.msra.mxu0 %v5378
    %6924 = vmatpush.bf16.msra.mxu0 %v5370
    %6925 = vmatpush.bf16.msra.mxu0 %v5362
    %6926 = vmatpush.bf16.msra.mxu0 %v5354
    %6927 = vmatpush.bf16.msra.mxu0 %v5346
    %6928 = vmatpush.bf16.msra.mxu0 %v5338
    %6929 = vmatpush.bf16.msra.mxu0 %v5330
    %6930 = vmatmul.bf16.gmra.mxu0 %v3078
    %v6931 = vpop.f32.mrf.mxu0
    %v6932 = vadd.f32 %v6919, %v6931
    %v6933 = vpop.f32.mrf.mxu0
    %6934 = vdwg.mxu0
    %6935 = vmatpush.bf16.msra.mxu0 %v5450
    %6936 = vmatpush.bf16.msra.mxu0 %v5442
    %6937 = vmatpush.bf16.msra.mxu0 %v5434
    %6938 = vmatpush.bf16.msra.mxu0 %v5426
    %6939 = vmatpush.bf16.msra.mxu0 %v5418
    %6940 = vmatpush.bf16.msra.mxu0 %v5410
    %6941 = vmatpush.bf16.msra.mxu0 %v5402
    %6942 = vmatpush.bf16.msra.mxu0 %v5394
    %6943 = vmatmul.bf16.gmra.mxu0 %v3079
    %v6944 = vpop.f32.mrf.mxu0
    %v6945 = vadd.f32 %v6932, %v6944
    %v6946 = vpop.f32.mrf.mxu0
    %6947 = vdwg.mxu0
    %6948 = vmatpush.bf16.msra.mxu0 %v5514
    %6949 = vmatpush.bf16.msra.mxu0 %v5506
    %6950 = vmatpush.bf16.msra.mxu0 %v5498
    %6951 = vmatpush.bf16.msra.mxu0 %v5490
    %6952 = vmatpush.bf16.msra.mxu0 %v5482
    %6953 = vmatpush.bf16.msra.mxu0 %v5474
    %6954 = vmatpush.bf16.msra.mxu0 %v5466
    %6955 = vmatpush.bf16.msra.mxu0 %v5458
    %6956 = vmatmul.bf16.gmra.mxu0 %v3080
    %v6957 = vpop.f32.mrf.mxu0
    %v6958 = vadd.f32 %v6945, %v6957
    %v6959 = vpop.f32.mrf.mxu0
    %6960 = vdwg.mxu0
    %6961 = vmatpush.bf16.msra.mxu0 %v5578
    %6962 = vmatpush.bf16.msra.mxu0 %v5570
    %6963 = vmatpush.bf16.msra.mxu0 %v5562
    %6964 = vmatpush.bf16.msra.mxu0 %v5554
    %6965 = vmatpush.bf16.msra.mxu0 %v5546
    %6966 = vmatpush.bf16.msra.mxu0 %v5538
    %6967 = vmatpush.bf16.msra.mxu0 %v5530
    %6968 = vmatpush.bf16.msra.mxu0 %v5522
    %6969 = vmatmul.bf16.gmra.mxu0 %v3081
    %v6970 = vpop.f32.mrf.mxu0
    %v6971 = vadd.f32 %v6958, %v6970
    %v6972 = vpop.f32.mrf.mxu0
    %6973 = vdwg.mxu0
    %6974 = vmatpush.bf16.msra.mxu0 %v5642
    %6975 = vmatpush.bf16.msra.mxu0 %v5634
    %6976 = vmatpush.bf16.msra.mxu0 %v5626
    %6977 = vmatpush.bf16.msra.mxu0 %v5618
    %6978 = vmatpush.bf16.msra.mxu0 %v5610
    %6979 = vmatpush.bf16.msra.mxu0 %v5602
    %6980 = vmatpush.bf16.msra.mxu0 %v5594
    %6981 = vmatpush.bf16.msra.mxu0 %v5586
    %6982 = vmatmul.bf16.gmra.mxu0 %v3082
    %v6983 = vpop.f32.mrf.mxu0
    %v6984 = vadd.f32 %v6971, %v6983
    %v6985 = vpop.f32.mrf.mxu0
    %6986 = vdwg.mxu0
    %v6987 = vxor.u32 %v6256, 2147483648
    %v6988 = vxor.u32 %v6360, 2147483648
    %v6989 = vxor.u32 %v6464, 2147483648
    %v6990 = vxor.u32 %v6568, 2147483648
    %v6991 = vxor.u32 %v6672, 2147483648
    %v6992 = vxor.u32 %v6776, 2147483648
    %v6993 = vxor.u32 %v6880, 2147483648
    %v6994 = vxor.u32 %v6984, 2147483648
    %v6995 = vmul.f32 %v6987, 1.442695
    %v6996 = vpow.pop %v6995
    %v6997 = vmul.f32 %v6988, 1.442695
    %v6998 = vpow.pop %v6997
    %v6999 = vmul.f32 %v6989, 1.442695
    %v7000 = vpow.pop %v6999
    %v7001 = vmul.f32 %v6990, 1.442695
    %v7002 = vpow.pop %v7001
    %v7003 = vmul.f32 %v6991, 1.442695
    %v7004 = vpow.pop %v7003
    %v7005 = vmul.f32 %v6992, 1.442695
    %v7006 = vpow.pop %v7005
    %v7007 = vmul.f32 %v6993, 1.442695
    %v7008 = vpow.pop %v7007
    %v7009 = vmul.f32 %v6994, 1.442695
    %v7010 = vpow.pop %v7009
    %v7011 = vadd.f32 %v6996, 1.0
    %v7012 = vadd.f32 %v6998, 1.0
    %v7013 = vadd.f32 %v7000, 1.0
    %v7014 = vadd.f32 %v7002, 1.0
    %v7015 = vadd.f32 %v7004, 1.0
    %v7016 = vadd.f32 %v7006, 1.0
    %v7017 = vadd.f32 %v7008, 1.0
    %v7018 = vadd.f32 %v7010, 1.0
    %v7019 = vrcp.pop %v7011
    %v7020 = vmul.f32 %v7011, %v7019
    %v7021 = vsub.f32 1.0, %v7020
    %v7022 = vmul.f32 %v7019, %v7021
    %v7023 = vadd.f32 %v7019, %v7022
    %vm7024 = vweird.f32 %v7011
    %vm7025 = vweird.f32 %v7019
    %vm7026 = vmor %vm7024, %vm7025
    %v7027 = vsel %vm7026, %v7019, %v7023
    %v7028 = vand.u32 2147483647, %v7011
    %vm7029 = vcmp.eq.f32.partialorder %v7028, 8.507059e+37
    %v7030 = vand.u32 %v7011, 2147483648
    %v7031 = vor.u32 1.1754944e-38, %v7030
    %v7032 = vsel %vm7029, %v7031, %v7027
    %v7033 = vmul.f32 1.0, %v7032
    %v7034 = vrcp.pop %v7012
    %v7035 = vmul.f32 %v7012, %v7034
    %v7036 = vsub.f32 1.0, %v7035
    %v7037 = vmul.f32 %v7034, %v7036
    %v7038 = vadd.f32 %v7034, %v7037
    %vm7039 = vweird.f32 %v7012
    %vm7040 = vweird.f32 %v7034
    %vm7041 = vmor %vm7039, %vm7040
    %v7042 = vsel %vm7041, %v7034, %v7038
    %v7043 = vand.u32 2147483647, %v7012
    %vm7044 = vcmp.eq.f32.partialorder %v7043, 8.507059e+37
    %v7045 = vand.u32 %v7012, 2147483648
    %v7046 = vor.u32 1.1754944e-38, %v7045
    %v7047 = vsel %vm7044, %v7046, %v7042
    %v7048 = vmul.f32 1.0, %v7047
    %v7049 = vrcp.pop %v7013
    %v7050 = vmul.f32 %v7013, %v7049
    %v7051 = vsub.f32 1.0, %v7050
    %v7052 = vmul.f32 %v7049, %v7051
    %v7053 = vadd.f32 %v7049, %v7052
    %vm7054 = vweird.f32 %v7013
    %vm7055 = vweird.f32 %v7049
    %vm7056 = vmor %vm7054, %vm7055
    %v7057 = vsel %vm7056, %v7049, %v7053
    %v7058 = vand.u32 2147483647, %v7013
    %vm7059 = vcmp.eq.f32.partialorder %v7058, 8.507059e+37
    %v7060 = vand.u32 %v7013, 2147483648
    %v7061 = vor.u32 1.1754944e-38, %v7060
    %v7062 = vsel %vm7059, %v7061, %v7057
    %v7063 = vmul.f32 1.0, %v7062
    %v7064 = vrcp.pop %v7014
    %v7065 = vmul.f32 %v7014, %v7064
    %v7066 = vsub.f32 1.0, %v7065
    %v7067 = vmul.f32 %v7064, %v7066
    %v7068 = vadd.f32 %v7064, %v7067
    %vm7069 = vweird.f32 %v7014
    %vm7070 = vweird.f32 %v7064
    %vm7071 = vmor %vm7069, %vm7070
    %v7072 = vsel %vm7071, %v7064, %v7068
    %v7073 = vand.u32 2147483647, %v7014
    %vm7074 = vcmp.eq.f32.partialorder %v7073, 8.507059e+37
    %v7075 = vand.u32 %v7014, 2147483648
    %v7076 = vor.u32 1.1754944e-38, %v7075
    %v7077 = vsel %vm7074, %v7076, %v7072
    %v7078 = vmul.f32 1.0, %v7077
    %v7079 = vrcp.pop %v7015
    %v7080 = vmul.f32 %v7015, %v7079
    %v7081 = vsub.f32 1.0, %v7080
    %v7082 = vmul.f32 %v7079, %v7081
    %v7083 = vadd.f32 %v7079, %v7082
    %vm7084 = vweird.f32 %v7015
    %vm7085 = vweird.f32 %v7079
    %vm7086 = vmor %vm7084, %vm7085
    %v7087 = vsel %vm7086, %v7079, %v7083
    %v7088 = vand.u32 2147483647, %v7015
    %vm7089 = vcmp.eq.f32.partialorder %v7088, 8.507059e+37
    %v7090 = vand.u32 %v7015, 2147483648
    %v7091 = vor.u32 1.1754944e-38, %v7090
    %v7092 = vsel %vm7089, %v7091, %v7087
    %v7093 = vmul.f32 1.0, %v7092
    %v7094 = vrcp.pop %v7016
    %v7095 = vmul.f32 %v7016, %v7094
    %v7096 = vsub.f32 1.0, %v7095
    %v7097 = vmul.f32 %v7094, %v7096
    %v7098 = vadd.f32 %v7094, %v7097
    %vm7099 = vweird.f32 %v7016
    %vm7100 = vweird.f32 %v7094
    %vm7101 = vmor %vm7099, %vm7100
    %v7102 = vsel %vm7101, %v7094, %v7098
    %v7103 = vand.u32 2147483647, %v7016
    %vm7104 = vcmp.eq.f32.partialorder %v7103, 8.507059e+37
    %v7105 = vand.u32 %v7016, 2147483648
    %v7106 = vor.u32 1.1754944e-38, %v7105
    %v7107 = vsel %vm7104, %v7106, %v7102
    %v7108 = vmul.f32 1.0, %v7107
    %v7109 = vrcp.pop %v7017
    %v7110 = vmul.f32 %v7017, %v7109
    %v7111 = vsub.f32 1.0, %v7110
    %v7112 = vmul.f32 %v7109, %v7111
    %v7113 = vadd.f32 %v7109, %v7112
    %vm7114 = vweird.f32 %v7017
    %vm7115 = vweird.f32 %v7109
    %vm7116 = vmor %vm7114, %vm7115
    %v7117 = vsel %vm7116, %v7109, %v7113
    %v7118 = vand.u32 2147483647, %v7017
    %vm7119 = vcmp.eq.f32.partialorder %v7118, 8.507059e+37
    %v7120 = vand.u32 %v7017, 2147483648
    %v7121 = vor.u32 1.1754944e-38, %v7120
    %v7122 = vsel %vm7119, %v7121, %v7117
    %v7123 = vmul.f32 1.0, %v7122
    %v7124 = vrcp.pop %v7018
    %v7125 = vmul.f32 %v7018, %v7124
    %v7126 = vsub.f32 1.0, %v7125
    %v7127 = vmul.f32 %v7124, %v7126
    %v7128 = vadd.f32 %v7124, %v7127
    %vm7129 = vweird.f32 %v7018
    %vm7130 = vweird.f32 %v7124
    %vm7131 = vmor %vm7129, %vm7130
    %v7132 = vsel %vm7131, %v7124, %v7128
    %v7133 = vand.u32 2147483647, %v7018
    %vm7134 = vcmp.eq.f32.partialorder %v7133, 8.507059e+37
    %v7135 = vand.u32 %v7018, 2147483648
    %v7136 = vor.u32 1.1754944e-38, %v7135
    %v7137 = vsel %vm7134, %v7136, %v7132
    %v7138 = vmul.f32 1.0, %v7137
    %v7139 = vmul.f32 %v3067, %v7033
    %v7140 = vmul.f32 %v3068, %v7048
    %v7141 = vmul.f32 %v3069, %v7063
    %v7142 = vmul.f32 %v3070, %v7078
    %v7143 = vmul.f32 %v3071, %v7093
    %v7144 = vmul.f32 %v3072, %v7108
    %v7145 = vmul.f32 %v3073, %v7123
    %v7146 = vmul.f32 %v3074, %v7138
    %v7147 = vpack.c.bf16 %v7139, %v7139
    %v7148 = vpack.c.bf16 %v7140, %v7140
    %v7149 = vpack.c.bf16 %v7141, %v7141
    %v7150 = vpack.c.bf16 %v7142, %v7142
    %v7151 = vpack.c.bf16 %v7143, %v7143
    %v7152 = vpack.c.bf16 %v7144, %v7144
    %v7153 = vpack.c.bf16 %v7145, %v7145
    %v7154 = vpack.c.bf16 %v7146, %v7146
    %v7155 = vld [vmem:[#allocation20] sm:$0xff]
    %v7156 = vld [vmem:[#allocation20 + $0x8] sm:$0xff]
    %v7157 = vld [vmem:[#allocation20 + $0x10] sm:$0xff]
    %v7158 = vld [vmem:[#allocation20 + $0x18] sm:$0xff]
    %v7159 = vld [vmem:[#allocation20 + $0x20] sm:$0xff]
    %v7160 = vld [vmem:[#allocation20 + $0x28] sm:$0xff]
    %v7161 = vld [vmem:[#allocation20 + $0x30] sm:$0xff]
    %v7162 = vld [vmem:[#allocation20 + $0x38] sm:$0xff]
    %v7163 = vld [vmem:[#allocation20 + $0x40] sm:$0xff]
    %v7164 = vld [vmem:[#allocation20 + $0x48] sm:$0xff]
    %v7165 = vld [vmem:[#allocation20 + $0x50] sm:$0xff]
    %v7166 = vld [vmem:[#allocation20 + $0x58] sm:$0xff]
    %v7167 = vld [vmem:[#allocation20 + $0x60] sm:$0xff]
    %v7168 = vld [vmem:[#allocation20 + $0x68] sm:$0xff]
    %v7169 = vld [vmem:[#allocation20 + $0x70] sm:$0xff]
    %v7170 = vld [vmem:[#allocation20 + $0x78] sm:$0xff]
    %v7171 = vld [vmem:[#allocation20 + $0x80] sm:$0xff]
    %v7172 = vld [vmem:[#allocation20 + $0x88] sm:$0xff]
    %v7173 = vld [vmem:[#allocation20 + $0x90] sm:$0xff]
    %v7174 = vld [vmem:[#allocation20 + $0x98] sm:$0xff]
    %v7175 = vld [vmem:[#allocation20 + $0xa0] sm:$0xff]
    %v7176 = vld [vmem:[#allocation20 + $0xa8] sm:$0xff]
    %v7177 = vld [vmem:[#allocation20 + $0xb0] sm:$0xff]
    %v7178 = vld [vmem:[#allocation20 + $0xb8] sm:$0xff]
    %v7179 = vld [vmem:[#allocation20 + $0xc0] sm:$0xff]
    %v7180 = vld [vmem:[#allocation20 + $0xc8] sm:$0xff]
    %v7181 = vld [vmem:[#allocation20 + $0xd0] sm:$0xff]
    %v7182 = vld [vmem:[#allocation20 + $0xd8] sm:$0xff]
    %v7183 = vld [vmem:[#allocation20 + $0xe0] sm:$0xff]
    %v7184 = vld [vmem:[#allocation20 + $0xe8] sm:$0xff]
    %v7185 = vld [vmem:[#allocation20 + $0xf0] sm:$0xff]
    %v7186 = vld [vmem:[#allocation20 + $0xf8] sm:$0xff]
    %v7187 = vld [vmem:[#allocation20 + $0x100] sm:$0xff]
    %v7188 = vld [vmem:[#allocation20 + $0x108] sm:$0xff]
    %v7189 = vld [vmem:[#allocation20 + $0x110] sm:$0xff]
    %v7190 = vld [vmem:[#allocation20 + $0x118] sm:$0xff]
    %v7191 = vld [vmem:[#allocation20 + $0x120] sm:$0xff]
    %v7192 = vld [vmem:[#allocation20 + $0x128] sm:$0xff]
    %v7193 = vld [vmem:[#allocation20 + $0x130] sm:$0xff]
    %v7194 = vld [vmem:[#allocation20 + $0x138] sm:$0xff]
    %v7195 = vld [vmem:[#allocation20 + $0x140] sm:$0xff]
    %v7196 = vld [vmem:[#allocation20 + $0x148] sm:$0xff]
    %v7197 = vld [vmem:[#allocation20 + $0x150] sm:$0xff]
    %v7198 = vld [vmem:[#allocation20 + $0x158] sm:$0xff]
    %v7199 = vld [vmem:[#allocation20 + $0x160] sm:$0xff]
    %v7200 = vld [vmem:[#allocation20 + $0x168] sm:$0xff]
    %v7201 = vld [vmem:[#allocation20 + $0x170] sm:$0xff]
    %v7202 = vld [vmem:[#allocation20 + $0x178] sm:$0xff]
    %v7203 = vld [vmem:[#allocation20 + $0x180] sm:$0xff]
    %v7204 = vld [vmem:[#allocation20 + $0x188] sm:$0xff]
    %v7205 = vld [vmem:[#allocation20 + $0x190] sm:$0xff]
    %v7206 = vld [vmem:[#allocation20 + $0x198] sm:$0xff]
    %v7207 = vld [vmem:[#allocation20 + $0x1a0] sm:$0xff]
    %v7208 = vld [vmem:[#allocation20 + $0x1a8] sm:$0xff]
    %v7209 = vld [vmem:[#allocation20 + $0x1b0] sm:$0xff]
    %v7210 = vld [vmem:[#allocation20 + $0x1b8] sm:$0xff]
    %v7211 = vld [vmem:[#allocation20 + $0x1c0] sm:$0xff]
    %v7212 = vld [vmem:[#allocation20 + $0x1c8] sm:$0xff]
    %v7213 = vld [vmem:[#allocation20 + $0x1d0] sm:$0xff]
    %v7214 = vld [vmem:[#allocation20 + $0x1d8] sm:$0xff]
    %v7215 = vld [vmem:[#allocation20 + $0x1e0] sm:$0xff]
    %v7216 = vld [vmem:[#allocation20 + $0x1e8] sm:$0xff]
    %v7217 = vld [vmem:[#allocation20 + $0x1f0] sm:$0xff]
    %v7218 = vld [vmem:[#allocation20 + $0x1f8] sm:$0xff]
    %v7219 = vld [vmem:[#allocation20 + $0x200] sm:$0xff]
    %v7220 = vld [vmem:[#allocation20 + $0x208] sm:$0xff]
    %v7221 = vld [vmem:[#allocation20 + $0x210] sm:$0xff]
    %v7222 = vld [vmem:[#allocation20 + $0x218] sm:$0xff]
    %v7223 = vld [vmem:[#allocation20 + $0x220] sm:$0xff]
    %v7224 = vld [vmem:[#allocation20 + $0x228] sm:$0xff]
    %v7225 = vld [vmem:[#allocation20 + $0x230] sm:$0xff]
    %v7226 = vld [vmem:[#allocation20 + $0x238] sm:$0xff]
    %v7227 = vld [vmem:[#allocation20 + $0x240] sm:$0xff]
    %v7228 = vld [vmem:[#allocation20 + $0x248] sm:$0xff]
    %v7229 = vld [vmem:[#allocation20 + $0x250] sm:$0xff]
    %v7230 = vld [vmem:[#allocation20 + $0x258] sm:$0xff]
    %v7231 = vld [vmem:[#allocation20 + $0x260] sm:$0xff]
    %v7232 = vld [vmem:[#allocation20 + $0x268] sm:$0xff]
    %v7233 = vld [vmem:[#allocation20 + $0x270] sm:$0xff]
    %v7234 = vld [vmem:[#allocation20 + $0x278] sm:$0xff]
    %v7235 = vld [vmem:[#allocation20 + $0x280] sm:$0xff]
    %v7236 = vld [vmem:[#allocation20 + $0x288] sm:$0xff]
    %v7237 = vld [vmem:[#allocation20 + $0x290] sm:$0xff]
    %v7238 = vld [vmem:[#allocation20 + $0x298] sm:$0xff]
    %v7239 = vld [vmem:[#allocation20 + $0x2a0] sm:$0xff]
    %v7240 = vld [vmem:[#allocation20 + $0x2a8] sm:$0xff]
    %v7241 = vld [vmem:[#allocation20 + $0x2b0] sm:$0xff]
    %v7242 = vld [vmem:[#allocation20 + $0x2b8] sm:$0xff]
    %v7243 = vld [vmem:[#allocation20 + $0x2c0] sm:$0xff]
    %v7244 = vld [vmem:[#allocation20 + $0x2c8] sm:$0xff]
    %v7245 = vld [vmem:[#allocation20 + $0x2d0] sm:$0xff]
    %v7246 = vld [vmem:[#allocation20 + $0x2d8] sm:$0xff]
    %v7247 = vld [vmem:[#allocation20 + $0x2e0] sm:$0xff]
    %v7248 = vld [vmem:[#allocation20 + $0x2e8] sm:$0xff]
    %v7249 = vld [vmem:[#allocation20 + $0x2f0] sm:$0xff]
    %v7250 = vld [vmem:[#allocation20 + $0x2f8] sm:$0xff]
    %v7251 = vld [vmem:[#allocation20 + $0x300] sm:$0xff]
    %v7252 = vld [vmem:[#allocation20 + $0x308] sm:$0xff]
    %v7253 = vld [vmem:[#allocation20 + $0x310] sm:$0xff]
    %v7254 = vld [vmem:[#allocation20 + $0x318] sm:$0xff]
    %v7255 = vld [vmem:[#allocation20 + $0x320] sm:$0xff]
    %v7256 = vld [vmem:[#allocation20 + $0x328] sm:$0xff]
    %v7257 = vld [vmem:[#allocation20 + $0x330] sm:$0xff]
    %v7258 = vld [vmem:[#allocation20 + $0x338] sm:$0xff]
    %v7259 = vld [vmem:[#allocation20 + $0x340] sm:$0xff]
    %v7260 = vld [vmem:[#allocation20 + $0x348] sm:$0xff]
    %v7261 = vld [vmem:[#allocation20 + $0x350] sm:$0xff]
    %v7262 = vld [vmem:[#allocation20 + $0x358] sm:$0xff]
    %v7263 = vld [vmem:[#allocation20 + $0x360] sm:$0xff]
    %v7264 = vld [vmem:[#allocation20 + $0x368] sm:$0xff]
    %v7265 = vld [vmem:[#allocation20 + $0x370] sm:$0xff]
    %v7266 = vld [vmem:[#allocation20 + $0x378] sm:$0xff]
    %v7267 = vld [vmem:[#allocation20 + $0x380] sm:$0xff]
    %v7268 = vld [vmem:[#allocation20 + $0x388] sm:$0xff]
    %v7269 = vld [vmem:[#allocation20 + $0x390] sm:$0xff]
    %v7270 = vld [vmem:[#allocation20 + $0x398] sm:$0xff]
    %v7271 = vld [vmem:[#allocation20 + $0x3a0] sm:$0xff]
    %v7272 = vld [vmem:[#allocation20 + $0x3a8] sm:$0xff]
    %v7273 = vld [vmem:[#allocation20 + $0x3b0] sm:$0xff]
    %v7274 = vld [vmem:[#allocation20 + $0x3b8] sm:$0xff]
    %v7275 = vld [vmem:[#allocation20 + $0x3c0] sm:$0xff]
    %v7276 = vld [vmem:[#allocation20 + $0x3c8] sm:$0xff]
    %v7277 = vld [vmem:[#allocation20 + $0x3d0] sm:$0xff]
    %v7278 = vld [vmem:[#allocation20 + $0x3d8] sm:$0xff]
    %v7279 = vld [vmem:[#allocation20 + $0x3e0] sm:$0xff]
    %v7280 = vld [vmem:[#allocation20 + $0x3e8] sm:$0xff]
    %v7281 = vld [vmem:[#allocation20 + $0x3f0] sm:$0xff]
    %v7282 = vld [vmem:[#allocation20 + $0x3f8] sm:$0xff]
    %v7283 = vld [vmem:[#allocation20 + $0x400] sm:$0xff]
    %v7284 = vld [vmem:[#allocation20 + $0x408] sm:$0xff]
    %v7285 = vld [vmem:[#allocation20 + $0x410] sm:$0xff]
    %v7286 = vld [vmem:[#allocation20 + $0x418] sm:$0xff]
    %v7287 = vld [vmem:[#allocation20 + $0x420] sm:$0xff]
    %v7288 = vld [vmem:[#allocation20 + $0x428] sm:$0xff]
    %v7289 = vld [vmem:[#allocation20 + $0x430] sm:$0xff]
    %v7290 = vld [vmem:[#allocation20 + $0x438] sm:$0xff]
    %v7291 = vld [vmem:[#allocation20 + $0x440] sm:$0xff]
    %v7292 = vld [vmem:[#allocation20 + $0x448] sm:$0xff]
    %v7293 = vld [vmem:[#allocation20 + $0x450] sm:$0xff]
    %v7294 = vld [vmem:[#allocation20 + $0x458] sm:$0xff]
    %v7295 = vld [vmem:[#allocation20 + $0x460] sm:$0xff]
    %v7296 = vld [vmem:[#allocation20 + $0x468] sm:$0xff]
    %v7297 = vld [vmem:[#allocation20 + $0x470] sm:$0xff]
    %v7298 = vld [vmem:[#allocation20 + $0x478] sm:$0xff]
    %v7299 = vld [vmem:[#allocation20 + $0x480] sm:$0xff]
    %v7300 = vld [vmem:[#allocation20 + $0x488] sm:$0xff]
    %v7301 = vld [vmem:[#allocation20 + $0x490] sm:$0xff]
    %v7302 = vld [vmem:[#allocation20 + $0x498] sm:$0xff]
    %v7303 = vld [vmem:[#allocation20 + $0x4a0] sm:$0xff]
    %v7304 = vld [vmem:[#allocation20 + $0x4a8] sm:$0xff]
    %v7305 = vld [vmem:[#allocation20 + $0x4b0] sm:$0xff]
    %v7306 = vld [vmem:[#allocation20 + $0x4b8] sm:$0xff]
    %v7307 = vld [vmem:[#allocation20 + $0x4c0] sm:$0xff]
    %v7308 = vld [vmem:[#allocation20 + $0x4c8] sm:$0xff]
    %v7309 = vld [vmem:[#allocation20 + $0x4d0] sm:$0xff]
    %v7310 = vld [vmem:[#allocation20 + $0x4d8] sm:$0xff]
    %v7311 = vld [vmem:[#allocation20 + $0x4e0] sm:$0xff]
    %v7312 = vld [vmem:[#allocation20 + $0x4e8] sm:$0xff]
    %v7313 = vld [vmem:[#allocation20 + $0x4f0] sm:$0xff]
    %v7314 = vld [vmem:[#allocation20 + $0x4f8] sm:$0xff]
    %v7315 = vld [vmem:[#allocation20 + $0x500] sm:$0xff]
    %v7316 = vld [vmem:[#allocation20 + $0x508] sm:$0xff]
    %v7317 = vld [vmem:[#allocation20 + $0x510] sm:$0xff]
    %v7318 = vld [vmem:[#allocation20 + $0x518] sm:$0xff]
    %v7319 = vld [vmem:[#allocation20 + $0x520] sm:$0xff]
    %v7320 = vld [vmem:[#allocation20 + $0x528] sm:$0xff]
    %v7321 = vld [vmem:[#allocation20 + $0x530] sm:$0xff]
    %v7322 = vld [vmem:[#allocation20 + $0x538] sm:$0xff]
    %v7323 = vld [vmem:[#allocation20 + $0x540] sm:$0xff]
    %v7324 = vld [vmem:[#allocation20 + $0x548] sm:$0xff]
    %v7325 = vld [vmem:[#allocation20 + $0x550] sm:$0xff]
    %v7326 = vld [vmem:[#allocation20 + $0x558] sm:$0xff]
    %v7327 = vld [vmem:[#allocation20 + $0x560] sm:$0xff]
    %v7328 = vld [vmem:[#allocation20 + $0x568] sm:$0xff]
    %v7329 = vld [vmem:[#allocation20 + $0x570] sm:$0xff]
    %v7330 = vld [vmem:[#allocation20 + $0x578] sm:$0xff]
    %v7331 = vld [vmem:[#allocation20 + $0x580] sm:$0xff]
    %v7332 = vld [vmem:[#allocation20 + $0x588] sm:$0xff]
    %v7333 = vld [vmem:[#allocation20 + $0x590] sm:$0xff]
    %v7334 = vld [vmem:[#allocation20 + $0x598] sm:$0xff]
    %v7335 = vld [vmem:[#allocation20 + $0x5a0] sm:$0xff]
    %v7336 = vld [vmem:[#allocation20 + $0x5a8] sm:$0xff]
    %v7337 = vld [vmem:[#allocation20 + $0x5b0] sm:$0xff]
    %v7338 = vld [vmem:[#allocation20 + $0x5b8] sm:$0xff]
    %v7339 = vld [vmem:[#allocation20 + $0x5c0] sm:$0xff]
    %v7340 = vld [vmem:[#allocation20 + $0x5c8] sm:$0xff]
    %v7341 = vld [vmem:[#allocation20 + $0x5d0] sm:$0xff]
    %v7342 = vld [vmem:[#allocation20 + $0x5d8] sm:$0xff]
    %v7343 = vld [vmem:[#allocation20 + $0x5e0] sm:$0xff]
    %v7344 = vld [vmem:[#allocation20 + $0x5e8] sm:$0xff]
    %v7345 = vld [vmem:[#allocation20 + $0x5f0] sm:$0xff]
    %v7346 = vld [vmem:[#allocation20 + $0x5f8] sm:$0xff]
    %v7347 = vld [vmem:[#allocation20 + $0x600] sm:$0xff]
    %v7348 = vld [vmem:[#allocation20 + $0x608] sm:$0xff]
    %v7349 = vld [vmem:[#allocation20 + $0x610] sm:$0xff]
    %v7350 = vld [vmem:[#allocation20 + $0x618] sm:$0xff]
    %v7351 = vld [vmem:[#allocation20 + $0x620] sm:$0xff]
    %v7352 = vld [vmem:[#allocation20 + $0x628] sm:$0xff]
    %v7353 = vld [vmem:[#allocation20 + $0x630] sm:$0xff]
    %v7354 = vld [vmem:[#allocation20 + $0x638] sm:$0xff]
    %v7355 = vld [vmem:[#allocation20 + $0x640] sm:$0xff]
    %v7356 = vld [vmem:[#allocation20 + $0x648] sm:$0xff]
    %v7357 = vld [vmem:[#allocation20 + $0x650] sm:$0xff]
    %v7358 = vld [vmem:[#allocation20 + $0x658] sm:$0xff]
    %v7359 = vld [vmem:[#allocation20 + $0x660] sm:$0xff]
    %v7360 = vld [vmem:[#allocation20 + $0x668] sm:$0xff]
    %v7361 = vld [vmem:[#allocation20 + $0x670] sm:$0xff]
    %v7362 = vld [vmem:[#allocation20 + $0x678] sm:$0xff]
    %v7363 = vld [vmem:[#allocation20 + $0x680] sm:$0xff]
    %v7364 = vld [vmem:[#allocation20 + $0x688] sm:$0xff]
    %v7365 = vld [vmem:[#allocation20 + $0x690] sm:$0xff]
    %v7366 = vld [vmem:[#allocation20 + $0x698] sm:$0xff]
    %v7367 = vld [vmem:[#allocation20 + $0x6a0] sm:$0xff]
    %v7368 = vld [vmem:[#allocation20 + $0x6a8] sm:$0xff]
    %v7369 = vld [vmem:[#allocation20 + $0x6b0] sm:$0xff]
    %v7370 = vld [vmem:[#allocation20 + $0x6b8] sm:$0xff]
    %v7371 = vld [vmem:[#allocation20 + $0x6c0] sm:$0xff]
    %v7372 = vld [vmem:[#allocation20 + $0x6c8] sm:$0xff]
    %v7373 = vld [vmem:[#allocation20 + $0x6d0] sm:$0xff]
    %v7374 = vld [vmem:[#allocation20 + $0x6d8] sm:$0xff]
    %v7375 = vld [vmem:[#allocation20 + $0x6e0] sm:$0xff]
    %v7376 = vld [vmem:[#allocation20 + $0x6e8] sm:$0xff]
    %v7377 = vld [vmem:[#allocation20 + $0x6f0] sm:$0xff]
    %v7378 = vld [vmem:[#allocation20 + $0x6f8] sm:$0xff]
    %v7379 = vld [vmem:[#allocation20 + $0x700] sm:$0xff]
    %v7380 = vld [vmem:[#allocation20 + $0x708] sm:$0xff]
    %v7381 = vld [vmem:[#allocation20 + $0x710] sm:$0xff]
    %v7382 = vld [vmem:[#allocation20 + $0x718] sm:$0xff]
    %v7383 = vld [vmem:[#allocation20 + $0x720] sm:$0xff]
    %v7384 = vld [vmem:[#allocation20 + $0x728] sm:$0xff]
    %v7385 = vld [vmem:[#allocation20 + $0x730] sm:$0xff]
    %v7386 = vld [vmem:[#allocation20 + $0x738] sm:$0xff]
    %v7387 = vld [vmem:[#allocation20 + $0x740] sm:$0xff]
    %v7388 = vld [vmem:[#allocation20 + $0x748] sm:$0xff]
    %v7389 = vld [vmem:[#allocation20 + $0x750] sm:$0xff]
    %v7390 = vld [vmem:[#allocation20 + $0x758] sm:$0xff]
    %v7391 = vld [vmem:[#allocation20 + $0x760] sm:$0xff]
    %v7392 = vld [vmem:[#allocation20 + $0x768] sm:$0xff]
    %v7393 = vld [vmem:[#allocation20 + $0x770] sm:$0xff]
    %v7394 = vld [vmem:[#allocation20 + $0x778] sm:$0xff]
    %v7395 = vld [vmem:[#allocation20 + $0x780] sm:$0xff]
    %v7396 = vld [vmem:[#allocation20 + $0x788] sm:$0xff]
    %v7397 = vld [vmem:[#allocation20 + $0x790] sm:$0xff]
    %v7398 = vld [vmem:[#allocation20 + $0x798] sm:$0xff]
    %v7399 = vld [vmem:[#allocation20 + $0x7a0] sm:$0xff]
    %v7400 = vld [vmem:[#allocation20 + $0x7a8] sm:$0xff]
    %v7401 = vld [vmem:[#allocation20 + $0x7b0] sm:$0xff]
    %v7402 = vld [vmem:[#allocation20 + $0x7b8] sm:$0xff]
    %v7403 = vld [vmem:[#allocation20 + $0x7c0] sm:$0xff]
    %v7404 = vld [vmem:[#allocation20 + $0x7c8] sm:$0xff]
    %v7405 = vld [vmem:[#allocation20 + $0x7d0] sm:$0xff]
    %v7406 = vld [vmem:[#allocation20 + $0x7d8] sm:$0xff]
    %v7407 = vld [vmem:[#allocation20 + $0x7e0] sm:$0xff]
    %v7408 = vld [vmem:[#allocation20 + $0x7e8] sm:$0xff]
    %v7409 = vld [vmem:[#allocation20 + $0x7f0] sm:$0xff]
    %v7410 = vld [vmem:[#allocation20 + $0x7f8] sm:$0xff]
    %v7411 = vld [vmem:[#allocation22] sm:$0xf]
    %v7413 = vperm.slane %v7411, 0
    %v7414 = vperm.slane %v7411, 1
    %v7415 = vperm.slane %v7411, 2
    %v7416 = vperm.slane %v7411, 3
    %v7677 = vunpack.c.l.b16 %v7155
    %v7678 = vunpack.c.h.b16 %v7155
    %v7679 = vunpack.c.l.b16 %v7156
    %v7680 = vunpack.c.h.b16 %v7156
    %v7681 = vunpack.c.l.b16 %v7157
    %v7682 = vunpack.c.h.b16 %v7157
    %v7683 = vunpack.c.l.b16 %v7158
    %v7684 = vunpack.c.h.b16 %v7158
    %v7685 = vunpack.c.l.b16 %v7159
    %v7686 = vunpack.c.h.b16 %v7159
    %v7687 = vunpack.c.l.b16 %v7160
    %v7688 = vunpack.c.h.b16 %v7160
    %v7689 = vunpack.c.l.b16 %v7161
    %v7690 = vunpack.c.h.b16 %v7161
    %v7691 = vunpack.c.l.b16 %v7162
    %v7692 = vunpack.c.h.b16 %v7162
    %v7693 = vunpack.c.l.b16 %v7163
    %v7694 = vunpack.c.h.b16 %v7163
    %v7695 = vunpack.c.l.b16 %v7164
    %v7696 = vunpack.c.h.b16 %v7164
    %v7697 = vunpack.c.l.b16 %v7165
    %v7698 = vunpack.c.h.b16 %v7165
    %v7699 = vunpack.c.l.b16 %v7166
    %v7700 = vunpack.c.h.b16 %v7166
    %v7701 = vunpack.c.l.b16 %v7167
    %v7702 = vunpack.c.h.b16 %v7167
    %v7703 = vunpack.c.l.b16 %v7168
    %v7704 = vunpack.c.h.b16 %v7168
    %v7705 = vunpack.c.l.b16 %v7169
    %v7706 = vunpack.c.h.b16 %v7169
    %v7707 = vunpack.c.l.b16 %v7170
    %v7708 = vunpack.c.h.b16 %v7170
    %v7709 = vunpack.c.l.b16 %v7171
    %v7710 = vunpack.c.h.b16 %v7171
    %v7711 = vunpack.c.l.b16 %v7172
    %v7712 = vunpack.c.h.b16 %v7172
    %v7713 = vunpack.c.l.b16 %v7173
    %v7714 = vunpack.c.h.b16 %v7173
    %v7715 = vunpack.c.l.b16 %v7174
    %v7716 = vunpack.c.h.b16 %v7174
    %v7717 = vunpack.c.l.b16 %v7175
    %v7718 = vunpack.c.h.b16 %v7175
    %v7719 = vunpack.c.l.b16 %v7176
    %v7720 = vunpack.c.h.b16 %v7176
    %v7721 = vunpack.c.l.b16 %v7177
    %v7722 = vunpack.c.h.b16 %v7177
    %v7723 = vunpack.c.l.b16 %v7178
    %v7724 = vunpack.c.h.b16 %v7178
    %v7725 = vunpack.c.l.b16 %v7179
    %v7726 = vunpack.c.h.b16 %v7179
    %v7727 = vunpack.c.l.b16 %v7180
    %v7728 = vunpack.c.h.b16 %v7180
    %v7729 = vunpack.c.l.b16 %v7181
    %v7730 = vunpack.c.h.b16 %v7181
    %v7731 = vunpack.c.l.b16 %v7182
    %v7732 = vunpack.c.h.b16 %v7182
    %v7733 = vunpack.c.l.b16 %v7183
    %v7734 = vunpack.c.h.b16 %v7183
    %v7735 = vunpack.c.l.b16 %v7184
    %v7736 = vunpack.c.h.b16 %v7184
    %v7737 = vunpack.c.l.b16 %v7185
    %v7738 = vunpack.c.h.b16 %v7185
    %v7739 = vunpack.c.l.b16 %v7186
    %v7740 = vunpack.c.h.b16 %v7186
    %v7741 = vunpack.c.l.b16 %v7187
    %v7742 = vunpack.c.h.b16 %v7187
    %v7743 = vunpack.c.l.b16 %v7188
    %v7744 = vunpack.c.h.b16 %v7188
    %v7745 = vunpack.c.l.b16 %v7189
    %v7746 = vunpack.c.h.b16 %v7189
    %v7747 = vunpack.c.l.b16 %v7190
    %v7748 = vunpack.c.h.b16 %v7190
    %v7749 = vunpack.c.l.b16 %v7191
    %v7750 = vunpack.c.h.b16 %v7191
    %v7751 = vunpack.c.l.b16 %v7192
    %v7752 = vunpack.c.h.b16 %v7192
    %v7753 = vunpack.c.l.b16 %v7193
    %v7754 = vunpack.c.h.b16 %v7193
    %v7755 = vunpack.c.l.b16 %v7194
    %v7756 = vunpack.c.h.b16 %v7194
    %v7757 = vunpack.c.l.b16 %v7195
    %v7758 = vunpack.c.h.b16 %v7195
    %v7759 = vunpack.c.l.b16 %v7196
    %v7760 = vunpack.c.h.b16 %v7196
    %v7761 = vunpack.c.l.b16 %v7197
    %v7762 = vunpack.c.h.b16 %v7197
    %v7763 = vunpack.c.l.b16 %v7198
    %v7764 = vunpack.c.h.b16 %v7198
    %v7765 = vunpack.c.l.b16 %v7199
    %v7766 = vunpack.c.h.b16 %v7199
    %v7767 = vunpack.c.l.b16 %v7200
    %v7768 = vunpack.c.h.b16 %v7200
    %v7769 = vunpack.c.l.b16 %v7201
    %v7770 = vunpack.c.h.b16 %v7201
    %v7771 = vunpack.c.l.b16 %v7202
    %v7772 = vunpack.c.h.b16 %v7202
    %v7773 = vunpack.c.l.b16 %v7203
    %v7774 = vunpack.c.h.b16 %v7203
    %v7775 = vunpack.c.l.b16 %v7204
    %v7776 = vunpack.c.h.b16 %v7204
    %v7777 = vunpack.c.l.b16 %v7205
    %v7778 = vunpack.c.h.b16 %v7205
    %v7779 = vunpack.c.l.b16 %v7206
    %v7780 = vunpack.c.h.b16 %v7206
    %v7781 = vunpack.c.l.b16 %v7207
    %v7782 = vunpack.c.h.b16 %v7207
    %v7783 = vunpack.c.l.b16 %v7208
    %v7784 = vunpack.c.h.b16 %v7208
    %v7785 = vunpack.c.l.b16 %v7209
    %v7786 = vunpack.c.h.b16 %v7209
    %v7787 = vunpack.c.l.b16 %v7210
    %v7788 = vunpack.c.h.b16 %v7210
    %v7789 = vunpack.c.l.b16 %v7211
    %v7790 = vunpack.c.h.b16 %v7211
    %v7791 = vunpack.c.l.b16 %v7212
    %v7792 = vunpack.c.h.b16 %v7212
    %v7793 = vunpack.c.l.b16 %v7213
    %v7794 = vunpack.c.h.b16 %v7213
    %v7795 = vunpack.c.l.b16 %v7214
    %v7796 = vunpack.c.h.b16 %v7214
    %v7797 = vunpack.c.l.b16 %v7215
    %v7798 = vunpack.c.h.b16 %v7215
    %v7799 = vunpack.c.l.b16 %v7216
    %v7800 = vunpack.c.h.b16 %v7216
    %v7801 = vunpack.c.l.b16 %v7217
    %v7802 = vunpack.c.h.b16 %v7217
    %v7803 = vunpack.c.l.b16 %v7218
    %v7804 = vunpack.c.h.b16 %v7218
    %v7805 = vunpack.c.l.b16 %v7219
    %v7806 = vunpack.c.h.b16 %v7219
    %v7807 = vunpack.c.l.b16 %v7220
    %v7808 = vunpack.c.h.b16 %v7220
    %v7809 = vunpack.c.l.b16 %v7221
    %v7810 = vunpack.c.h.b16 %v7221
    %v7811 = vunpack.c.l.b16 %v7222
    %v7812 = vunpack.c.h.b16 %v7222
    %v7813 = vunpack.c.l.b16 %v7223
    %v7814 = vunpack.c.h.b16 %v7223
    %v7815 = vunpack.c.l.b16 %v7224
    %v7816 = vunpack.c.h.b16 %v7224
    %v7817 = vunpack.c.l.b16 %v7225
    %v7818 = vunpack.c.h.b16 %v7225
    %v7819 = vunpack.c.l.b16 %v7226
    %v7820 = vunpack.c.h.b16 %v7226
    %v7821 = vunpack.c.l.b16 %v7227
    %v7822 = vunpack.c.h.b16 %v7227
    %v7823 = vunpack.c.l.b16 %v7228
    %v7824 = vunpack.c.h.b16 %v7228
    %v7825 = vunpack.c.l.b16 %v7229
    %v7826 = vunpack.c.h.b16 %v7229
    %v7827 = vunpack.c.l.b16 %v7230
    %v7828 = vunpack.c.h.b16 %v7230
    %v7829 = vunpack.c.l.b16 %v7231
    %v7830 = vunpack.c.h.b16 %v7231
    %v7831 = vunpack.c.l.b16 %v7232
    %v7832 = vunpack.c.h.b16 %v7232
    %v7833 = vunpack.c.l.b16 %v7233
    %v7834 = vunpack.c.h.b16 %v7233
    %v7835 = vunpack.c.l.b16 %v7234
    %v7836 = vunpack.c.h.b16 %v7234
    %v7837 = vunpack.c.l.b16 %v7235
    %v7838 = vunpack.c.h.b16 %v7235
    %v7839 = vunpack.c.l.b16 %v7236
    %v7840 = vunpack.c.h.b16 %v7236
    %v7841 = vunpack.c.l.b16 %v7237
    %v7842 = vunpack.c.h.b16 %v7237
    %v7843 = vunpack.c.l.b16 %v7238
    %v7844 = vunpack.c.h.b16 %v7238
    %v7845 = vunpack.c.l.b16 %v7239
    %v7846 = vunpack.c.h.b16 %v7239
    %v7847 = vunpack.c.l.b16 %v7240
    %v7848 = vunpack.c.h.b16 %v7240
    %v7849 = vunpack.c.l.b16 %v7241
    %v7850 = vunpack.c.h.b16 %v7241
    %v7851 = vunpack.c.l.b16 %v7242
    %v7852 = vunpack.c.h.b16 %v7242
    %v7853 = vunpack.c.l.b16 %v7243
    %v7854 = vunpack.c.h.b16 %v7243
    %v7855 = vunpack.c.l.b16 %v7244
    %v7856 = vunpack.c.h.b16 %v7244
    %v7857 = vunpack.c.l.b16 %v7245
    %v7858 = vunpack.c.h.b16 %v7245
    %v7859 = vunpack.c.l.b16 %v7246
    %v7860 = vunpack.c.h.b16 %v7246
    %v7861 = vunpack.c.l.b16 %v7247
    %v7862 = vunpack.c.h.b16 %v7247
    %v7863 = vunpack.c.l.b16 %v7248
    %v7864 = vunpack.c.h.b16 %v7248
    %v7865 = vunpack.c.l.b16 %v7249
    %v7866 = vunpack.c.h.b16 %v7249
    %v7867 = vunpack.c.l.b16 %v7250
    %v7868 = vunpack.c.h.b16 %v7250
    %v7869 = vunpack.c.l.b16 %v7251
    %v7870 = vunpack.c.h.b16 %v7251
    %v7871 = vunpack.c.l.b16 %v7252
    %v7872 = vunpack.c.h.b16 %v7252
    %v7873 = vunpack.c.l.b16 %v7253
    %v7874 = vunpack.c.h.b16 %v7253
    %v7875 = vunpack.c.l.b16 %v7254
    %v7876 = vunpack.c.h.b16 %v7254
    %v7877 = vunpack.c.l.b16 %v7255
    %v7878 = vunpack.c.h.b16 %v7255
    %v7879 = vunpack.c.l.b16 %v7256
    %v7880 = vunpack.c.h.b16 %v7256
    %v7881 = vunpack.c.l.b16 %v7257
    %v7882 = vunpack.c.h.b16 %v7257
    %v7883 = vunpack.c.l.b16 %v7258
    %v7884 = vunpack.c.h.b16 %v7258
    %v7885 = vunpack.c.l.b16 %v7259
    %v7886 = vunpack.c.h.b16 %v7259
    %v7887 = vunpack.c.l.b16 %v7260
    %v7888 = vunpack.c.h.b16 %v7260
    %v7889 = vunpack.c.l.b16 %v7261
    %v7890 = vunpack.c.h.b16 %v7261
    %v7891 = vunpack.c.l.b16 %v7262
    %v7892 = vunpack.c.h.b16 %v7262
    %v7893 = vunpack.c.l.b16 %v7263
    %v7894 = vunpack.c.h.b16 %v7263
    %v7895 = vunpack.c.l.b16 %v7264
    %v7896 = vunpack.c.h.b16 %v7264
    %v7897 = vunpack.c.l.b16 %v7265
    %v7898 = vunpack.c.h.b16 %v7265
    %v7899 = vunpack.c.l.b16 %v7266
    %v7900 = vunpack.c.h.b16 %v7266
    %v7901 = vunpack.c.l.b16 %v7267
    %v7902 = vunpack.c.h.b16 %v7267
    %v7903 = vunpack.c.l.b16 %v7268
    %v7904 = vunpack.c.h.b16 %v7268
    %v7905 = vunpack.c.l.b16 %v7269
    %v7906 = vunpack.c.h.b16 %v7269
    %v7907 = vunpack.c.l.b16 %v7270
    %v7908 = vunpack.c.h.b16 %v7270
    %v7909 = vunpack.c.l.b16 %v7271
    %v7910 = vunpack.c.h.b16 %v7271
    %v7911 = vunpack.c.l.b16 %v7272
    %v7912 = vunpack.c.h.b16 %v7272
    %v7913 = vunpack.c.l.b16 %v7273
    %v7914 = vunpack.c.h.b16 %v7273
    %v7915 = vunpack.c.l.b16 %v7274
    %v7916 = vunpack.c.h.b16 %v7274
    %v7917 = vunpack.c.l.b16 %v7275
    %v7918 = vunpack.c.h.b16 %v7275
    %v7919 = vunpack.c.l.b16 %v7276
    %v7920 = vunpack.c.h.b16 %v7276
    %v7921 = vunpack.c.l.b16 %v7277
    %v7922 = vunpack.c.h.b16 %v7277
    %v7923 = vunpack.c.l.b16 %v7278
    %v7924 = vunpack.c.h.b16 %v7278
    %v7925 = vunpack.c.l.b16 %v7279
    %v7926 = vunpack.c.h.b16 %v7279
    %v7927 = vunpack.c.l.b16 %v7280
    %v7928 = vunpack.c.h.b16 %v7280
    %v7929 = vunpack.c.l.b16 %v7281
    %v7930 = vunpack.c.h.b16 %v7281
    %v7931 = vunpack.c.l.b16 %v7282
    %v7932 = vunpack.c.h.b16 %v7282
    %v7933 = vunpack.c.l.b16 %v7283
    %v7934 = vunpack.c.h.b16 %v7283
    %v7935 = vunpack.c.l.b16 %v7284
    %v7936 = vunpack.c.h.b16 %v7284
    %v7937 = vunpack.c.l.b16 %v7285
    %v7938 = vunpack.c.h.b16 %v7285
    %v7939 = vunpack.c.l.b16 %v7286
    %v7940 = vunpack.c.h.b16 %v7286
    %v7941 = vunpack.c.l.b16 %v7287
    %v7942 = vunpack.c.h.b16 %v7287
    %v7943 = vunpack.c.l.b16 %v7288
    %v7944 = vunpack.c.h.b16 %v7288
    %v7945 = vunpack.c.l.b16 %v7289
    %v7946 = vunpack.c.h.b16 %v7289
    %v7947 = vunpack.c.l.b16 %v7290
    %v7948 = vunpack.c.h.b16 %v7290
    %v7949 = vunpack.c.l.b16 %v7291
    %v7950 = vunpack.c.h.b16 %v7291
    %v7951 = vunpack.c.l.b16 %v7292
    %v7952 = vunpack.c.h.b16 %v7292
    %v7953 = vunpack.c.l.b16 %v7293
    %v7954 = vunpack.c.h.b16 %v7293
    %v7955 = vunpack.c.l.b16 %v7294
    %v7956 = vunpack.c.h.b16 %v7294
    %v7957 = vunpack.c.l.b16 %v7295
    %v7958 = vunpack.c.h.b16 %v7295
    %v7959 = vunpack.c.l.b16 %v7296
    %v7960 = vunpack.c.h.b16 %v7296
    %v7961 = vunpack.c.l.b16 %v7297
    %v7962 = vunpack.c.h.b16 %v7297
    %v7963 = vunpack.c.l.b16 %v7298
    %v7964 = vunpack.c.h.b16 %v7298
    %v7965 = vunpack.c.l.b16 %v7299
    %v7966 = vunpack.c.h.b16 %v7299
    %v7967 = vunpack.c.l.b16 %v7300
    %v7968 = vunpack.c.h.b16 %v7300
    %v7969 = vunpack.c.l.b16 %v7301
    %v7970 = vunpack.c.h.b16 %v7301
    %v7971 = vunpack.c.l.b16 %v7302
    %v7972 = vunpack.c.h.b16 %v7302
    %v7973 = vunpack.c.l.b16 %v7303
    %v7974 = vunpack.c.h.b16 %v7303
    %v7975 = vunpack.c.l.b16 %v7304
    %v7976 = vunpack.c.h.b16 %v7304
    %v7977 = vunpack.c.l.b16 %v7305
    %v7978 = vunpack.c.h.b16 %v7305
    %v7979 = vunpack.c.l.b16 %v7306
    %v7980 = vunpack.c.h.b16 %v7306
    %v7981 = vunpack.c.l.b16 %v7307
    %v7982 = vunpack.c.h.b16 %v7307
    %v7983 = vunpack.c.l.b16 %v7308
    %v7984 = vunpack.c.h.b16 %v7308
    %v7985 = vunpack.c.l.b16 %v7309
    %v7986 = vunpack.c.h.b16 %v7309
    %v7987 = vunpack.c.l.b16 %v7310
    %v7988 = vunpack.c.h.b16 %v7310
    %v7989 = vunpack.c.l.b16 %v7311
    %v7990 = vunpack.c.h.b16 %v7311
    %v7991 = vunpack.c.l.b16 %v7312
    %v7992 = vunpack.c.h.b16 %v7312
    %v7993 = vunpack.c.l.b16 %v7313
    %v7994 = vunpack.c.h.b16 %v7313
    %v7995 = vunpack.c.l.b16 %v7314
    %v7996 = vunpack.c.h.b16 %v7314
    %v7997 = vunpack.c.l.b16 %v7315
    %v7998 = vunpack.c.h.b16 %v7315
    %v7999 = vunpack.c.l.b16 %v7316
    %v8000 = vunpack.c.h.b16 %v7316
    %v8001 = vunpack.c.l.b16 %v7317
    %v8002 = vunpack.c.h.b16 %v7317
    %v8003 = vunpack.c.l.b16 %v7318
    %v8004 = vunpack.c.h.b16 %v7318
    %v8005 = vunpack.c.l.b16 %v7319
    %v8006 = vunpack.c.h.b16 %v7319
    %v8007 = vunpack.c.l.b16 %v7320
    %v8008 = vunpack.c.h.b16 %v7320
    %v8009 = vunpack.c.l.b16 %v7321
    %v8010 = vunpack.c.h.b16 %v7321
    %v8011 = vunpack.c.l.b16 %v7322
    %v8012 = vunpack.c.h.b16 %v7322
    %v8013 = vunpack.c.l.b16 %v7323
    %v8014 = vunpack.c.h.b16 %v7323
    %v8015 = vunpack.c.l.b16 %v7324
    %v8016 = vunpack.c.h.b16 %v7324
    %v8017 = vunpack.c.l.b16 %v7325
    %v8018 = vunpack.c.h.b16 %v7325
    %v8019 = vunpack.c.l.b16 %v7326
    %v8020 = vunpack.c.h.b16 %v7326
    %v8021 = vunpack.c.l.b16 %v7327
    %v8022 = vunpack.c.h.b16 %v7327
    %v8023 = vunpack.c.l.b16 %v7328
    %v8024 = vunpack.c.h.b16 %v7328
    %v8025 = vunpack.c.l.b16 %v7329
    %v8026 = vunpack.c.h.b16 %v7329
    %v8027 = vunpack.c.l.b16 %v7330
    %v8028 = vunpack.c.h.b16 %v7330
    %v8029 = vunpack.c.l.b16 %v7331
    %v8030 = vunpack.c.h.b16 %v7331
    %v8031 = vunpack.c.l.b16 %v7332
    %v8032 = vunpack.c.h.b16 %v7332
    %v8033 = vunpack.c.l.b16 %v7333
    %v8034 = vunpack.c.h.b16 %v7333
    %v8035 = vunpack.c.l.b16 %v7334
    %v8036 = vunpack.c.h.b16 %v7334
    %v8037 = vunpack.c.l.b16 %v7335
    %v8038 = vunpack.c.h.b16 %v7335
    %v8039 = vunpack.c.l.b16 %v7336
    %v8040 = vunpack.c.h.b16 %v7336
    %v8041 = vunpack.c.l.b16 %v7337
    %v8042 = vunpack.c.h.b16 %v7337
    %v8043 = vunpack.c.l.b16 %v7338
    %v8044 = vunpack.c.h.b16 %v7338
    %v8045 = vunpack.c.l.b16 %v7339
    %v8046 = vunpack.c.h.b16 %v7339
    %v8047 = vunpack.c.l.b16 %v7340
    %v8048 = vunpack.c.h.b16 %v7340
    %v8049 = vunpack.c.l.b16 %v7341
    %v8050 = vunpack.c.h.b16 %v7341
    %v8051 = vunpack.c.l.b16 %v7342
    %v8052 = vunpack.c.h.b16 %v7342
    %v8053 = vunpack.c.l.b16 %v7343
    %v8054 = vunpack.c.h.b16 %v7343
    %v8055 = vunpack.c.l.b16 %v7344
    %v8056 = vunpack.c.h.b16 %v7344
    %v8057 = vunpack.c.l.b16 %v7345
    %v8058 = vunpack.c.h.b16 %v7345
    %v8059 = vunpack.c.l.b16 %v7346
    %v8060 = vunpack.c.h.b16 %v7346
    %v8061 = vunpack.c.l.b16 %v7347
    %v8062 = vunpack.c.h.b16 %v7347
    %v8063 = vunpack.c.l.b16 %v7348
    %v8064 = vunpack.c.h.b16 %v7348
    %v8065 = vunpack.c.l.b16 %v7349
    %v8066 = vunpack.c.h.b16 %v7349
    %v8067 = vunpack.c.l.b16 %v7350
    %v8068 = vunpack.c.h.b16 %v7350
    %v8069 = vunpack.c.l.b16 %v7351
    %v8070 = vunpack.c.h.b16 %v7351
    %v8071 = vunpack.c.l.b16 %v7352
    %v8072 = vunpack.c.h.b16 %v7352
    %v8073 = vunpack.c.l.b16 %v7353
    %v8074 = vunpack.c.h.b16 %v7353
    %v8075 = vunpack.c.l.b16 %v7354
    %v8076 = vunpack.c.h.b16 %v7354
    %v8077 = vunpack.c.l.b16 %v7355
    %v8078 = vunpack.c.h.b16 %v7355
    %v8079 = vunpack.c.l.b16 %v7356
    %v8080 = vunpack.c.h.b16 %v7356
    %v8081 = vunpack.c.l.b16 %v7357
    %v8082 = vunpack.c.h.b16 %v7357
    %v8083 = vunpack.c.l.b16 %v7358
    %v8084 = vunpack.c.h.b16 %v7358
    %v8085 = vunpack.c.l.b16 %v7359
    %v8086 = vunpack.c.h.b16 %v7359
    %v8087 = vunpack.c.l.b16 %v7360
    %v8088 = vunpack.c.h.b16 %v7360
    %v8089 = vunpack.c.l.b16 %v7361
    %v8090 = vunpack.c.h.b16 %v7361
    %v8091 = vunpack.c.l.b16 %v7362
    %v8092 = vunpack.c.h.b16 %v7362
    %v8093 = vunpack.c.l.b16 %v7363
    %v8094 = vunpack.c.h.b16 %v7363
    %v8095 = vunpack.c.l.b16 %v7364
    %v8096 = vunpack.c.h.b16 %v7364
    %v8097 = vunpack.c.l.b16 %v7365
    %v8098 = vunpack.c.h.b16 %v7365
    %v8099 = vunpack.c.l.b16 %v7366
    %v8100 = vunpack.c.h.b16 %v7366
    %v8101 = vunpack.c.l.b16 %v7367
    %v8102 = vunpack.c.h.b16 %v7367
    %v8103 = vunpack.c.l.b16 %v7368
    %v8104 = vunpack.c.h.b16 %v7368
    %v8105 = vunpack.c.l.b16 %v7369
    %v8106 = vunpack.c.h.b16 %v7369
    %v8107 = vunpack.c.l.b16 %v7370
    %v8108 = vunpack.c.h.b16 %v7370
    %v8109 = vunpack.c.l.b16 %v7371
    %v8110 = vunpack.c.h.b16 %v7371
    %v8111 = vunpack.c.l.b16 %v7372
    %v8112 = vunpack.c.h.b16 %v7372
    %v8113 = vunpack.c.l.b16 %v7373
    %v8114 = vunpack.c.h.b16 %v7373
    %v8115 = vunpack.c.l.b16 %v7374
    %v8116 = vunpack.c.h.b16 %v7374
    %v8117 = vunpack.c.l.b16 %v7375
    %v8118 = vunpack.c.h.b16 %v7375
    %v8119 = vunpack.c.l.b16 %v7376
    %v8120 = vunpack.c.h.b16 %v7376
    %v8121 = vunpack.c.l.b16 %v7377
    %v8122 = vunpack.c.h.b16 %v7377
    %v8123 = vunpack.c.l.b16 %v7378
    %v8124 = vunpack.c.h.b16 %v7378
    %v8125 = vunpack.c.l.b16 %v7379
    %v8126 = vunpack.c.h.b16 %v7379
    %v8127 = vunpack.c.l.b16 %v7380
    %v8128 = vunpack.c.h.b16 %v7380
    %v8129 = vunpack.c.l.b16 %v7381
    %v8130 = vunpack.c.h.b16 %v7381
    %v8131 = vunpack.c.l.b16 %v7382
    %v8132 = vunpack.c.h.b16 %v7382
    %v8133 = vunpack.c.l.b16 %v7383
    %v8134 = vunpack.c.h.b16 %v7383
    %v8135 = vunpack.c.l.b16 %v7384
    %v8136 = vunpack.c.h.b16 %v7384
    %v8137 = vunpack.c.l.b16 %v7385
    %v8138 = vunpack.c.h.b16 %v7385
    %v8139 = vunpack.c.l.b16 %v7386
    %v8140 = vunpack.c.h.b16 %v7386
    %v8141 = vunpack.c.l.b16 %v7387
    %v8142 = vunpack.c.h.b16 %v7387
    %v8143 = vunpack.c.l.b16 %v7388
    %v8144 = vunpack.c.h.b16 %v7388
    %v8145 = vunpack.c.l.b16 %v7389
    %v8146 = vunpack.c.h.b16 %v7389
    %v8147 = vunpack.c.l.b16 %v7390
    %v8148 = vunpack.c.h.b16 %v7390
    %v8149 = vunpack.c.l.b16 %v7391
    %v8150 = vunpack.c.h.b16 %v7391
    %v8151 = vunpack.c.l.b16 %v7392
    %v8152 = vunpack.c.h.b16 %v7392
    %v8153 = vunpack.c.l.b16 %v7393
    %v8154 = vunpack.c.h.b16 %v7393
    %v8155 = vunpack.c.l.b16 %v7394
    %v8156 = vunpack.c.h.b16 %v7394
    %v8157 = vunpack.c.l.b16 %v7395
    %v8158 = vunpack.c.h.b16 %v7395
    %v8159 = vunpack.c.l.b16 %v7396
    %v8160 = vunpack.c.h.b16 %v7396
    %v8161 = vunpack.c.l.b16 %v7397
    %v8162 = vunpack.c.h.b16 %v7397
    %v8163 = vunpack.c.l.b16 %v7398
    %v8164 = vunpack.c.h.b16 %v7398
    %v8165 = vunpack.c.l.b16 %v7399
    %v8166 = vunpack.c.h.b16 %v7399
    %v8167 = vunpack.c.l.b16 %v7400
    %v8168 = vunpack.c.h.b16 %v7400
    %v8169 = vunpack.c.l.b16 %v7401
    %v8170 = vunpack.c.h.b16 %v7401
    %v8171 = vunpack.c.l.b16 %v7402
    %v8172 = vunpack.c.h.b16 %v7402
    %v8173 = vunpack.c.l.b16 %v7403
    %v8174 = vunpack.c.h.b16 %v7403
    %v8175 = vunpack.c.l.b16 %v7404
    %v8176 = vunpack.c.h.b16 %v7404
    %v8177 = vunpack.c.l.b16 %v7405
    %v8178 = vunpack.c.h.b16 %v7405
    %v8179 = vunpack.c.l.b16 %v7406
    %v8180 = vunpack.c.h.b16 %v7406
    %v8181 = vunpack.c.l.b16 %v7407
    %v8182 = vunpack.c.h.b16 %v7407
    %v8183 = vunpack.c.l.b16 %v7408
    %v8184 = vunpack.c.h.b16 %v7408
    %v8185 = vunpack.c.l.b16 %v7409
    %v8186 = vunpack.c.h.b16 %v7409
    %v8187 = vunpack.c.l.b16 %v7410
    %v8188 = vunpack.c.h.b16 %v7410
    %v8189 = vpack.c.b16 %v7681, %v7677
    %v8190 = vpack.c.b16 %v7682, %v7678
    %v8191 = vpack.c.b16 %v7683, %v7679
    %v8192 = vpack.c.b16 %v7684, %v7680
    %v8193 = vpack.c.b16 %v7689, %v7685
    %v8194 = vpack.c.b16 %v7690, %v7686
    %v8195 = vpack.c.b16 %v7691, %v7687
    %v8196 = vpack.c.b16 %v7692, %v7688
    %v8197 = vpack.c.b16 %v7697, %v7693
    %v8198 = vpack.c.b16 %v7698, %v7694
    %v8199 = vpack.c.b16 %v7699, %v7695
    %v8200 = vpack.c.b16 %v7700, %v7696
    %v8201 = vpack.c.b16 %v7705, %v7701
    %v8202 = vpack.c.b16 %v7706, %v7702
    %v8203 = vpack.c.b16 %v7707, %v7703
    %v8204 = vpack.c.b16 %v7708, %v7704
    %v8205 = vpack.c.b16 %v7713, %v7709
    %v8206 = vpack.c.b16 %v7714, %v7710
    %v8207 = vpack.c.b16 %v7715, %v7711
    %v8208 = vpack.c.b16 %v7716, %v7712
    %v8209 = vpack.c.b16 %v7721, %v7717
    %v8210 = vpack.c.b16 %v7722, %v7718
    %v8211 = vpack.c.b16 %v7723, %v7719
    %v8212 = vpack.c.b16 %v7724, %v7720
    %v8213 = vpack.c.b16 %v7729, %v7725
    %v8214 = vpack.c.b16 %v7730, %v7726
    %v8215 = vpack.c.b16 %v7731, %v7727
    %v8216 = vpack.c.b16 %v7732, %v7728
    %v8217 = vpack.c.b16 %v7737, %v7733
    %v8218 = vpack.c.b16 %v7738, %v7734
    %v8219 = vpack.c.b16 %v7739, %v7735
    %v8220 = vpack.c.b16 %v7740, %v7736
    %v8221 = vpack.c.b16 %v7745, %v7741
    %v8222 = vpack.c.b16 %v7746, %v7742
    %v8223 = vpack.c.b16 %v7747, %v7743
    %v8224 = vpack.c.b16 %v7748, %v7744
    %v8225 = vpack.c.b16 %v7753, %v7749
    %v8226 = vpack.c.b16 %v7754, %v7750
    %v8227 = vpack.c.b16 %v7755, %v7751
    %v8228 = vpack.c.b16 %v7756, %v7752
    %v8229 = vpack.c.b16 %v7761, %v7757
    %v8230 = vpack.c.b16 %v7762, %v7758
    %v8231 = vpack.c.b16 %v7763, %v7759
    %v8232 = vpack.c.b16 %v7764, %v7760
    %v8233 = vpack.c.b16 %v7769, %v7765
    %v8234 = vpack.c.b16 %v7770, %v7766
    %v8235 = vpack.c.b16 %v7771, %v7767
    %v8236 = vpack.c.b16 %v7772, %v7768
    %v8237 = vpack.c.b16 %v7777, %v7773
    %v8238 = vpack.c.b16 %v7778, %v7774
    %v8239 = vpack.c.b16 %v7779, %v7775
    %v8240 = vpack.c.b16 %v7780, %v7776
    %v8241 = vpack.c.b16 %v7785, %v7781
    %v8242 = vpack.c.b16 %v7786, %v7782
    %v8243 = vpack.c.b16 %v7787, %v7783
    %v8244 = vpack.c.b16 %v7788, %v7784
    %v8245 = vpack.c.b16 %v7793, %v7789
    %v8246 = vpack.c.b16 %v7794, %v7790
    %v8247 = vpack.c.b16 %v7795, %v7791
    %v8248 = vpack.c.b16 %v7796, %v7792
    %v8249 = vpack.c.b16 %v7801, %v7797
    %v8250 = vpack.c.b16 %v7802, %v7798
    %v8251 = vpack.c.b16 %v7803, %v7799
    %v8252 = vpack.c.b16 %v7804, %v7800
    %v8253 = vpack.c.b16 %v7809, %v7805
    %v8254 = vpack.c.b16 %v7810, %v7806
    %v8255 = vpack.c.b16 %v7811, %v7807
    %v8256 = vpack.c.b16 %v7812, %v7808
    %v8257 = vpack.c.b16 %v7817, %v7813
    %v8258 = vpack.c.b16 %v7818, %v7814
    %v8259 = vpack.c.b16 %v7819, %v7815
    %v8260 = vpack.c.b16 %v7820, %v7816
    %v8261 = vpack.c.b16 %v7825, %v7821
    %v8262 = vpack.c.b16 %v7826, %v7822
    %v8263 = vpack.c.b16 %v7827, %v7823
    %v8264 = vpack.c.b16 %v7828, %v7824
    %v8265 = vpack.c.b16 %v7833, %v7829
    %v8266 = vpack.c.b16 %v7834, %v7830
    %v8267 = vpack.c.b16 %v7835, %v7831
    %v8268 = vpack.c.b16 %v7836, %v7832
    %v8269 = vpack.c.b16 %v7841, %v7837
    %v8270 = vpack.c.b16 %v7842, %v7838
    %v8271 = vpack.c.b16 %v7843, %v7839
    %v8272 = vpack.c.b16 %v7844, %v7840
    %v8273 = vpack.c.b16 %v7849, %v7845
    %v8274 = vpack.c.b16 %v7850, %v7846
    %v8275 = vpack.c.b16 %v7851, %v7847
    %v8276 = vpack.c.b16 %v7852, %v7848
    %v8277 = vpack.c.b16 %v7857, %v7853
    %v8278 = vpack.c.b16 %v7858, %v7854
    %v8279 = vpack.c.b16 %v7859, %v7855
    %v8280 = vpack.c.b16 %v7860, %v7856
    %v8281 = vpack.c.b16 %v7865, %v7861
    %v8282 = vpack.c.b16 %v7866, %v7862
    %v8283 = vpack.c.b16 %v7867, %v7863
    %v8284 = vpack.c.b16 %v7868, %v7864
    %v8285 = vpack.c.b16 %v7873, %v7869
    %v8286 = vpack.c.b16 %v7874, %v7870
    %v8287 = vpack.c.b16 %v7875, %v7871
    %v8288 = vpack.c.b16 %v7876, %v7872
    %v8289 = vpack.c.b16 %v7881, %v7877
    %v8290 = vpack.c.b16 %v7882, %v7878
    %v8291 = vpack.c.b16 %v7883, %v7879
    %v8292 = vpack.c.b16 %v7884, %v7880
    %v8293 = vpack.c.b16 %v7889, %v7885
    %v8294 = vpack.c.b16 %v7890, %v7886
    %v8295 = vpack.c.b16 %v7891, %v7887
    %v8296 = vpack.c.b16 %v7892, %v7888
    %v8297 = vpack.c.b16 %v7897, %v7893
    %v8298 = vpack.c.b16 %v7898, %v7894
    %v8299 = vpack.c.b16 %v7899, %v7895
    %v8300 = vpack.c.b16 %v7900, %v7896
    %v8301 = vpack.c.b16 %v7905, %v7901
    %v8302 = vpack.c.b16 %v7906, %v7902
    %v8303 = vpack.c.b16 %v7907, %v7903
    %v8304 = vpack.c.b16 %v7908, %v7904
    %v8305 = vpack.c.b16 %v7913, %v7909
    %v8306 = vpack.c.b16 %v7914, %v7910
    %v8307 = vpack.c.b16 %v7915, %v7911
    %v8308 = vpack.c.b16 %v7916, %v7912
    %v8309 = vpack.c.b16 %v7921, %v7917
    %v8310 = vpack.c.b16 %v7922, %v7918
    %v8311 = vpack.c.b16 %v7923, %v7919
    %v8312 = vpack.c.b16 %v7924, %v7920
    %v8313 = vpack.c.b16 %v7929, %v7925
    %v8314 = vpack.c.b16 %v7930, %v7926
    %v8315 = vpack.c.b16 %v7931, %v7927
    %v8316 = vpack.c.b16 %v7932, %v7928
    %v8317 = vpack.c.b16 %v7937, %v7933
    %v8318 = vpack.c.b16 %v7938, %v7934
    %v8319 = vpack.c.b16 %v7939, %v7935
    %v8320 = vpack.c.b16 %v7940, %v7936
    %v8321 = vpack.c.b16 %v7945, %v7941
    %v8322 = vpack.c.b16 %v7946, %v7942
    %v8323 = vpack.c.b16 %v7947, %v7943
    %v8324 = vpack.c.b16 %v7948, %v7944
    %v8325 = vpack.c.b16 %v7953, %v7949
    %v8326 = vpack.c.b16 %v7954, %v7950
    %v8327 = vpack.c.b16 %v7955, %v7951
    %v8328 = vpack.c.b16 %v7956, %v7952
    %v8329 = vpack.c.b16 %v7961, %v7957
    %v8330 = vpack.c.b16 %v7962, %v7958
    %v8331 = vpack.c.b16 %v7963, %v7959
    %v8332 = vpack.c.b16 %v7964, %v7960
    %v8333 = vpack.c.b16 %v7969, %v7965
    %v8334 = vpack.c.b16 %v7970, %v7966
    %v8335 = vpack.c.b16 %v7971, %v7967
    %v8336 = vpack.c.b16 %v7972, %v7968
    %v8337 = vpack.c.b16 %v7977, %v7973
    %v8338 = vpack.c.b16 %v7978, %v7974
    %v8339 = vpack.c.b16 %v7979, %v7975
    %v8340 = vpack.c.b16 %v7980, %v7976
    %v8341 = vpack.c.b16 %v7985, %v7981
    %v8342 = vpack.c.b16 %v7986, %v7982
    %v8343 = vpack.c.b16 %v7987, %v7983
    %v8344 = vpack.c.b16 %v7988, %v7984
    %v8345 = vpack.c.b16 %v7993, %v7989
    %v8346 = vpack.c.b16 %v7994, %v7990
    %v8347 = vpack.c.b16 %v7995, %v7991
    %v8348 = vpack.c.b16 %v7996, %v7992
    %v8349 = vpack.c.b16 %v8001, %v7997
    %v8350 = vpack.c.b16 %v8002, %v7998
    %v8351 = vpack.c.b16 %v8003, %v7999
    %v8352 = vpack.c.b16 %v8004, %v8000
    %v8353 = vpack.c.b16 %v8009, %v8005
    %v8354 = vpack.c.b16 %v8010, %v8006
    %v8355 = vpack.c.b16 %v8011, %v8007
    %v8356 = vpack.c.b16 %v8012, %v8008
    %v8357 = vpack.c.b16 %v8017, %v8013
    %v8358 = vpack.c.b16 %v8018, %v8014
    %v8359 = vpack.c.b16 %v8019, %v8015
    %v8360 = vpack.c.b16 %v8020, %v8016
    %v8361 = vpack.c.b16 %v8025, %v8021
    %v8362 = vpack.c.b16 %v8026, %v8022
    %v8363 = vpack.c.b16 %v8027, %v8023
    %v8364 = vpack.c.b16 %v8028, %v8024
    %v8365 = vpack.c.b16 %v8033, %v8029
    %v8366 = vpack.c.b16 %v8034, %v8030
    %v8367 = vpack.c.b16 %v8035, %v8031
    %v8368 = vpack.c.b16 %v8036, %v8032
    %v8369 = vpack.c.b16 %v8041, %v8037
    %v8370 = vpack.c.b16 %v8042, %v8038
    %v8371 = vpack.c.b16 %v8043, %v8039
    %v8372 = vpack.c.b16 %v8044, %v8040
    %v8373 = vpack.c.b16 %v8049, %v8045
    %v8374 = vpack.c.b16 %v8050, %v8046
    %v8375 = vpack.c.b16 %v8051, %v8047
    %v8376 = vpack.c.b16 %v8052, %v8048
    %v8377 = vpack.c.b16 %v8057, %v8053
    %v8378 = vpack.c.b16 %v8058, %v8054
    %v8379 = vpack.c.b16 %v8059, %v8055
    %v8380 = vpack.c.b16 %v8060, %v8056
    %v8381 = vpack.c.b16 %v8065, %v8061
    %v8382 = vpack.c.b16 %v8066, %v8062
    %v8383 = vpack.c.b16 %v8067, %v8063
    %v8384 = vpack.c.b16 %v8068, %v8064
    %v8385 = vpack.c.b16 %v8073, %v8069
    %v8386 = vpack.c.b16 %v8074, %v8070
    %v8387 = vpack.c.b16 %v8075, %v8071
    %v8388 = vpack.c.b16 %v8076, %v8072
    %v8389 = vpack.c.b16 %v8081, %v8077
    %v8390 = vpack.c.b16 %v8082, %v8078
    %v8391 = vpack.c.b16 %v8083, %v8079
    %v8392 = vpack.c.b16 %v8084, %v8080
    %v8393 = vpack.c.b16 %v8089, %v8085
    %v8394 = vpack.c.b16 %v8090, %v8086
    %v8395 = vpack.c.b16 %v8091, %v8087
    %v8396 = vpack.c.b16 %v8092, %v8088
    %v8397 = vpack.c.b16 %v8097, %v8093
    %v8398 = vpack.c.b16 %v8098, %v8094
    %v8399 = vpack.c.b16 %v8099, %v8095
    %v8400 = vpack.c.b16 %v8100, %v8096
    %v8401 = vpack.c.b16 %v8105, %v8101
    %v8402 = vpack.c.b16 %v8106, %v8102
    %v8403 = vpack.c.b16 %v8107, %v8103
    %v8404 = vpack.c.b16 %v8108, %v8104
    %v8405 = vpack.c.b16 %v8113, %v8109
    %v8406 = vpack.c.b16 %v8114, %v8110
    %v8407 = vpack.c.b16 %v8115, %v8111
    %v8408 = vpack.c.b16 %v8116, %v8112
    %v8409 = vpack.c.b16 %v8121, %v8117
    %v8410 = vpack.c.b16 %v8122, %v8118
    %v8411 = vpack.c.b16 %v8123, %v8119
    %v8412 = vpack.c.b16 %v8124, %v8120
    %v8413 = vpack.c.b16 %v8129, %v8125
    %v8414 = vpack.c.b16 %v8130, %v8126
    %v8415 = vpack.c.b16 %v8131, %v8127
    %v8416 = vpack.c.b16 %v8132, %v8128
    %v8417 = vpack.c.b16 %v8137, %v8133
    %v8418 = vpack.c.b16 %v8138, %v8134
    %v8419 = vpack.c.b16 %v8139, %v8135
    %v8420 = vpack.c.b16 %v8140, %v8136
    %v8421 = vpack.c.b16 %v8145, %v8141
    %v8422 = vpack.c.b16 %v8146, %v8142
    %v8423 = vpack.c.b16 %v8147, %v8143
    %v8424 = vpack.c.b16 %v8148, %v8144
    %v8425 = vpack.c.b16 %v8153, %v8149
    %v8426 = vpack.c.b16 %v8154, %v8150
    %v8427 = vpack.c.b16 %v8155, %v8151
    %v8428 = vpack.c.b16 %v8156, %v8152
    %v8429 = vpack.c.b16 %v8161, %v8157
    %v8430 = vpack.c.b16 %v8162, %v8158
    %v8431 = vpack.c.b16 %v8163, %v8159
    %v8432 = vpack.c.b16 %v8164, %v8160
    %v8433 = vpack.c.b16 %v8169, %v8165
    %v8434 = vpack.c.b16 %v8170, %v8166
    %v8435 = vpack.c.b16 %v8171, %v8167
    %v8436 = vpack.c.b16 %v8172, %v8168
    %v8437 = vpack.c.b16 %v8177, %v8173
    %v8438 = vpack.c.b16 %v8178, %v8174
    %v8439 = vpack.c.b16 %v8179, %v8175
    %v8440 = vpack.c.b16 %v8180, %v8176
    %v8441 = vpack.c.b16 %v8185, %v8181
    %v8442 = vpack.c.b16 %v8186, %v8182
    %v8443 = vpack.c.b16 %v8187, %v8183
    %v8444 = vpack.c.b16 %v8188, %v8184
    %8701 = vmatpush.bf16.msra.mxu0 %v8217
    %8702 = vmatpush.bf16.msra.mxu0 %v8213
    %8703 = vmatpush.bf16.msra.mxu0 %v8209
    %8704 = vmatpush.bf16.msra.mxu0 %v8205
    %8705 = vmatpush.bf16.msra.mxu0 %v8201
    %8706 = vmatpush.bf16.msra.mxu0 %v8197
    %8707 = vmatpush.bf16.msra.mxu0 %v8193
    %8708 = vmatpush.bf16.msra.mxu0 %v8189
    %8709 = vmatmul.bf16.gmra.mxu0 %v7147
    %v8710 = vpop.f32.mrf.mxu0
    %v8711 = vadd.f32 %v7413, %v8710
    %v8712 = vpop.f32.mrf.mxu0
    %8713 = vdwg.mxu0
    %8714 = vmatpush.bf16.msra.mxu0 %v8249
    %8715 = vmatpush.bf16.msra.mxu0 %v8245
    %8716 = vmatpush.bf16.msra.mxu0 %v8241
    %8717 = vmatpush.bf16.msra.mxu0 %v8237
    %8718 = vmatpush.bf16.msra.mxu0 %v8233
    %8719 = vmatpush.bf16.msra.mxu0 %v8229
    %8720 = vmatpush.bf16.msra.mxu0 %v8225
    %8721 = vmatpush.bf16.msra.mxu0 %v8221
    %8722 = vmatmul.bf16.gmra.mxu0 %v7148
    %v8723 = vpop.f32.mrf.mxu0
    %v8724 = vadd.f32 %v8711, %v8723
    %v8725 = vpop.f32.mrf.mxu0
    %8726 = vdwg.mxu0
    %8727 = vmatpush.bf16.msra.mxu0 %v8281
    %8728 = vmatpush.bf16.msra.mxu0 %v8277
    %8729 = vmatpush.bf16.msra.mxu0 %v8273
    %8730 = vmatpush.bf16.msra.mxu0 %v8269
    %8731 = vmatpush.bf16.msra.mxu0 %v8265
    %8732 = vmatpush.bf16.msra.mxu0 %v8261
    %8733 = vmatpush.bf16.msra.mxu0 %v8257
    %8734 = vmatpush.bf16.msra.mxu0 %v8253
    %8735 = vmatmul.bf16.gmra.mxu0 %v7149
    %v8736 = vpop.f32.mrf.mxu0
    %v8737 = vadd.f32 %v8724, %v8736
    %v8738 = vpop.f32.mrf.mxu0
    %8739 = vdwg.mxu0
    %8740 = vmatpush.bf16.msra.mxu0 %v8313
    %8741 = vmatpush.bf16.msra.mxu0 %v8309
    %8742 = vmatpush.bf16.msra.mxu0 %v8305
    %8743 = vmatpush.bf16.msra.mxu0 %v8301
    %8744 = vmatpush.bf16.msra.mxu0 %v8297
    %8745 = vmatpush.bf16.msra.mxu0 %v8293
    %8746 = vmatpush.bf16.msra.mxu0 %v8289
    %8747 = vmatpush.bf16.msra.mxu0 %v8285
    %8748 = vmatmul.bf16.gmra.mxu0 %v7150
    %v8749 = vpop.f32.mrf.mxu0
    %v8750 = vadd.f32 %v8737, %v8749
    %v8751 = vpop.f32.mrf.mxu0
    %8752 = vdwg.mxu0
    %8753 = vmatpush.bf16.msra.mxu0 %v8345
    %8754 = vmatpush.bf16.msra.mxu0 %v8341
    %8755 = vmatpush.bf16.msra.mxu0 %v8337
    %8756 = vmatpush.bf16.msra.mxu0 %v8333
    %8757 = vmatpush.bf16.msra.mxu0 %v8329
    %8758 = vmatpush.bf16.msra.mxu0 %v8325
    %8759 = vmatpush.bf16.msra.mxu0 %v8321
    %8760 = vmatpush.bf16.msra.mxu0 %v8317
    %8761 = vmatmul.bf16.gmra.mxu0 %v7151
    %v8762 = vpop.f32.mrf.mxu0
    %v8763 = vadd.f32 %v8750, %v8762
    %v8764 = vpop.f32.mrf.mxu0
    %8765 = vdwg.mxu0
    %8766 = vmatpush.bf16.msra.mxu0 %v8377
    %8767 = vmatpush.bf16.msra.mxu0 %v8373
    %8768 = vmatpush.bf16.msra.mxu0 %v8369
    %8769 = vmatpush.bf16.msra.mxu0 %v8365
    %8770 = vmatpush.bf16.msra.mxu0 %v8361
    %8771 = vmatpush.bf16.msra.mxu0 %v8357
    %8772 = vmatpush.bf16.msra.mxu0 %v8353
    %8773 = vmatpush.bf16.msra.mxu0 %v8349
    %8774 = vmatmul.bf16.gmra.mxu0 %v7152
    %v8775 = vpop.f32.mrf.mxu0
    %v8776 = vadd.f32 %v8763, %v8775
    %v8777 = vpop.f32.mrf.mxu0
    %8778 = vdwg.mxu0
    %8779 = vmatpush.bf16.msra.mxu0 %v8409
    %8780 = vmatpush.bf16.msra.mxu0 %v8405
    %8781 = vmatpush.bf16.msra.mxu0 %v8401
    %8782 = vmatpush.bf16.msra.mxu0 %v8397
    %8783 = vmatpush.bf16.msra.mxu0 %v8393
    %8784 = vmatpush.bf16.msra.mxu0 %v8389
    %8785 = vmatpush.bf16.msra.mxu0 %v8385
    %8786 = vmatpush.bf16.msra.mxu0 %v8381
    %8787 = vmatmul.bf16.gmra.mxu0 %v7153
    %v8788 = vpop.f32.mrf.mxu0
    %v8789 = vadd.f32 %v8776, %v8788
    %v8790 = vpop.f32.mrf.mxu0
    %8791 = vdwg.mxu0
    %8792 = vmatpush.bf16.msra.mxu0 %v8441
    %8793 = vmatpush.bf16.msra.mxu0 %v8437
    %8794 = vmatpush.bf16.msra.mxu0 %v8433
    %8795 = vmatpush.bf16.msra.mxu0 %v8429
    %8796 = vmatpush.bf16.msra.mxu0 %v8425
    %8797 = vmatpush.bf16.msra.mxu0 %v8421
    %8798 = vmatpush.bf16.msra.mxu0 %v8417
    %8799 = vmatpush.bf16.msra.mxu0 %v8413
    %8800 = vmatmul.bf16.gmra.mxu0 %v7154
    %v8801 = vpop.f32.mrf.mxu0
    %v8802 = vadd.f32 %v8789, %v8801
    %v8803 = vpop.f32.mrf.mxu0
    %8804 = vdwg.mxu0
    %8805 = vmatpush.bf16.msra.mxu0 %v8218
    %8806 = vmatpush.bf16.msra.mxu0 %v8214
    %8807 = vmatpush.bf16.msra.mxu0 %v8210
    %8808 = vmatpush.bf16.msra.mxu0 %v8206
    %8809 = vmatpush.bf16.msra.mxu0 %v8202
    %8810 = vmatpush.bf16.msra.mxu0 %v8198
    %8811 = vmatpush.bf16.msra.mxu0 %v8194
    %8812 = vmatpush.bf16.msra.mxu0 %v8190
    %8813 = vmatmul.bf16.gmra.mxu0 %v7147
    %v8814 = vpop.f32.mrf.mxu0
    %v8815 = vadd.f32 %v7414, %v8814
    %v8816 = vpop.f32.mrf.mxu0
    %8817 = vdwg.mxu0
    %8818 = vmatpush.bf16.msra.mxu0 %v8250
    %8819 = vmatpush.bf16.msra.mxu0 %v8246
    %8820 = vmatpush.bf16.msra.mxu0 %v8242
    %8821 = vmatpush.bf16.msra.mxu0 %v8238
    %8822 = vmatpush.bf16.msra.mxu0 %v8234
    %8823 = vmatpush.bf16.msra.mxu0 %v8230
    %8824 = vmatpush.bf16.msra.mxu0 %v8226
    %8825 = vmatpush.bf16.msra.mxu0 %v8222
    %8826 = vmatmul.bf16.gmra.mxu0 %v7148
    %v8827 = vpop.f32.mrf.mxu0
    %v8828 = vadd.f32 %v8815, %v8827
    %v8829 = vpop.f32.mrf.mxu0
    %8830 = vdwg.mxu0
    %8831 = vmatpush.bf16.msra.mxu0 %v8282
    %8832 = vmatpush.bf16.msra.mxu0 %v8278
    %8833 = vmatpush.bf16.msra.mxu0 %v8274
    %8834 = vmatpush.bf16.msra.mxu0 %v8270
    %8835 = vmatpush.bf16.msra.mxu0 %v8266
    %8836 = vmatpush.bf16.msra.mxu0 %v8262
    %8837 = vmatpush.bf16.msra.mxu0 %v8258
    %8838 = vmatpush.bf16.msra.mxu0 %v8254
    %8839 = vmatmul.bf16.gmra.mxu0 %v7149
    %v8840 = vpop.f32.mrf.mxu0
    %v8841 = vadd.f32 %v8828, %v8840
    %v8842 = vpop.f32.mrf.mxu0
    %8843 = vdwg.mxu0
    %8844 = vmatpush.bf16.msra.mxu0 %v8314
    %8845 = vmatpush.bf16.msra.mxu0 %v8310
    %8846 = vmatpush.bf16.msra.mxu0 %v8306
    %8847 = vmatpush.bf16.msra.mxu0 %v8302
    %8848 = vmatpush.bf16.msra.mxu0 %v8298
    %8849 = vmatpush.bf16.msra.mxu0 %v8294
    %8850 = vmatpush.bf16.msra.mxu0 %v8290
    %8851 = vmatpush.bf16.msra.mxu0 %v8286
    %8852 = vmatmul.bf16.gmra.mxu0 %v7150
    %v8853 = vpop.f32.mrf.mxu0
    %v8854 = vadd.f32 %v8841, %v8853
    %v8855 = vpop.f32.mrf.mxu0
    %8856 = vdwg.mxu0
    %8857 = vmatpush.bf16.msra.mxu0 %v8346
    %8858 = vmatpush.bf16.msra.mxu0 %v8342
    %8859 = vmatpush.bf16.msra.mxu0 %v8338
    %8860 = vmatpush.bf16.msra.mxu0 %v8334
    %8861 = vmatpush.bf16.msra.mxu0 %v8330
    %8862 = vmatpush.bf16.msra.mxu0 %v8326
    %8863 = vmatpush.bf16.msra.mxu0 %v8322
    %8864 = vmatpush.bf16.msra.mxu0 %v8318
    %8865 = vmatmul.bf16.gmra.mxu0 %v7151
    %v8866 = vpop.f32.mrf.mxu0
    %v8867 = vadd.f32 %v8854, %v8866
    %v8868 = vpop.f32.mrf.mxu0
    %8869 = vdwg.mxu0
    %8870 = vmatpush.bf16.msra.mxu0 %v8378
    %8871 = vmatpush.bf16.msra.mxu0 %v8374
    %8872 = vmatpush.bf16.msra.mxu0 %v8370
    %8873 = vmatpush.bf16.msra.mxu0 %v8366
    %8874 = vmatpush.bf16.msra.mxu0 %v8362
    %8875 = vmatpush.bf16.msra.mxu0 %v8358
    %8876 = vmatpush.bf16.msra.mxu0 %v8354
    %8877 = vmatpush.bf16.msra.mxu0 %v8350
    %8878 = vmatmul.bf16.gmra.mxu0 %v7152
    %v8879 = vpop.f32.mrf.mxu0
    %v8880 = vadd.f32 %v8867, %v8879
    %v8881 = vpop.f32.mrf.mxu0
    %8882 = vdwg.mxu0
    %8883 = vmatpush.bf16.msra.mxu0 %v8410
    %8884 = vmatpush.bf16.msra.mxu0 %v8406
    %8885 = vmatpush.bf16.msra.mxu0 %v8402
    %8886 = vmatpush.bf16.msra.mxu0 %v8398
    %8887 = vmatpush.bf16.msra.mxu0 %v8394
    %8888 = vmatpush.bf16.msra.mxu0 %v8390
    %8889 = vmatpush.bf16.msra.mxu0 %v8386
    %8890 = vmatpush.bf16.msra.mxu0 %v8382
    %8891 = vmatmul.bf16.gmra.mxu0 %v7153
    %v8892 = vpop.f32.mrf.mxu0
    %v8893 = vadd.f32 %v8880, %v8892
    %v8894 = vpop.f32.mrf.mxu0
    %8895 = vdwg.mxu0
    %8896 = vmatpush.bf16.msra.mxu0 %v8442
    %8897 = vmatpush.bf16.msra.mxu0 %v8438
    %8898 = vmatpush.bf16.msra.mxu0 %v8434
    %8899 = vmatpush.bf16.msra.mxu0 %v8430
    %8900 = vmatpush.bf16.msra.mxu0 %v8426
    %8901 = vmatpush.bf16.msra.mxu0 %v8422
    %8902 = vmatpush.bf16.msra.mxu0 %v8418
    %8903 = vmatpush.bf16.msra.mxu0 %v8414
    %8904 = vmatmul.bf16.gmra.mxu0 %v7154
    %v8905 = vpop.f32.mrf.mxu0
    %v8906 = vadd.f32 %v8893, %v8905
    %v8907 = vpop.f32.mrf.mxu0
    %8908 = vdwg.mxu0
    %8909 = vmatpush.bf16.msra.mxu0 %v8219
    %8910 = vmatpush.bf16.msra.mxu0 %v8215
    %8911 = vmatpush.bf16.msra.mxu0 %v8211
    %8912 = vmatpush.bf16.msra.mxu0 %v8207
    %8913 = vmatpush.bf16.msra.mxu0 %v8203
    %8914 = vmatpush.bf16.msra.mxu0 %v8199
    %8915 = vmatpush.bf16.msra.mxu0 %v8195
    %8916 = vmatpush.bf16.msra.mxu0 %v8191
    %8917 = vmatmul.bf16.gmra.mxu0 %v7147
    %v8918 = vpop.f32.mrf.mxu0
    %v8919 = vadd.f32 %v7415, %v8918
    %v8920 = vpop.f32.mrf.mxu0
    %8921 = vdwg.mxu0
    %8922 = vmatpush.bf16.msra.mxu0 %v8251
    %8923 = vmatpush.bf16.msra.mxu0 %v8247
    %8924 = vmatpush.bf16.msra.mxu0 %v8243
    %8925 = vmatpush.bf16.msra.mxu0 %v8239
    %8926 = vmatpush.bf16.msra.mxu0 %v8235
    %8927 = vmatpush.bf16.msra.mxu0 %v8231
    %8928 = vmatpush.bf16.msra.mxu0 %v8227
    %8929 = vmatpush.bf16.msra.mxu0 %v8223
    %8930 = vmatmul.bf16.gmra.mxu0 %v7148
    %v8931 = vpop.f32.mrf.mxu0
    %v8932 = vadd.f32 %v8919, %v8931
    %v8933 = vpop.f32.mrf.mxu0
    %8934 = vdwg.mxu0
    %8935 = vmatpush.bf16.msra.mxu0 %v8283
    %8936 = vmatpush.bf16.msra.mxu0 %v8279
    %8937 = vmatpush.bf16.msra.mxu0 %v8275
    %8938 = vmatpush.bf16.msra.mxu0 %v8271
    %8939 = vmatpush.bf16.msra.mxu0 %v8267
    %8940 = vmatpush.bf16.msra.mxu0 %v8263
    %8941 = vmatpush.bf16.msra.mxu0 %v8259
    %8942 = vmatpush.bf16.msra.mxu0 %v8255
    %8943 = vmatmul.bf16.gmra.mxu0 %v7149
    %v8944 = vpop.f32.mrf.mxu0
    %v8945 = vadd.f32 %v8932, %v8944
    %v8946 = vpop.f32.mrf.mxu0
    %8947 = vdwg.mxu0
    %8948 = vmatpush.bf16.msra.mxu0 %v8315
    %8949 = vmatpush.bf16.msra.mxu0 %v8311
    %8950 = vmatpush.bf16.msra.mxu0 %v8307
    %8951 = vmatpush.bf16.msra.mxu0 %v8303
    %8952 = vmatpush.bf16.msra.mxu0 %v8299
    %8953 = vmatpush.bf16.msra.mxu0 %v8295
    %8954 = vmatpush.bf16.msra.mxu0 %v8291
    %8955 = vmatpush.bf16.msra.mxu0 %v8287
    %8956 = vmatmul.bf16.gmra.mxu0 %v7150
    %v8957 = vpop.f32.mrf.mxu0
    %v8958 = vadd.f32 %v8945, %v8957
    %v8959 = vpop.f32.mrf.mxu0
    %8960 = vdwg.mxu0
    %8961 = vmatpush.bf16.msra.mxu0 %v8347
    %8962 = vmatpush.bf16.msra.mxu0 %v8343
    %8963 = vmatpush.bf16.msra.mxu0 %v8339
    %8964 = vmatpush.bf16.msra.mxu0 %v8335
    %8965 = vmatpush.bf16.msra.mxu0 %v8331
    %8966 = vmatpush.bf16.msra.mxu0 %v8327
    %8967 = vmatpush.bf16.msra.mxu0 %v8323
    %8968 = vmatpush.bf16.msra.mxu0 %v8319
    %8969 = vmatmul.bf16.gmra.mxu0 %v7151
    %v8970 = vpop.f32.mrf.mxu0
    %v8971 = vadd.f32 %v8958, %v8970
    %v8972 = vpop.f32.mrf.mxu0
    %8973 = vdwg.mxu0
    %8974 = vmatpush.bf16.msra.mxu0 %v8379
    %8975 = vmatpush.bf16.msra.mxu0 %v8375
    %8976 = vmatpush.bf16.msra.mxu0 %v8371
    %8977 = vmatpush.bf16.msra.mxu0 %v8367
    %8978 = vmatpush.bf16.msra.mxu0 %v8363
    %8979 = vmatpush.bf16.msra.mxu0 %v8359
    %8980 = vmatpush.bf16.msra.mxu0 %v8355
    %8981 = vmatpush.bf16.msra.mxu0 %v8351
    %8982 = vmatmul.bf16.gmra.mxu0 %v7152
    %v8983 = vpop.f32.mrf.mxu0
    %v8984 = vadd.f32 %v8971, %v8983
    %v8985 = vpop.f32.mrf.mxu0
    %8986 = vdwg.mxu0
    %8987 = vmatpush.bf16.msra.mxu0 %v8411
    %8988 = vmatpush.bf16.msra.mxu0 %v8407
    %8989 = vmatpush.bf16.msra.mxu0 %v8403
    %8990 = vmatpush.bf16.msra.mxu0 %v8399
    %8991 = vmatpush.bf16.msra.mxu0 %v8395
    %8992 = vmatpush.bf16.msra.mxu0 %v8391
    %8993 = vmatpush.bf16.msra.mxu0 %v8387
    %8994 = vmatpush.bf16.msra.mxu0 %v8383
    %8995 = vmatmul.bf16.gmra.mxu0 %v7153
    %v8996 = vpop.f32.mrf.mxu0
    %v8997 = vadd.f32 %v8984, %v8996
    %v8998 = vpop.f32.mrf.mxu0
    %8999 = vdwg.mxu0
    %9000 = vmatpush.bf16.msra.mxu0 %v8443
    %9001 = vmatpush.bf16.msra.mxu0 %v8439
    %9002 = vmatpush.bf16.msra.mxu0 %v8435
    %9003 = vmatpush.bf16.msra.mxu0 %v8431
    %9004 = vmatpush.bf16.msra.mxu0 %v8427
    %9005 = vmatpush.bf16.msra.mxu0 %v8423
    %9006 = vmatpush.bf16.msra.mxu0 %v8419
    %9007 = vmatpush.bf16.msra.mxu0 %v8415
    %9008 = vmatmul.bf16.gmra.mxu0 %v7154
    %v9009 = vpop.f32.mrf.mxu0
    %v9010 = vadd.f32 %v8997, %v9009
    %v9011 = vpop.f32.mrf.mxu0
    %9012 = vdwg.mxu0
    %9013 = vmatpush.bf16.msra.mxu0 %v8220
    %9014 = vmatpush.bf16.msra.mxu0 %v8216
    %9015 = vmatpush.bf16.msra.mxu0 %v8212
    %9016 = vmatpush.bf16.msra.mxu0 %v8208
    %9017 = vmatpush.bf16.msra.mxu0 %v8204
    %9018 = vmatpush.bf16.msra.mxu0 %v8200
    %9019 = vmatpush.bf16.msra.mxu0 %v8196
    %9020 = vmatpush.bf16.msra.mxu0 %v8192
    %9021 = vmatmul.bf16.gmra.mxu0 %v7147
    %v9022 = vpop.f32.mrf.mxu0
    %v9023 = vadd.f32 %v7416, %v9022
    %v9024 = vpop.f32.mrf.mxu0
    %9025 = vdwg.mxu0
    %9026 = vmatpush.bf16.msra.mxu0 %v8252
    %9027 = vmatpush.bf16.msra.mxu0 %v8248
    %9028 = vmatpush.bf16.msra.mxu0 %v8244
    %9029 = vmatpush.bf16.msra.mxu0 %v8240
    %9030 = vmatpush.bf16.msra.mxu0 %v8236
    %9031 = vmatpush.bf16.msra.mxu0 %v8232
    %9032 = vmatpush.bf16.msra.mxu0 %v8228
    %9033 = vmatpush.bf16.msra.mxu0 %v8224
    %9034 = vmatmul.bf16.gmra.mxu0 %v7148
    %v9035 = vpop.f32.mrf.mxu0
    %v9036 = vadd.f32 %v9023, %v9035
    %v9037 = vpop.f32.mrf.mxu0
    %9038 = vdwg.mxu0
    %9039 = vmatpush.bf16.msra.mxu0 %v8284
    %9040 = vmatpush.bf16.msra.mxu0 %v8280
    %9041 = vmatpush.bf16.msra.mxu0 %v8276
    %9042 = vmatpush.bf16.msra.mxu0 %v8272
    %9043 = vmatpush.bf16.msra.mxu0 %v8268
    %9044 = vmatpush.bf16.msra.mxu0 %v8264
    %9045 = vmatpush.bf16.msra.mxu0 %v8260
    %9046 = vmatpush.bf16.msra.mxu0 %v8256
    %9047 = vmatmul.bf16.gmra.mxu0 %v7149
    %v9048 = vpop.f32.mrf.mxu0
    %v9049 = vadd.f32 %v9036, %v9048
    %v9050 = vpop.f32.mrf.mxu0
    %9051 = vdwg.mxu0
    %9052 = vmatpush.bf16.msra.mxu0 %v8316
    %9053 = vmatpush.bf16.msra.mxu0 %v8312
    %9054 = vmatpush.bf16.msra.mxu0 %v8308
    %9055 = vmatpush.bf16.msra.mxu0 %v8304
    %9056 = vmatpush.bf16.msra.mxu0 %v8300
    %9057 = vmatpush.bf16.msra.mxu0 %v8296
    %9058 = vmatpush.bf16.msra.mxu0 %v8292
    %9059 = vmatpush.bf16.msra.mxu0 %v8288
    %9060 = vmatmul.bf16.gmra.mxu0 %v7150
    %v9061 = vpop.f32.mrf.mxu0
    %v9062 = vadd.f32 %v9049, %v9061
    %v9063 = vpop.f32.mrf.mxu0
    %9064 = vdwg.mxu0
    %9065 = vmatpush.bf16.msra.mxu0 %v8348
    %9066 = vmatpush.bf16.msra.mxu0 %v8344
    %9067 = vmatpush.bf16.msra.mxu0 %v8340
    %9068 = vmatpush.bf16.msra.mxu0 %v8336
    %9069 = vmatpush.bf16.msra.mxu0 %v8332
    %9070 = vmatpush.bf16.msra.mxu0 %v8328
    %9071 = vmatpush.bf16.msra.mxu0 %v8324
    %9072 = vmatpush.bf16.msra.mxu0 %v8320
    %9073 = vmatmul.bf16.gmra.mxu0 %v7151
    %v9074 = vpop.f32.mrf.mxu0
    %v9075 = vadd.f32 %v9062, %v9074
    %v9076 = vpop.f32.mrf.mxu0
    %9077 = vdwg.mxu0
    %9078 = vmatpush.bf16.msra.mxu0 %v8380
    %9079 = vmatpush.bf16.msra.mxu0 %v8376
    %9080 = vmatpush.bf16.msra.mxu0 %v8372
    %9081 = vmatpush.bf16.msra.mxu0 %v8368
    %9082 = vmatpush.bf16.msra.mxu0 %v8364
    %9083 = vmatpush.bf16.msra.mxu0 %v8360
    %9084 = vmatpush.bf16.msra.mxu0 %v8356
    %9085 = vmatpush.bf16.msra.mxu0 %v8352
    %9086 = vmatmul.bf16.gmra.mxu0 %v7152
    %v9087 = vpop.f32.mrf.mxu0
    %v9088 = vadd.f32 %v9075, %v9087
    %v9089 = vpop.f32.mrf.mxu0
    %9090 = vdwg.mxu0
    %9091 = vmatpush.bf16.msra.mxu0 %v8412
    %9092 = vmatpush.bf16.msra.mxu0 %v8408
    %9093 = vmatpush.bf16.msra.mxu0 %v8404
    %9094 = vmatpush.bf16.msra.mxu0 %v8400
    %9095 = vmatpush.bf16.msra.mxu0 %v8396
    %9096 = vmatpush.bf16.msra.mxu0 %v8392
    %9097 = vmatpush.bf16.msra.mxu0 %v8388
    %9098 = vmatpush.bf16.msra.mxu0 %v8384
    %9099 = vmatmul.bf16.gmra.mxu0 %v7153
    %v9100 = vpop.f32.mrf.mxu0
    %v9101 = vadd.f32 %v9088, %v9100
    %v9102 = vpop.f32.mrf.mxu0
    %9103 = vdwg.mxu0
    %9104 = vmatpush.bf16.msra.mxu0 %v8444
    %9105 = vmatpush.bf16.msra.mxu0 %v8440
    %9106 = vmatpush.bf16.msra.mxu0 %v8436
    %9107 = vmatpush.bf16.msra.mxu0 %v8432
    %9108 = vmatpush.bf16.msra.mxu0 %v8428
    %9109 = vmatpush.bf16.msra.mxu0 %v8424
    %9110 = vmatpush.bf16.msra.mxu0 %v8420
    %9111 = vmatpush.bf16.msra.mxu0 %v8416
    %9112 = vmatmul.bf16.gmra.mxu0 %v7154
    %v9113 = vpop.f32.mrf.mxu0
    %v9114 = vadd.f32 %v9101, %v9113
    %v9115 = vpop.f32.mrf.mxu0
    %9116 = vdwg.mxu0
    %v9117 = vmax.f32 %v8802, 0.0
    %v9118 = vmax.f32 %v8906, 0.0
    %v9119 = vmax.f32 %v9010, 0.0
    %v9120 = vmax.f32 %v9114, 0.0
    %v9121 = vpack.c.bf16 %v9117, %v9117
    %v9122 = vpack.c.bf16 %v9118, %v9118
    %v9123 = vpack.c.bf16 %v9119, %v9119
    %v9124 = vpack.c.bf16 %v9120, %v9120
    %v9125 = vld [vmem:[#allocation23] sm:$0xff]
    %v9126 = vld [vmem:[#allocation23 + $0x8] sm:$0xff]
    %v9127 = vld [vmem:[#allocation23 + $0x10] sm:$0xff]
    %v9128 = vld [vmem:[#allocation23 + $0x18] sm:$0xff]
    %v9129 = vld [vmem:[#allocation23 + $0x20] sm:$0xff]
    %v9130 = vld [vmem:[#allocation23 + $0x28] sm:$0xff]
    %v9131 = vld [vmem:[#allocation23 + $0x30] sm:$0xff]
    %v9132 = vld [vmem:[#allocation23 + $0x38] sm:$0xff]
    %v9133 = vld [vmem:[#allocation23 + $0x40] sm:$0xff]
    %v9134 = vld [vmem:[#allocation23 + $0x48] sm:$0xff]
    %v9135 = vld [vmem:[#allocation23 + $0x50] sm:$0xff]
    %v9136 = vld [vmem:[#allocation23 + $0x58] sm:$0xff]
    %v9137 = vld [vmem:[#allocation23 + $0x60] sm:$0xff]
    %v9138 = vld [vmem:[#allocation23 + $0x68] sm:$0xff]
    %v9139 = vld [vmem:[#allocation23 + $0x70] sm:$0xff]
    %v9140 = vld [vmem:[#allocation23 + $0x78] sm:$0xff]
    %v9141 = vld [vmem:[#allocation23 + $0x80] sm:$0xff]
    %v9142 = vld [vmem:[#allocation23 + $0x88] sm:$0xff]
    %v9143 = vld [vmem:[#allocation23 + $0x90] sm:$0xff]
    %v9144 = vld [vmem:[#allocation23 + $0x98] sm:$0xff]
    %v9145 = vld [vmem:[#allocation23 + $0xa0] sm:$0xff]
    %v9146 = vld [vmem:[#allocation23 + $0xa8] sm:$0xff]
    %v9147 = vld [vmem:[#allocation23 + $0xb0] sm:$0xff]
    %v9148 = vld [vmem:[#allocation23 + $0xb8] sm:$0xff]
    %v9149 = vld [vmem:[#allocation23 + $0xc0] sm:$0xff]
    %v9150 = vld [vmem:[#allocation23 + $0xc8] sm:$0xff]
    %v9151 = vld [vmem:[#allocation23 + $0xd0] sm:$0xff]
    %v9152 = vld [vmem:[#allocation23 + $0xd8] sm:$0xff]
    %v9153 = vld [vmem:[#allocation23 + $0xe0] sm:$0xff]
    %v9154 = vld [vmem:[#allocation23 + $0xe8] sm:$0xff]
    %v9155 = vld [vmem:[#allocation23 + $0xf0] sm:$0xff]
    %v9156 = vld [vmem:[#allocation23 + $0xf8] sm:$0xff]
    %v9157 = vld [vmem:[#allocation23 + $0x100] sm:$0xff]
    %v9158 = vld [vmem:[#allocation23 + $0x108] sm:$0xff]
    %v9159 = vld [vmem:[#allocation23 + $0x110] sm:$0xff]
    %v9160 = vld [vmem:[#allocation23 + $0x118] sm:$0xff]
    %v9161 = vld [vmem:[#allocation23 + $0x120] sm:$0xff]
    %v9162 = vld [vmem:[#allocation23 + $0x128] sm:$0xff]
    %v9163 = vld [vmem:[#allocation23 + $0x130] sm:$0xff]
    %v9164 = vld [vmem:[#allocation23 + $0x138] sm:$0xff]
    %v9165 = vld [vmem:[#allocation23 + $0x140] sm:$0xff]
    %v9166 = vld [vmem:[#allocation23 + $0x148] sm:$0xff]
    %v9167 = vld [vmem:[#allocation23 + $0x150] sm:$0xff]
    %v9168 = vld [vmem:[#allocation23 + $0x158] sm:$0xff]
    %v9169 = vld [vmem:[#allocation23 + $0x160] sm:$0xff]
    %v9170 = vld [vmem:[#allocation23 + $0x168] sm:$0xff]
    %v9171 = vld [vmem:[#allocation23 + $0x170] sm:$0xff]
    %v9172 = vld [vmem:[#allocation23 + $0x178] sm:$0xff]
    %v9173 = vld [vmem:[#allocation23 + $0x180] sm:$0xff]
    %v9174 = vld [vmem:[#allocation23 + $0x188] sm:$0xff]
    %v9175 = vld [vmem:[#allocation23 + $0x190] sm:$0xff]
    %v9176 = vld [vmem:[#allocation23 + $0x198] sm:$0xff]
    %v9177 = vld [vmem:[#allocation23 + $0x1a0] sm:$0xff]
    %v9178 = vld [vmem:[#allocation23 + $0x1a8] sm:$0xff]
    %v9179 = vld [vmem:[#allocation23 + $0x1b0] sm:$0xff]
    %v9180 = vld [vmem:[#allocation23 + $0x1b8] sm:$0xff]
    %v9181 = vld [vmem:[#allocation23 + $0x1c0] sm:$0xff]
    %v9182 = vld [vmem:[#allocation23 + $0x1c8] sm:$0xff]
    %v9183 = vld [vmem:[#allocation23 + $0x1d0] sm:$0xff]
    %v9184 = vld [vmem:[#allocation23 + $0x1d8] sm:$0xff]
    %v9185 = vld [vmem:[#allocation23 + $0x1e0] sm:$0xff]
    %v9186 = vld [vmem:[#allocation23 + $0x1e8] sm:$0xff]
    %v9187 = vld [vmem:[#allocation23 + $0x1f0] sm:$0xff]
    %v9188 = vld [vmem:[#allocation23 + $0x1f8] sm:$0xff]
    %v9189 = vld [vmem:[#allocation25] sm:$0x3]
    %v9191 = vperm.slane %v9189, 0
    %v9192 = vperm.slane %v9189, 1
    %v9259 = vunpack.c.l.b16 %v9125
    %v9260 = vunpack.c.h.b16 %v9125
    %v9261 = vunpack.c.l.b16 %v9126
    %v9262 = vunpack.c.h.b16 %v9126
    %v9263 = vunpack.c.l.b16 %v9127
    %v9264 = vunpack.c.h.b16 %v9127
    %v9265 = vunpack.c.l.b16 %v9128
    %v9266 = vunpack.c.h.b16 %v9128
    %v9267 = vunpack.c.l.b16 %v9129
    %v9268 = vunpack.c.h.b16 %v9129
    %v9269 = vunpack.c.l.b16 %v9130
    %v9270 = vunpack.c.h.b16 %v9130
    %v9271 = vunpack.c.l.b16 %v9131
    %v9272 = vunpack.c.h.b16 %v9131
    %v9273 = vunpack.c.l.b16 %v9132
    %v9274 = vunpack.c.h.b16 %v9132
    %v9275 = vunpack.c.l.b16 %v9133
    %v9276 = vunpack.c.h.b16 %v9133
    %v9277 = vunpack.c.l.b16 %v9134
    %v9278 = vunpack.c.h.b16 %v9134
    %v9279 = vunpack.c.l.b16 %v9135
    %v9280 = vunpack.c.h.b16 %v9135
    %v9281 = vunpack.c.l.b16 %v9136
    %v9282 = vunpack.c.h.b16 %v9136
    %v9283 = vunpack.c.l.b16 %v9137
    %v9284 = vunpack.c.h.b16 %v9137
    %v9285 = vunpack.c.l.b16 %v9138
    %v9286 = vunpack.c.h.b16 %v9138
    %v9287 = vunpack.c.l.b16 %v9139
    %v9288 = vunpack.c.h.b16 %v9139
    %v9289 = vunpack.c.l.b16 %v9140
    %v9290 = vunpack.c.h.b16 %v9140
    %v9291 = vunpack.c.l.b16 %v9141
    %v9292 = vunpack.c.h.b16 %v9141
    %v9293 = vunpack.c.l.b16 %v9142
    %v9294 = vunpack.c.h.b16 %v9142
    %v9295 = vunpack.c.l.b16 %v9143
    %v9296 = vunpack.c.h.b16 %v9143
    %v9297 = vunpack.c.l.b16 %v9144
    %v9298 = vunpack.c.h.b16 %v9144
    %v9299 = vunpack.c.l.b16 %v9145
    %v9300 = vunpack.c.h.b16 %v9145
    %v9301 = vunpack.c.l.b16 %v9146
    %v9302 = vunpack.c.h.b16 %v9146
    %v9303 = vunpack.c.l.b16 %v9147
    %v9304 = vunpack.c.h.b16 %v9147
    %v9305 = vunpack.c.l.b16 %v9148
    %v9306 = vunpack.c.h.b16 %v9148
    %v9307 = vunpack.c.l.b16 %v9149
    %v9308 = vunpack.c.h.b16 %v9149
    %v9309 = vunpack.c.l.b16 %v9150
    %v9310 = vunpack.c.h.b16 %v9150
    %v9311 = vunpack.c.l.b16 %v9151
    %v9312 = vunpack.c.h.b16 %v9151
    %v9313 = vunpack.c.l.b16 %v9152
    %v9314 = vunpack.c.h.b16 %v9152
    %v9315 = vunpack.c.l.b16 %v9153
    %v9316 = vunpack.c.h.b16 %v9153
    %v9317 = vunpack.c.l.b16 %v9154
    %v9318 = vunpack.c.h.b16 %v9154
    %v9319 = vunpack.c.l.b16 %v9155
    %v9320 = vunpack.c.h.b16 %v9155
    %v9321 = vunpack.c.l.b16 %v9156
    %v9322 = vunpack.c.h.b16 %v9156
    %v9323 = vunpack.c.l.b16 %v9157
    %v9324 = vunpack.c.h.b16 %v9157
    %v9325 = vunpack.c.l.b16 %v9158
    %v9326 = vunpack.c.h.b16 %v9158
    %v9327 = vunpack.c.l.b16 %v9159
    %v9328 = vunpack.c.h.b16 %v9159
    %v9329 = vunpack.c.l.b16 %v9160
    %v9330 = vunpack.c.h.b16 %v9160
    %v9331 = vunpack.c.l.b16 %v9161
    %v9332 = vunpack.c.h.b16 %v9161
    %v9333 = vunpack.c.l.b16 %v9162
    %v9334 = vunpack.c.h.b16 %v9162
    %v9335 = vunpack.c.l.b16 %v9163
    %v9336 = vunpack.c.h.b16 %v9163
    %v9337 = vunpack.c.l.b16 %v9164
    %v9338 = vunpack.c.h.b16 %v9164
    %v9339 = vunpack.c.l.b16 %v9165
    %v9340 = vunpack.c.h.b16 %v9165
    %v9341 = vunpack.c.l.b16 %v9166
    %v9342 = vunpack.c.h.b16 %v9166
    %v9343 = vunpack.c.l.b16 %v9167
    %v9344 = vunpack.c.h.b16 %v9167
    %v9345 = vunpack.c.l.b16 %v9168
    %v9346 = vunpack.c.h.b16 %v9168
    %v9347 = vunpack.c.l.b16 %v9169
    %v9348 = vunpack.c.h.b16 %v9169
    %v9349 = vunpack.c.l.b16 %v9170
    %v9350 = vunpack.c.h.b16 %v9170
    %v9351 = vunpack.c.l.b16 %v9171
    %v9352 = vunpack.c.h.b16 %v9171
    %v9353 = vunpack.c.l.b16 %v9172
    %v9354 = vunpack.c.h.b16 %v9172
    %v9355 = vunpack.c.l.b16 %v9173
    %v9356 = vunpack.c.h.b16 %v9173
    %v9357 = vunpack.c.l.b16 %v9174
    %v9358 = vunpack.c.h.b16 %v9174
    %v9359 = vunpack.c.l.b16 %v9175
    %v9360 = vunpack.c.h.b16 %v9175
    %v9361 = vunpack.c.l.b16 %v9176
    %v9362 = vunpack.c.h.b16 %v9176
    %v9363 = vunpack.c.l.b16 %v9177
    %v9364 = vunpack.c.h.b16 %v9177
    %v9365 = vunpack.c.l.b16 %v9178
    %v9366 = vunpack.c.h.b16 %v9178
    %v9367 = vunpack.c.l.b16 %v9179
    %v9368 = vunpack.c.h.b16 %v9179
    %v9369 = vunpack.c.l.b16 %v9180
    %v9370 = vunpack.c.h.b16 %v9180
    %v9371 = vunpack.c.l.b16 %v9181
    %v9372 = vunpack.c.h.b16 %v9181
    %v9373 = vunpack.c.l.b16 %v9182
    %v9374 = vunpack.c.h.b16 %v9182
    %v9375 = vunpack.c.l.b16 %v9183
    %v9376 = vunpack.c.h.b16 %v9183
    %v9377 = vunpack.c.l.b16 %v9184
    %v9378 = vunpack.c.h.b16 %v9184
    %v9379 = vunpack.c.l.b16 %v9185
    %v9380 = vunpack.c.h.b16 %v9185
    %v9381 = vunpack.c.l.b16 %v9186
    %v9382 = vunpack.c.h.b16 %v9186
    %v9383 = vunpack.c.l.b16 %v9187
    %v9384 = vunpack.c.h.b16 %v9187
    %v9385 = vunpack.c.l.b16 %v9188
    %v9386 = vunpack.c.h.b16 %v9188
    %v9387 = vpack.c.b16 %v9261, %v9259
    %v9388 = vpack.c.b16 %v9262, %v9260
    %v9389 = vpack.c.b16 %v9265, %v9263
    %v9390 = vpack.c.b16 %v9266, %v9264
    %v9391 = vpack.c.b16 %v9269, %v9267
    %v9392 = vpack.c.b16 %v9270, %v9268
    %v9393 = vpack.c.b16 %v9273, %v9271
    %v9394 = vpack.c.b16 %v9274, %v9272
    %v9395 = vpack.c.b16 %v9277, %v9275
    %v9396 = vpack.c.b16 %v9278, %v9276
    %v9397 = vpack.c.b16 %v9281, %v9279
    %v9398 = vpack.c.b16 %v9282, %v9280
    %v9399 = vpack.c.b16 %v9285, %v9283
    %v9400 = vpack.c.b16 %v9286, %v9284
    %v9401 = vpack.c.b16 %v9289, %v9287
    %v9402 = vpack.c.b16 %v9290, %v9288
    %v9403 = vpack.c.b16 %v9293, %v9291
    %v9404 = vpack.c.b16 %v9294, %v9292
    %v9405 = vpack.c.b16 %v9297, %v9295
    %v9406 = vpack.c.b16 %v9298, %v9296
    %v9407 = vpack.c.b16 %v9301, %v9299
    %v9408 = vpack.c.b16 %v9302, %v9300
    %v9409 = vpack.c.b16 %v9305, %v9303
    %v9410 = vpack.c.b16 %v9306, %v9304
    %v9411 = vpack.c.b16 %v9309, %v9307
    %v9412 = vpack.c.b16 %v9310, %v9308
    %v9413 = vpack.c.b16 %v9313, %v9311
    %v9414 = vpack.c.b16 %v9314, %v9312
    %v9415 = vpack.c.b16 %v9317, %v9315
    %v9416 = vpack.c.b16 %v9318, %v9316
    %v9417 = vpack.c.b16 %v9321, %v9319
    %v9418 = vpack.c.b16 %v9322, %v9320
    %v9419 = vpack.c.b16 %v9325, %v9323
    %v9420 = vpack.c.b16 %v9326, %v9324
    %v9421 = vpack.c.b16 %v9329, %v9327
    %v9422 = vpack.c.b16 %v9330, %v9328
    %v9423 = vpack.c.b16 %v9333, %v9331
    %v9424 = vpack.c.b16 %v9334, %v9332
    %v9425 = vpack.c.b16 %v9337, %v9335
    %v9426 = vpack.c.b16 %v9338, %v9336
    %v9427 = vpack.c.b16 %v9341, %v9339
    %v9428 = vpack.c.b16 %v9342, %v9340
    %v9429 = vpack.c.b16 %v9345, %v9343
    %v9430 = vpack.c.b16 %v9346, %v9344
    %v9431 = vpack.c.b16 %v9349, %v9347
    %v9432 = vpack.c.b16 %v9350, %v9348
    %v9433 = vpack.c.b16 %v9353, %v9351
    %v9434 = vpack.c.b16 %v9354, %v9352
    %v9435 = vpack.c.b16 %v9357, %v9355
    %v9436 = vpack.c.b16 %v9358, %v9356
    %v9437 = vpack.c.b16 %v9361, %v9359
    %v9438 = vpack.c.b16 %v9362, %v9360
    %v9439 = vpack.c.b16 %v9365, %v9363
    %v9440 = vpack.c.b16 %v9366, %v9364
    %v9441 = vpack.c.b16 %v9369, %v9367
    %v9442 = vpack.c.b16 %v9370, %v9368
    %v9443 = vpack.c.b16 %v9373, %v9371
    %v9444 = vpack.c.b16 %v9374, %v9372
    %v9445 = vpack.c.b16 %v9377, %v9375
    %v9446 = vpack.c.b16 %v9378, %v9376
    %v9447 = vpack.c.b16 %v9381, %v9379
    %v9448 = vpack.c.b16 %v9382, %v9380
    %v9449 = vpack.c.b16 %v9385, %v9383
    %v9450 = vpack.c.b16 %v9386, %v9384
    %9515 = vmatpush.bf16.msra.mxu0 %v9401
    %9516 = vmatpush.bf16.msra.mxu0 %v9399
    %9517 = vmatpush.bf16.msra.mxu0 %v9397
    %9518 = vmatpush.bf16.msra.mxu0 %v9395
    %9519 = vmatpush.bf16.msra.mxu0 %v9393
    %9520 = vmatpush.bf16.msra.mxu0 %v9391
    %9521 = vmatpush.bf16.msra.mxu0 %v9389
    %9522 = vmatpush.bf16.msra.mxu0 %v9387
    %9523 = vmatmul.bf16.gmra.mxu0 %v9121
    %v9524 = vpop.f32.mrf.mxu0
    %v9525 = vadd.f32 %v9191, %v9524
    %v9526 = vpop.f32.mrf.mxu0
    %9527 = vdwg.mxu0
    %9528 = vmatpush.bf16.msra.mxu0 %v9417
    %9529 = vmatpush.bf16.msra.mxu0 %v9415
    %9530 = vmatpush.bf16.msra.mxu0 %v9413
    %9531 = vmatpush.bf16.msra.mxu0 %v9411
    %9532 = vmatpush.bf16.msra.mxu0 %v9409
    %9533 = vmatpush.bf16.msra.mxu0 %v9407
    %9534 = vmatpush.bf16.msra.mxu0 %v9405
    %9535 = vmatpush.bf16.msra.mxu0 %v9403
    %9536 = vmatmul.bf16.gmra.mxu0 %v9122
    %v9537 = vpop.f32.mrf.mxu0
    %v9538 = vadd.f32 %v9525, %v9537
    %v9539 = vpop.f32.mrf.mxu0
    %9540 = vdwg.mxu0
    %9541 = vmatpush.bf16.msra.mxu0 %v9433
    %9542 = vmatpush.bf16.msra.mxu0 %v9431
    %9543 = vmatpush.bf16.msra.mxu0 %v9429
    %9544 = vmatpush.bf16.msra.mxu0 %v9427
    %9545 = vmatpush.bf16.msra.mxu0 %v9425
    %9546 = vmatpush.bf16.msra.mxu0 %v9423
    %9547 = vmatpush.bf16.msra.mxu0 %v9421
    %9548 = vmatpush.bf16.msra.mxu0 %v9419
    %9549 = vmatmul.bf16.gmra.mxu0 %v9123
    %v9550 = vpop.f32.mrf.mxu0
    %v9551 = vadd.f32 %v9538, %v9550
    %v9552 = vpop.f32.mrf.mxu0
    %9553 = vdwg.mxu0
    %9554 = vmatpush.bf16.msra.mxu0 %v9449
    %9555 = vmatpush.bf16.msra.mxu0 %v9447
    %9556 = vmatpush.bf16.msra.mxu0 %v9445
    %9557 = vmatpush.bf16.msra.mxu0 %v9443
    %9558 = vmatpush.bf16.msra.mxu0 %v9441
    %9559 = vmatpush.bf16.msra.mxu0 %v9439
    %9560 = vmatpush.bf16.msra.mxu0 %v9437
    %9561 = vmatpush.bf16.msra.mxu0 %v9435
    %9562 = vmatmul.bf16.gmra.mxu0 %v9124
    %v9563 = vpop.f32.mrf.mxu0
    %v9564 = vadd.f32 %v9551, %v9563
    %v9565 = vpop.f32.mrf.mxu0
    %9566 = vdwg.mxu0
    %9567 = vmatpush.bf16.msra.mxu0 %v9402
    %9568 = vmatpush.bf16.msra.mxu0 %v9400
    %9569 = vmatpush.bf16.msra.mxu0 %v9398
    %9570 = vmatpush.bf16.msra.mxu0 %v9396
    %9571 = vmatpush.bf16.msra.mxu0 %v9394
    %9572 = vmatpush.bf16.msra.mxu0 %v9392
    %9573 = vmatpush.bf16.msra.mxu0 %v9390
    %9574 = vmatpush.bf16.msra.mxu0 %v9388
    %9575 = vmatmul.bf16.gmra.mxu0 %v9121
    %v9576 = vpop.f32.mrf.mxu0
    %v9577 = vadd.f32 %v9192, %v9576
    %v9578 = vpop.f32.mrf.mxu0
    %9579 = vdwg.mxu0
    %9580 = vmatpush.bf16.msra.mxu0 %v9418
    %9581 = vmatpush.bf16.msra.mxu0 %v9416
    %9582 = vmatpush.bf16.msra.mxu0 %v9414
    %9583 = vmatpush.bf16.msra.mxu0 %v9412
    %9584 = vmatpush.bf16.msra.mxu0 %v9410
    %9585 = vmatpush.bf16.msra.mxu0 %v9408
    %9586 = vmatpush.bf16.msra.mxu0 %v9406
    %9587 = vmatpush.bf16.msra.mxu0 %v9404
    %9588 = vmatmul.bf16.gmra.mxu0 %v9122
    %v9589 = vpop.f32.mrf.mxu0
    %v9590 = vadd.f32 %v9577, %v9589
    %v9591 = vpop.f32.mrf.mxu0
    %9592 = vdwg.mxu0
    %9593 = vmatpush.bf16.msra.mxu0 %v9434
    %9594 = vmatpush.bf16.msra.mxu0 %v9432
    %9595 = vmatpush.bf16.msra.mxu0 %v9430
    %9596 = vmatpush.bf16.msra.mxu0 %v9428
    %9597 = vmatpush.bf16.msra.mxu0 %v9426
    %9598 = vmatpush.bf16.msra.mxu0 %v9424
    %9599 = vmatpush.bf16.msra.mxu0 %v9422
    %9600 = vmatpush.bf16.msra.mxu0 %v9420
    %9601 = vmatmul.bf16.gmra.mxu0 %v9123
    %v9602 = vpop.f32.mrf.mxu0
    %v9603 = vadd.f32 %v9590, %v9602
    %v9604 = vpop.f32.mrf.mxu0
    %9605 = vdwg.mxu0
    %9606 = vmatpush.bf16.msra.mxu0 %v9450
    %9607 = vmatpush.bf16.msra.mxu0 %v9448
    %9608 = vmatpush.bf16.msra.mxu0 %v9446
    %9609 = vmatpush.bf16.msra.mxu0 %v9444
    %9610 = vmatpush.bf16.msra.mxu0 %v9442
    %9611 = vmatpush.bf16.msra.mxu0 %v9440
    %9612 = vmatpush.bf16.msra.mxu0 %v9438
    %9613 = vmatpush.bf16.msra.mxu0 %v9436
    %9614 = vmatmul.bf16.gmra.mxu0 %v9124
    %v9615 = vpop.f32.mrf.mxu0
    %v9616 = vadd.f32 %v9603, %v9615
    %v9617 = vpop.f32.mrf.mxu0
    %9618 = vdwg.mxu0
    %v9619 = vtanh.pop %v9564
    %v9620 = vtanh.pop %v9616
    %v9621 = vpack.c.bf16 %v9619, %v9619
    %v9622 = vpack.c.bf16 %v9620, %v9620
    %v9623 = vld [vmem:[#allocation26] sm:$0xf]
    %v9624 = vld [vmem:[#allocation26 + $0x4] sm:$0xf]
    %v9625 = vld [vmem:[#allocation26 + $0x8] sm:$0xf]
    %v9626 = vld [vmem:[#allocation26 + $0xc] sm:$0xf]
    %v9627 = vld [vmem:[#allocation26 + $0x10] sm:$0xf]
    %v9628 = vld [vmem:[#allocation26 + $0x14] sm:$0xf]
    %v9629 = vld [vmem:[#allocation26 + $0x18] sm:$0xf]
    %v9630 = vld [vmem:[#allocation26 + $0x1c] sm:$0xf]
    %v9631 = vld [vmem:[#allocation26 + $0x20] sm:$0xf]
    %v9632 = vld [vmem:[#allocation26 + $0x24] sm:$0xf]
    %v9633 = vld [vmem:[#allocation26 + $0x28] sm:$0xf]
    %v9634 = vld [vmem:[#allocation26 + $0x2c] sm:$0xf]
    %v9635 = vld [vmem:[#allocation26 + $0x30] sm:$0xf]
    %v9636 = vld [vmem:[#allocation26 + $0x34] sm:$0xf]
    %v9637 = vld [vmem:[#allocation26 + $0x38] sm:$0xf]
    %v9638 = vld [vmem:[#allocation26 + $0x3c] sm:$0xf]
    %v9639 = vld [vmem:[#allocation26 + $0x40] sm:$0xf]
    %v9640 = vld [vmem:[#allocation26 + $0x44] sm:$0xf]
    %v9641 = vld [vmem:[#allocation26 + $0x48] sm:$0xf]
    %v9642 = vld [vmem:[#allocation26 + $0x4c] sm:$0xf]
    %v9643 = vld [vmem:[#allocation26 + $0x50] sm:$0xf]
    %v9644 = vld [vmem:[#allocation26 + $0x54] sm:$0xf]
    %v9645 = vld [vmem:[#allocation26 + $0x58] sm:$0xf]
    %v9646 = vld [vmem:[#allocation26 + $0x5c] sm:$0xf]
    %v9647 = vld [vmem:[#allocation26 + $0x60] sm:$0xf]
    %v9648 = vld [vmem:[#allocation26 + $0x64] sm:$0xf]
    %v9649 = vld [vmem:[#allocation26 + $0x68] sm:$0xf]
    %v9650 = vld [vmem:[#allocation26 + $0x6c] sm:$0xf]
    %v9651 = vld [vmem:[#allocation26 + $0x70] sm:$0xf]
    %v9652 = vld [vmem:[#allocation26 + $0x74] sm:$0xf]
    %v9653 = vld [vmem:[#allocation26 + $0x78] sm:$0xf]
    %v9654 = vld [vmem:[#allocation26 + $0x7c] sm:$0xf]
    %v9655 = vld [vmem:[#allocation28] sm:$0x1]
    %v9657 = vperm.slane %v9655, 0
    %v9691 = vunpack.c.l.b16 %v9623
    %v9692 = vunpack.c.l.b16 %v9624
    %v9693 = vunpack.c.l.b16 %v9625
    %v9694 = vunpack.c.l.b16 %v9626
    %v9695 = vunpack.c.l.b16 %v9627
    %v9696 = vunpack.c.l.b16 %v9628
    %v9697 = vunpack.c.l.b16 %v9629
    %v9698 = vunpack.c.l.b16 %v9630
    %v9699 = vunpack.c.l.b16 %v9631
    %v9700 = vunpack.c.l.b16 %v9632
    %v9701 = vunpack.c.l.b16 %v9633
    %v9702 = vunpack.c.l.b16 %v9634
    %v9703 = vunpack.c.l.b16 %v9635
    %v9704 = vunpack.c.l.b16 %v9636
    %v9705 = vunpack.c.l.b16 %v9637
    %v9706 = vunpack.c.l.b16 %v9638
    %v9707 = vunpack.c.l.b16 %v9639
    %v9708 = vunpack.c.l.b16 %v9640
    %v9709 = vunpack.c.l.b16 %v9641
    %v9710 = vunpack.c.l.b16 %v9642
    %v9711 = vunpack.c.l.b16 %v9643
    %v9712 = vunpack.c.l.b16 %v9644
    %v9713 = vunpack.c.l.b16 %v9645
    %v9714 = vunpack.c.l.b16 %v9646
    %v9715 = vunpack.c.l.b16 %v9647
    %v9716 = vunpack.c.l.b16 %v9648
    %v9717 = vunpack.c.l.b16 %v9649
    %v9718 = vunpack.c.l.b16 %v9650
    %v9719 = vunpack.c.l.b16 %v9651
    %v9720 = vunpack.c.l.b16 %v9652
    %v9721 = vunpack.c.l.b16 %v9653
    %v9722 = vunpack.c.l.b16 %v9654
    %v9723 = vpack.c.b16 %v9692, %v9691
    %v9724 = vpack.c.b16 %v9694, %v9693
    %v9725 = vpack.c.b16 %v9696, %v9695
    %v9726 = vpack.c.b16 %v9698, %v9697
    %v9727 = vpack.c.b16 %v9700, %v9699
    %v9728 = vpack.c.b16 %v9702, %v9701
    %v9729 = vpack.c.b16 %v9704, %v9703
    %v9730 = vpack.c.b16 %v9706, %v9705
    %v9731 = vpack.c.b16 %v9708, %v9707
    %v9732 = vpack.c.b16 %v9710, %v9709
    %v9733 = vpack.c.b16 %v9712, %v9711
    %v9734 = vpack.c.b16 %v9714, %v9713
    %v9735 = vpack.c.b16 %v9716, %v9715
    %v9736 = vpack.c.b16 %v9718, %v9717
    %v9737 = vpack.c.b16 %v9720, %v9719
    %v9738 = vpack.c.b16 %v9722, %v9721
    %9755 = vmatpush.bf16.msra.mxu0 %v9730
    %9756 = vmatpush.bf16.msra.mxu0 %v9729
    %9757 = vmatpush.bf16.msra.mxu0 %v9728
    %9758 = vmatpush.bf16.msra.mxu0 %v9727
    %9759 = vmatpush.bf16.msra.mxu0 %v9726
    %9760 = vmatpush.bf16.msra.mxu0 %v9725
    %9761 = vmatpush.bf16.msra.mxu0 %v9724
    %9762 = vmatpush.bf16.msra.mxu0 %v9723
    %9763 = vmatmul.bf16.gmra.mxu0 %v9621
    %v9764 = vpop.f32.mrf.mxu0
    %v9765 = vadd.f32 %v9657, %v9764
    %v9766 = vpop.f32.mrf.mxu0
    %9767 = vdwg.mxu0
    %9768 = vmatpush.bf16.msra.mxu0 %v9738
    %9769 = vmatpush.bf16.msra.mxu0 %v9737
    %9770 = vmatpush.bf16.msra.mxu0 %v9736
    %9771 = vmatpush.bf16.msra.mxu0 %v9735
    %9772 = vmatpush.bf16.msra.mxu0 %v9734
    %9773 = vmatpush.bf16.msra.mxu0 %v9733
    %9774 = vmatpush.bf16.msra.mxu0 %v9732
    %9775 = vmatpush.bf16.msra.mxu0 %v9731
    %9776 = vmatmul.bf16.gmra.mxu0 %v9622
    %v9777 = vpop.f32.mrf.mxu0
    %v9778 = vadd.f32 %v9765, %v9777
    %v9779 = vpop.f32.mrf.mxu0
    %9780 = vdwg.mxu0
    %v9781 = vtanh.pop %v9778
    %v9782 = vpack.c.bf16 %v9781, %v9781
    %v9783 = vld [vmem:[#allocation29] sm:$0xf]
    %v9784 = vld [vmem:[#allocation29 + $0x4] sm:$0xf]
    %v9785 = vld [vmem:[#allocation29 + $0x8] sm:$0xf]
    %v9786 = vld [vmem:[#allocation29 + $0xc] sm:$0xf]
    %v9787 = vld [vmem:[#allocation29 + $0x10] sm:$0xf]
    %v9788 = vld [vmem:[#allocation29 + $0x14] sm:$0xf]
    %v9789 = vld [vmem:[#allocation29 + $0x18] sm:$0xf]
    %v9790 = vld [vmem:[#allocation29 + $0x1c] sm:$0xf]
    %v9791 = vld [vmem:[#allocation29 + $0x20] sm:$0xf]
    %v9792 = vld [vmem:[#allocation29 + $0x24] sm:$0xf]
    %v9793 = vld [vmem:[#allocation29 + $0x28] sm:$0xf]
    %v9794 = vld [vmem:[#allocation29 + $0x2c] sm:$0xf]
    %v9795 = vld [vmem:[#allocation29 + $0x30] sm:$0xf]
    %v9796 = vld [vmem:[#allocation29 + $0x34] sm:$0xf]
    %v9797 = vld [vmem:[#allocation29 + $0x38] sm:$0xf]
    %v9798 = vld [vmem:[#allocation29 + $0x3c] sm:$0xf]
    %v9799 = vld [vmem:[#allocation31] sm:$0x1]
    %v9801 = vperm.slane %v9799, 0
    %v9819 = vunpack.c.l.b16 %v9783
    %v9820 = vunpack.c.l.b16 %v9784
    %v9821 = vunpack.c.l.b16 %v9785
    %v9822 = vunpack.c.l.b16 %v9786
    %v9823 = vunpack.c.l.b16 %v9787
    %v9824 = vunpack.c.l.b16 %v9788
    %v9825 = vunpack.c.l.b16 %v9789
    %v9826 = vunpack.c.l.b16 %v9790
    %v9827 = vunpack.c.l.b16 %v9791
    %v9828 = vunpack.c.l.b16 %v9792
    %v9829 = vunpack.c.l.b16 %v9793
    %v9830 = vunpack.c.l.b16 %v9794
    %v9831 = vunpack.c.l.b16 %v9795
    %v9832 = vunpack.c.l.b16 %v9796
    %v9833 = vunpack.c.l.b16 %v9797
    %v9834 = vunpack.c.l.b16 %v9798
    %v9835 = vpack.c.b16 %v9820, %v9819
    %v9836 = vpack.c.b16 %v9822, %v9821
    %v9837 = vpack.c.b16 %v9824, %v9823
    %v9838 = vpack.c.b16 %v9826, %v9825
    %v9839 = vpack.c.b16 %v9828, %v9827
    %v9840 = vpack.c.b16 %v9830, %v9829
    %v9841 = vpack.c.b16 %v9832, %v9831
    %v9842 = vpack.c.b16 %v9834, %v9833
    %9851 = vmatpush.bf16.msra.mxu0 %v9842
    %9852 = vmatpush.bf16.msra.mxu0 %v9841
    %9853 = vmatpush.bf16.msra.mxu0 %v9840
    %9854 = vmatpush.bf16.msra.mxu0 %v9839
    %9855 = vmatpush.bf16.msra.mxu0 %v9838
    %9856 = vmatpush.bf16.msra.mxu0 %v9837
    %9857 = vmatpush.bf16.msra.mxu0 %v9836
    %9858 = vmatpush.bf16.msra.mxu0 %v9835
    %9859 = vmatmul.bf16.gmra.mxu0 %v9782
    %v9860 = vpop.f32.mrf.mxu0
    %v9861 = vadd.f32 %v9801, %v9860
    %v9862 = vpop.f32.mrf.mxu0
    %9863 = vdwg.mxu0
    %9864 = vst [vmem:[#allocation32] sm:$0xff] %v9861
    // Predicated region
    $region158: #{tpu_custom_call.1} parent=1 // pred_check
      _
    $region159: #{tpu_custom_call.1} parent=1 // pred_check_branch
      %9866 = sbr.rel (0) target = $region161
    $region160: #{tpu_custom_call.1} parent=1 // pred_region
      %9868 = vsyncadd [#allocation4], 0
      %s9870 = sshll.u32 [#allocation32], 4
      %s9871 = int_to_ptr.vmem [resolvable:$true] %s9870
      %s9872 = sshll.u32 %s20, 4
      %s9873 = int_to_ptr.hbm [resolvable:$true] %s9872
      %9875 = dma.vmem_to_hbm [thread:$0]  %s9871, 128, %s9873, [#allocation4]
    $region161: #{tpu_custom_call.1} parent=1 // pred_fallthru
      _
    // Predicated region
    $region162: #{tpu_custom_call.1} parent=1 // pred_check
      _
    $region163: #{tpu_custom_call.1} parent=1 // pred_check_branch
      %9877 = sbr.rel (0) target = $region165
    $region164: #{tpu_custom_call.1} parent=1 // pred_region
      %9879 = dma.done [#allocation4], 128
    $region165: #{tpu_custom_call.1} parent=1 // pred_fallthru
      _
    %9880 = vsyncpa [#allocation3], 1
    %9881 = vsyncpa [#allocation6], 1
    %9882 = vsyncpa [#allocation9], 1
    %9883 = vsyncpa [#allocation12], 1
    %9884 = vsyncpa [#allocation15], 1
    %9885 = vsyncpa [#allocation18], 1
    %9886 = vsyncpa [#allocation21], 1
    %9887 = vsyncpa [#allocation24], 1
    %9888 = vsyncpa [#allocation27], 1
    %9889 = vsyncpa [#allocation30], 1
    %9890 = vsyncpa [#allocation4], 1

</llo_original>
